<compile_context>
chip_gen: v7x
topology: tpu7x:2x2x1
jax: 0.10.0
libtpu: 0.0.40
codegen_flags: <defaults>
</compile_context>

<pallas_src>
import jax
import jax.numpy as jnp
from jax.experimental import pallas as pl
from jax.experimental.pallas import tpu as pltpu

# ---- scaled-down hyper-params (module default is input_size=96 -> f=1152) ----
INPUT_SIZE = 16                  # C  (Conv1d in_channels / groups)
F = 12 * INPUT_SIZE              # 192: conv out channels == GRU input/hidden size
DEPTH = 3                        # GRU layers
CLASSES = 8
KSIZE = 15
STRIDE = 8
NEG_SLOPE = 0.01                 # nn.LeakyReLU default

B = 2
T = 39
TP = (T - KSIZE) // STRIDE + 1   # 4 conv output steps
KC = KSIZE * INPUT_SIZE          # 240 im2col contraction size

# ---- padded kernel layout (lane = 128, f32 sublane = 8) ----
Bp = 8                           # batch rows padded to one f32 sublane tile
FP = 256                         # per-gate / hidden width padded to a multiple of 128
KCP = 256                        # im2col contraction padded to a multiple of 128
CP = 128                         # classifier lane width (classes padded to 128)
NEG_INF = -1e30                  # bias for padded class columns -> exp() == 0 in the softmax


def _leaky_relu(v):
    return jnp.where(v > 0, v, NEG_SLOPE * v)


def gru_stack_kernel(xwin_ref, wconv_ref, bconv_ref,
                     wih_ref, whh_ref, brz_ref, bin_n_ref, bhn_ref,
                     w1_ref, b1_ref, w2_ref, b2_ref,
                     out_ref, seq_ref):
    """Single invocation: conv -> DEPTH GRU layers -> MLP head -> softmax.

    xwin_ref:  (TP*Bp, KCP)      bf16 im2col windows, rows ordered t*Bp + b (batch zero-padded)
    wconv_ref: (KCP, FP)         bf16 densified grouped-conv weight (zero-padded)
    bconv_ref: (1, FP)           f32
    wih_ref:   (DEPTH, FP, 3FP)  bf16 input-gate weights, gates r|z|n each lane-padded to FP
    whh_ref:   (DEPTH, FP, 3FP)  bf16 hidden-gate weights
    brz_ref:   (DEPTH, 1, 2FP)   f32  fused bias (bih+bhh) for r|z
    bin_n_ref: (DEPTH, 1, FP)    f32  bih_n
    bhn_ref:   (DEPTH, 1, FP)    f32  bhh_n (must stay inside the r*(...) term)
    w1_ref:    (DEPTH, FP, FP)   bf16 Linear(DEPTH*F->F) chunk per layer's hn
    b1_ref:    (1, FP) f32, w2_ref: (FP, CP) bf16, b2_ref: (1, CP) f32 (pad cols = -1e30)
    out_ref:   (Bp, CP)          f32 softmax probabilities (wrapper slices to (B, CLASSES))
    seq_ref:   (TP*Bp, FP)       f32 scratch — current layer's input/output sequence
    """
    # ---- grouped Conv1d as one im2col matmul + LeakyReLU ----
    y = jnp.dot(xwin_ref[...], wconv_ref[...], preferred_element_type=jnp.float32)
    seq_ref[...] = _leaky_relu(y + bconv_ref[...])                       # (TP*Bp, FP)

    zacc = jnp.zeros((Bp, FP), jnp.float32)                              # classifier accumulator
    for l in range(DEPTH):                                               # all weights resident
        wih = wih_ref[l]                                                 # (FP, 3FP) bf16
        whh = whh_ref[l]                                                 # (FP, 3FP) bf16
        brz = brz_ref[l]                                                 # (1, 2FP)
        b_in = bin_n_ref[l]                                              # (1, FP)
        b_hn = bhn_ref[l]                                                # (1, FP)

        # hoisted input projection: all time steps at once (M = TP*Bp = 32)
        gi_all = jnp.dot(seq_ref[...].astype(jnp.bfloat16), wih,
                         preferred_element_type=jnp.float32)             # (TP*Bp, 3FP)

        # serial recurrence: one (Bp, FP) @ (FP, 3FP) matmul per step
        h = jnp.zeros((Bp, FP), jnp.float32)
        # TODO(synk): switch to lax.fori_loop(..., unroll=2-4) for the real model where TP is large.
        for t in range(TP):
            gi = gi_all[t * Bp:(t + 1) * Bp]                             # 8-row aligned slice
            gh = jnp.dot(h.astype(jnp.bfloat16), whh,
                         preferred_element_type=jnp.float32)             # (Bp, 3FP)
            rz = jax.nn.sigmoid(gi[:, :2 * FP] + gh[:, :2 * FP] + brz)   # r|z fused, lane-aligned
            r = rz[:, :FP]
            z = rz[:, FP:]
            n = jnp.tanh(gi[:, 2 * FP:] + b_in + r * (gh[:, 2 * FP:] + b_hn))
            h = (1.0 - z) * n + z * h                                    # padded cols stay 0
            seq_ref[pl.ds(t * Bp, Bp), :] = h                            # next layer's input

        # classifier: z1 += hn[layer] @ W1_chunk[layer]
        zacc = zacc + jnp.dot(h.astype(jnp.bfloat16), w1_ref[l],
                              preferred_element_type=jnp.float32)

    # ---- MLP head + exact softmax (runs once; lane-dense 128-wide output) ----
    z1 = _leaky_relu(zacc + b1_ref[...])
    logits = jnp.dot(z1.astype(jnp.bfloat16), w2_ref[...],
                     preferred_element_type=jnp.float32) + b2_ref[...]
    m = jnp.max(logits, axis=-1, keepdims=True)
    e = jnp.exp(logits - m)                                              # padded classes -> 0
    out_ref[...] = (e / jnp.sum(e, axis=-1, keepdims=True)).astype(out_ref.dtype)


def make_params(key):
    """Deterministic synthetic parameters in the module's logical layout.

    Grouped Conv1d weight (F, 1, K) is densified to an im2col weight (K*C, F); GRU weights are
    kept per layer / per gate, already transposed for x @ W. Matmul weights are stored bf16.
    """
    ks = jax.random.split(key, 10)
    s = 0.1

    # grouped Conv1d: PyTorch weight (out=F, in/groups=1, K) -> keep (F, K), then densify
    wconv_g = s * jax.random.normal(ks[0], (F, KSIZE), jnp.float32)
    bconv = s * jax.random.normal(ks[1], (1, F), jnp.float32)
    group_of_o = jnp.arange(F) // (F // INPUT_SIZE)                        # out-channel -> group
    mask = (jnp.arange(INPUT_SIZE)[:, None] == group_of_o[None, :]).astype(jnp.float32)  # (C, F)
    wconv_dense = wconv_g.T[:, None, :] * mask[None, :, :]                 # (K, C, F)
    wconv = wconv_dense.reshape(KC, F).astype(jnp.bfloat16)                # im2col weight

    # GRU per-layer per-gate (r, z, n) weights, already transposed for x @ W
    wih = s * jax.random.normal(ks[2], (DEPTH, 3, F, F), jnp.float32)
    whh = s * jax.random.normal(ks[3], (DEPTH, 3, F, F), jnp.float32)
    bih = s * jax.random.normal(ks[4], (DEPTH, 3, 1, F), jnp.float32)
    bhh = s * jax.random.normal(ks[5], (DEPTH, 3, 1, F), jnp.float32)

    w1 = (s * jax.random.normal(ks[6], (DEPTH, F, F), jnp.float32)).astype(jnp.bfloat16)
    b1 = s * jax.random.normal(ks[7], (1, F), jnp.float32)
    w2 = (s * jax.random.normal(ks[8], (F, CLASSES), jnp.float32)).astype(jnp.bfloat16)
    b2 = s * jax.random.normal(ks[9], (1, CLASSES), jnp.float32)

    return dict(wconv=wconv, bconv=bconv,
                wih=wih.astype(jnp.bfloat16), whh=whh.astype(jnp.bfloat16),
                bih=bih, bhh=bhh, w1=w1, b1=b1, w2=w2, b2=b2)


def _pack_kernel_params(p):
    """Pad/concatenate the logical params into the lane/sublane-aligned kernel layout."""
    def pad_gate_w(a):        # (..., F, F) -> (..., FP, FP), zero rows & cols
        return jnp.pad(a, [(0, 0)] * (a.ndim - 2) + [(0, FP - F), (0, FP - F)])

    def pad_gate_b(a):        # (..., F) -> (..., FP)
        return jnp.pad(a, [(0, 0)] * (a.ndim - 1) + [(0, FP - F)])

    wih_k = jnp.concatenate([pad_gate_w(p["wih"][:, g]) for g in range(3)], axis=-1)  # (D,FP,3FP)
    whh_k = jnp.concatenate([pad_gate_w(p["whh"][:, g]) for g in range(3)], axis=-1)  # (D,FP,3FP)
    brz_k = jnp.concatenate([pad_gate_b(p["bih"][:, 0] + p["bhh"][:, 0]),
                             pad_gate_b(p["bih"][:, 1] + p["bhh"][:, 1])], axis=-1)   # (D,1,2FP)
    bin_k = pad_gate_b(p["bih"][:, 2])                                                # (D,1,FP)
    bhn_k = pad_gate_b(p["bhh"][:, 2])                                                # (D,1,FP)

    wconv_k = jnp.pad(p["wconv"], ((0, KCP - KC), (0, FP - F)))                       # (KCP,FP)
    bconv_k = jnp.pad(p["bconv"], ((0, 0), (0, FP - F)))                              # (1,FP)
    w1_k = jnp.pad(p["w1"], ((0, 0), (0, FP - F), (0, FP - F)))                       # (D,FP,FP)
    b1_k = jnp.pad(p["b1"], ((0, 0), (0, FP - F)))                                    # (1,FP)
    w2_k = jnp.pad(p["w2"], ((0, FP - F), (0, CP - CLASSES)))                         # (FP,CP)
    b2_k = jnp.pad(p["b2"], ((0, 0), (0, CP - CLASSES)), constant_values=NEG_INF)     # (1,CP)

    return (wconv_k, bconv_k, wih_k, whh_k, brz_k, bin_k, bhn_k, w1_k, b1_k, w2_k, b2_k)


@jax.jit
def lstm_forward(x, p):
    # im2col window extraction (layout plumbing only): rows ordered t*Bp + b, batch zero-padded.
    idx = STRIDE * jnp.arange(TP)[:, None] + jnp.arange(KSIZE)[None, :]    # (TP, K)
    win = x[:, idx, :]                                                     # (B, TP, K, C)
    win = win.transpose(1, 0, 2, 3).reshape(TP, B, KC)                     # (TP, B, K*C)
    win = jnp.pad(win, ((0, 0), (0, Bp - B), (0, KCP - KC)))               # (TP, Bp, KCP)
    xwin = win.reshape(TP * Bp, KCP).astype(jnp.bfloat16)

    (wconv_k, bconv_k, wih_k, whh_k, brz_k, bin_k, bhn_k,
     w1_k, b1_k, w2_k, b2_k) = _pack_kernel_params(p)

    grid_spec = pltpu.PrefetchScalarGridSpec(
        num_scalar_prefetch=0,
        grid=(1,),                                            # single invocation, all weights resident
        in_specs=[
            pl.BlockSpec((TP * Bp, KCP), lambda i: (0, 0)),               # xwin
            pl.BlockSpec((KCP, FP), lambda i: (0, 0)),                    # wconv
            pl.BlockSpec((1, FP), lambda i: (0, 0)),                      # bconv
            pl.BlockSpec((DEPTH, FP, 3 * FP), lambda i: (0, 0, 0)),       # wih (all layers)
            pl.BlockSpec((DEPTH, FP, 3 * FP), lambda i: (0, 0, 0)),       # whh (all layers)
            pl.BlockSpec((DEPTH, 1, 2 * FP), lambda i: (0, 0, 0)),        # brz
            pl.BlockSpec((DEPTH, 1, FP), lambda i: (0, 0, 0)),            # bih_n
            pl.BlockSpec((DEPTH, 1, FP), lambda i: (0, 0, 0)),            # bhh_n
            pl.BlockSpec((DEPTH, FP, FP), lambda i: (0, 0, 0)),           # w1 chunks
            pl.BlockSpec((1, FP), lambda i: (0, 0)),                      # b1
            pl.BlockSpec((FP, CP), lambda i: (0, 0)),                     # w2 (lane-padded)
            pl.BlockSpec((1, CP), lambda i: (0, 0)),                      # b2 (pad cols = -1e30)
        ],
        out_specs=pl.BlockSpec((Bp, CP), lambda i: (0, 0)),
        scratch_shapes=[
            pltpu.VMEM((TP * Bp, FP), jnp.float32),                       # layer sequence carry
        ],
    )

    out = pl.pallas_call(
        gru_stack_kernel,
        out_shape=jax.ShapeDtypeStruct((Bp, CP), jnp.float32),
        grid_spec=grid_spec,
        compiler_params=pltpu.CompilerParams(dimension_semantics=("arbitrary",)),
        cost_estimate=pl.CostEstimate(flops=85_000_000,
                                      transcendentals=80_000,
                                      bytes_accessed=3_500_000),
    )(xwin, wconv_k, bconv_k, wih_k, whh_k, brz_k, bin_k, bhn_k,
      w1_k, b1_k, w2_k, b2_k)

    return out[:B, :CLASSES]


def reference_forward(x, p):
    """Pure-JAX f32 reference using the same (bf16-stored) weights upcast to f32."""
    idx = STRIDE * jnp.arange(TP)[:, None] + jnp.arange(KSIZE)[None, :]
    win = x[:, idx, :]                                                     # (B, TP, K, C)
    xwin = win.reshape(B, TP, KC)
    y = xwin @ p["wconv"].astype(jnp.float32) + p["bconv"]
    y = _leaky_relu(y)                                                     # (B, TP, F)

    finals = []
    layer_in = y
    for l in range(DEPTH):
        wr, wz, wn = (p["wih"][l, g].astype(jnp.float32) for g in range(3))
        ur, uz, un = (p["whh"][l, g].astype(jnp.float32) for g in range(3))
        bir, biz, bin_ = (p["bih"][l, g] for g in range(3))
        bhr, bhz, bhn_ = (p["bhh"][l, g] for g in range(3))
        h = jnp.zeros((B, F), jnp.float32)
        outs = []
        for t in range(TP):
            xt = layer_in[:, t]
            r = jax.nn.sigmoid(xt @ wr + bir + h @ ur + bhr)
            z = jax.nn.sigmoid(xt @ wz + biz + h @ uz + bhz)
            n = jnp.tanh(xt @ wn + bin_ + r * (h @ un + bhn_))
            h = (1.0 - z) * n + z * h
            outs.append(h)
        finals.append(h)
        layer_in = jnp.stack(outs, axis=1)

    z1 = p["b1"]
    for l in range(DEPTH):
        z1 = z1 + finals[l] @ p["w1"][l].astype(jnp.float32)
    z1 = _leaky_relu(z1)
    logits = z1 @ p["w2"].astype(jnp.float32) + p["b2"]
    return jax.nn.softmax(logits, axis=-1)


if __name__ == "__main__":
    key = jax.random.PRNGKey(0)
    kx, kp = jax.random.split(key)
    x = jax.random.normal(kx, (B, T, INPUT_SIZE), dtype=jnp.float32)
    params = make_params(kp)

    out = jax.block_until_ready(lstm_forward(x, params))
    ref = reference_forward(x, params)

    assert out.shape == (B, CLASSES), out.shape
    # bf16 matmul activations vs f32 reference => slightly relaxed tolerance
    assert jnp.allclose(out, ref, atol=2e-2, rtol=2e-2), (out, ref)
    print("KERNEL_OK")
</pallas_src>

<mosaic_0001>
module attributes {stable_mosaic.version = 11 : i64} {
  func.func @gru_stack_kernel(%arg0: i32, %arg1: memref<32x256xbf16, #tpu.memory_space<vmem>>, %arg2: memref<256x256xbf16, #tpu.memory_space<vmem>>, %arg3: memref<1x256xf32, #tpu.memory_space<vmem>>, %arg4: memref<3x256x768xbf16, #tpu.memory_space<vmem>>, %arg5: memref<3x256x768xbf16, #tpu.memory_space<vmem>>, %arg6: memref<3x1x512xf32, #tpu.memory_space<vmem>>, %arg7: memref<3x1x256xf32, #tpu.memory_space<vmem>>, %arg8: memref<3x1x256xf32, #tpu.memory_space<vmem>>, %arg9: memref<3x256x256xbf16, #tpu.memory_space<vmem>>, %arg10: memref<1x256xf32, #tpu.memory_space<vmem>>, %arg11: memref<256x128xbf16, #tpu.memory_space<vmem>>, %arg12: memref<1x128xf32, #tpu.memory_space<vmem>>, %arg13: memref<8x128xf32, #tpu.memory_space<vmem>>, %arg14: memref<32x256xf32, #tpu.memory_space<vmem>>) attributes {dimension_semantics = [#tpu.dimension_semantics<arbitrary>], iteration_bounds = array<i64: 1>, scalar_prefetch = 0 : i64, scratch_operands = 1 : i64, tpu.core_type = #tpu.core_type<tc>, window_params = [{pipeline_mode = #tpu.pipeline_mode<synchronous>, transform_indices = @transform_0, window_bounds = array<i64: 32, 256>}, {pipeline_mode = #tpu.pipeline_mode<synchronous>, transform_indices = @transform_1, window_bounds = array<i64: 256, 256>}, {pipeline_mode = #tpu.pipeline_mode<synchronous>, transform_indices = @transform_2, window_bounds = array<i64: 1, 256>}, {pipeline_mode = #tpu.pipeline_mode<synchronous>, transform_indices = @transform_3, window_bounds = array<i64: 3, 256, 768>}, {pipeline_mode = #tpu.pipeline_mode<synchronous>, transform_indices = @transform_4, window_bounds = array<i64: 3, 256, 768>}, {pipeline_mode = #tpu.pipeline_mode<synchronous>, transform_indices = @transform_5, window_bounds = array<i64: 3, 1, 512>}, {pipeline_mode = #tpu.pipeline_mode<synchronous>, transform_indices = @transform_6, window_bounds = array<i64: 3, 1, 256>}, {pipeline_mode = #tpu.pipeline_mode<synchronous>, transform_indices = @transform_7, window_bounds = array<i64: 3, 1, 256>}, {pipeline_mode = #tpu.pipeline_mode<synchronous>, transform_indices = @transform_8, window_bounds = array<i64: 3, 256, 256>}, {pipeline_mode = #tpu.pipeline_mode<synchronous>, transform_indices = @transform_9, window_bounds = array<i64: 1, 256>}, {pipeline_mode = #tpu.pipeline_mode<synchronous>, transform_indices = @transform_10, window_bounds = array<i64: 256, 128>}, {pipeline_mode = #tpu.pipeline_mode<synchronous>, transform_indices = @transform_11, window_bounds = array<i64: 1, 128>}, {pipeline_mode = #tpu.pipeline_mode<synchronous>, transform_indices = @transform_12, window_bounds = array<i64: 8, 128>}]} {
    %c0 = arith.constant 0 : index
    %c0_0 = arith.constant 0 : index
    %0 = vector.load %arg1[%c0, %c0_0] : memref<32x256xbf16, #tpu.memory_space<vmem>>, vector<32x256xbf16>
    %c0_1 = arith.constant 0 : index
    %c0_2 = arith.constant 0 : index
    %1 = vector.load %arg2[%c0_1, %c0_2] : memref<256x256xbf16, #tpu.memory_space<vmem>>, vector<256x256xbf16>
    %cst = arith.constant dense<0.000000e+00> : vector<32x256xf32>
    %2 = tpu.matmul %0, %1, %cst {dimension_numbers = #tpu.dot_dimension_numbers<[1], [0], [0], [1], [0, 0, 1, 1], [], []>} : vector<32x256xbf16>, vector<256x256xbf16>, vector<32x256xf32> -> vector<32x256xf32>
    %c0_3 = arith.constant 0 : index
    %c0_4 = arith.constant 0 : index
    %3 = vector.load %arg3[%c0_3, %c0_4] : memref<1x256xf32, #tpu.memory_space<vmem>>, vector<1x256xf32>
    %4 = vector.broadcast %3 : vector<1x256xf32> to vector<32x256xf32>
    %5 = arith.addf %2, %4 : vector<32x256xf32>
    %cst_5 = arith.constant 0.000000e+00 : f32
    %6 = vector.broadcast %cst_5 : f32 to vector<32x256xf32>
    %7 = arith.cmpf ogt, %5, %6 : vector<32x256xf32>
    %cst_6 = arith.constant 0.00999999977 : f32
    %8 = vector.broadcast %cst_6 : f32 to vector<32x256xf32>
    %9 = arith.mulf %8, %5 : vector<32x256xf32>
    %10 = arith.select %7, %5, %9 : vector<32x256xi1>, vector<32x256xf32>
    %c0_7 = arith.constant 0 : index
    %c0_8 = arith.constant 0 : index
    %11 = vector.load %arg14[%c0_7, %c0_8] : memref<32x256xf32, #tpu.memory_space<vmem>>, vector<32x256xf32>
    tpu.vector_store %arg14[%c0_7, %c0_8], %10 {strides = array<i32>} : memref<32x256xf32, #tpu.memory_space<vmem>>, vector<32x256xf32>,
    %cst_9 = arith.constant 0.000000e+00 : f32
    %12 = vector.broadcast %cst_9 : f32 to vector<8x256xf32>
    %c0_10 = arith.constant 0 : index
    %c0_11 = arith.constant 0 : index
    %c0_12 = arith.constant 0 : index
    %13 = vector.load %arg4[%c0_10, %c0_11, %c0_12] : memref<3x256x768xbf16, #tpu.memory_space<vmem>>, vector<1x256x768xbf16>
    %14 = vector.shape_cast %13 : vector<1x256x768xbf16> to vector<256x768xbf16>
    %c0_13 = arith.constant 0 : index
    %c0_14 = arith.constant 0 : index
    %c0_15 = arith.constant 0 : index
    %15 = vector.load %arg5[%c0_13, %c0_14, %c0_15] : memref<3x256x768xbf16, #tpu.memory_space<vmem>>, vector<1x256x768xbf16>
    %16 = vector.shape_cast %15 : vector<1x256x768xbf16> to vector<256x768xbf16>
    %c0_16 = arith.constant 0 : index
    %c0_17 = arith.constant 0 : index
    %c0_18 = arith.constant 0 : index
    %17 = vector.load %arg6[%c0_16, %c0_17, %c0_18] : memref<3x1x512xf32, #tpu.memory_space<vmem>>, vector<1x1x512xf32>
    %18 = vector.shape_cast %17 : vector<1x1x512xf32> to vector<1x512xf32>
    %c0_19 = arith.constant 0 : index
    %c0_20 = arith.constant 0 : index
    %c0_21 = arith.constant 0 : index
    %19 = vector.load %arg7[%c0_19, %c0_20, %c0_21] : memref<3x1x256xf32, #tpu.memory_space<vmem>>, vector<1x1x256xf32>
    %20 = vector.shape_cast %19 : vector<1x1x256xf32> to vector<1x256xf32>
    %c0_22 = arith.constant 0 : index
    %c0_23 = arith.constant 0 : index
    %c0_24 = arith.constant 0 : index
    %21 = vector.load %arg8[%c0_22, %c0_23, %c0_24] : memref<3x1x256xf32, #tpu.memory_space<vmem>>, vector<1x1x256xf32>
    %22 = vector.shape_cast %21 : vector<1x1x256xf32> to vector<1x256xf32>
    %c0_25 = arith.constant 0 : index
    %c0_26 = arith.constant 0 : index
    %23 = vector.load %arg14[%c0_25, %c0_26] : memref<32x256xf32, #tpu.memory_space<vmem>>, vector<32x256xf32>
    %24 = arith.truncf %23 : vector<32x256xf32> to vector<32x256xbf16>
    %cst_27 = arith.constant dense<0.000000e+00> : vector<32x768xf32>
    %25 = tpu.matmul %24, %14, %cst_27 {dimension_numbers = #tpu.dot_dimension_numbers<[1], [0], [0], [1], [0, 0, 1, 1], [], []>} : vector<32x256xbf16>, vector<256x768xbf16>, vector<32x768xf32> -> vector<32x768xf32>
    %cst_28 = arith.constant 0.000000e+00 : f32
    %26 = vector.broadcast %cst_28 : f32 to vector<8x256xf32>
    %27 = vector.extract_strided_slice %25 {offsets = [0, 0], sizes = [8, 768], strides = [1, 1]} : vector<32x768xf32> to vector<8x768xf32>
    %28 = arith.truncf %26 : vector<8x256xf32> to vector<8x256xbf16>
    %cst_29 = arith.constant dense<0.000000e+00> : vector<8x768xf32>
    %29 = tpu.matmul %28, %16, %cst_29 {dimension_numbers = #tpu.dot_dimension_numbers<[1], [0], [0], [1], [0, 0, 1, 1], [], []>} : vector<8x256xbf16>, vector<256x768xbf16>, vector<8x768xf32> -> vector<8x768xf32>
    %30 = vector.extract_strided_slice %27 {offsets = [0, 0], sizes = [8, 512], strides = [1, 1]} : vector<8x768xf32> to vector<8x512xf32>
    %31 = vector.extract_strided_slice %29 {offsets = [0, 0], sizes = [8, 512], strides = [1, 1]} : vector<8x768xf32> to vector<8x512xf32>
    %32 = arith.addf %30, %31 : vector<8x512xf32>
    %33 = vector.broadcast %18 : vector<1x512xf32> to vector<8x512xf32>
    %34 = arith.addf %32, %33 : vector<8x512xf32>
    %35 = arith.negf %34 : vector<8x512xf32>
    %36 = math.exp %35 : vector<8x512xf32>
    %cst_30 = arith.constant 1.000000e+00 : f32
    %37 = vector.broadcast %cst_30 : f32 to vector<8x512xf32>
    %38 = arith.addf %37, %36 : vector<8x512xf32>
    %39 = arith.divf %37, %38 : vector<8x512xf32>
    %40 = vector.extract_strided_slice %39 {offsets = [0, 0], sizes = [8, 256], strides = [1, 1]} : vector<8x512xf32> to vector<8x256xf32>
    %41 = vector.extract_strided_slice %39 {offsets = [0, 256], sizes = [8, 256], strides = [1, 1]} : vector<8x512xf32> to vector<8x256xf32>
    %42 = vector.extract_strided_slice %27 {offsets = [0, 512], sizes = [8, 256], strides = [1, 1]} : vector<8x768xf32> to vector<8x256xf32>
    %43 = vector.broadcast %20 : vector<1x256xf32> to vector<8x256xf32>
    %44 = arith.addf %42, %43 : vector<8x256xf32>
    %45 = vector.extract_strided_slice %29 {offsets = [0, 512], sizes = [8, 256], strides = [1, 1]} : vector<8x768xf32> to vector<8x256xf32>
    %46 = vector.broadcast %22 : vector<1x256xf32> to vector<8x256xf32>
    %47 = arith.addf %45, %46 : vector<8x256xf32>
    %48 = arith.mulf %40, %47 : vector<8x256xf32>
    %49 = arith.addf %44, %48 : vector<8x256xf32>
    %50 = math.tanh %49 : vector<8x256xf32>
    %cst_31 = arith.constant 1.000000e+00 : f32
    %51 = vector.broadcast %cst_31 : f32 to vector<8x256xf32>
    %52 = arith.subf %51, %41 : vector<8x256xf32>
    %53 = arith.mulf %52, %50 : vector<8x256xf32>
    %54 = arith.mulf %41, %26 : vector<8x256xf32>
    %55 = arith.addf %53, %54 : vector<8x256xf32>
    %c0_32 = arith.constant 0 : index
    %c0_33 = arith.constant 0 : index
    %56 = vector.load %arg14[%c0_32, %c0_33] : memref<32x256xf32, #tpu.memory_space<vmem>>, vector<8x256xf32>
    tpu.vector_store %arg14[%c0_32, %c0_33], %55 {strides = array<i32>} : memref<32x256xf32, #tpu.memory_space<vmem>>, vector<8x256xf32>,
    %57 = vector.extract_strided_slice %25 {offsets = [8, 0], sizes = [8, 768], strides = [1, 1]} : vector<32x768xf32> to vector<8x768xf32>
    %58 = arith.truncf %55 : vector<8x256xf32> to vector<8x256xbf16>
    %cst_34 = arith.constant dense<0.000000e+00> : vector<8x768xf32>
    %59 = tpu.matmul %58, %16, %cst_34 {dimension_numbers = #tpu.dot_dimension_numbers<[1], [0], [0], [1], [0, 0, 1, 1], [], []>} : vector<8x256xbf16>, vector<256x768xbf16>, vector<8x768xf32> -> vector<8x768xf32>
    %60 = vector.extract_strided_slice %57 {offsets = [0, 0], sizes = [8, 512], strides = [1, 1]} : vector<8x768xf32> to vector<8x512xf32>
    %61 = vector.extract_strided_slice %59 {offsets = [0, 0], sizes = [8, 512], strides = [1, 1]} : vector<8x768xf32> to vector<8x512xf32>
    %62 = arith.addf %60, %61 : vector<8x512xf32>
    %63 = vector.broadcast %18 : vector<1x512xf32> to vector<8x512xf32>
    %64 = arith.addf %62, %63 : vector<8x512xf32>
    %65 = arith.negf %64 : vector<8x512xf32>
    %66 = math.exp %65 : vector<8x512xf32>
    %cst_35 = arith.constant 1.000000e+00 : f32
    %67 = vector.broadcast %cst_35 : f32 to vector<8x512xf32>
    %68 = arith.addf %67, %66 : vector<8x512xf32>
    %69 = arith.divf %67, %68 : vector<8x512xf32>
    %70 = vector.extract_strided_slice %69 {offsets = [0, 0], sizes = [8, 256], strides = [1, 1]} : vector<8x512xf32> to vector<8x256xf32>
    %71 = vector.extract_strided_slice %69 {offsets = [0, 256], sizes = [8, 256], strides = [1, 1]} : vector<8x512xf32> to vector<8x256xf32>
    %72 = vector.extract_strided_slice %57 {offsets = [0, 512], sizes = [8, 256], strides = [1, 1]} : vector<8x768xf32> to vector<8x256xf32>
    %73 = vector.broadcast %20 : vector<1x256xf32> to vector<8x256xf32>
    %74 = arith.addf %72, %73 : vector<8x256xf32>
    %75 = vector.extract_strided_slice %59 {offsets = [0, 512], sizes = [8, 256], strides = [1, 1]} : vector<8x768xf32> to vector<8x256xf32>
    %76 = vector.broadcast %22 : vector<1x256xf32> to vector<8x256xf32>
    %77 = arith.addf %75, %76 : vector<8x256xf32>
    %78 = arith.mulf %70, %77 : vector<8x256xf32>
    %79 = arith.addf %74, %78 : vector<8x256xf32>
    %80 = math.tanh %79 : vector<8x256xf32>
    %cst_36 = arith.constant 1.000000e+00 : f32
    %81 = vector.broadcast %cst_36 : f32 to vector<8x256xf32>
    %82 = arith.subf %81, %71 : vector<8x256xf32>
    %83 = arith.mulf %82, %80 : vector<8x256xf32>
    %84 = arith.mulf %71, %55 : vector<8x256xf32>
    %85 = arith.addf %83, %84 : vector<8x256xf32>
    %c8 = arith.constant 8 : index
    %c0_37 = arith.constant 0 : index
    %86 = vector.load %arg14[%c8, %c0_37] : memref<32x256xf32, #tpu.memory_space<vmem>>, vector<8x256xf32>
    tpu.vector_store %arg14[%c8, %c0_37], %85 {strides = array<i32>} : memref<32x256xf32, #tpu.memory_space<vmem>>, vector<8x256xf32>,
    %87 = vector.extract_strided_slice %25 {offsets = [16, 0], sizes = [8, 768], strides = [1, 1]} : vector<32x768xf32> to vector<8x768xf32>
    %88 = arith.truncf %85 : vector<8x256xf32> to vector<8x256xbf16>
    %cst_38 = arith.constant dense<0.000000e+00> : vector<8x768xf32>
    %89 = tpu.matmul %88, %16, %cst_38 {dimension_numbers = #tpu.dot_dimension_numbers<[1], [0], [0], [1], [0, 0, 1, 1], [], []>} : vector<8x256xbf16>, vector<256x768xbf16>, vector<8x768xf32> -> vector<8x768xf32>
    %90 = vector.extract_strided_slice %87 {offsets = [0, 0], sizes = [8, 512], strides = [1, 1]} : vector<8x768xf32> to vector<8x512xf32>
    %91 = vector.extract_strided_slice %89 {offsets = [0, 0], sizes = [8, 512], strides = [1, 1]} : vector<8x768xf32> to vector<8x512xf32>
    %92 = arith.addf %90, %91 : vector<8x512xf32>
    %93 = vector.broadcast %18 : vector<1x512xf32> to vector<8x512xf32>
    %94 = arith.addf %92, %93 : vector<8x512xf32>
    %95 = arith.negf %94 : vector<8x512xf32>
    %96 = math.exp %95 : vector<8x512xf32>
    %cst_39 = arith.constant 1.000000e+00 : f32
    %97 = vector.broadcast %cst_39 : f32 to vector<8x512xf32>
    %98 = arith.addf %97, %96 : vector<8x512xf32>
    %99 = arith.divf %97, %98 : vector<8x512xf32>
    %100 = vector.extract_strided_slice %99 {offsets = [0, 0], sizes = [8, 256], strides = [1, 1]} : vector<8x512xf32> to vector<8x256xf32>
    %101 = vector.extract_strided_slice %99 {offsets = [0, 256], sizes = [8, 256], strides = [1, 1]} : vector<8x512xf32> to vector<8x256xf32>
    %102 = vector.extract_strided_slice %87 {offsets = [0, 512], sizes = [8, 256], strides = [1, 1]} : vector<8x768xf32> to vector<8x256xf32>
    %103 = vector.broadcast %20 : vector<1x256xf32> to vector<8x256xf32>
    %104 = arith.addf %102, %103 : vector<8x256xf32>
    %105 = vector.extract_strided_slice %89 {offsets = [0, 512], sizes = [8, 256], strides = [1, 1]} : vector<8x768xf32> to vector<8x256xf32>
    %106 = vector.broadcast %22 : vector<1x256xf32> to vector<8x256xf32>
    %107 = arith.addf %105, %106 : vector<8x256xf32>
    %108 = arith.mulf %100, %107 : vector<8x256xf32>
    %109 = arith.addf %104, %108 : vector<8x256xf32>
    %110 = math.tanh %109 : vector<8x256xf32>
    %cst_40 = arith.constant 1.000000e+00 : f32
    %111 = vector.broadcast %cst_40 : f32 to vector<8x256xf32>
    %112 = arith.subf %111, %101 : vector<8x256xf32>
    %113 = arith.mulf %112, %110 : vector<8x256xf32>
    %114 = arith.mulf %101, %85 : vector<8x256xf32>
    %115 = arith.addf %113, %114 : vector<8x256xf32>
    %c16 = arith.constant 16 : index
    %c0_41 = arith.constant 0 : index
    %116 = vector.load %arg14[%c16, %c0_41] : memref<32x256xf32, #tpu.memory_space<vmem>>, vector<8x256xf32>
    tpu.vector_store %arg14[%c16, %c0_41], %115 {strides = array<i32>} : memref<32x256xf32, #tpu.memory_space<vmem>>, vector<8x256xf32>,
    %117 = vector.extract_strided_slice %25 {offsets = [24, 0], sizes = [8, 768], strides = [1, 1]} : vector<32x768xf32> to vector<8x768xf32>
    %118 = arith.truncf %115 : vector<8x256xf32> to vector<8x256xbf16>
    %cst_42 = arith.constant dense<0.000000e+00> : vector<8x768xf32>
    %119 = tpu.matmul %118, %16, %cst_42 {dimension_numbers = #tpu.dot_dimension_numbers<[1], [0], [0], [1], [0, 0, 1, 1], [], []>} : vector<8x256xbf16>, vector<256x768xbf16>, vector<8x768xf32> -> vector<8x768xf32>
    %120 = vector.extract_strided_slice %117 {offsets = [0, 0], sizes = [8, 512], strides = [1, 1]} : vector<8x768xf32> to vector<8x512xf32>
    %121 = vector.extract_strided_slice %119 {offsets = [0, 0], sizes = [8, 512], strides = [1, 1]} : vector<8x768xf32> to vector<8x512xf32>
    %122 = arith.addf %120, %121 : vector<8x512xf32>
    %123 = vector.broadcast %18 : vector<1x512xf32> to vector<8x512xf32>
    %124 = arith.addf %122, %123 : vector<8x512xf32>
    %125 = arith.negf %124 : vector<8x512xf32>
    %126 = math.exp %125 : vector<8x512xf32>
    %cst_43 = arith.constant 1.000000e+00 : f32
    %127 = vector.broadcast %cst_43 : f32 to vector<8x512xf32>
    %128 = arith.addf %127, %126 : vector<8x512xf32>
    %129 = arith.divf %127, %128 : vector<8x512xf32>
    %130 = vector.extract_strided_slice %129 {offsets = [0, 0], sizes = [8, 256], strides = [1, 1]} : vector<8x512xf32> to vector<8x256xf32>
    %131 = vector.extract_strided_slice %129 {offsets = [0, 256], sizes = [8, 256], strides = [1, 1]} : vector<8x512xf32> to vector<8x256xf32>
    %132 = vector.extract_strided_slice %117 {offsets = [0, 512], sizes = [8, 256], strides = [1, 1]} : vector<8x768xf32> to vector<8x256xf32>
    %133 = vector.broadcast %20 : vector<1x256xf32> to vector<8x256xf32>
    %134 = arith.addf %132, %133 : vector<8x256xf32>
    %135 = vector.extract_strided_slice %119 {offsets = [0, 512], sizes = [8, 256], strides = [1, 1]} : vector<8x768xf32> to vector<8x256xf32>
    %136 = vector.broadcast %22 : vector<1x256xf32> to vector<8x256xf32>
    %137 = arith.addf %135, %136 : vector<8x256xf32>
    %138 = arith.mulf %130, %137 : vector<8x256xf32>
    %139 = arith.addf %134, %138 : vector<8x256xf32>
    %140 = math.tanh %139 : vector<8x256xf32>
    %cst_44 = arith.constant 1.000000e+00 : f32
    %141 = vector.broadcast %cst_44 : f32 to vector<8x256xf32>
    %142 = arith.subf %141, %131 : vector<8x256xf32>
    %143 = arith.mulf %142, %140 : vector<8x256xf32>
    %144 = arith.mulf %131, %115 : vector<8x256xf32>
    %145 = arith.addf %143, %144 : vector<8x256xf32>
    %c24 = arith.constant 24 : index
    %c0_45 = arith.constant 0 : index
    %146 = vector.load %arg14[%c24, %c0_45] : memref<32x256xf32, #tpu.memory_space<vmem>>, vector<8x256xf32>
    tpu.vector_store %arg14[%c24, %c0_45], %145 {strides = array<i32>} : memref<32x256xf32, #tpu.memory_space<vmem>>, vector<8x256xf32>,
    %147 = arith.truncf %145 : vector<8x256xf32> to vector<8x256xbf16>
    %c0_46 = arith.constant 0 : index
    %c0_47 = arith.constant 0 : index
    %c0_48 = arith.constant 0 : index
    %148 = vector.load %arg9[%c0_46, %c0_47, %c0_48] : memref<3x256x256xbf16, #tpu.memory_space<vmem>>, vector<1x256x256xbf16>
    %149 = vector.shape_cast %148 : vector<1x256x256xbf16> to vector<256x256xbf16>
    %cst_49 = arith.constant dense<0.000000e+00> : vector<8x256xf32>
    %150 = tpu.matmul %147, %149, %cst_49 {dimension_numbers = #tpu.dot_dimension_numbers<[1], [0], [0], [1], [0, 0, 1, 1], [], []>} : vector<8x256xbf16>, vector<256x256xbf16>, vector<8x256xf32> -> vector<8x256xf32>
    %151 = arith.addf %12, %150 : vector<8x256xf32>
    %c1 = arith.constant 1 : index
    %c0_50 = arith.constant 0 : index
    %c0_51 = arith.constant 0 : index
    %152 = vector.load %arg4[%c1, %c0_50, %c0_51] : memref<3x256x768xbf16, #tpu.memory_space<vmem>>, vector<1x256x768xbf16>
    %153 = vector.shape_cast %152 : vector<1x256x768xbf16> to vector<256x768xbf16>
    %c1_52 = arith.constant 1 : index
    %c0_53 = arith.constant 0 : index
    %c0_54 = arith.constant 0 : index
    %154 = vector.load %arg5[%c1_52, %c0_53, %c0_54] : memref<3x256x768xbf16, #tpu.memory_space<vmem>>, vector<1x256x768xbf16>
    %155 = vector.shape_cast %154 : vector<1x256x768xbf16> to vector<256x768xbf16>
    %c1_55 = arith.constant 1 : index
    %c0_56 = arith.constant 0 : index
    %c0_57 = arith.constant 0 : index
    %156 = vector.load %arg6[%c1_55, %c0_56, %c0_57] : memref<3x1x512xf32, #tpu.memory_space<vmem>>, vector<1x1x512xf32>
    %157 = vector.shape_cast %156 : vector<1x1x512xf32> to vector<1x512xf32>
    %c1_58 = arith.constant 1 : index
    %c0_59 = arith.constant 0 : index
    %c0_60 = arith.constant 0 : index
    %158 = vector.load %arg7[%c1_58, %c0_59, %c0_60] : memref<3x1x256xf32, #tpu.memory_space<vmem>>, vector<1x1x256xf32>
    %159 = vector.shape_cast %158 : vector<1x1x256xf32> to vector<1x256xf32>
    %c1_61 = arith.constant 1 : index
    %c0_62 = arith.constant 0 : index
    %c0_63 = arith.constant 0 : index
    %160 = vector.load %arg8[%c1_61, %c0_62, %c0_63] : memref<3x1x256xf32, #tpu.memory_space<vmem>>, vector<1x1x256xf32>
    %161 = vector.shape_cast %160 : vector<1x1x256xf32> to vector<1x256xf32>
    %c0_64 = arith.constant 0 : index
    %c0_65 = arith.constant 0 : index
    %162 = vector.load %arg14[%c0_64, %c0_65] : memref<32x256xf32, #tpu.memory_space<vmem>>, vector<32x256xf32>
    %163 = arith.truncf %162 : vector<32x256xf32> to vector<32x256xbf16>
    %cst_66 = arith.constant dense<0.000000e+00> : vector<32x768xf32>
    %164 = tpu.matmul %163, %153, %cst_66 {dimension_numbers = #tpu.dot_dimension_numbers<[1], [0], [0], [1], [0, 0, 1, 1], [], []>} : vector<32x256xbf16>, vector<256x768xbf16>, vector<32x768xf32> -> vector<32x768xf32>
    %cst_67 = arith.constant 0.000000e+00 : f32
    %165 = vector.broadcast %cst_67 : f32 to vector<8x256xf32>
    %166 = vector.extract_strided_slice %164 {offsets = [0, 0], sizes = [8, 768], strides = [1, 1]} : vector<32x768xf32> to vector<8x768xf32>
    %167 = arith.truncf %165 : vector<8x256xf32> to vector<8x256xbf16>
    %cst_68 = arith.constant dense<0.000000e+00> : vector<8x768xf32>
    %168 = tpu.matmul %167, %155, %cst_68 {dimension_numbers = #tpu.dot_dimension_numbers<[1], [0], [0], [1], [0, 0, 1, 1], [], []>} : vector<8x256xbf16>, vector<256x768xbf16>, vector<8x768xf32> -> vector<8x768xf32>
    %169 = vector.extract_strided_slice %166 {offsets = [0, 0], sizes = [8, 512], strides = [1, 1]} : vector<8x768xf32> to vector<8x512xf32>
    %170 = vector.extract_strided_slice %168 {offsets = [0, 0], sizes = [8, 512], strides = [1, 1]} : vector<8x768xf32> to vector<8x512xf32>
    %171 = arith.addf %169, %170 : vector<8x512xf32>
    %172 = vector.broadcast %157 : vector<1x512xf32> to vector<8x512xf32>
    %173 = arith.addf %171, %172 : vector<8x512xf32>
    %174 = arith.negf %173 : vector<8x512xf32>
    %175 = math.exp %174 : vector<8x512xf32>
    %cst_69 = arith.constant 1.000000e+00 : f32
    %176 = vector.broadcast %cst_69 : f32 to vector<8x512xf32>
    %177 = arith.addf %176, %175 : vector<8x512xf32>
    %178 = arith.divf %176, %177 : vector<8x512xf32>
    %179 = vector.extract_strided_slice %178 {offsets = [0, 0], sizes = [8, 256], strides = [1, 1]} : vector<8x512xf32> to vector<8x256xf32>
    %180 = vector.extract_strided_slice %178 {offsets = [0, 256], sizes = [8, 256], strides = [1, 1]} : vector<8x512xf32> to vector<8x256xf32>
    %181 = vector.extract_strided_slice %166 {offsets = [0, 512], sizes = [8, 256], strides = [1, 1]} : vector<8x768xf32> to vector<8x256xf32>
    %182 = vector.broadcast %159 : vector<1x256xf32> to vector<8x256xf32>
    %183 = arith.addf %181, %182 : vector<8x256xf32>
    %184 = vector.extract_strided_slice %168 {offsets = [0, 512], sizes = [8, 256], strides = [1, 1]} : vector<8x768xf32> to vector<8x256xf32>
    %185 = vector.broadcast %161 : vector<1x256xf32> to vector<8x256xf32>
    %186 = arith.addf %184, %185 : vector<8x256xf32>
    %187 = arith.mulf %179, %186 : vector<8x256xf32>
    %188 = arith.addf %183, %187 : vector<8x256xf32>
    %189 = math.tanh %188 : vector<8x256xf32>
    %cst_70 = arith.constant 1.000000e+00 : f32
    %190 = vector.broadcast %cst_70 : f32 to vector<8x256xf32>
    %191 = arith.subf %190, %180 : vector<8x256xf32>
    %192 = arith.mulf %191, %189 : vector<8x256xf32>
    %193 = arith.mulf %180, %165 : vector<8x256xf32>
    %194 = arith.addf %192, %193 : vector<8x256xf32>
    %c0_71 = arith.constant 0 : index
    %c0_72 = arith.constant 0 : index
    %195 = vector.load %arg14[%c0_71, %c0_72] : memref<32x256xf32, #tpu.memory_space<vmem>>, vector<8x256xf32>
    tpu.vector_store %arg14[%c0_71, %c0_72], %194 {strides = array<i32>} : memref<32x256xf32, #tpu.memory_space<vmem>>, vector<8x256xf32>,
    %196 = vector.extract_strided_slice %164 {offsets = [8, 0], sizes = [8, 768], strides = [1, 1]} : vector<32x768xf32> to vector<8x768xf32>
    %197 = arith.truncf %194 : vector<8x256xf32> to vector<8x256xbf16>
    %cst_73 = arith.constant dense<0.000000e+00> : vector<8x768xf32>
    %198 = tpu.matmul %197, %155, %cst_73 {dimension_numbers = #tpu.dot_dimension_numbers<[1], [0], [0], [1], [0, 0, 1, 1], [], []>} : vector<8x256xbf16>, vector<256x768xbf16>, vector<8x768xf32> -> vector<8x768xf32>
    %199 = vector.extract_strided_slice %196 {offsets = [0, 0], sizes = [8, 512], strides = [1, 1]} : vector<8x768xf32> to vector<8x512xf32>
    %200 = vector.extract_strided_slice %198 {offsets = [0, 0], sizes = [8, 512], strides = [1, 1]} : vector<8x768xf32> to vector<8x512xf32>
    %201 = arith.addf %199, %200 : vector<8x512xf32>
    %202 = vector.broadcast %157 : vector<1x512xf32> to vector<8x512xf32>
    %203 = arith.addf %201, %202 : vector<8x512xf32>
    %204 = arith.negf %203 : vector<8x512xf32>
    %205 = math.exp %204 : vector<8x512xf32>
    %cst_74 = arith.constant 1.000000e+00 : f32
    %206 = vector.broadcast %cst_74 : f32 to vector<8x512xf32>
    %207 = arith.addf %206, %205 : vector<8x512xf32>
    %208 = arith.divf %206, %207 : vector<8x512xf32>
    %209 = vector.extract_strided_slice %208 {offsets = [0, 0], sizes = [8, 256], strides = [1, 1]} : vector<8x512xf32> to vector<8x256xf32>
    %210 = vector.extract_strided_slice %208 {offsets = [0, 256], sizes = [8, 256], strides = [1, 1]} : vector<8x512xf32> to vector<8x256xf32>
    %211 = vector.extract_strided_slice %196 {offsets = [0, 512], sizes = [8, 256], strides = [1, 1]} : vector<8x768xf32> to vector<8x256xf32>
    %212 = vector.broadcast %159 : vector<1x256xf32> to vector<8x256xf32>
    %213 = arith.addf %211, %212 : vector<8x256xf32>
    %214 = vector.extract_strided_slice %198 {offsets = [0, 512], sizes = [8, 256], strides = [1, 1]} : vector<8x768xf32> to vector<8x256xf32>
    %215 = vector.broadcast %161 : vector<1x256xf32> to vector<8x256xf32>
    %216 = arith.addf %214, %215 : vector<8x256xf32>
    %217 = arith.mulf %209, %216 : vector<8x256xf32>
    %218 = arith.addf %213, %217 : vector<8x256xf32>
    %219 = math.tanh %218 : vector<8x256xf32>
    %cst_75 = arith.constant 1.000000e+00 : f32
    %220 = vector.broadcast %cst_75 : f32 to vector<8x256xf32>
    %221 = arith.subf %220, %210 : vector<8x256xf32>
    %222 = arith.mulf %221, %219 : vector<8x256xf32>
    %223 = arith.mulf %210, %194 : vector<8x256xf32>
    %224 = arith.addf %222, %223 : vector<8x256xf32>
    %c8_76 = arith.constant 8 : index
    %c0_77 = arith.constant 0 : index
    %225 = vector.load %arg14[%c8_76, %c0_77] : memref<32x256xf32, #tpu.memory_space<vmem>>, vector<8x256xf32>
    tpu.vector_store %arg14[%c8_76, %c0_77], %224 {strides = array<i32>} : memref<32x256xf32, #tpu.memory_space<vmem>>, vector<8x256xf32>,
    %226 = vector.extract_strided_slice %164 {offsets = [16, 0], sizes = [8, 768], strides = [1, 1]} : vector<32x768xf32> to vector<8x768xf32>
    %227 = arith.truncf %224 : vector<8x256xf32> to vector<8x256xbf16>
    %cst_78 = arith.constant dense<0.000000e+00> : vector<8x768xf32>
    %228 = tpu.matmul %227, %155, %cst_78 {dimension_numbers = #tpu.dot_dimension_numbers<[1], [0], [0], [1], [0, 0, 1, 1], [], []>} : vector<8x256xbf16>, vector<256x768xbf16>, vector<8x768xf32> -> vector<8x768xf32>
    %229 = vector.extract_strided_slice %226 {offsets = [0, 0], sizes = [8, 512], strides = [1, 1]} : vector<8x768xf32> to vector<8x512xf32>
    %230 = vector.extract_strided_slice %228 {offsets = [0, 0], sizes = [8, 512], strides = [1, 1]} : vector<8x768xf32> to vector<8x512xf32>
    %231 = arith.addf %229, %230 : vector<8x512xf32>
    %232 = vector.broadcast %157 : vector<1x512xf32> to vector<8x512xf32>
    %233 = arith.addf %231, %232 : vector<8x512xf32>
    %234 = arith.negf %233 : vector<8x512xf32>
    %235 = math.exp %234 : vector<8x512xf32>
    %cst_79 = arith.constant 1.000000e+00 : f32
    %236 = vector.broadcast %cst_79 : f32 to vector<8x512xf32>
    %237 = arith.addf %236, %235 : vector<8x512xf32>
    %238 = arith.divf %236, %237 : vector<8x512xf32>
    %239 = vector.extract_strided_slice %238 {offsets = [0, 0], sizes = [8, 256], strides = [1, 1]} : vector<8x512xf32> to vector<8x256xf32>
    %240 = vector.extract_strided_slice %238 {offsets = [0, 256], sizes = [8, 256], strides = [1, 1]} : vector<8x512xf32> to vector<8x256xf32>
    %241 = vector.extract_strided_slice %226 {offsets = [0, 512], sizes = [8, 256], strides = [1, 1]} : vector<8x768xf32> to vector<8x256xf32>
    %242 = vector.broadcast %159 : vector<1x256xf32> to vector<8x256xf32>
    %243 = arith.addf %241, %242 : vector<8x256xf32>
    %244 = vector.extract_strided_slice %228 {offsets = [0, 512], sizes = [8, 256], strides = [1, 1]} : vector<8x768xf32> to vector<8x256xf32>
    %245 = vector.broadcast %161 : vector<1x256xf32> to vector<8x256xf32>
    %246 = arith.addf %244, %245 : vector<8x256xf32>
    %247 = arith.mulf %239, %246 : vector<8x256xf32>
    %248 = arith.addf %243, %247 : vector<8x256xf32>
    %249 = math.tanh %248 : vector<8x256xf32>
    %cst_80 = arith.constant 1.000000e+00 : f32
    %250 = vector.broadcast %cst_80 : f32 to vector<8x256xf32>
    %251 = arith.subf %250, %240 : vector<8x256xf32>
    %252 = arith.mulf %251, %249 : vector<8x256xf32>
    %253 = arith.mulf %240, %224 : vector<8x256xf32>
    %254 = arith.addf %252, %253 : vector<8x256xf32>
    %c16_81 = arith.constant 16 : index
    %c0_82 = arith.constant 0 : index
    %255 = vector.load %arg14[%c16_81, %c0_82] : memref<32x256xf32, #tpu.memory_space<vmem>>, vector<8x256xf32>
    tpu.vector_store %arg14[%c16_81, %c0_82], %254 {strides = array<i32>} : memref<32x256xf32, #tpu.memory_space<vmem>>, vector<8x256xf32>,
    %256 = vector.extract_strided_slice %164 {offsets = [24, 0], sizes = [8, 768], strides = [1, 1]} : vector<32x768xf32> to vector<8x768xf32>
    %257 = arith.truncf %254 : vector<8x256xf32> to vector<8x256xbf16>
    %cst_83 = arith.constant dense<0.000000e+00> : vector<8x768xf32>
    %258 = tpu.matmul %257, %155, %cst_83 {dimension_numbers = #tpu.dot_dimension_numbers<[1], [0], [0], [1], [0, 0, 1, 1], [], []>} : vector<8x256xbf16>, vector<256x768xbf16>, vector<8x768xf32> -> vector<8x768xf32>
    %259 = vector.extract_strided_slice %256 {offsets = [0, 0], sizes = [8, 512], strides = [1, 1]} : vector<8x768xf32> to vector<8x512xf32>
    %260 = vector.extract_strided_slice %258 {offsets = [0, 0], sizes = [8, 512], strides = [1, 1]} : vector<8x768xf32> to vector<8x512xf32>
    %261 = arith.addf %259, %260 : vector<8x512xf32>
    %262 = vector.broadcast %157 : vector<1x512xf32> to vector<8x512xf32>
    %263 = arith.addf %261, %262 : vector<8x512xf32>
    %264 = arith.negf %263 : vector<8x512xf32>
    %265 = math.exp %264 : vector<8x512xf32>
    %cst_84 = arith.constant 1.000000e+00 : f32
    %266 = vector.broadcast %cst_84 : f32 to vector<8x512xf32>
    %267 = arith.addf %266, %265 : vector<8x512xf32>
    %268 = arith.divf %266, %267 : vector<8x512xf32>
    %269 = vector.extract_strided_slice %268 {offsets = [0, 0], sizes = [8, 256], strides = [1, 1]} : vector<8x512xf32> to vector<8x256xf32>
    %270 = vector.extract_strided_slice %268 {offsets = [0, 256], sizes = [8, 256], strides = [1, 1]} : vector<8x512xf32> to vector<8x256xf32>
    %271 = vector.extract_strided_slice %256 {offsets = [0, 512], sizes = [8, 256], strides = [1, 1]} : vector<8x768xf32> to vector<8x256xf32>
    %272 = vector.broadcast %159 : vector<1x256xf32> to vector<8x256xf32>
    %273 = arith.addf %271, %272 : vector<8x256xf32>
    %274 = vector.extract_strided_slice %258 {offsets = [0, 512], sizes = [8, 256], strides = [1, 1]} : vector<8x768xf32> to vector<8x256xf32>
    %275 = vector.broadcast %161 : vector<1x256xf32> to vector<8x256xf32>
    %276 = arith.addf %274, %275 : vector<8x256xf32>
    %277 = arith.mulf %269, %276 : vector<8x256xf32>
    %278 = arith.addf %273, %277 : vector<8x256xf32>
    %279 = math.tanh %278 : vector<8x256xf32>
    %cst_85 = arith.constant 1.000000e+00 : f32
    %280 = vector.broadcast %cst_85 : f32 to vector<8x256xf32>
    %281 = arith.subf %280, %270 : vector<8x256xf32>
    %282 = arith.mulf %281, %279 : vector<8x256xf32>
    %283 = arith.mulf %270, %254 : vector<8x256xf32>
    %284 = arith.addf %282, %283 : vector<8x256xf32>
    %c24_86 = arith.constant 24 : index
    %c0_87 = arith.constant 0 : index
    %285 = vector.load %arg14[%c24_86, %c0_87] : memref<32x256xf32, #tpu.memory_space<vmem>>, vector<8x256xf32>
    tpu.vector_store %arg14[%c24_86, %c0_87], %284 {strides = array<i32>} : memref<32x256xf32, #tpu.memory_space<vmem>>, vector<8x256xf32>,
    %286 = arith.truncf %284 : vector<8x256xf32> to vector<8x256xbf16>
    %c1_88 = arith.constant 1 : index
    %c0_89 = arith.constant 0 : index
    %c0_90 = arith.constant 0 : index
    %287 = vector.load %arg9[%c1_88, %c0_89, %c0_90] : memref<3x256x256xbf16, #tpu.memory_space<vmem>>, vector<1x256x256xbf16>
    %288 = vector.shape_cast %287 : vector<1x256x256xbf16> to vector<256x256xbf16>
    %cst_91 = arith.constant dense<0.000000e+00> : vector<8x256xf32>
    %289 = tpu.matmul %286, %288, %cst_91 {dimension_numbers = #tpu.dot_dimension_numbers<[1], [0], [0], [1], [0, 0, 1, 1], [], []>} : vector<8x256xbf16>, vector<256x256xbf16>, vector<8x256xf32> -> vector<8x256xf32>
    %290 = arith.addf %151, %289 : vector<8x256xf32>
    %c2 = arith.constant 2 : index
    %c0_92 = arith.constant 0 : index
    %c0_93 = arith.constant 0 : index
    %291 = vector.load %arg4[%c2, %c0_92, %c0_93] : memref<3x256x768xbf16, #tpu.memory_space<vmem>>, vector<1x256x768xbf16>
    %292 = vector.shape_cast %291 : vector<1x256x768xbf16> to vector<256x768xbf16>
    %c2_94 = arith.constant 2 : index
    %c0_95 = arith.constant 0 : index
    %c0_96 = arith.constant 0 : index
    %293 = vector.load %arg5[%c2_94, %c0_95, %c0_96] : memref<3x256x768xbf16, #tpu.memory_space<vmem>>, vector<1x256x768xbf16>
    %294 = vector.shape_cast %293 : vector<1x256x768xbf16> to vector<256x768xbf16>
    %c2_97 = arith.constant 2 : index
    %c0_98 = arith.constant 0 : index
    %c0_99 = arith.constant 0 : index
    %295 = vector.load %arg6[%c2_97, %c0_98, %c0_99] : memref<3x1x512xf32, #tpu.memory_space<vmem>>, vector<1x1x512xf32>
    %296 = vector.shape_cast %295 : vector<1x1x512xf32> to vector<1x512xf32>
    %c2_100 = arith.constant 2 : index
    %c0_101 = arith.constant 0 : index
    %c0_102 = arith.constant 0 : index
    %297 = vector.load %arg7[%c2_100, %c0_101, %c0_102] : memref<3x1x256xf32, #tpu.memory_space<vmem>>, vector<1x1x256xf32>
    %298 = vector.shape_cast %297 : vector<1x1x256xf32> to vector<1x256xf32>
    %c2_103 = arith.constant 2 : index
    %c0_104 = arith.constant 0 : index
    %c0_105 = arith.constant 0 : index
    %299 = vector.load %arg8[%c2_103, %c0_104, %c0_105] : memref<3x1x256xf32, #tpu.memory_space<vmem>>, vector<1x1x256xf32>
    %300 = vector.shape_cast %299 : vector<1x1x256xf32> to vector<1x256xf32>
    %c0_106 = arith.constant 0 : index
    %c0_107 = arith.constant 0 : index
    %301 = vector.load %arg14[%c0_106, %c0_107] : memref<32x256xf32, #tpu.memory_space<vmem>>, vector<32x256xf32>
    %302 = arith.truncf %301 : vector<32x256xf32> to vector<32x256xbf16>
    %cst_108 = arith.constant dense<0.000000e+00> : vector<32x768xf32>
    %303 = tpu.matmul %302, %292, %cst_108 {dimension_numbers = #tpu.dot_dimension_numbers<[1], [0], [0], [1], [0, 0, 1, 1], [], []>} : vector<32x256xbf16>, vector<256x768xbf16>, vector<32x768xf32> -> vector<32x768xf32>
    %cst_109 = arith.constant 0.000000e+00 : f32
    %304 = vector.broadcast %cst_109 : f32 to vector<8x256xf32>
    %305 = vector.extract_strided_slice %303 {offsets = [0, 0], sizes = [8, 768], strides = [1, 1]} : vector<32x768xf32> to vector<8x768xf32>
    %306 = arith.truncf %304 : vector<8x256xf32> to vector<8x256xbf16>
    %cst_110 = arith.constant dense<0.000000e+00> : vector<8x768xf32>
    %307 = tpu.matmul %306, %294, %cst_110 {dimension_numbers = #tpu.dot_dimension_numbers<[1], [0], [0], [1], [0, 0, 1, 1], [], []>} : vector<8x256xbf16>, vector<256x768xbf16>, vector<8x768xf32> -> vector<8x768xf32>
    %308 = vector.extract_strided_slice %305 {offsets = [0, 0], sizes = [8, 512], strides = [1, 1]} : vector<8x768xf32> to vector<8x512xf32>
    %309 = vector.extract_strided_slice %307 {offsets = [0, 0], sizes = [8, 512], strides = [1, 1]} : vector<8x768xf32> to vector<8x512xf32>
    %310 = arith.addf %308, %309 : vector<8x512xf32>
    %311 = vector.broadcast %296 : vector<1x512xf32> to vector<8x512xf32>
    %312 = arith.addf %310, %311 : vector<8x512xf32>
    %313 = arith.negf %312 : vector<8x512xf32>
    %314 = math.exp %313 : vector<8x512xf32>
    %cst_111 = arith.constant 1.000000e+00 : f32
    %315 = vector.broadcast %cst_111 : f32 to vector<8x512xf32>
    %316 = arith.addf %315, %314 : vector<8x512xf32>
    %317 = arith.divf %315, %316 : vector<8x512xf32>
    %318 = vector.extract_strided_slice %317 {offsets = [0, 0], sizes = [8, 256], strides = [1, 1]} : vector<8x512xf32> to vector<8x256xf32>
    %319 = vector.extract_strided_slice %317 {offsets = [0, 256], sizes = [8, 256], strides = [1, 1]} : vector<8x512xf32> to vector<8x256xf32>
    %320 = vector.extract_strided_slice %305 {offsets = [0, 512], sizes = [8, 256], strides = [1, 1]} : vector<8x768xf32> to vector<8x256xf32>
    %321 = vector.broadcast %298 : vector<1x256xf32> to vector<8x256xf32>
    %322 = arith.addf %320, %321 : vector<8x256xf32>
    %323 = vector.extract_strided_slice %307 {offsets = [0, 512], sizes = [8, 256], strides = [1, 1]} : vector<8x768xf32> to vector<8x256xf32>
    %324 = vector.broadcast %300 : vector<1x256xf32> to vector<8x256xf32>
    %325 = arith.addf %323, %324 : vector<8x256xf32>
    %326 = arith.mulf %318, %325 : vector<8x256xf32>
    %327 = arith.addf %322, %326 : vector<8x256xf32>
    %328 = math.tanh %327 : vector<8x256xf32>
    %cst_112 = arith.constant 1.000000e+00 : f32
    %329 = vector.broadcast %cst_112 : f32 to vector<8x256xf32>
    %330 = arith.subf %329, %319 : vector<8x256xf32>
    %331 = arith.mulf %330, %328 : vector<8x256xf32>
    %332 = arith.mulf %319, %304 : vector<8x256xf32>
    %333 = arith.addf %331, %332 : vector<8x256xf32>
    %c0_113 = arith.constant 0 : index
    %c0_114 = arith.constant 0 : index
    %334 = vector.load %arg14[%c0_113, %c0_114] : memref<32x256xf32, #tpu.memory_space<vmem>>, vector<8x256xf32>
    tpu.vector_store %arg14[%c0_113, %c0_114], %333 {strides = array<i32>} : memref<32x256xf32, #tpu.memory_space<vmem>>, vector<8x256xf32>,
    %335 = vector.extract_strided_slice %303 {offsets = [8, 0], sizes = [8, 768], strides = [1, 1]} : vector<32x768xf32> to vector<8x768xf32>
    %336 = arith.truncf %333 : vector<8x256xf32> to vector<8x256xbf16>
    %cst_115 = arith.constant dense<0.000000e+00> : vector<8x768xf32>
    %337 = tpu.matmul %336, %294, %cst_115 {dimension_numbers = #tpu.dot_dimension_numbers<[1], [0], [0], [1], [0, 0, 1, 1], [], []>} : vector<8x256xbf16>, vector<256x768xbf16>, vector<8x768xf32> -> vector<8x768xf32>
    %338 = vector.extract_strided_slice %335 {offsets = [0, 0], sizes = [8, 512], strides = [1, 1]} : vector<8x768xf32> to vector<8x512xf32>
    %339 = vector.extract_strided_slice %337 {offsets = [0, 0], sizes = [8, 512], strides = [1, 1]} : vector<8x768xf32> to vector<8x512xf32>
    %340 = arith.addf %338, %339 : vector<8x512xf32>
    %341 = vector.broadcast %296 : vector<1x512xf32> to vector<8x512xf32>
    %342 = arith.addf %340, %341 : vector<8x512xf32>
    %343 = arith.negf %342 : vector<8x512xf32>
    %344 = math.exp %343 : vector<8x512xf32>
    %cst_116 = arith.constant 1.000000e+00 : f32
    %345 = vector.broadcast %cst_116 : f32 to vector<8x512xf32>
    %346 = arith.addf %345, %344 : vector<8x512xf32>
    %347 = arith.divf %345, %346 : vector<8x512xf32>
    %348 = vector.extract_strided_slice %347 {offsets = [0, 0], sizes = [8, 256], strides = [1, 1]} : vector<8x512xf32> to vector<8x256xf32>
    %349 = vector.extract_strided_slice %347 {offsets = [0, 256], sizes = [8, 256], strides = [1, 1]} : vector<8x512xf32> to vector<8x256xf32>
    %350 = vector.extract_strided_slice %335 {offsets = [0, 512], sizes = [8, 256], strides = [1, 1]} : vector<8x768xf32> to vector<8x256xf32>
    %351 = vector.broadcast %298 : vector<1x256xf32> to vector<8x256xf32>
    %352 = arith.addf %350, %351 : vector<8x256xf32>
    %353 = vector.extract_strided_slice %337 {offsets = [0, 512], sizes = [8, 256], strides = [1, 1]} : vector<8x768xf32> to vector<8x256xf32>
    %354 = vector.broadcast %300 : vector<1x256xf32> to vector<8x256xf32>
    %355 = arith.addf %353, %354 : vector<8x256xf32>
    %356 = arith.mulf %348, %355 : vector<8x256xf32>
    %357 = arith.addf %352, %356 : vector<8x256xf32>
    %358 = math.tanh %357 : vector<8x256xf32>
    %cst_117 = arith.constant 1.000000e+00 : f32
    %359 = vector.broadcast %cst_117 : f32 to vector<8x256xf32>
    %360 = arith.subf %359, %349 : vector<8x256xf32>
    %361 = arith.mulf %360, %358 : vector<8x256xf32>
    %362 = arith.mulf %349, %333 : vector<8x256xf32>
    %363 = arith.addf %361, %362 : vector<8x256xf32>
    %c8_118 = arith.constant 8 : index
    %c0_119 = arith.constant 0 : index
    %364 = vector.load %arg14[%c8_118, %c0_119] : memref<32x256xf32, #tpu.memory_space<vmem>>, vector<8x256xf32>
    tpu.vector_store %arg14[%c8_118, %c0_119], %363 {strides = array<i32>} : memref<32x256xf32, #tpu.memory_space<vmem>>, vector<8x256xf32>,
    %365 = vector.extract_strided_slice %303 {offsets = [16, 0], sizes = [8, 768], strides = [1, 1]} : vector<32x768xf32> to vector<8x768xf32>
    %366 = arith.truncf %363 : vector<8x256xf32> to vector<8x256xbf16>
    %cst_120 = arith.constant dense<0.000000e+00> : vector<8x768xf32>
    %367 = tpu.matmul %366, %294, %cst_120 {dimension_numbers = #tpu.dot_dimension_numbers<[1], [0], [0], [1], [0, 0, 1, 1], [], []>} : vector<8x256xbf16>, vector<256x768xbf16>, vector<8x768xf32> -> vector<8x768xf32>
    %368 = vector.extract_strided_slice %365 {offsets = [0, 0], sizes = [8, 512], strides = [1, 1]} : vector<8x768xf32> to vector<8x512xf32>
    %369 = vector.extract_strided_slice %367 {offsets = [0, 0], sizes = [8, 512], strides = [1, 1]} : vector<8x768xf32> to vector<8x512xf32>
    %370 = arith.addf %368, %369 : vector<8x512xf32>
    %371 = vector.broadcast %296 : vector<1x512xf32> to vector<8x512xf32>
    %372 = arith.addf %370, %371 : vector<8x512xf32>
    %373 = arith.negf %372 : vector<8x512xf32>
    %374 = math.exp %373 : vector<8x512xf32>
    %cst_121 = arith.constant 1.000000e+00 : f32
    %375 = vector.broadcast %cst_121 : f32 to vector<8x512xf32>
    %376 = arith.addf %375, %374 : vector<8x512xf32>
    %377 = arith.divf %375, %376 : vector<8x512xf32>
    %378 = vector.extract_strided_slice %377 {offsets = [0, 0], sizes = [8, 256], strides = [1, 1]} : vector<8x512xf32> to vector<8x256xf32>
    %379 = vector.extract_strided_slice %377 {offsets = [0, 256], sizes = [8, 256], strides = [1, 1]} : vector<8x512xf32> to vector<8x256xf32>
    %380 = vector.extract_strided_slice %365 {offsets = [0, 512], sizes = [8, 256], strides = [1, 1]} : vector<8x768xf32> to vector<8x256xf32>
    %381 = vector.broadcast %298 : vector<1x256xf32> to vector<8x256xf32>
    %382 = arith.addf %380, %381 : vector<8x256xf32>
    %383 = vector.extract_strided_slice %367 {offsets = [0, 512], sizes = [8, 256], strides = [1, 1]} : vector<8x768xf32> to vector<8x256xf32>
    %384 = vector.broadcast %300 : vector<1x256xf32> to vector<8x256xf32>
    %385 = arith.addf %383, %384 : vector<8x256xf32>
    %386 = arith.mulf %378, %385 : vector<8x256xf32>
    %387 = arith.addf %382, %386 : vector<8x256xf32>
    %388 = math.tanh %387 : vector<8x256xf32>
    %cst_122 = arith.constant 1.000000e+00 : f32
    %389 = vector.broadcast %cst_122 : f32 to vector<8x256xf32>
    %390 = arith.subf %389, %379 : vector<8x256xf32>
    %391 = arith.mulf %390, %388 : vector<8x256xf32>
    %392 = arith.mulf %379, %363 : vector<8x256xf32>
    %393 = arith.addf %391, %392 : vector<8x256xf32>
    %c16_123 = arith.constant 16 : index
    %c0_124 = arith.constant 0 : index
    %394 = vector.load %arg14[%c16_123, %c0_124] : memref<32x256xf32, #tpu.memory_space<vmem>>, vector<8x256xf32>
    tpu.vector_store %arg14[%c16_123, %c0_124], %393 {strides = array<i32>} : memref<32x256xf32, #tpu.memory_space<vmem>>, vector<8x256xf32>,
    %395 = vector.extract_strided_slice %303 {offsets = [24, 0], sizes = [8, 768], strides = [1, 1]} : vector<32x768xf32> to vector<8x768xf32>
    %396 = arith.truncf %393 : vector<8x256xf32> to vector<8x256xbf16>
    %cst_125 = arith.constant dense<0.000000e+00> : vector<8x768xf32>
    %397 = tpu.matmul %396, %294, %cst_125 {dimension_numbers = #tpu.dot_dimension_numbers<[1], [0], [0], [1], [0, 0, 1, 1], [], []>} : vector<8x256xbf16>, vector<256x768xbf16>, vector<8x768xf32> -> vector<8x768xf32>
    %398 = vector.extract_strided_slice %395 {offsets = [0, 0], sizes = [8, 512], strides = [1, 1]} : vector<8x768xf32> to vector<8x512xf32>
    %399 = vector.extract_strided_slice %397 {offsets = [0, 0], sizes = [8, 512], strides = [1, 1]} : vector<8x768xf32> to vector<8x512xf32>
    %400 = arith.addf %398, %399 : vector<8x512xf32>
    %401 = vector.broadcast %296 : vector<1x512xf32> to vector<8x512xf32>
    %402 = arith.addf %400, %401 : vector<8x512xf32>
    %403 = arith.negf %402 : vector<8x512xf32>
    %404 = math.exp %403 : vector<8x512xf32>
    %cst_126 = arith.constant 1.000000e+00 : f32
    %405 = vector.broadcast %cst_126 : f32 to vector<8x512xf32>
    %406 = arith.addf %405, %404 : vector<8x512xf32>
    %407 = arith.divf %405, %406 : vector<8x512xf32>
    %408 = vector.extract_strided_slice %407 {offsets = [0, 0], sizes = [8, 256], strides = [1, 1]} : vector<8x512xf32> to vector<8x256xf32>
    %409 = vector.extract_strided_slice %407 {offsets = [0, 256], sizes = [8, 256], strides = [1, 1]} : vector<8x512xf32> to vector<8x256xf32>
    %410 = vector.extract_strided_slice %395 {offsets = [0, 512], sizes = [8, 256], strides = [1, 1]} : vector<8x768xf32> to vector<8x256xf32>
    %411 = vector.broadcast %298 : vector<1x256xf32> to vector<8x256xf32>
    %412 = arith.addf %410, %411 : vector<8x256xf32>
    %413 = vector.extract_strided_slice %397 {offsets = [0, 512], sizes = [8, 256], strides = [1, 1]} : vector<8x768xf32> to vector<8x256xf32>
    %414 = vector.broadcast %300 : vector<1x256xf32> to vector<8x256xf32>
    %415 = arith.addf %413, %414 : vector<8x256xf32>
    %416 = arith.mulf %408, %415 : vector<8x256xf32>
    %417 = arith.addf %412, %416 : vector<8x256xf32>
    %418 = math.tanh %417 : vector<8x256xf32>
    %cst_127 = arith.constant 1.000000e+00 : f32
    %419 = vector.broadcast %cst_127 : f32 to vector<8x256xf32>
    %420 = arith.subf %419, %409 : vector<8x256xf32>
    %421 = arith.mulf %420, %418 : vector<8x256xf32>
    %422 = arith.mulf %409, %393 : vector<8x256xf32>
    %423 = arith.addf %421, %422 : vector<8x256xf32>
    %c24_128 = arith.constant 24 : index
    %c0_129 = arith.constant 0 : index
    %424 = vector.load %arg14[%c24_128, %c0_129] : memref<32x256xf32, #tpu.memory_space<vmem>>, vector<8x256xf32>
    tpu.vector_store %arg14[%c24_128, %c0_129], %423 {strides = array<i32>} : memref<32x256xf32, #tpu.memory_space<vmem>>, vector<8x256xf32>,
    %425 = arith.truncf %423 : vector<8x256xf32> to vector<8x256xbf16>
    %c2_130 = arith.constant 2 : index
    %c0_131 = arith.constant 0 : index
    %c0_132 = arith.constant 0 : index
    %426 = vector.load %arg9[%c2_130, %c0_131, %c0_132] : memref<3x256x256xbf16, #tpu.memory_space<vmem>>, vector<1x256x256xbf16>
    %427 = vector.shape_cast %426 : vector<1x256x256xbf16> to vector<256x256xbf16>
    %cst_133 = arith.constant dense<0.000000e+00> : vector<8x256xf32>
    %428 = tpu.matmul %425, %427, %cst_133 {dimension_numbers = #tpu.dot_dimension_numbers<[1], [0], [0], [1], [0, 0, 1, 1], [], []>} : vector<8x256xbf16>, vector<256x256xbf16>, vector<8x256xf32> -> vector<8x256xf32>
    %429 = arith.addf %290, %428 : vector<8x256xf32>
    %c0_134 = arith.constant 0 : index
    %c0_135 = arith.constant 0 : index
    %430 = vector.load %arg10[%c0_134, %c0_135] : memref<1x256xf32, #tpu.memory_space<vmem>>, vector<1x256xf32>
    %431 = vector.broadcast %430 : vector<1x256xf32> to vector<8x256xf32>
    %432 = arith.addf %429, %431 : vector<8x256xf32>
    %cst_136 = arith.constant 0.000000e+00 : f32
    %433 = vector.broadcast %cst_136 : f32 to vector<8x256xf32>
    %434 = arith.cmpf ogt, %432, %433 : vector<8x256xf32>
    %cst_137 = arith.constant 0.00999999977 : f32
    %435 = vector.broadcast %cst_137 : f32 to vector<8x256xf32>
    %436 = arith.mulf %435, %432 : vector<8x256xf32>
    %437 = arith.select %434, %432, %436 : vector<8x256xi1>, vector<8x256xf32>
    %438 = arith.truncf %437 : vector<8x256xf32> to vector<8x256xbf16>
    %c0_138 = arith.constant 0 : index
    %c0_139 = arith.constant 0 : index
    %439 = vector.load %arg11[%c0_138, %c0_139] : memref<256x128xbf16, #tpu.memory_space<vmem>>, vector<256x128xbf16>
    %cst_140 = arith.constant dense<0.000000e+00> : vector<8x128xf32>
    %440 = tpu.matmul %438, %439, %cst_140 {dimension_numbers = #tpu.dot_dimension_numbers<[1], [0], [0], [1], [0, 0, 1, 1], [], []>} : vector<8x256xbf16>, vector<256x128xbf16>, vector<8x128xf32> -> vector<8x128xf32>
    %c0_141 = arith.constant 0 : index
    %c0_142 = arith.constant 0 : index
    %441 = vector.load %arg12[%c0_141, %c0_142] : memref<1x128xf32, #tpu.memory_space<vmem>>, vector<1x128xf32>
    %442 = vector.broadcast %441 : vector<1x128xf32> to vector<8x128xf32>
    %443 = arith.addf %440, %442 : vector<8x128xf32>
    %cst_143 = arith.constant dense<0xFF800000> : vector<8xf32>
    %444 = vector.multi_reduction <maximumf>, %443, %cst_143 [1] : vector<8x128xf32> to vector<8xf32>
    %445 = vector.shape_cast %444 : vector<8xf32> to vector<8x1xf32>
    %446 = vector.broadcast %445 : vector<8x1xf32> to vector<8x128xf32>
    %447 = arith.subf %443, %446 : vector<8x128xf32>
    %448 = math.exp %447 : vector<8x128xf32>
    %cst_144 = arith.constant dense<0.000000e+00> : vector<8xf32>
    %449 = vector.multi_reduction <add>, %448, %cst_144 [1] : vector<8x128xf32> to vector<8xf32>
    %450 = vector.shape_cast %449 : vector<8xf32> to vector<8x1xf32>
    %451 = vector.broadcast %450 : vector<8x1xf32> to vector<8x128xf32>
    %452 = arith.divf %448, %451 : vector<8x128xf32>
    %c0_145 = arith.constant 0 : index
    %c0_146 = arith.constant 0 : index
    %453 = vector.load %arg13[%c0_145, %c0_146] : memref<8x128xf32, #tpu.memory_space<vmem>>, vector<8x128xf32>
    tpu.vector_store %arg13[%c0_145, %c0_146], %452 {strides = array<i32>} : memref<8x128xf32, #tpu.memory_space<vmem>>, vector<8x128xf32>,
    return
  }
  func.func @transform_0(%arg0: i32) -> (i32, i32) {
    %c0_i32 = arith.constant 0 : i32
    %c0_i32_0 = arith.constant 0 : i32
    %c0_i32_1 = arith.constant 0 : i32
    return %c0_i32, %c0_i32_0 : i32, i32
  }
  func.func @transform_1(%arg0: i32) -> (i32, i32) {
    %c0_i32 = arith.constant 0 : i32
    %c0_i32_0 = arith.constant 0 : i32
    %c0_i32_1 = arith.constant 0 : i32
    return %c0_i32, %c0_i32_0 : i32, i32
  }
  func.func @transform_2(%arg0: i32) -> (i32, i32) {
    %c0_i32 = arith.constant 0 : i32
    %c0_i32_0 = arith.constant 0 : i32
    %c0_i32_1 = arith.constant 0 : i32
    return %c0_i32, %c0_i32_0 : i32, i32
  }
  func.func @transform_3(%arg0: i32) -> (i32, i32, i32) {
    %c0_i32 = arith.constant 0 : i32
    %c0_i32_0 = arith.constant 0 : i32
    %c0_i32_1 = arith.constant 0 : i32
    %c0_i32_2 = arith.constant 0 : i32
    return %c0_i32, %c0_i32_0, %c0_i32_1 : i32, i32, i32
  }
  func.func @transform_4(%arg0: i32) -> (i32, i32, i32) {
    %c0_i32 = arith.constant 0 : i32
    %c0_i32_0 = arith.constant 0 : i32
    %c0_i32_1 = arith.constant 0 : i32
    %c0_i32_2 = arith.constant 0 : i32
    return %c0_i32, %c0_i32_0, %c0_i32_1 : i32, i32, i32
  }
  func.func @transform_5(%arg0: i32) -> (i32, i32, i32) {
    %c0_i32 = arith.constant 0 : i32
    %c0_i32_0 = arith.constant 0 : i32
    %c0_i32_1 = arith.constant 0 : i32
    %c0_i32_2 = arith.constant 0 : i32
    return %c0_i32, %c0_i32_0, %c0_i32_1 : i32, i32, i32
  }
  func.func @transform_6(%arg0: i32) -> (i32, i32, i32) {
    %c0_i32 = arith.constant 0 : i32
    %c0_i32_0 = arith.constant 0 : i32
    %c0_i32_1 = arith.constant 0 : i32
    %c0_i32_2 = arith.constant 0 : i32
    return %c0_i32, %c0_i32_0, %c0_i32_1 : i32, i32, i32
  }
  func.func @transform_7(%arg0: i32) -> (i32, i32, i32) {
    %c0_i32 = arith.constant 0 : i32
    %c0_i32_0 = arith.constant 0 : i32
    %c0_i32_1 = arith.constant 0 : i32
    %c0_i32_2 = arith.constant 0 : i32
    return %c0_i32, %c0_i32_0, %c0_i32_1 : i32, i32, i32
  }
  func.func @transform_8(%arg0: i32) -> (i32, i32, i32) {
    %c0_i32 = arith.constant 0 : i32
    %c0_i32_0 = arith.constant 0 : i32
    %c0_i32_1 = arith.constant 0 : i32
    %c0_i32_2 = arith.constant 0 : i32
    return %c0_i32, %c0_i32_0, %c0_i32_1 : i32, i32, i32
  }
  func.func @transform_9(%arg0: i32) -> (i32, i32) {
    %c0_i32 = arith.constant 0 : i32
    %c0_i32_0 = arith.constant 0 : i32
    %c0_i32_1 = arith.constant 0 : i32
    return %c0_i32, %c0_i32_0 : i32, i32
  }
  func.func @transform_10(%arg0: i32) -> (i32, i32) {
    %c0_i32 = arith.constant 0 : i32
    %c0_i32_0 = arith.constant 0 : i32
    %c0_i32_1 = arith.constant 0 : i32
    return %c0_i32, %c0_i32_0 : i32, i32
  }
  func.func @transform_11(%arg0: i32) -> (i32, i32) {
    %c0_i32 = arith.constant 0 : i32
    %c0_i32_0 = arith.constant 0 : i32
    %c0_i32_1 = arith.constant 0 : i32
    return %c0_i32, %c0_i32_0 : i32, i32
  }
  func.func @transform_12(%arg0: i32) -> (i32, i32) {
    %c0_i32 = arith.constant 0 : i32
    %c0_i32_0 = arith.constant 0 : i32
    %c0_i32_1 = arith.constant 0 : i32
    return %c0_i32, %c0_i32_0 : i32, i32
  }
}

</mosaic_0001>

<llo_original>
// kernel: lstm_forward.1
$region0: #{lstm_forward.1}
  #allocation0 [shape = 'u32[]', space=smem, size = 0x4, offset = 0x4, fixed_abs, tag = 'smem constant byte address 0x4 - core index']
  #allocation1 [shape = 'u32[144,128]{1,0:T(1,128)}', space=vmem, size = 0x12000, scoped, tag = 'internal scratch']
  #allocation2 [shape = 'f32[32,256]{1,0:T(8,128)}', space=vmem, size = 0x8000, scoped, tag = 'scratch operand']
  %s0 = inlined_call_operand.vmem [shape: bf16[32,256], index: 0, kind: input, shape index: {}]
  %s1 = inlined_call_operand.vmem [shape: bf16[256,256], index: 1, kind: input, shape index: {}]
  %s2 = inlined_call_operand.vmem [shape: f32[1,256], index: 2, kind: input, shape index: {}]
  %s3 = inlined_call_operand.vmem [shape: bf16[3,256,768], index: 3, kind: input, shape index: {}]
  %s4 = inlined_call_operand.vmem [shape: bf16[3,256,768], index: 4, kind: input, shape index: {}]
  %s5 = inlined_call_operand.vmem [shape: f32[3,1,512], index: 5, kind: input, shape index: {}]
  %s6 = inlined_call_operand.vmem [shape: f32[3,1,256], index: 6, kind: input, shape index: {}]
  %s7 = inlined_call_operand.vmem [shape: f32[3,1,256], index: 7, kind: input, shape index: {}]
  %s8 = inlined_call_operand.vmem [shape: bf16[3,256,256], index: 8, kind: input, shape index: {}]
  %s9 = inlined_call_operand.vmem [shape: f32[1,256], index: 9, kind: input, shape index: {}]
  %s10 = inlined_call_operand.vmem [shape: bf16[256,128], index: 10, kind: input, shape index: {}]
  %s11 = inlined_call_operand.vmem [shape: f32[1,128], index: 11, kind: input, shape index: {}]
  %s12 = inlined_call_operand.vmem [shape: f32[8,128], index: 12, kind: output, shape index: {}]
  %s13 = sld [smem:[#allocation0]]
  $region58: #{lstm_forward.1} parent=0
    _
  %s15 = ssub.s32 1, %s13
  %s16 = scalar_select 0, %s15, %s13
  // Predicated region
  $region2: #{lstm_forward.1} parent=0 // pred_check
    _
  $region3: #{lstm_forward.1} parent=0 // pred_check_branch
    %18 = sbr.rel (0) target = $region5
  $region4: #{lstm_forward.1} parent=0 // pred_region
    _
  $region5: #{lstm_forward.1} parent=0 // pred_fallthru
    _
  // Predicated region
  $region6: #{lstm_forward.1} parent=0 // pred_check
    _
  $region7: #{lstm_forward.1} parent=0 // pred_check_branch
    %20 = sbr.rel (0) target = $region9
  $region8: #{lstm_forward.1} parent=0 // pred_region
    _
  $region9: #{lstm_forward.1} parent=0 // pred_fallthru
    _
  // Predicated region
  $region10: #{lstm_forward.1} parent=0 // pred_check
    _
  $region11: #{lstm_forward.1} parent=0 // pred_check_branch
    %22 = sbr.rel (0) target = $region13
  $region12: #{lstm_forward.1} parent=0 // pred_region
    _
  $region13: #{lstm_forward.1} parent=0 // pred_fallthru
    _
  // Predicated region
  $region14: #{lstm_forward.1} parent=0 // pred_check
    _
  $region15: #{lstm_forward.1} parent=0 // pred_check_branch
    %24 = sbr.rel (0) target = $region17
  $region16: #{lstm_forward.1} parent=0 // pred_region
    _
  $region17: #{lstm_forward.1} parent=0 // pred_fallthru
    _
  // Predicated region
  $region18: #{lstm_forward.1} parent=0 // pred_check
    _
  $region19: #{lstm_forward.1} parent=0 // pred_check_branch
    %26 = sbr.rel (0) target = $region21
  $region20: #{lstm_forward.1} parent=0 // pred_region
    _
  $region21: #{lstm_forward.1} parent=0 // pred_fallthru
    _
  // Predicated region
  $region22: #{lstm_forward.1} parent=0 // pred_check
    _
  $region23: #{lstm_forward.1} parent=0 // pred_check_branch
    %28 = sbr.rel (0) target = $region25
  $region24: #{lstm_forward.1} parent=0 // pred_region
    _
  $region25: #{lstm_forward.1} parent=0 // pred_fallthru
    _
  // Predicated region
  $region26: #{lstm_forward.1} parent=0 // pred_check
    _
  $region27: #{lstm_forward.1} parent=0 // pred_check_branch
    %30 = sbr.rel (0) target = $region29
  $region28: #{lstm_forward.1} parent=0 // pred_region
    _
  $region29: #{lstm_forward.1} parent=0 // pred_fallthru
    _
  // Predicated region
  $region30: #{lstm_forward.1} parent=0 // pred_check
    _
  $region31: #{lstm_forward.1} parent=0 // pred_check_branch
    %32 = sbr.rel (0) target = $region33
  $region32: #{lstm_forward.1} parent=0 // pred_region
    _
  $region33: #{lstm_forward.1} parent=0 // pred_fallthru
    _
  // Predicated region
  $region34: #{lstm_forward.1} parent=0 // pred_check
    _
  $region35: #{lstm_forward.1} parent=0 // pred_check_branch
    %34 = sbr.rel (0) target = $region37
  $region36: #{lstm_forward.1} parent=0 // pred_region
    _
  $region37: #{lstm_forward.1} parent=0 // pred_fallthru
    _
  // Predicated region
  $region38: #{lstm_forward.1} parent=0 // pred_check
    _
  $region39: #{lstm_forward.1} parent=0 // pred_check_branch
    %36 = sbr.rel (0) target = $region41
  $region40: #{lstm_forward.1} parent=0 // pred_region
    _
  $region41: #{lstm_forward.1} parent=0 // pred_fallthru
    _
  // Predicated region
  $region42: #{lstm_forward.1} parent=0 // pred_check
    _
  $region43: #{lstm_forward.1} parent=0 // pred_check_branch
    %38 = sbr.rel (0) target = $region45
  $region44: #{lstm_forward.1} parent=0 // pred_region
    _
  $region45: #{lstm_forward.1} parent=0 // pred_fallthru
    _
  // Predicated region
  $region46: #{lstm_forward.1} parent=0 // pred_check
    _
  $region47: #{lstm_forward.1} parent=0 // pred_check_branch
    %40 = sbr.rel (0) target = $region49
  $region48: #{lstm_forward.1} parent=0 // pred_region
    _
  $region49: #{lstm_forward.1} parent=0 // pred_fallthru
    _
  %v42 = vld [vmem:[%s0] sm:$0xff]
  %v43 = vld [vmem:[%s0 + $0x8] sm:$0xff]
  %v44 = vld [vmem:[%s0 + $0x10] sm:$0xff]
  %v45 = vld [vmem:[%s0 + $0x18] sm:$0xff]
  %v46 = vld [vmem:[%s1] sm:$0xff]
  %v47 = vld [vmem:[%s1 + $0x8] sm:$0xff]
  %v48 = vld [vmem:[%s1 + $0x10] sm:$0xff]
  %v49 = vld [vmem:[%s1 + $0x18] sm:$0xff]
  %v50 = vld [vmem:[%s1 + $0x20] sm:$0xff]
  %v51 = vld [vmem:[%s1 + $0x28] sm:$0xff]
  %v52 = vld [vmem:[%s1 + $0x30] sm:$0xff]
  %v53 = vld [vmem:[%s1 + $0x38] sm:$0xff]
  %v54 = vld [vmem:[%s1 + $0x40] sm:$0xff]
  %v55 = vld [vmem:[%s1 + $0x48] sm:$0xff]
  %v56 = vld [vmem:[%s1 + $0x50] sm:$0xff]
  %v57 = vld [vmem:[%s1 + $0x58] sm:$0xff]
  %v58 = vld [vmem:[%s1 + $0x60] sm:$0xff]
  %v59 = vld [vmem:[%s1 + $0x68] sm:$0xff]
  %v60 = vld [vmem:[%s1 + $0x70] sm:$0xff]
  %v61 = vld [vmem:[%s1 + $0x78] sm:$0xff]
  %v62 = vld [vmem:[%s1 + $0x80] sm:$0xff]
  %v63 = vld [vmem:[%s1 + $0x88] sm:$0xff]
  %v64 = vld [vmem:[%s1 + $0x90] sm:$0xff]
  %v65 = vld [vmem:[%s1 + $0x98] sm:$0xff]
  %v66 = vld [vmem:[%s1 + $0xa0] sm:$0xff]
  %v67 = vld [vmem:[%s1 + $0xa8] sm:$0xff]
  %v68 = vld [vmem:[%s1 + $0xb0] sm:$0xff]
  %v69 = vld [vmem:[%s1 + $0xb8] sm:$0xff]
  %v70 = vld [vmem:[%s1 + $0xc0] sm:$0xff]
  %v71 = vld [vmem:[%s1 + $0xc8] sm:$0xff]
  %v72 = vld [vmem:[%s1 + $0xd0] sm:$0xff]
  %v73 = vld [vmem:[%s1 + $0xd8] sm:$0xff]
  %v74 = vld [vmem:[%s1 + $0xe0] sm:$0xff]
  %v75 = vld [vmem:[%s1 + $0xe8] sm:$0xff]
  %v76 = vld [vmem:[%s1 + $0xf0] sm:$0xff]
  %v77 = vld [vmem:[%s1 + $0xf8] sm:$0xff]
  %v78 = vld [vmem:[%s2] sm:$0x3]
  %v80 = vlaneseq
  %v81 = vshrl.u32 %v80, 7
  %v82 = vsub.s32 0, %v81
  %v83 = vrot.slane %v78, %v82
  %v84 = vlaneseq
  %v85 = vshrl.u32 %v84, 7
  %v86 = vsub.s32 1, %v85
  %v87 = vrot.slane %v78, %v86
  %v94 = vunpack.c.l.b16 %v42
  %v95 = vunpack.c.h.b16 %v42
  %v96 = vunpack.c.l.b16 %v43
  %v97 = vunpack.c.h.b16 %v43
  %v98 = vunpack.c.l.b16 %v44
  %v99 = vunpack.c.h.b16 %v44
  %v100 = vunpack.c.l.b16 %v45
  %v101 = vunpack.c.h.b16 %v45
  %v102 = vpack.c.b16 %v96, %v94
  %v103 = vpack.c.b16 %v97, %v95
  %v104 = vpack.c.b16 %v100, %v98
  %v105 = vpack.c.b16 %v101, %v99
  %v142 = vunpack.c.l.b16 %v46
  %v143 = vunpack.c.h.b16 %v46
  %v144 = vunpack.c.l.b16 %v47
  %v145 = vunpack.c.h.b16 %v47
  %v146 = vunpack.c.l.b16 %v48
  %v147 = vunpack.c.h.b16 %v48
  %v148 = vunpack.c.l.b16 %v49
  %v149 = vunpack.c.h.b16 %v49
  %v150 = vunpack.c.l.b16 %v50
  %v151 = vunpack.c.h.b16 %v50
  %v152 = vunpack.c.l.b16 %v51
  %v153 = vunpack.c.h.b16 %v51
  %v154 = vunpack.c.l.b16 %v52
  %v155 = vunpack.c.h.b16 %v52
  %v156 = vunpack.c.l.b16 %v53
  %v157 = vunpack.c.h.b16 %v53
  %v158 = vunpack.c.l.b16 %v54
  %v159 = vunpack.c.h.b16 %v54
  %v160 = vunpack.c.l.b16 %v55
  %v161 = vunpack.c.h.b16 %v55
  %v162 = vunpack.c.l.b16 %v56
  %v163 = vunpack.c.h.b16 %v56
  %v164 = vunpack.c.l.b16 %v57
  %v165 = vunpack.c.h.b16 %v57
  %v166 = vunpack.c.l.b16 %v58
  %v167 = vunpack.c.h.b16 %v58
  %v168 = vunpack.c.l.b16 %v59
  %v169 = vunpack.c.h.b16 %v59
  %v170 = vunpack.c.l.b16 %v60
  %v171 = vunpack.c.h.b16 %v60
  %v172 = vunpack.c.l.b16 %v61
  %v173 = vunpack.c.h.b16 %v61
  %v174 = vunpack.c.l.b16 %v62
  %v175 = vunpack.c.h.b16 %v62
  %v176 = vunpack.c.l.b16 %v63
  %v177 = vunpack.c.h.b16 %v63
  %v178 = vunpack.c.l.b16 %v64
  %v179 = vunpack.c.h.b16 %v64
  %v180 = vunpack.c.l.b16 %v65
  %v181 = vunpack.c.h.b16 %v65
  %v182 = vunpack.c.l.b16 %v66
  %v183 = vunpack.c.h.b16 %v66
  %v184 = vunpack.c.l.b16 %v67
  %v185 = vunpack.c.h.b16 %v67
  %v186 = vunpack.c.l.b16 %v68
  %v187 = vunpack.c.h.b16 %v68
  %v188 = vunpack.c.l.b16 %v69
  %v189 = vunpack.c.h.b16 %v69
  %v190 = vunpack.c.l.b16 %v70
  %v191 = vunpack.c.h.b16 %v70
  %v192 = vunpack.c.l.b16 %v71
  %v193 = vunpack.c.h.b16 %v71
  %v194 = vunpack.c.l.b16 %v72
  %v195 = vunpack.c.h.b16 %v72
  %v196 = vunpack.c.l.b16 %v73
  %v197 = vunpack.c.h.b16 %v73
  %v198 = vunpack.c.l.b16 %v74
  %v199 = vunpack.c.h.b16 %v74
  %v200 = vunpack.c.l.b16 %v75
  %v201 = vunpack.c.h.b16 %v75
  %v202 = vunpack.c.l.b16 %v76
  %v203 = vunpack.c.h.b16 %v76
  %v204 = vunpack.c.l.b16 %v77
  %v205 = vunpack.c.h.b16 %v77
  %v206 = vpack.c.b16 %v144, %v142
  %v207 = vpack.c.b16 %v145, %v143
  %v208 = vpack.c.b16 %v148, %v146
  %v209 = vpack.c.b16 %v149, %v147
  %v210 = vpack.c.b16 %v152, %v150
  %v211 = vpack.c.b16 %v153, %v151
  %v212 = vpack.c.b16 %v156, %v154
  %v213 = vpack.c.b16 %v157, %v155
  %v214 = vpack.c.b16 %v160, %v158
  %v215 = vpack.c.b16 %v161, %v159
  %v216 = vpack.c.b16 %v164, %v162
  %v217 = vpack.c.b16 %v165, %v163
  %v218 = vpack.c.b16 %v168, %v166
  %v219 = vpack.c.b16 %v169, %v167
  %v220 = vpack.c.b16 %v172, %v170
  %v221 = vpack.c.b16 %v173, %v171
  %v222 = vpack.c.b16 %v176, %v174
  %v223 = vpack.c.b16 %v177, %v175
  %v224 = vpack.c.b16 %v180, %v178
  %v225 = vpack.c.b16 %v181, %v179
  %v226 = vpack.c.b16 %v184, %v182
  %v227 = vpack.c.b16 %v185, %v183
  %v228 = vpack.c.b16 %v188, %v186
  %v229 = vpack.c.b16 %v189, %v187
  %v230 = vpack.c.b16 %v192, %v190
  %v231 = vpack.c.b16 %v193, %v191
  %v232 = vpack.c.b16 %v196, %v194
  %v233 = vpack.c.b16 %v197, %v195
  %v234 = vpack.c.b16 %v200, %v198
  %v235 = vpack.c.b16 %v201, %v199
  %v236 = vpack.c.b16 %v204, %v202
  %v237 = vpack.c.b16 %v205, %v203
  %270 = vmatprep.subr.bf16.mxu0 %v207
  %271 = vmatpush1.bf16.msra.mxu0 %v206
  %272 = vmatprep.subr.bf16.mxu0 %v209
  %273 = vmatpush1.bf16.msra.mxu0 %v208
  %274 = vmatprep.subr.bf16.mxu0 %v211
  %275 = vmatpush1.bf16.msra.mxu0 %v210
  %276 = vmatprep.subr.bf16.mxu0 %v213
  %277 = vmatpush1.bf16.msra.mxu0 %v212
  %278 = vmatprep.subr.bf16.mxu0 %v215
  %279 = vmatpush1.bf16.msra.mxu0 %v214
  %280 = vmatprep.subr.bf16.mxu0 %v217
  %281 = vmatpush1.bf16.msra.mxu0 %v216
  %282 = vmatprep.subr.bf16.mxu0 %v219
  %283 = vmatpush1.bf16.msra.mxu0 %v218
  %284 = vmatprep.subr.bf16.mxu0 %v221
  %285 = vmatpush1.bf16.msra.mxu0 %v220
  %286 = vmatprep.subr.bf16.mxu0 %v223
  %287 = vmatpush1.bf16.msra.mxu0 %v222
  %288 = vmatprep.subr.bf16.mxu0 %v225
  %289 = vmatpush1.bf16.msra.mxu0 %v224
  %290 = vmatprep.subr.bf16.mxu0 %v227
  %291 = vmatpush1.bf16.msra.mxu0 %v226
  %292 = vmatprep.subr.bf16.mxu0 %v229
  %293 = vmatpush1.bf16.msra.mxu0 %v228
  %294 = vmatprep.subr.bf16.mxu0 %v231
  %295 = vmatpush1.bf16.msra.mxu0 %v230
  %296 = vmatprep.subr.bf16.mxu0 %v233
  %297 = vmatpush1.bf16.msra.mxu0 %v232
  %298 = vmatprep.subr.bf16.mxu0 %v235
  %299 = vmatpush1.bf16.msra.mxu0 %v234
  %300 = vmatprep.subr.bf16.mxu0 %v237
  %301 = vmatpush1.bf16.msra.mxu0 %v236
  %302 = vmatprep.mubr.bf16.mxu0 %v103
  %303 = vmatmul.mubr.bf16.gmra.mrb[0].mxu0 %v102
  %v304 = vpop.f32.mrb[0].mxu0
  %v305 = vadd.f32 %v83, %v304
  %v306 = vpop.f32.mrb[0].mxu0
  %v307 = vadd.f32 %v87, %v306
  %v308 = vpop.f32.mrb[0].mxu0
  %v309 = vadd.f32 %v83, %v308
  %v310 = vpop.f32.mrb[0].mxu0
  %v311 = vadd.f32 %v87, %v310
  %312 = vmatprep.mubr.bf16.mxu0 %v105
  %313 = vmatmul.mubr.bf16.gmra.mrb[0].mxu0 %v104
  %v314 = vpop.f32.mrb[0].mxu0
  %v315 = vadd.f32 %v83, %v314
  %v316 = vpop.f32.mrb[0].mxu0
  %v317 = vadd.f32 %v87, %v316
  %v318 = vpop.f32.mrb[0].mxu0
  %v319 = vadd.f32 %v83, %v318
  %v320 = vpop.f32.mrb[0].mxu0
  %v321 = vadd.f32 %v87, %v320
  %322 = vdwg.mxu0
  %vm323 = vcmp.gt.f32.partialorder %v305, 0.0
  %vm324 = vcmp.gt.f32.partialorder %v307, 0.0
  %vm325 = vcmp.gt.f32.partialorder %v309, 0.0
  %vm326 = vcmp.gt.f32.partialorder %v311, 0.0
  %vm327 = vcmp.gt.f32.partialorder %v315, 0.0
  %vm328 = vcmp.gt.f32.partialorder %v317, 0.0
  %vm329 = vcmp.gt.f32.partialorder %v319, 0.0
  %vm330 = vcmp.gt.f32.partialorder %v321, 0.0
  %v331 = vmul.f32 %v305, 0.01
  %v332 = vmul.f32 %v307, 0.01
  %v333 = vmul.f32 %v309, 0.01
  %v334 = vmul.f32 %v311, 0.01
  %v335 = vmul.f32 %v315, 0.01
  %v336 = vmul.f32 %v317, 0.01
  %v337 = vmul.f32 %v319, 0.01
  %v338 = vmul.f32 %v321, 0.01
  %v339 = vsel %vm323, %v305, %v331
  %v340 = vsel %vm324, %v307, %v332
  %v341 = vsel %vm325, %v309, %v333
  %v342 = vsel %vm326, %v311, %v334
  %v343 = vsel %vm327, %v315, %v335
  %v344 = vsel %vm328, %v317, %v336
  %v345 = vsel %vm329, %v319, %v337
  %v346 = vsel %vm330, %v321, %v338
  %347 = vst [vmem:[#allocation2] sm:$0xff] %v339
  %348 = vst [vmem:[#allocation2 + $0x8] sm:$0xff] %v340
  %349 = vst [vmem:[#allocation2 + $0x10] sm:$0xff] %v341
  %350 = vst [vmem:[#allocation2 + $0x18] sm:$0xff] %v342
  %351 = vst [vmem:[#allocation2 + $0x20] sm:$0xff] %v343
  %352 = vst [vmem:[#allocation2 + $0x28] sm:$0xff] %v344
  %353 = vst [vmem:[#allocation2 + $0x30] sm:$0xff] %v345
  %354 = vst [vmem:[#allocation2 + $0x38] sm:$0xff] %v346
  %v355 = vld [vmem:[%s3] sm:$0xff]
  %v356 = vld [vmem:[%s3 + $0x8] sm:$0xff]
  %v357 = vld [vmem:[%s3 + $0x10] sm:$0xff]
  %v358 = vld [vmem:[%s3 + $0x18] sm:$0xff]
  %v359 = vld [vmem:[%s3 + $0x20] sm:$0xff]
  %v360 = vld [vmem:[%s3 + $0x28] sm:$0xff]
  %v361 = vld [vmem:[%s3 + $0x30] sm:$0xff]
  %v362 = vld [vmem:[%s3 + $0x38] sm:$0xff]
  %v363 = vld [vmem:[%s3 + $0x40] sm:$0xff]
  %v364 = vld [vmem:[%s3 + $0x48] sm:$0xff]
  %v365 = vld [vmem:[%s3 + $0x50] sm:$0xff]
  %v366 = vld [vmem:[%s3 + $0x58] sm:$0xff]
  %v367 = vld [vmem:[%s3 + $0x60] sm:$0xff]
  %v368 = vld [vmem:[%s3 + $0x68] sm:$0xff]
  %v369 = vld [vmem:[%s3 + $0x70] sm:$0xff]
  %v370 = vld [vmem:[%s3 + $0x78] sm:$0xff]
  %v371 = vld [vmem:[%s3 + $0x80] sm:$0xff]
  %v372 = vld [vmem:[%s3 + $0x88] sm:$0xff]
  %v373 = vld [vmem:[%s3 + $0x90] sm:$0xff]
  %v374 = vld [vmem:[%s3 + $0x98] sm:$0xff]
  %v375 = vld [vmem:[%s3 + $0xa0] sm:$0xff]
  %v376 = vld [vmem:[%s3 + $0xa8] sm:$0xff]
  %v377 = vld [vmem:[%s3 + $0xb0] sm:$0xff]
  %v378 = vld [vmem:[%s3 + $0xb8] sm:$0xff]
  %v379 = vld [vmem:[%s3 + $0xc0] sm:$0xff]
  %v380 = vld [vmem:[%s3 + $0xc8] sm:$0xff]
  %v381 = vld [vmem:[%s3 + $0xd0] sm:$0xff]
  %v382 = vld [vmem:[%s3 + $0xd8] sm:$0xff]
  %v383 = vld [vmem:[%s3 + $0xe0] sm:$0xff]
  %v384 = vld [vmem:[%s3 + $0xe8] sm:$0xff]
  %v385 = vld [vmem:[%s3 + $0xf0] sm:$0xff]
  %v386 = vld [vmem:[%s3 + $0xf8] sm:$0xff]
  %v387 = vld [vmem:[%s3 + $0x100] sm:$0xff]
  %v388 = vld [vmem:[%s3 + $0x108] sm:$0xff]
  %v389 = vld [vmem:[%s3 + $0x110] sm:$0xff]
  %v390 = vld [vmem:[%s3 + $0x118] sm:$0xff]
  %v391 = vld [vmem:[%s3 + $0x120] sm:$0xff]
  %v392 = vld [vmem:[%s3 + $0x128] sm:$0xff]
  %v393 = vld [vmem:[%s3 + $0x130] sm:$0xff]
  %v394 = vld [vmem:[%s3 + $0x138] sm:$0xff]
  %v395 = vld [vmem:[%s3 + $0x140] sm:$0xff]
  %v396 = vld [vmem:[%s3 + $0x148] sm:$0xff]
  %v397 = vld [vmem:[%s3 + $0x150] sm:$0xff]
  %v398 = vld [vmem:[%s3 + $0x158] sm:$0xff]
  %v399 = vld [vmem:[%s3 + $0x160] sm:$0xff]
  %v400 = vld [vmem:[%s3 + $0x168] sm:$0xff]
  %v401 = vld [vmem:[%s3 + $0x170] sm:$0xff]
  %v402 = vld [vmem:[%s3 + $0x178] sm:$0xff]
  %v403 = vld [vmem:[%s3 + $0x180] sm:$0xff]
  %v404 = vld [vmem:[%s3 + $0x188] sm:$0xff]
  %v405 = vld [vmem:[%s3 + $0x190] sm:$0xff]
  %v406 = vld [vmem:[%s3 + $0x198] sm:$0xff]
  %v407 = vld [vmem:[%s3 + $0x1a0] sm:$0xff]
  %v408 = vld [vmem:[%s3 + $0x1a8] sm:$0xff]
  %v409 = vld [vmem:[%s3 + $0x1b0] sm:$0xff]
  %v410 = vld [vmem:[%s3 + $0x1b8] sm:$0xff]
  %v411 = vld [vmem:[%s3 + $0x1c0] sm:$0xff]
  %v412 = vld [vmem:[%s3 + $0x1c8] sm:$0xff]
  %v413 = vld [vmem:[%s3 + $0x1d0] sm:$0xff]
  %v414 = vld [vmem:[%s3 + $0x1d8] sm:$0xff]
  %v415 = vld [vmem:[%s3 + $0x1e0] sm:$0xff]
  %v416 = vld [vmem:[%s3 + $0x1e8] sm:$0xff]
  %v417 = vld [vmem:[%s3 + $0x1f0] sm:$0xff]
  %v418 = vld [vmem:[%s3 + $0x1f8] sm:$0xff]
  %v419 = vld [vmem:[%s3 + $0x200] sm:$0xff]
  %v420 = vld [vmem:[%s3 + $0x208] sm:$0xff]
  %v421 = vld [vmem:[%s3 + $0x210] sm:$0xff]
  %v422 = vld [vmem:[%s3 + $0x218] sm:$0xff]
  %v423 = vld [vmem:[%s3 + $0x220] sm:$0xff]
  %v424 = vld [vmem:[%s3 + $0x228] sm:$0xff]
  %v425 = vld [vmem:[%s3 + $0x230] sm:$0xff]
  %v426 = vld [vmem:[%s3 + $0x238] sm:$0xff]
  %v427 = vld [vmem:[%s3 + $0x240] sm:$0xff]
  %v428 = vld [vmem:[%s3 + $0x248] sm:$0xff]
  %v429 = vld [vmem:[%s3 + $0x250] sm:$0xff]
  %v430 = vld [vmem:[%s3 + $0x258] sm:$0xff]
  %v431 = vld [vmem:[%s3 + $0x260] sm:$0xff]
  %v432 = vld [vmem:[%s3 + $0x268] sm:$0xff]
  %v433 = vld [vmem:[%s3 + $0x270] sm:$0xff]
  %v434 = vld [vmem:[%s3 + $0x278] sm:$0xff]
  %v435 = vld [vmem:[%s3 + $0x280] sm:$0xff]
  %v436 = vld [vmem:[%s3 + $0x288] sm:$0xff]
  %v437 = vld [vmem:[%s3 + $0x290] sm:$0xff]
  %v438 = vld [vmem:[%s3 + $0x298] sm:$0xff]
  %v439 = vld [vmem:[%s3 + $0x2a0] sm:$0xff]
  %v440 = vld [vmem:[%s3 + $0x2a8] sm:$0xff]
  %v441 = vld [vmem:[%s3 + $0x2b0] sm:$0xff]
  %v442 = vld [vmem:[%s3 + $0x2b8] sm:$0xff]
  %v443 = vld [vmem:[%s3 + $0x2c0] sm:$0xff]
  %v444 = vld [vmem:[%s3 + $0x2c8] sm:$0xff]
  %v445 = vld [vmem:[%s3 + $0x2d0] sm:$0xff]
  %v446 = vld [vmem:[%s3 + $0x2d8] sm:$0xff]
  %v447 = vld [vmem:[%s3 + $0x2e0] sm:$0xff]
  %v448 = vld [vmem:[%s3 + $0x2e8] sm:$0xff]
  %v449 = vld [vmem:[%s3 + $0x2f0] sm:$0xff]
  %v450 = vld [vmem:[%s3 + $0x2f8] sm:$0xff]
  %v451 = vld [vmem:[%s4] sm:$0xff]
  %v452 = vld [vmem:[%s4 + $0x8] sm:$0xff]
  %v453 = vld [vmem:[%s4 + $0x10] sm:$0xff]
  %v454 = vld [vmem:[%s4 + $0x18] sm:$0xff]
  %v455 = vld [vmem:[%s4 + $0x20] sm:$0xff]
  %v456 = vld [vmem:[%s4 + $0x28] sm:$0xff]
  %v457 = vld [vmem:[%s4 + $0x30] sm:$0xff]
  %v458 = vld [vmem:[%s4 + $0x38] sm:$0xff]
  %v459 = vld [vmem:[%s4 + $0x40] sm:$0xff]
  %v460 = vld [vmem:[%s4 + $0x48] sm:$0xff]
  %v461 = vld [vmem:[%s4 + $0x50] sm:$0xff]
  %v462 = vld [vmem:[%s4 + $0x58] sm:$0xff]
  %v463 = vld [vmem:[%s4 + $0x60] sm:$0xff]
  %v464 = vld [vmem:[%s4 + $0x68] sm:$0xff]
  %v465 = vld [vmem:[%s4 + $0x70] sm:$0xff]
  %v466 = vld [vmem:[%s4 + $0x78] sm:$0xff]
  %v467 = vld [vmem:[%s4 + $0x80] sm:$0xff]
  %v468 = vld [vmem:[%s4 + $0x88] sm:$0xff]
  %v469 = vld [vmem:[%s4 + $0x90] sm:$0xff]
  %v470 = vld [vmem:[%s4 + $0x98] sm:$0xff]
  %v471 = vld [vmem:[%s4 + $0xa0] sm:$0xff]
  %v472 = vld [vmem:[%s4 + $0xa8] sm:$0xff]
  %v473 = vld [vmem:[%s4 + $0xb0] sm:$0xff]
  %v474 = vld [vmem:[%s4 + $0xb8] sm:$0xff]
  %v475 = vld [vmem:[%s4 + $0xc0] sm:$0xff]
  %v476 = vld [vmem:[%s4 + $0xc8] sm:$0xff]
  %v477 = vld [vmem:[%s4 + $0xd0] sm:$0xff]
  %v478 = vld [vmem:[%s4 + $0xd8] sm:$0xff]
  %v479 = vld [vmem:[%s4 + $0xe0] sm:$0xff]
  %v480 = vld [vmem:[%s4 + $0xe8] sm:$0xff]
  %v481 = vld [vmem:[%s4 + $0xf0] sm:$0xff]
  %v482 = vld [vmem:[%s4 + $0xf8] sm:$0xff]
  %v483 = vld [vmem:[%s4 + $0x100] sm:$0xff]
  %v484 = vld [vmem:[%s4 + $0x108] sm:$0xff]
  %v485 = vld [vmem:[%s4 + $0x110] sm:$0xff]
  %v486 = vld [vmem:[%s4 + $0x118] sm:$0xff]
  %v487 = vld [vmem:[%s4 + $0x120] sm:$0xff]
  %v488 = vld [vmem:[%s4 + $0x128] sm:$0xff]
  %v489 = vld [vmem:[%s4 + $0x130] sm:$0xff]
  %v490 = vld [vmem:[%s4 + $0x138] sm:$0xff]
  %v491 = vld [vmem:[%s4 + $0x140] sm:$0xff]
  %v492 = vld [vmem:[%s4 + $0x148] sm:$0xff]
  %v493 = vld [vmem:[%s4 + $0x150] sm:$0xff]
  %v494 = vld [vmem:[%s4 + $0x158] sm:$0xff]
  %v495 = vld [vmem:[%s4 + $0x160] sm:$0xff]
  %v496 = vld [vmem:[%s4 + $0x168] sm:$0xff]
  %v497 = vld [vmem:[%s4 + $0x170] sm:$0xff]
  %v498 = vld [vmem:[%s4 + $0x178] sm:$0xff]
  %v499 = vld [vmem:[%s4 + $0x180] sm:$0xff]
  %v500 = vld [vmem:[%s4 + $0x188] sm:$0xff]
  %v501 = vld [vmem:[%s4 + $0x190] sm:$0xff]
  %v502 = vld [vmem:[%s4 + $0x198] sm:$0xff]
  %v503 = vld [vmem:[%s4 + $0x1a0] sm:$0xff]
  %v504 = vld [vmem:[%s4 + $0x1a8] sm:$0xff]
  %v505 = vld [vmem:[%s4 + $0x1b0] sm:$0xff]
  %v506 = vld [vmem:[%s4 + $0x1b8] sm:$0xff]
  %v507 = vld [vmem:[%s4 + $0x1c0] sm:$0xff]
  %v508 = vld [vmem:[%s4 + $0x1c8] sm:$0xff]
  %v509 = vld [vmem:[%s4 + $0x1d0] sm:$0xff]
  %v510 = vld [vmem:[%s4 + $0x1d8] sm:$0xff]
  %v511 = vld [vmem:[%s4 + $0x1e0] sm:$0xff]
  %v512 = vld [vmem:[%s4 + $0x1e8] sm:$0xff]
  %v513 = vld [vmem:[%s4 + $0x1f0] sm:$0xff]
  %v514 = vld [vmem:[%s4 + $0x1f8] sm:$0xff]
  %v515 = vld [vmem:[%s4 + $0x200] sm:$0xff]
  %v516 = vld [vmem:[%s4 + $0x208] sm:$0xff]
  %v517 = vld [vmem:[%s4 + $0x210] sm:$0xff]
  %v518 = vld [vmem:[%s4 + $0x218] sm:$0xff]
  %v519 = vld [vmem:[%s4 + $0x220] sm:$0xff]
  %v520 = vld [vmem:[%s4 + $0x228] sm:$0xff]
  %v521 = vld [vmem:[%s4 + $0x230] sm:$0xff]
  %v522 = vld [vmem:[%s4 + $0x238] sm:$0xff]
  %v523 = vld [vmem:[%s4 + $0x240] sm:$0xff]
  %v524 = vld [vmem:[%s4 + $0x248] sm:$0xff]
  %v525 = vld [vmem:[%s4 + $0x250] sm:$0xff]
  %v526 = vld [vmem:[%s4 + $0x258] sm:$0xff]
  %v527 = vld [vmem:[%s4 + $0x260] sm:$0xff]
  %v528 = vld [vmem:[%s4 + $0x268] sm:$0xff]
  %v529 = vld [vmem:[%s4 + $0x270] sm:$0xff]
  %v530 = vld [vmem:[%s4 + $0x278] sm:$0xff]
  %v531 = vld [vmem:[%s4 + $0x280] sm:$0xff]
  %v532 = vld [vmem:[%s4 + $0x288] sm:$0xff]
  %v533 = vld [vmem:[%s4 + $0x290] sm:$0xff]
  %v534 = vld [vmem:[%s4 + $0x298] sm:$0xff]
  %v535 = vld [vmem:[%s4 + $0x2a0] sm:$0xff]
  %v536 = vld [vmem:[%s4 + $0x2a8] sm:$0xff]
  %v537 = vld [vmem:[%s4 + $0x2b0] sm:$0xff]
  %v538 = vld [vmem:[%s4 + $0x2b8] sm:$0xff]
  %v539 = vld [vmem:[%s4 + $0x2c0] sm:$0xff]
  %v540 = vld [vmem:[%s4 + $0x2c8] sm:$0xff]
  %v541 = vld [vmem:[%s4 + $0x2d0] sm:$0xff]
  %v542 = vld [vmem:[%s4 + $0x2d8] sm:$0xff]
  %v543 = vld [vmem:[%s4 + $0x2e0] sm:$0xff]
  %v544 = vld [vmem:[%s4 + $0x2e8] sm:$0xff]
  %v545 = vld [vmem:[%s4 + $0x2f0] sm:$0xff]
  %v546 = vld [vmem:[%s4 + $0x2f8] sm:$0xff]
  %v547 = vld [vmem:[%s5] sm:$0xf]
  %v548 = vld [vmem:[%s6] sm:$0x3]
  %v549 = vld [vmem:[%s7] sm:$0x3]
  %v550 = vld [vmem:[#allocation2] sm:$0xff]
  %v551 = vld [vmem:[#allocation2 + $0x8] sm:$0xff]
  %v552 = vld [vmem:[#allocation2 + $0x10] sm:$0xff]
  %v553 = vld [vmem:[#allocation2 + $0x18] sm:$0xff]
  %v554 = vld [vmem:[#allocation2 + $0x20] sm:$0xff]
  %v555 = vld [vmem:[#allocation2 + $0x28] sm:$0xff]
  %v556 = vld [vmem:[#allocation2 + $0x30] sm:$0xff]
  %v557 = vld [vmem:[#allocation2 + $0x38] sm:$0xff]
  %v558 = vpack.c.bf16 %v552, %v550
  %v559 = vpack.c.bf16 %v553, %v551
  %v560 = vpack.c.bf16 %v556, %v554
  %v561 = vpack.c.bf16 %v557, %v555
  %v658 = vunpack.c.l.b16 %v355
  %v659 = vunpack.c.h.b16 %v355
  %v660 = vunpack.c.l.b16 %v356
  %v661 = vunpack.c.h.b16 %v356
  %v662 = vunpack.c.l.b16 %v357
  %v663 = vunpack.c.h.b16 %v357
  %v664 = vunpack.c.l.b16 %v358
  %v665 = vunpack.c.h.b16 %v358
  %v666 = vunpack.c.l.b16 %v359
  %v667 = vunpack.c.h.b16 %v359
  %v668 = vunpack.c.l.b16 %v360
  %v669 = vunpack.c.h.b16 %v360
  %v670 = vunpack.c.l.b16 %v361
  %v671 = vunpack.c.h.b16 %v361
  %v672 = vunpack.c.l.b16 %v362
  %v673 = vunpack.c.h.b16 %v362
  %v674 = vunpack.c.l.b16 %v363
  %v675 = vunpack.c.h.b16 %v363
  %v676 = vunpack.c.l.b16 %v364
  %v677 = vunpack.c.h.b16 %v364
  %v678 = vunpack.c.l.b16 %v365
  %v679 = vunpack.c.h.b16 %v365
  %v680 = vunpack.c.l.b16 %v366
  %v681 = vunpack.c.h.b16 %v366
  %v682 = vunpack.c.l.b16 %v367
  %v683 = vunpack.c.h.b16 %v367
  %v684 = vunpack.c.l.b16 %v368
  %v685 = vunpack.c.h.b16 %v368
  %v686 = vunpack.c.l.b16 %v369
  %v687 = vunpack.c.h.b16 %v369
  %v688 = vunpack.c.l.b16 %v370
  %v689 = vunpack.c.h.b16 %v370
  %v690 = vunpack.c.l.b16 %v371
  %v691 = vunpack.c.h.b16 %v371
  %v692 = vunpack.c.l.b16 %v372
  %v693 = vunpack.c.h.b16 %v372
  %v694 = vunpack.c.l.b16 %v373
  %v695 = vunpack.c.h.b16 %v373
  %v696 = vunpack.c.l.b16 %v374
  %v697 = vunpack.c.h.b16 %v374
  %v698 = vunpack.c.l.b16 %v375
  %v699 = vunpack.c.h.b16 %v375
  %v700 = vunpack.c.l.b16 %v376
  %v701 = vunpack.c.h.b16 %v376
  %v702 = vunpack.c.l.b16 %v377
  %v703 = vunpack.c.h.b16 %v377
  %v704 = vunpack.c.l.b16 %v378
  %v705 = vunpack.c.h.b16 %v378
  %v706 = vunpack.c.l.b16 %v379
  %v707 = vunpack.c.h.b16 %v379
  %v708 = vunpack.c.l.b16 %v380
  %v709 = vunpack.c.h.b16 %v380
  %v710 = vunpack.c.l.b16 %v381
  %v711 = vunpack.c.h.b16 %v381
  %v712 = vunpack.c.l.b16 %v382
  %v713 = vunpack.c.h.b16 %v382
  %v714 = vunpack.c.l.b16 %v383
  %v715 = vunpack.c.h.b16 %v383
  %v716 = vunpack.c.l.b16 %v384
  %v717 = vunpack.c.h.b16 %v384
  %v718 = vunpack.c.l.b16 %v385
  %v719 = vunpack.c.h.b16 %v385
  %v720 = vunpack.c.l.b16 %v386
  %v721 = vunpack.c.h.b16 %v386
  %v722 = vunpack.c.l.b16 %v387
  %v723 = vunpack.c.h.b16 %v387
  %v724 = vunpack.c.l.b16 %v388
  %v725 = vunpack.c.h.b16 %v388
  %v726 = vunpack.c.l.b16 %v389
  %v727 = vunpack.c.h.b16 %v389
  %v728 = vunpack.c.l.b16 %v390
  %v729 = vunpack.c.h.b16 %v390
  %v730 = vunpack.c.l.b16 %v391
  %v731 = vunpack.c.h.b16 %v391
  %v732 = vunpack.c.l.b16 %v392
  %v733 = vunpack.c.h.b16 %v392
  %v734 = vunpack.c.l.b16 %v393
  %v735 = vunpack.c.h.b16 %v393
  %v736 = vunpack.c.l.b16 %v394
  %v737 = vunpack.c.h.b16 %v394
  %v738 = vunpack.c.l.b16 %v395
  %v739 = vunpack.c.h.b16 %v395
  %v740 = vunpack.c.l.b16 %v396
  %v741 = vunpack.c.h.b16 %v396
  %v742 = vunpack.c.l.b16 %v397
  %v743 = vunpack.c.h.b16 %v397
  %v744 = vunpack.c.l.b16 %v398
  %v745 = vunpack.c.h.b16 %v398
  %v746 = vunpack.c.l.b16 %v399
  %v747 = vunpack.c.h.b16 %v399
  %v748 = vunpack.c.l.b16 %v400
  %v749 = vunpack.c.h.b16 %v400
  %v750 = vunpack.c.l.b16 %v401
  %v751 = vunpack.c.h.b16 %v401
  %v752 = vunpack.c.l.b16 %v402
  %v753 = vunpack.c.h.b16 %v402
  %v754 = vunpack.c.l.b16 %v403
  %v755 = vunpack.c.h.b16 %v403
  %v756 = vunpack.c.l.b16 %v404
  %v757 = vunpack.c.h.b16 %v404
  %v758 = vunpack.c.l.b16 %v405
  %v759 = vunpack.c.h.b16 %v405
  %v760 = vunpack.c.l.b16 %v406
  %v761 = vunpack.c.h.b16 %v406
  %v762 = vunpack.c.l.b16 %v407
  %v763 = vunpack.c.h.b16 %v407
  %v764 = vunpack.c.l.b16 %v408
  %v765 = vunpack.c.h.b16 %v408
  %v766 = vunpack.c.l.b16 %v409
  %v767 = vunpack.c.h.b16 %v409
  %v768 = vunpack.c.l.b16 %v410
  %v769 = vunpack.c.h.b16 %v410
  %v770 = vunpack.c.l.b16 %v411
  %v771 = vunpack.c.h.b16 %v411
  %v772 = vunpack.c.l.b16 %v412
  %v773 = vunpack.c.h.b16 %v412
  %v774 = vunpack.c.l.b16 %v413
  %v775 = vunpack.c.h.b16 %v413
  %v776 = vunpack.c.l.b16 %v414
  %v777 = vunpack.c.h.b16 %v414
  %v778 = vunpack.c.l.b16 %v415
  %v779 = vunpack.c.h.b16 %v415
  %v780 = vunpack.c.l.b16 %v416
  %v781 = vunpack.c.h.b16 %v416
  %v782 = vunpack.c.l.b16 %v417
  %v783 = vunpack.c.h.b16 %v417
  %v784 = vunpack.c.l.b16 %v418
  %v785 = vunpack.c.h.b16 %v418
  %v786 = vunpack.c.l.b16 %v419
  %v787 = vunpack.c.h.b16 %v419
  %v788 = vunpack.c.l.b16 %v420
  %v789 = vunpack.c.h.b16 %v420
  %v790 = vunpack.c.l.b16 %v421
  %v791 = vunpack.c.h.b16 %v421
  %v792 = vunpack.c.l.b16 %v422
  %v793 = vunpack.c.h.b16 %v422
  %v794 = vunpack.c.l.b16 %v423
  %v795 = vunpack.c.h.b16 %v423
  %v796 = vunpack.c.l.b16 %v424
  %v797 = vunpack.c.h.b16 %v424
  %v798 = vunpack.c.l.b16 %v425
  %v799 = vunpack.c.h.b16 %v425
  %v800 = vunpack.c.l.b16 %v426
  %v801 = vunpack.c.h.b16 %v426
  %v802 = vunpack.c.l.b16 %v427
  %v803 = vunpack.c.h.b16 %v427
  %v804 = vunpack.c.l.b16 %v428
  %v805 = vunpack.c.h.b16 %v428
  %v806 = vunpack.c.l.b16 %v429
  %v807 = vunpack.c.h.b16 %v429
  %v808 = vunpack.c.l.b16 %v430
  %v809 = vunpack.c.h.b16 %v430
  %v810 = vunpack.c.l.b16 %v431
  %v811 = vunpack.c.h.b16 %v431
  %v812 = vunpack.c.l.b16 %v432
  %v813 = vunpack.c.h.b16 %v432
  %v814 = vunpack.c.l.b16 %v433
  %v815 = vunpack.c.h.b16 %v433
  %v816 = vunpack.c.l.b16 %v434
  %v817 = vunpack.c.h.b16 %v434
  %v818 = vunpack.c.l.b16 %v435
  %v819 = vunpack.c.h.b16 %v435
  %v820 = vunpack.c.l.b16 %v436
  %v821 = vunpack.c.h.b16 %v436
  %v822 = vunpack.c.l.b16 %v437
  %v823 = vunpack.c.h.b16 %v437
  %v824 = vunpack.c.l.b16 %v438
  %v825 = vunpack.c.h.b16 %v438
  %v826 = vunpack.c.l.b16 %v439
  %v827 = vunpack.c.h.b16 %v439
  %v828 = vunpack.c.l.b16 %v440
  %v829 = vunpack.c.h.b16 %v440
  %v830 = vunpack.c.l.b16 %v441
  %v831 = vunpack.c.h.b16 %v441
  %v832 = vunpack.c.l.b16 %v442
  %v833 = vunpack.c.h.b16 %v442
  %v834 = vunpack.c.l.b16 %v443
  %v835 = vunpack.c.h.b16 %v443
  %v836 = vunpack.c.l.b16 %v444
  %v837 = vunpack.c.h.b16 %v444
  %v838 = vunpack.c.l.b16 %v445
  %v839 = vunpack.c.h.b16 %v445
  %v840 = vunpack.c.l.b16 %v446
  %v841 = vunpack.c.h.b16 %v446
  %v842 = vunpack.c.l.b16 %v447
  %v843 = vunpack.c.h.b16 %v447
  %v844 = vunpack.c.l.b16 %v448
  %v845 = vunpack.c.h.b16 %v448
  %v846 = vunpack.c.l.b16 %v449
  %v847 = vunpack.c.h.b16 %v449
  %v848 = vunpack.c.l.b16 %v450
  %v849 = vunpack.c.h.b16 %v450
  %v850 = vpack.c.b16 %v664, %v658
  %v851 = vpack.c.b16 %v665, %v659
  %v852 = vpack.c.b16 %v666, %v660
  %v853 = vpack.c.b16 %v667, %v661
  %v854 = vpack.c.b16 %v668, %v662
  %v855 = vpack.c.b16 %v669, %v663
  %v856 = vpack.c.b16 %v676, %v670
  %v857 = vpack.c.b16 %v677, %v671
  %v858 = vpack.c.b16 %v678, %v672
  %v859 = vpack.c.b16 %v679, %v673
  %v860 = vpack.c.b16 %v680, %v674
  %v861 = vpack.c.b16 %v681, %v675
  %v862 = vpack.c.b16 %v688, %v682
  %v863 = vpack.c.b16 %v689, %v683
  %v864 = vpack.c.b16 %v690, %v684
  %v865 = vpack.c.b16 %v691, %v685
  %v866 = vpack.c.b16 %v692, %v686
  %v867 = vpack.c.b16 %v693, %v687
  %v868 = vpack.c.b16 %v700, %v694
  %v869 = vpack.c.b16 %v701, %v695
  %v870 = vpack.c.b16 %v702, %v696
  %v871 = vpack.c.b16 %v703, %v697
  %v872 = vpack.c.b16 %v704, %v698
  %v873 = vpack.c.b16 %v705, %v699
  %v874 = vpack.c.b16 %v712, %v706
  %v875 = vpack.c.b16 %v713, %v707
  %v876 = vpack.c.b16 %v714, %v708
  %v877 = vpack.c.b16 %v715, %v709
  %v878 = vpack.c.b16 %v716, %v710
  %v879 = vpack.c.b16 %v717, %v711
  %v880 = vpack.c.b16 %v724, %v718
  %v881 = vpack.c.b16 %v725, %v719
  %v882 = vpack.c.b16 %v726, %v720
  %v883 = vpack.c.b16 %v727, %v721
  %v884 = vpack.c.b16 %v728, %v722
  %v885 = vpack.c.b16 %v729, %v723
  %v886 = vpack.c.b16 %v736, %v730
  %v887 = vpack.c.b16 %v737, %v731
  %v888 = vpack.c.b16 %v738, %v732
  %v889 = vpack.c.b16 %v739, %v733
  %v890 = vpack.c.b16 %v740, %v734
  %v891 = vpack.c.b16 %v741, %v735
  %v892 = vpack.c.b16 %v748, %v742
  %v893 = vpack.c.b16 %v749, %v743
  %v894 = vpack.c.b16 %v750, %v744
  %v895 = vpack.c.b16 %v751, %v745
  %v896 = vpack.c.b16 %v752, %v746
  %v897 = vpack.c.b16 %v753, %v747
  %v898 = vpack.c.b16 %v760, %v754
  %v899 = vpack.c.b16 %v761, %v755
  %v900 = vpack.c.b16 %v762, %v756
  %v901 = vpack.c.b16 %v763, %v757
  %v902 = vpack.c.b16 %v764, %v758
  %v903 = vpack.c.b16 %v765, %v759
  %v904 = vpack.c.b16 %v772, %v766
  %v905 = vpack.c.b16 %v773, %v767
  %v906 = vpack.c.b16 %v774, %v768
  %v907 = vpack.c.b16 %v775, %v769
  %v908 = vpack.c.b16 %v776, %v770
  %v909 = vpack.c.b16 %v777, %v771
  %v910 = vpack.c.b16 %v784, %v778
  %v911 = vpack.c.b16 %v785, %v779
  %v912 = vpack.c.b16 %v786, %v780
  %v913 = vpack.c.b16 %v787, %v781
  %v914 = vpack.c.b16 %v788, %v782
  %v915 = vpack.c.b16 %v789, %v783
  %v916 = vpack.c.b16 %v796, %v790
  %v917 = vpack.c.b16 %v797, %v791
  %v918 = vpack.c.b16 %v798, %v792
  %v919 = vpack.c.b16 %v799, %v793
  %v920 = vpack.c.b16 %v800, %v794
  %v921 = vpack.c.b16 %v801, %v795
  %v922 = vpack.c.b16 %v808, %v802
  %v923 = vpack.c.b16 %v809, %v803
  %v924 = vpack.c.b16 %v810, %v804
  %v925 = vpack.c.b16 %v811, %v805
  %v926 = vpack.c.b16 %v812, %v806
  %v927 = vpack.c.b16 %v813, %v807
  %v928 = vpack.c.b16 %v820, %v814
  %v929 = vpack.c.b16 %v821, %v815
  %v930 = vpack.c.b16 %v822, %v816
  %v931 = vpack.c.b16 %v823, %v817
  %v932 = vpack.c.b16 %v824, %v818
  %v933 = vpack.c.b16 %v825, %v819
  %v934 = vpack.c.b16 %v832, %v826
  %v935 = vpack.c.b16 %v833, %v827
  %v936 = vpack.c.b16 %v834, %v828
  %v937 = vpack.c.b16 %v835, %v829
  %v938 = vpack.c.b16 %v836, %v830
  %v939 = vpack.c.b16 %v837, %v831
  %v940 = vpack.c.b16 %v844, %v838
  %v941 = vpack.c.b16 %v845, %v839
  %v942 = vpack.c.b16 %v846, %v840
  %v943 = vpack.c.b16 %v847, %v841
  %v944 = vpack.c.b16 %v848, %v842
  %v945 = vpack.c.b16 %v849, %v843
  %1042 = vmatprep.subr.bf16.mxu0 %v851
  %1043 = vmatpush1.bf16.msra.mxu0 %v850
  %1044 = vmatprep.subr.bf16.mxu0 %v857
  %1045 = vmatpush1.bf16.msra.mxu0 %v856
  %1046 = vmatprep.subr.bf16.mxu0 %v863
  %1047 = vmatpush1.bf16.msra.mxu0 %v862
  %1048 = vmatprep.subr.bf16.mxu0 %v869
  %1049 = vmatpush1.bf16.msra.mxu0 %v868
  %1050 = vmatprep.subr.bf16.mxu0 %v875
  %1051 = vmatpush1.bf16.msra.mxu0 %v874
  %1052 = vmatprep.subr.bf16.mxu0 %v881
  %1053 = vmatpush1.bf16.msra.mxu0 %v880
  %1054 = vmatprep.subr.bf16.mxu0 %v887
  %1055 = vmatpush1.bf16.msra.mxu0 %v886
  %1056 = vmatprep.subr.bf16.mxu0 %v893
  %1057 = vmatpush1.bf16.msra.mxu0 %v892
  %1058 = vmatprep.subr.bf16.mxu0 %v899
  %1059 = vmatpush1.bf16.msra.mxu0 %v898
  %1060 = vmatprep.subr.bf16.mxu0 %v905
  %1061 = vmatpush1.bf16.msra.mxu0 %v904
  %1062 = vmatprep.subr.bf16.mxu0 %v911
  %1063 = vmatpush1.bf16.msra.mxu0 %v910
  %1064 = vmatprep.subr.bf16.mxu0 %v917
  %1065 = vmatpush1.bf16.msra.mxu0 %v916
  %1066 = vmatprep.subr.bf16.mxu0 %v923
  %1067 = vmatpush1.bf16.msra.mxu0 %v922
  %1068 = vmatprep.subr.bf16.mxu0 %v929
  %1069 = vmatpush1.bf16.msra.mxu0 %v928
  %1070 = vmatprep.subr.bf16.mxu0 %v935
  %1071 = vmatpush1.bf16.msra.mxu0 %v934
  %1072 = vmatprep.subr.bf16.mxu0 %v941
  %1073 = vmatpush1.bf16.msra.mxu0 %v940
  %1074 = vmatprep.mubr.bf16.mxu0 %v559
  %1075 = vmatmul.mubr.bf16.gmra.mrb[0].mxu0 %v558
  %v1076 = vpop.f32.mrb[0].mxu0
  %v1077 = vadd.f32 0.0, %v1076
  %v1078 = vpop.f32.mrb[0].mxu0
  %v1079 = vadd.f32 0.0, %v1078
  %v1080 = vpop.f32.mrb[0].mxu0
  %v1081 = vadd.f32 0.0, %v1080
  %v1082 = vpop.f32.mrb[0].mxu0
  %v1083 = vadd.f32 0.0, %v1082
  %1084 = vmatprep.mubr.bf16.mxu0 %v561
  %1085 = vmatmul.mubr.bf16.gmra.mrb[0].mxu0 %v560
  %v1086 = vpop.f32.mrb[0].mxu0
  %v1087 = vadd.f32 0.0, %v1086
  %v1088 = vpop.f32.mrb[0].mxu0
  %v1089 = vadd.f32 0.0, %v1088
  %v1090 = vpop.f32.mrb[0].mxu0
  %v1091 = vadd.f32 0.0, %v1090
  %v1092 = vpop.f32.mrb[0].mxu0
  %v1093 = vadd.f32 0.0, %v1092
  %1094 = vdwg.mxu0
  %1095 = vmatprep.subr.bf16.mxu0 %v853
  %1096 = vmatpush1.bf16.msra.mxu0 %v852
  %1097 = vmatprep.subr.bf16.mxu0 %v859
  %1098 = vmatpush1.bf16.msra.mxu0 %v858
  %1099 = vmatprep.subr.bf16.mxu0 %v865
  %1100 = vmatpush1.bf16.msra.mxu0 %v864
  %1101 = vmatprep.subr.bf16.mxu0 %v871
  %1102 = vmatpush1.bf16.msra.mxu0 %v870
  %1103 = vmatprep.subr.bf16.mxu0 %v877
  %1104 = vmatpush1.bf16.msra.mxu0 %v876
  %1105 = vmatprep.subr.bf16.mxu0 %v883
  %1106 = vmatpush1.bf16.msra.mxu0 %v882
  %1107 = vmatprep.subr.bf16.mxu0 %v889
  %1108 = vmatpush1.bf16.msra.mxu0 %v888
  %1109 = vmatprep.subr.bf16.mxu0 %v895
  %1110 = vmatpush1.bf16.msra.mxu0 %v894
  %1111 = vmatprep.subr.bf16.mxu0 %v901
  %1112 = vmatpush1.bf16.msra.mxu0 %v900
  %1113 = vmatprep.subr.bf16.mxu0 %v907
  %1114 = vmatpush1.bf16.msra.mxu0 %v906
  %1115 = vmatprep.subr.bf16.mxu0 %v913
  %1116 = vmatpush1.bf16.msra.mxu0 %v912
  %1117 = vmatprep.subr.bf16.mxu0 %v919
  %1118 = vmatpush1.bf16.msra.mxu0 %v918
  %1119 = vmatprep.subr.bf16.mxu0 %v925
  %1120 = vmatpush1.bf16.msra.mxu0 %v924
  %1121 = vmatprep.subr.bf16.mxu0 %v931
  %1122 = vmatpush1.bf16.msra.mxu0 %v930
  %1123 = vmatprep.subr.bf16.mxu0 %v937
  %1124 = vmatpush1.bf16.msra.mxu0 %v936
  %1125 = vmatprep.subr.bf16.mxu0 %v943
  %1126 = vmatpush1.bf16.msra.mxu0 %v942
  %1127 = vmatprep.mubr.bf16.mxu0 %v559
  %1128 = vmatmul.mubr.bf16.gmra.mrb[0].mxu0 %v558
  %v1129 = vpop.f32.mrb[0].mxu0
  %v1130 = vadd.f32 0.0, %v1129
  %v1131 = vpop.f32.mrb[0].mxu0
  %v1132 = vadd.f32 0.0, %v1131
  %v1133 = vpop.f32.mrb[0].mxu0
  %v1134 = vadd.f32 0.0, %v1133
  %v1135 = vpop.f32.mrb[0].mxu0
  %v1136 = vadd.f32 0.0, %v1135
  %1137 = vmatprep.mubr.bf16.mxu0 %v561
  %1138 = vmatmul.mubr.bf16.gmra.mrb[0].mxu0 %v560
  %v1139 = vpop.f32.mrb[0].mxu0
  %v1140 = vadd.f32 0.0, %v1139
  %v1141 = vpop.f32.mrb[0].mxu0
  %v1142 = vadd.f32 0.0, %v1141
  %v1143 = vpop.f32.mrb[0].mxu0
  %v1144 = vadd.f32 0.0, %v1143
  %v1145 = vpop.f32.mrb[0].mxu0
  %v1146 = vadd.f32 0.0, %v1145
  %1147 = vdwg.mxu0
  %1148 = vmatprep.subr.bf16.mxu0 %v855
  %1149 = vmatpush1.bf16.msra.mxu0 %v854
  %1150 = vmatprep.subr.bf16.mxu0 %v861
  %1151 = vmatpush1.bf16.msra.mxu0 %v860
  %1152 = vmatprep.subr.bf16.mxu0 %v867
  %1153 = vmatpush1.bf16.msra.mxu0 %v866
  %1154 = vmatprep.subr.bf16.mxu0 %v873
  %1155 = vmatpush1.bf16.msra.mxu0 %v872
  %1156 = vmatprep.subr.bf16.mxu0 %v879
  %1157 = vmatpush1.bf16.msra.mxu0 %v878
  %1158 = vmatprep.subr.bf16.mxu0 %v885
  %1159 = vmatpush1.bf16.msra.mxu0 %v884
  %1160 = vmatprep.subr.bf16.mxu0 %v891
  %1161 = vmatpush1.bf16.msra.mxu0 %v890
  %1162 = vmatprep.subr.bf16.mxu0 %v897
  %1163 = vmatpush1.bf16.msra.mxu0 %v896
  %1164 = vmatprep.subr.bf16.mxu0 %v903
  %1165 = vmatpush1.bf16.msra.mxu0 %v902
  %1166 = vmatprep.subr.bf16.mxu0 %v909
  %1167 = vmatpush1.bf16.msra.mxu0 %v908
  %1168 = vmatprep.subr.bf16.mxu0 %v915
  %1169 = vmatpush1.bf16.msra.mxu0 %v914
  %1170 = vmatprep.subr.bf16.mxu0 %v921
  %1171 = vmatpush1.bf16.msra.mxu0 %v920
  %1172 = vmatprep.subr.bf16.mxu0 %v927
  %1173 = vmatpush1.bf16.msra.mxu0 %v926
  %1174 = vmatprep.subr.bf16.mxu0 %v933
  %1175 = vmatpush1.bf16.msra.mxu0 %v932
  %1176 = vmatprep.subr.bf16.mxu0 %v939
  %1177 = vmatpush1.bf16.msra.mxu0 %v938
  %1178 = vmatprep.subr.bf16.mxu0 %v945
  %1179 = vmatpush1.bf16.msra.mxu0 %v944
  %1180 = vmatprep.mubr.bf16.mxu0 %v559
  %1181 = vmatmul.mubr.bf16.gmra.mrb[0].mxu0 %v558
  %v1182 = vpop.f32.mrb[0].mxu0
  %v1183 = vadd.f32 0.0, %v1182
  %v1184 = vpop.f32.mrb[0].mxu0
  %v1185 = vadd.f32 0.0, %v1184
  %v1186 = vpop.f32.mrb[0].mxu0
  %v1187 = vadd.f32 0.0, %v1186
  %v1188 = vpop.f32.mrb[0].mxu0
  %v1189 = vadd.f32 0.0, %v1188
  %1190 = vmatprep.mubr.bf16.mxu0 %v561
  %1191 = vmatmul.mubr.bf16.gmra.mrb[0].mxu0 %v560
  %v1192 = vpop.f32.mrb[0].mxu0
  %v1193 = vadd.f32 0.0, %v1192
  %v1194 = vpop.f32.mrb[0].mxu0
  %v1195 = vadd.f32 0.0, %v1194
  %v1196 = vpop.f32.mrb[0].mxu0
  %v1197 = vadd.f32 0.0, %v1196
  %v1198 = vpop.f32.mrb[0].mxu0
  %v1199 = vadd.f32 0.0, %v1198
  %1200 = vdwg.mxu0
  %v1297 = vunpack.c.l.b16 %v451
  %v1298 = vunpack.c.h.b16 %v451
  %v1299 = vunpack.c.l.b16 %v452
  %v1300 = vunpack.c.h.b16 %v452
  %v1301 = vunpack.c.l.b16 %v453
  %v1302 = vunpack.c.h.b16 %v453
  %v1303 = vunpack.c.l.b16 %v454
  %v1304 = vunpack.c.h.b16 %v454
  %v1305 = vunpack.c.l.b16 %v455
  %v1306 = vunpack.c.h.b16 %v455
  %v1307 = vunpack.c.l.b16 %v456
  %v1308 = vunpack.c.h.b16 %v456
  %v1309 = vunpack.c.l.b16 %v457
  %v1310 = vunpack.c.h.b16 %v457
  %v1311 = vunpack.c.l.b16 %v458
  %v1312 = vunpack.c.h.b16 %v458
  %v1313 = vunpack.c.l.b16 %v459
  %v1314 = vunpack.c.h.b16 %v459
  %v1315 = vunpack.c.l.b16 %v460
  %v1316 = vunpack.c.h.b16 %v460
  %v1317 = vunpack.c.l.b16 %v461
  %v1318 = vunpack.c.h.b16 %v461
  %v1319 = vunpack.c.l.b16 %v462
  %v1320 = vunpack.c.h.b16 %v462
  %v1321 = vunpack.c.l.b16 %v463
  %v1322 = vunpack.c.h.b16 %v463
  %v1323 = vunpack.c.l.b16 %v464
  %v1324 = vunpack.c.h.b16 %v464
  %v1325 = vunpack.c.l.b16 %v465
  %v1326 = vunpack.c.h.b16 %v465
  %v1327 = vunpack.c.l.b16 %v466
  %v1328 = vunpack.c.h.b16 %v466
  %v1329 = vunpack.c.l.b16 %v467
  %v1330 = vunpack.c.h.b16 %v467
  %v1331 = vunpack.c.l.b16 %v468
  %v1332 = vunpack.c.h.b16 %v468
  %v1333 = vunpack.c.l.b16 %v469
  %v1334 = vunpack.c.h.b16 %v469
  %v1335 = vunpack.c.l.b16 %v470
  %v1336 = vunpack.c.h.b16 %v470
  %v1337 = vunpack.c.l.b16 %v471
  %v1338 = vunpack.c.h.b16 %v471
  %v1339 = vunpack.c.l.b16 %v472
  %v1340 = vunpack.c.h.b16 %v472
  %v1341 = vunpack.c.l.b16 %v473
  %v1342 = vunpack.c.h.b16 %v473
  %v1343 = vunpack.c.l.b16 %v474
  %v1344 = vunpack.c.h.b16 %v474
  %v1345 = vunpack.c.l.b16 %v475
  %v1346 = vunpack.c.h.b16 %v475
  %v1347 = vunpack.c.l.b16 %v476
  %v1348 = vunpack.c.h.b16 %v476
  %v1349 = vunpack.c.l.b16 %v477
  %v1350 = vunpack.c.h.b16 %v477
  %v1351 = vunpack.c.l.b16 %v478
  %v1352 = vunpack.c.h.b16 %v478
  %v1353 = vunpack.c.l.b16 %v479
  %v1354 = vunpack.c.h.b16 %v479
  %v1355 = vunpack.c.l.b16 %v480
  %v1356 = vunpack.c.h.b16 %v480
  %v1357 = vunpack.c.l.b16 %v481
  %v1358 = vunpack.c.h.b16 %v481
  %v1359 = vunpack.c.l.b16 %v482
  %v1360 = vunpack.c.h.b16 %v482
  %v1361 = vunpack.c.l.b16 %v483
  %v1362 = vunpack.c.h.b16 %v483
  %v1363 = vunpack.c.l.b16 %v484
  %v1364 = vunpack.c.h.b16 %v484
  %v1365 = vunpack.c.l.b16 %v485
  %v1366 = vunpack.c.h.b16 %v485
  %v1367 = vunpack.c.l.b16 %v486
  %v1368 = vunpack.c.h.b16 %v486
  %v1369 = vunpack.c.l.b16 %v487
  %v1370 = vunpack.c.h.b16 %v487
  %v1371 = vunpack.c.l.b16 %v488
  %v1372 = vunpack.c.h.b16 %v488
  %v1373 = vunpack.c.l.b16 %v489
  %v1374 = vunpack.c.h.b16 %v489
  %v1375 = vunpack.c.l.b16 %v490
  %v1376 = vunpack.c.h.b16 %v490
  %v1377 = vunpack.c.l.b16 %v491
  %v1378 = vunpack.c.h.b16 %v491
  %v1379 = vunpack.c.l.b16 %v492
  %v1380 = vunpack.c.h.b16 %v492
  %v1381 = vunpack.c.l.b16 %v493
  %v1382 = vunpack.c.h.b16 %v493
  %v1383 = vunpack.c.l.b16 %v494
  %v1384 = vunpack.c.h.b16 %v494
  %v1385 = vunpack.c.l.b16 %v495
  %v1386 = vunpack.c.h.b16 %v495
  %v1387 = vunpack.c.l.b16 %v496
  %v1388 = vunpack.c.h.b16 %v496
  %v1389 = vunpack.c.l.b16 %v497
  %v1390 = vunpack.c.h.b16 %v497
  %v1391 = vunpack.c.l.b16 %v498
  %v1392 = vunpack.c.h.b16 %v498
  %v1393 = vunpack.c.l.b16 %v499
  %v1394 = vunpack.c.h.b16 %v499
  %v1395 = vunpack.c.l.b16 %v500
  %v1396 = vunpack.c.h.b16 %v500
  %v1397 = vunpack.c.l.b16 %v501
  %v1398 = vunpack.c.h.b16 %v501
  %v1399 = vunpack.c.l.b16 %v502
  %v1400 = vunpack.c.h.b16 %v502
  %v1401 = vunpack.c.l.b16 %v503
  %v1402 = vunpack.c.h.b16 %v503
  %v1403 = vunpack.c.l.b16 %v504
  %v1404 = vunpack.c.h.b16 %v504
  %v1405 = vunpack.c.l.b16 %v505
  %v1406 = vunpack.c.h.b16 %v505
  %v1407 = vunpack.c.l.b16 %v506
  %v1408 = vunpack.c.h.b16 %v506
  %v1409 = vunpack.c.l.b16 %v507
  %v1410 = vunpack.c.h.b16 %v507
  %v1411 = vunpack.c.l.b16 %v508
  %v1412 = vunpack.c.h.b16 %v508
  %v1413 = vunpack.c.l.b16 %v509
  %v1414 = vunpack.c.h.b16 %v509
  %v1415 = vunpack.c.l.b16 %v510
  %v1416 = vunpack.c.h.b16 %v510
  %v1417 = vunpack.c.l.b16 %v511
  %v1418 = vunpack.c.h.b16 %v511
  %v1419 = vunpack.c.l.b16 %v512
  %v1420 = vunpack.c.h.b16 %v512
  %v1421 = vunpack.c.l.b16 %v513
  %v1422 = vunpack.c.h.b16 %v513
  %v1423 = vunpack.c.l.b16 %v514
  %v1424 = vunpack.c.h.b16 %v514
  %v1425 = vunpack.c.l.b16 %v515
  %v1426 = vunpack.c.h.b16 %v515
  %v1427 = vunpack.c.l.b16 %v516
  %v1428 = vunpack.c.h.b16 %v516
  %v1429 = vunpack.c.l.b16 %v517
  %v1430 = vunpack.c.h.b16 %v517
  %v1431 = vunpack.c.l.b16 %v518
  %v1432 = vunpack.c.h.b16 %v518
  %v1433 = vunpack.c.l.b16 %v519
  %v1434 = vunpack.c.h.b16 %v519
  %v1435 = vunpack.c.l.b16 %v520
  %v1436 = vunpack.c.h.b16 %v520
  %v1437 = vunpack.c.l.b16 %v521
  %v1438 = vunpack.c.h.b16 %v521
  %v1439 = vunpack.c.l.b16 %v522
  %v1440 = vunpack.c.h.b16 %v522
  %v1441 = vunpack.c.l.b16 %v523
  %v1442 = vunpack.c.h.b16 %v523
  %v1443 = vunpack.c.l.b16 %v524
  %v1444 = vunpack.c.h.b16 %v524
  %v1445 = vunpack.c.l.b16 %v525
  %v1446 = vunpack.c.h.b16 %v525
  %v1447 = vunpack.c.l.b16 %v526
  %v1448 = vunpack.c.h.b16 %v526
  %v1449 = vunpack.c.l.b16 %v527
  %v1450 = vunpack.c.h.b16 %v527
  %v1451 = vunpack.c.l.b16 %v528
  %v1452 = vunpack.c.h.b16 %v528
  %v1453 = vunpack.c.l.b16 %v529
  %v1454 = vunpack.c.h.b16 %v529
  %v1455 = vunpack.c.l.b16 %v530
  %v1456 = vunpack.c.h.b16 %v530
  %v1457 = vunpack.c.l.b16 %v531
  %v1458 = vunpack.c.h.b16 %v531
  %v1459 = vunpack.c.l.b16 %v532
  %v1460 = vunpack.c.h.b16 %v532
  %v1461 = vunpack.c.l.b16 %v533
  %v1462 = vunpack.c.h.b16 %v533
  %v1463 = vunpack.c.l.b16 %v534
  %v1464 = vunpack.c.h.b16 %v534
  %v1465 = vunpack.c.l.b16 %v535
  %v1466 = vunpack.c.h.b16 %v535
  %v1467 = vunpack.c.l.b16 %v536
  %v1468 = vunpack.c.h.b16 %v536
  %v1469 = vunpack.c.l.b16 %v537
  %v1470 = vunpack.c.h.b16 %v537
  %v1471 = vunpack.c.l.b16 %v538
  %v1472 = vunpack.c.h.b16 %v538
  %v1473 = vunpack.c.l.b16 %v539
  %v1474 = vunpack.c.h.b16 %v539
  %v1475 = vunpack.c.l.b16 %v540
  %v1476 = vunpack.c.h.b16 %v540
  %v1477 = vunpack.c.l.b16 %v541
  %v1478 = vunpack.c.h.b16 %v541
  %v1479 = vunpack.c.l.b16 %v542
  %v1480 = vunpack.c.h.b16 %v542
  %v1481 = vunpack.c.l.b16 %v543
  %v1482 = vunpack.c.h.b16 %v543
  %v1483 = vunpack.c.l.b16 %v544
  %v1484 = vunpack.c.h.b16 %v544
  %v1485 = vunpack.c.l.b16 %v545
  %v1486 = vunpack.c.h.b16 %v545
  %v1487 = vunpack.c.l.b16 %v546
  %v1488 = vunpack.c.h.b16 %v546
  %v1489 = vpack.c.b16 %v1303, %v1297
  %v1490 = vpack.c.b16 %v1304, %v1298
  %v1491 = vpack.c.b16 %v1305, %v1299
  %v1492 = vpack.c.b16 %v1306, %v1300
  %v1493 = vpack.c.b16 %v1307, %v1301
  %v1494 = vpack.c.b16 %v1308, %v1302
  %v1495 = vpack.c.b16 %v1315, %v1309
  %v1496 = vpack.c.b16 %v1316, %v1310
  %v1497 = vpack.c.b16 %v1317, %v1311
  %v1498 = vpack.c.b16 %v1318, %v1312
  %v1499 = vpack.c.b16 %v1319, %v1313
  %v1500 = vpack.c.b16 %v1320, %v1314
  %v1501 = vpack.c.b16 %v1327, %v1321
  %v1502 = vpack.c.b16 %v1328, %v1322
  %v1503 = vpack.c.b16 %v1329, %v1323
  %v1504 = vpack.c.b16 %v1330, %v1324
  %v1505 = vpack.c.b16 %v1331, %v1325
  %v1506 = vpack.c.b16 %v1332, %v1326
  %v1507 = vpack.c.b16 %v1339, %v1333
  %v1508 = vpack.c.b16 %v1340, %v1334
  %v1509 = vpack.c.b16 %v1341, %v1335
  %v1510 = vpack.c.b16 %v1342, %v1336
  %v1511 = vpack.c.b16 %v1343, %v1337
  %v1512 = vpack.c.b16 %v1344, %v1338
  %v1513 = vpack.c.b16 %v1351, %v1345
  %v1514 = vpack.c.b16 %v1352, %v1346
  %v1515 = vpack.c.b16 %v1353, %v1347
  %v1516 = vpack.c.b16 %v1354, %v1348
  %v1517 = vpack.c.b16 %v1355, %v1349
  %v1518 = vpack.c.b16 %v1356, %v1350
  %v1519 = vpack.c.b16 %v1363, %v1357
  %v1520 = vpack.c.b16 %v1364, %v1358
  %v1521 = vpack.c.b16 %v1365, %v1359
  %v1522 = vpack.c.b16 %v1366, %v1360
  %v1523 = vpack.c.b16 %v1367, %v1361
  %v1524 = vpack.c.b16 %v1368, %v1362
  %v1525 = vpack.c.b16 %v1375, %v1369
  %v1526 = vpack.c.b16 %v1376, %v1370
  %v1527 = vpack.c.b16 %v1377, %v1371
  %v1528 = vpack.c.b16 %v1378, %v1372
  %v1529 = vpack.c.b16 %v1379, %v1373
  %v1530 = vpack.c.b16 %v1380, %v1374
  %v1531 = vpack.c.b16 %v1387, %v1381
  %v1532 = vpack.c.b16 %v1388, %v1382
  %v1533 = vpack.c.b16 %v1389, %v1383
  %v1534 = vpack.c.b16 %v1390, %v1384
  %v1535 = vpack.c.b16 %v1391, %v1385
  %v1536 = vpack.c.b16 %v1392, %v1386
  %v1537 = vpack.c.b16 %v1399, %v1393
  %v1538 = vpack.c.b16 %v1400, %v1394
  %v1539 = vpack.c.b16 %v1401, %v1395
  %v1540 = vpack.c.b16 %v1402, %v1396
  %v1541 = vpack.c.b16 %v1403, %v1397
  %v1542 = vpack.c.b16 %v1404, %v1398
  %v1543 = vpack.c.b16 %v1411, %v1405
  %v1544 = vpack.c.b16 %v1412, %v1406
  %v1545 = vpack.c.b16 %v1413, %v1407
  %v1546 = vpack.c.b16 %v1414, %v1408
  %v1547 = vpack.c.b16 %v1415, %v1409
  %v1548 = vpack.c.b16 %v1416, %v1410
  %v1549 = vpack.c.b16 %v1423, %v1417
  %v1550 = vpack.c.b16 %v1424, %v1418
  %v1551 = vpack.c.b16 %v1425, %v1419
  %v1552 = vpack.c.b16 %v1426, %v1420
  %v1553 = vpack.c.b16 %v1427, %v1421
  %v1554 = vpack.c.b16 %v1428, %v1422
  %v1555 = vpack.c.b16 %v1435, %v1429
  %v1556 = vpack.c.b16 %v1436, %v1430
  %v1557 = vpack.c.b16 %v1437, %v1431
  %v1558 = vpack.c.b16 %v1438, %v1432
  %v1559 = vpack.c.b16 %v1439, %v1433
  %v1560 = vpack.c.b16 %v1440, %v1434
  %v1561 = vpack.c.b16 %v1447, %v1441
  %v1562 = vpack.c.b16 %v1448, %v1442
  %v1563 = vpack.c.b16 %v1449, %v1443
  %v1564 = vpack.c.b16 %v1450, %v1444
  %v1565 = vpack.c.b16 %v1451, %v1445
  %v1566 = vpack.c.b16 %v1452, %v1446
  %v1567 = vpack.c.b16 %v1459, %v1453
  %v1568 = vpack.c.b16 %v1460, %v1454
  %v1569 = vpack.c.b16 %v1461, %v1455
  %v1570 = vpack.c.b16 %v1462, %v1456
  %v1571 = vpack.c.b16 %v1463, %v1457
  %v1572 = vpack.c.b16 %v1464, %v1458
  %v1573 = vpack.c.b16 %v1471, %v1465
  %v1574 = vpack.c.b16 %v1472, %v1466
  %v1575 = vpack.c.b16 %v1473, %v1467
  %v1576 = vpack.c.b16 %v1474, %v1468
  %v1577 = vpack.c.b16 %v1475, %v1469
  %v1578 = vpack.c.b16 %v1476, %v1470
  %v1579 = vpack.c.b16 %v1483, %v1477
  %v1580 = vpack.c.b16 %v1484, %v1478
  %v1581 = vpack.c.b16 %v1485, %v1479
  %v1582 = vpack.c.b16 %v1486, %v1480
  %v1583 = vpack.c.b16 %v1487, %v1481
  %v1584 = vpack.c.b16 %v1488, %v1482
  %1681 = vmatprep.subr.bf16.mxu0 %v1490
  %1682 = vmatpush1.bf16.msra.mxu0 %v1489
  %1683 = vmatprep.subr.bf16.mxu0 %v1496
  %1684 = vmatpush1.bf16.msra.mxu0 %v1495
  %1685 = vmatprep.subr.bf16.mxu0 %v1502
  %1686 = vmatpush1.bf16.msra.mxu0 %v1501
  %1687 = vmatprep.subr.bf16.mxu0 %v1508
  %1688 = vmatpush1.bf16.msra.mxu0 %v1507
  %1689 = vmatprep.subr.bf16.mxu0 %v1514
  %1690 = vmatpush1.bf16.msra.mxu0 %v1513
  %1691 = vmatprep.subr.bf16.mxu0 %v1520
  %1692 = vmatpush1.bf16.msra.mxu0 %v1519
  %1693 = vmatprep.subr.bf16.mxu0 %v1526
  %1694 = vmatpush1.bf16.msra.mxu0 %v1525
  %1695 = vmatprep.subr.bf16.mxu0 %v1532
  %1696 = vmatpush1.bf16.msra.mxu0 %v1531
  %1697 = vmatprep.subr.bf16.mxu0 %v1538
  %1698 = vmatpush1.bf16.msra.mxu0 %v1537
  %1699 = vmatprep.subr.bf16.mxu0 %v1544
  %1700 = vmatpush1.bf16.msra.mxu0 %v1543
  %1701 = vmatprep.subr.bf16.mxu0 %v1550
  %1702 = vmatpush1.bf16.msra.mxu0 %v1549
  %1703 = vmatprep.subr.bf16.mxu0 %v1556
  %1704 = vmatpush1.bf16.msra.mxu0 %v1555
  %1705 = vmatprep.subr.bf16.mxu0 %v1562
  %1706 = vmatpush1.bf16.msra.mxu0 %v1561
  %1707 = vmatprep.subr.bf16.mxu0 %v1568
  %1708 = vmatpush1.bf16.msra.mxu0 %v1567
  %1709 = vmatprep.subr.bf16.mxu0 %v1574
  %1710 = vmatpush1.bf16.msra.mxu0 %v1573
  %1711 = vmatprep.subr.bf16.mxu0 %v1580
  %1712 = vmatpush1.bf16.msra.mxu0 %v1579
  %1713 = vmatprep.mubr.bf16.mxu0 0
  %1714 = vmatmul.mubr.bf16.gmra.mrb[0].mxu0 0
  %v1715 = vpop.f32.mrb[0].mxu0
  %v1716 = vadd.f32 0.0, %v1715
  %v1717 = vpop.f32.mrb[0].mxu0
  %v1718 = vadd.f32 0.0, %v1717
  %v1719 = vpop.f32.mrb[0].mxu0
  %v1720 = vpop.f32.mrb[0].mxu0
  %1721 = vdwg.mxu0
  %1722 = vmatprep.subr.bf16.mxu0 %v1492
  %1723 = vmatpush1.bf16.msra.mxu0 %v1491
  %1724 = vmatprep.subr.bf16.mxu0 %v1498
  %1725 = vmatpush1.bf16.msra.mxu0 %v1497
  %1726 = vmatprep.subr.bf16.mxu0 %v1504
  %1727 = vmatpush1.bf16.msra.mxu0 %v1503
  %1728 = vmatprep.subr.bf16.mxu0 %v1510
  %1729 = vmatpush1.bf16.msra.mxu0 %v1509
  %1730 = vmatprep.subr.bf16.mxu0 %v1516
  %1731 = vmatpush1.bf16.msra.mxu0 %v1515
  %1732 = vmatprep.subr.bf16.mxu0 %v1522
  %1733 = vmatpush1.bf16.msra.mxu0 %v1521
  %1734 = vmatprep.subr.bf16.mxu0 %v1528
  %1735 = vmatpush1.bf16.msra.mxu0 %v1527
  %1736 = vmatprep.subr.bf16.mxu0 %v1534
  %1737 = vmatpush1.bf16.msra.mxu0 %v1533
  %1738 = vmatprep.subr.bf16.mxu0 %v1540
  %1739 = vmatpush1.bf16.msra.mxu0 %v1539
  %1740 = vmatprep.subr.bf16.mxu0 %v1546
  %1741 = vmatpush1.bf16.msra.mxu0 %v1545
  %1742 = vmatprep.subr.bf16.mxu0 %v1552
  %1743 = vmatpush1.bf16.msra.mxu0 %v1551
  %1744 = vmatprep.subr.bf16.mxu0 %v1558
  %1745 = vmatpush1.bf16.msra.mxu0 %v1557
  %1746 = vmatprep.subr.bf16.mxu0 %v1564
  %1747 = vmatpush1.bf16.msra.mxu0 %v1563
  %1748 = vmatprep.subr.bf16.mxu0 %v1570
  %1749 = vmatpush1.bf16.msra.mxu0 %v1569
  %1750 = vmatprep.subr.bf16.mxu0 %v1576
  %1751 = vmatpush1.bf16.msra.mxu0 %v1575
  %1752 = vmatprep.subr.bf16.mxu0 %v1582
  %1753 = vmatpush1.bf16.msra.mxu0 %v1581
  %1754 = vmatprep.mubr.bf16.mxu0 0
  %1755 = vmatmul.mubr.bf16.gmra.mrb[0].mxu0 0
  %v1756 = vpop.f32.mrb[0].mxu0
  %v1757 = vadd.f32 0.0, %v1756
  %v1758 = vpop.f32.mrb[0].mxu0
  %v1759 = vadd.f32 0.0, %v1758
  %v1760 = vpop.f32.mrb[0].mxu0
  %v1761 = vpop.f32.mrb[0].mxu0
  %1762 = vdwg.mxu0
  %1763 = vmatprep.subr.bf16.mxu0 %v1494
  %1764 = vmatpush1.bf16.msra.mxu0 %v1493
  %1765 = vmatprep.subr.bf16.mxu0 %v1500
  %1766 = vmatpush1.bf16.msra.mxu0 %v1499
  %1767 = vmatprep.subr.bf16.mxu0 %v1506
  %1768 = vmatpush1.bf16.msra.mxu0 %v1505
  %1769 = vmatprep.subr.bf16.mxu0 %v1512
  %1770 = vmatpush1.bf16.msra.mxu0 %v1511
  %1771 = vmatprep.subr.bf16.mxu0 %v1518
  %1772 = vmatpush1.bf16.msra.mxu0 %v1517
  %1773 = vmatprep.subr.bf16.mxu0 %v1524
  %1774 = vmatpush1.bf16.msra.mxu0 %v1523
  %1775 = vmatprep.subr.bf16.mxu0 %v1530
  %1776 = vmatpush1.bf16.msra.mxu0 %v1529
  %1777 = vmatprep.subr.bf16.mxu0 %v1536
  %1778 = vmatpush1.bf16.msra.mxu0 %v1535
  %1779 = vmatprep.subr.bf16.mxu0 %v1542
  %1780 = vmatpush1.bf16.msra.mxu0 %v1541
  %1781 = vmatprep.subr.bf16.mxu0 %v1548
  %1782 = vmatpush1.bf16.msra.mxu0 %v1547
  %1783 = vmatprep.subr.bf16.mxu0 %v1554
  %1784 = vmatpush1.bf16.msra.mxu0 %v1553
  %1785 = vmatprep.subr.bf16.mxu0 %v1560
  %1786 = vmatpush1.bf16.msra.mxu0 %v1559
  %1787 = vmatprep.subr.bf16.mxu0 %v1566
  %1788 = vmatpush1.bf16.msra.mxu0 %v1565
  %1789 = vmatprep.subr.bf16.mxu0 %v1572
  %1790 = vmatpush1.bf16.msra.mxu0 %v1571
  %1791 = vmatprep.subr.bf16.mxu0 %v1578
  %1792 = vmatpush1.bf16.msra.mxu0 %v1577
  %1793 = vmatprep.subr.bf16.mxu0 %v1584
  %1794 = vmatpush1.bf16.msra.mxu0 %v1583
  %1795 = vmatprep.mubr.bf16.mxu0 0
  %1796 = vmatmul.mubr.bf16.gmra.mrb[0].mxu0 0
  %v1797 = vpop.f32.mrb[0].mxu0
  %v1798 = vadd.f32 0.0, %v1797
  %v1799 = vpop.f32.mrb[0].mxu0
  %v1800 = vadd.f32 0.0, %v1799
  %v1801 = vpop.f32.mrb[0].mxu0
  %v1802 = vpop.f32.mrb[0].mxu0
  %1803 = vdwg.mxu0
  %v1804 = vadd.f32 %v1077, %v1716
  %v1805 = vadd.f32 %v1079, %v1718
  %v1806 = vadd.f32 %v1130, %v1757
  %v1807 = vadd.f32 %v1132, %v1759
  %v1809 = vlaneseq
  %v1810 = vshrl.u32 %v1809, 7
  %v1811 = vsub.s32 0, %v1810
  %v1812 = vrot.slane %v547, %v1811
  %v1813 = vlaneseq
  %v1814 = vshrl.u32 %v1813, 7
  %v1815 = vsub.s32 1, %v1814
  %v1816 = vrot.slane %v547, %v1815
  %v1817 = vlaneseq
  %v1818 = vshrl.u32 %v1817, 7
  %v1819 = vsub.s32 2, %v1818
  %v1820 = vrot.slane %v547, %v1819
  %v1821 = vlaneseq
  %v1822 = vshrl.u32 %v1821, 7
  %v1823 = vsub.s32 3, %v1822
  %v1824 = vrot.slane %v547, %v1823
  %v1829 = vadd.f32 %v1804, %v1812
  %v1830 = vadd.f32 %v1805, %v1816
  %v1831 = vadd.f32 %v1806, %v1820
  %v1832 = vadd.f32 %v1807, %v1824
  %v1833 = vxor.u32 %v1829, 2147483648
  %v1834 = vxor.u32 %v1830, 2147483648
  %v1835 = vxor.u32 %v1831, 2147483648
  %v1836 = vxor.u32 %v1832, 2147483648
  %v1837 = vmul.f32 %v1833, 1.442695
  %v1838 = vpow.pop %v1837
  %v1839 = vmul.f32 %v1834, 1.442695
  %v1840 = vpow.pop %v1839
  %v1841 = vmul.f32 %v1835, 1.442695
  %v1842 = vpow.pop %v1841
  %v1843 = vmul.f32 %v1836, 1.442695
  %v1844 = vpow.pop %v1843
  %v1845 = vadd.f32 %v1838, 1.0
  %v1846 = vadd.f32 %v1840, 1.0
  %v1847 = vadd.f32 %v1842, 1.0
  %v1848 = vadd.f32 %v1844, 1.0
  %v1849 = vrcp.pop %v1845
  %v1850 = vmul.f32 1.0, %v1849
  %v1851 = vrcp.pop %v1846
  %v1852 = vmul.f32 1.0, %v1851
  %v1853 = vrcp.pop %v1847
  %v1854 = vmul.f32 1.0, %v1853
  %v1855 = vrcp.pop %v1848
  %v1856 = vmul.f32 1.0, %v1855
  %v1858 = vlaneseq
  %v1859 = vshrl.u32 %v1858, 7
  %v1860 = vsub.s32 0, %v1859
  %v1861 = vrot.slane %v548, %v1860
  %v1862 = vlaneseq
  %v1863 = vshrl.u32 %v1862, 7
  %v1864 = vsub.s32 1, %v1863
  %v1865 = vrot.slane %v548, %v1864
  %v1868 = vadd.f32 %v1183, %v1861
  %v1869 = vadd.f32 %v1185, %v1865
  %v1871 = vlaneseq
  %v1872 = vshrl.u32 %v1871, 7
  %v1873 = vsub.s32 0, %v1872
  %v1874 = vrot.slane %v549, %v1873
  %v1875 = vlaneseq
  %v1876 = vshrl.u32 %v1875, 7
  %v1877 = vsub.s32 1, %v1876
  %v1878 = vrot.slane %v549, %v1877
  %v1881 = vadd.f32 %v1798, %v1874
  %v1882 = vadd.f32 %v1800, %v1878
  %v1883 = vmul.f32 %v1850, %v1881
  %v1884 = vmul.f32 %v1852, %v1882
  %v1885 = vadd.f32 %v1868, %v1883
  %v1886 = vadd.f32 %v1869, %v1884
  %v1887 = vtanh.pop %v1885
  %v1888 = vtanh.pop %v1886
  %v1889 = vsub.f32 1.0, %v1854
  %v1890 = vsub.f32 1.0, %v1856
  %v1891 = vmul.f32 %v1889, %v1887
  %v1892 = vmul.f32 %v1890, %v1888
  %v1893 = vmul.f32 %v1854, 0.0
  %v1894 = vmul.f32 %v1856, 0.0
  %v1895 = vadd.f32 %v1891, %v1893
  %v1896 = vadd.f32 %v1892, %v1894
  %1897 = vst [vmem:[#allocation2] sm:$0xff] %v1895
  %1898 = vst [vmem:[#allocation2 + $0x8] sm:$0xff] %v1896
  %v1899 = vpack.c.bf16 %v1895, %v1895
  %v1900 = vpack.c.bf16 %v1896, %v1896
  %1901 = vmatprep.subr.bf16.mxu0 %v1490
  %1902 = vmatpush1.bf16.msra.mxu0 %v1489
  %1903 = vmatprep.subr.bf16.mxu0 %v1496
  %1904 = vmatpush1.bf16.msra.mxu0 %v1495
  %1905 = vmatprep.subr.bf16.mxu0 %v1502
  %1906 = vmatpush1.bf16.msra.mxu0 %v1501
  %1907 = vmatprep.subr.bf16.mxu0 %v1508
  %1908 = vmatpush1.bf16.msra.mxu0 %v1507
  %1909 = vmatprep.subr.bf16.mxu0 %v1514
  %1910 = vmatpush1.bf16.msra.mxu0 %v1513
  %1911 = vmatprep.subr.bf16.mxu0 %v1520
  %1912 = vmatpush1.bf16.msra.mxu0 %v1519
  %1913 = vmatprep.subr.bf16.mxu0 %v1526
  %1914 = vmatpush1.bf16.msra.mxu0 %v1525
  %1915 = vmatprep.subr.bf16.mxu0 %v1532
  %1916 = vmatpush1.bf16.msra.mxu0 %v1531
  %1917 = vmatprep.subr.bf16.mxu0 %v1538
  %1918 = vmatpush1.bf16.msra.mxu0 %v1537
  %1919 = vmatprep.subr.bf16.mxu0 %v1544
  %1920 = vmatpush1.bf16.msra.mxu0 %v1543
  %1921 = vmatprep.subr.bf16.mxu0 %v1550
  %1922 = vmatpush1.bf16.msra.mxu0 %v1549
  %1923 = vmatprep.subr.bf16.mxu0 %v1556
  %1924 = vmatpush1.bf16.msra.mxu0 %v1555
  %1925 = vmatprep.subr.bf16.mxu0 %v1562
  %1926 = vmatpush1.bf16.msra.mxu0 %v1561
  %1927 = vmatprep.subr.bf16.mxu0 %v1568
  %1928 = vmatpush1.bf16.msra.mxu0 %v1567
  %1929 = vmatprep.subr.bf16.mxu0 %v1574
  %1930 = vmatpush1.bf16.msra.mxu0 %v1573
  %1931 = vmatprep.subr.bf16.mxu0 %v1580
  %1932 = vmatpush1.bf16.msra.mxu0 %v1579
  %1933 = vmatprep.mubr.bf16.mxu0 %v1900
  %1934 = vmatmul.mubr.bf16.gmra.mrb[0].mxu0 %v1899
  %v1935 = vpop.f32.mrb[0].mxu0
  %v1936 = vadd.f32 0.0, %v1935
  %v1937 = vpop.f32.mrb[0].mxu0
  %v1938 = vadd.f32 0.0, %v1937
  %v1939 = vpop.f32.mrb[0].mxu0
  %v1940 = vpop.f32.mrb[0].mxu0
  %1941 = vdwg.mxu0
  %1942 = vmatprep.subr.bf16.mxu0 %v1492
  %1943 = vmatpush1.bf16.msra.mxu0 %v1491
  %1944 = vmatprep.subr.bf16.mxu0 %v1498
  %1945 = vmatpush1.bf16.msra.mxu0 %v1497
  %1946 = vmatprep.subr.bf16.mxu0 %v1504
  %1947 = vmatpush1.bf16.msra.mxu0 %v1503
  %1948 = vmatprep.subr.bf16.mxu0 %v1510
  %1949 = vmatpush1.bf16.msra.mxu0 %v1509
  %1950 = vmatprep.subr.bf16.mxu0 %v1516
  %1951 = vmatpush1.bf16.msra.mxu0 %v1515
  %1952 = vmatprep.subr.bf16.mxu0 %v1522
  %1953 = vmatpush1.bf16.msra.mxu0 %v1521
  %1954 = vmatprep.subr.bf16.mxu0 %v1528
  %1955 = vmatpush1.bf16.msra.mxu0 %v1527
  %1956 = vmatprep.subr.bf16.mxu0 %v1534
  %1957 = vmatpush1.bf16.msra.mxu0 %v1533
  %1958 = vmatprep.subr.bf16.mxu0 %v1540
  %1959 = vmatpush1.bf16.msra.mxu0 %v1539
  %1960 = vmatprep.subr.bf16.mxu0 %v1546
  %1961 = vmatpush1.bf16.msra.mxu0 %v1545
  %1962 = vmatprep.subr.bf16.mxu0 %v1552
  %1963 = vmatpush1.bf16.msra.mxu0 %v1551
  %1964 = vmatprep.subr.bf16.mxu0 %v1558
  %1965 = vmatpush1.bf16.msra.mxu0 %v1557
  %1966 = vmatprep.subr.bf16.mxu0 %v1564
  %1967 = vmatpush1.bf16.msra.mxu0 %v1563
  %1968 = vmatprep.subr.bf16.mxu0 %v1570
  %1969 = vmatpush1.bf16.msra.mxu0 %v1569
  %1970 = vmatprep.subr.bf16.mxu0 %v1576
  %1971 = vmatpush1.bf16.msra.mxu0 %v1575
  %1972 = vmatprep.subr.bf16.mxu0 %v1582
  %1973 = vmatpush1.bf16.msra.mxu0 %v1581
  %1974 = vmatprep.mubr.bf16.mxu0 %v1900
  %1975 = vmatmul.mubr.bf16.gmra.mrb[0].mxu0 %v1899
  %v1976 = vpop.f32.mrb[0].mxu0
  %v1977 = vadd.f32 0.0, %v1976
  %v1978 = vpop.f32.mrb[0].mxu0
  %v1979 = vadd.f32 0.0, %v1978
  %v1980 = vpop.f32.mrb[0].mxu0
  %v1981 = vpop.f32.mrb[0].mxu0
  %1982 = vdwg.mxu0
  %1983 = vmatprep.subr.bf16.mxu0 %v1494
  %1984 = vmatpush1.bf16.msra.mxu0 %v1493
  %1985 = vmatprep.subr.bf16.mxu0 %v1500
  %1986 = vmatpush1.bf16.msra.mxu0 %v1499
  %1987 = vmatprep.subr.bf16.mxu0 %v1506
  %1988 = vmatpush1.bf16.msra.mxu0 %v1505
  %1989 = vmatprep.subr.bf16.mxu0 %v1512
  %1990 = vmatpush1.bf16.msra.mxu0 %v1511
  %1991 = vmatprep.subr.bf16.mxu0 %v1518
  %1992 = vmatpush1.bf16.msra.mxu0 %v1517
  %1993 = vmatprep.subr.bf16.mxu0 %v1524
  %1994 = vmatpush1.bf16.msra.mxu0 %v1523
  %1995 = vmatprep.subr.bf16.mxu0 %v1530
  %1996 = vmatpush1.bf16.msra.mxu0 %v1529
  %1997 = vmatprep.subr.bf16.mxu0 %v1536
  %1998 = vmatpush1.bf16.msra.mxu0 %v1535
  %1999 = vmatprep.subr.bf16.mxu0 %v1542
  %2000 = vmatpush1.bf16.msra.mxu0 %v1541
  %2001 = vmatprep.subr.bf16.mxu0 %v1548
  %2002 = vmatpush1.bf16.msra.mxu0 %v1547
  %2003 = vmatprep.subr.bf16.mxu0 %v1554
  %2004 = vmatpush1.bf16.msra.mxu0 %v1553
  %2005 = vmatprep.subr.bf16.mxu0 %v1560
  %2006 = vmatpush1.bf16.msra.mxu0 %v1559
  %2007 = vmatprep.subr.bf16.mxu0 %v1566
  %2008 = vmatpush1.bf16.msra.mxu0 %v1565
  %2009 = vmatprep.subr.bf16.mxu0 %v1572
  %2010 = vmatpush1.bf16.msra.mxu0 %v1571
  %2011 = vmatprep.subr.bf16.mxu0 %v1578
  %2012 = vmatpush1.bf16.msra.mxu0 %v1577
  %2013 = vmatprep.subr.bf16.mxu0 %v1584
  %2014 = vmatpush1.bf16.msra.mxu0 %v1583
  %2015 = vmatprep.mubr.bf16.mxu0 %v1900
  %2016 = vmatmul.mubr.bf16.gmra.mrb[0].mxu0 %v1899
  %v2017 = vpop.f32.mrb[0].mxu0
  %v2018 = vadd.f32 0.0, %v2017
  %v2019 = vpop.f32.mrb[0].mxu0
  %v2020 = vadd.f32 0.0, %v2019
  %v2021 = vpop.f32.mrb[0].mxu0
  %v2022 = vpop.f32.mrb[0].mxu0
  %2023 = vdwg.mxu0
  %v2024 = vadd.f32 %v1081, %v1936
  %v2025 = vadd.f32 %v1083, %v1938
  %v2026 = vadd.f32 %v1134, %v1977
  %v2027 = vadd.f32 %v1136, %v1979
  %v2028 = vadd.f32 %v2024, %v1812
  %v2029 = vadd.f32 %v2025, %v1816
  %v2030 = vadd.f32 %v2026, %v1820
  %v2031 = vadd.f32 %v2027, %v1824
  %v2032 = vxor.u32 %v2028, 2147483648
  %v2033 = vxor.u32 %v2029, 2147483648
  %v2034 = vxor.u32 %v2030, 2147483648
  %v2035 = vxor.u32 %v2031, 2147483648
  %v2036 = vmul.f32 %v2032, 1.442695
  %v2037 = vpow.pop %v2036
  %v2038 = vmul.f32 %v2033, 1.442695
  %v2039 = vpow.pop %v2038
  %v2040 = vmul.f32 %v2034, 1.442695
  %v2041 = vpow.pop %v2040
  %v2042 = vmul.f32 %v2035, 1.442695
  %v2043 = vpow.pop %v2042
  %v2044 = vadd.f32 %v2037, 1.0
  %v2045 = vadd.f32 %v2039, 1.0
  %v2046 = vadd.f32 %v2041, 1.0
  %v2047 = vadd.f32 %v2043, 1.0
  %v2048 = vrcp.pop %v2044
  %v2049 = vmul.f32 1.0, %v2048
  %v2050 = vrcp.pop %v2045
  %v2051 = vmul.f32 1.0, %v2050
  %v2052 = vrcp.pop %v2046
  %v2053 = vmul.f32 1.0, %v2052
  %v2054 = vrcp.pop %v2047
  %v2055 = vmul.f32 1.0, %v2054
  %v2056 = vadd.f32 %v1187, %v1861
  %v2057 = vadd.f32 %v1189, %v1865
  %v2058 = vadd.f32 %v2018, %v1874
  %v2059 = vadd.f32 %v2020, %v1878
  %v2060 = vmul.f32 %v2049, %v2058
  %v2061 = vmul.f32 %v2051, %v2059
  %v2062 = vadd.f32 %v2056, %v2060
  %v2063 = vadd.f32 %v2057, %v2061
  %v2064 = vtanh.pop %v2062
  %v2065 = vtanh.pop %v2063
  %v2066 = vsub.f32 1.0, %v2053
  %v2067 = vsub.f32 1.0, %v2055
  %v2068 = vmul.f32 %v2066, %v2064
  %v2069 = vmul.f32 %v2067, %v2065
  %v2070 = vmul.f32 %v2053, %v1895
  %v2071 = vmul.f32 %v2055, %v1896
  %v2072 = vadd.f32 %v2068, %v2070
  %v2073 = vadd.f32 %v2069, %v2071
  %2074 = vst [vmem:[#allocation2 + $0x10] sm:$0xff] %v2072
  %2075 = vst [vmem:[#allocation2 + $0x18] sm:$0xff] %v2073
  %v2076 = vpack.c.bf16 %v2072, %v2072
  %v2077 = vpack.c.bf16 %v2073, %v2073
  %2078 = vmatprep.subr.bf16.mxu0 %v1490
  %2079 = vmatpush1.bf16.msra.mxu0 %v1489
  %2080 = vmatprep.subr.bf16.mxu0 %v1496
  %2081 = vmatpush1.bf16.msra.mxu0 %v1495
  %2082 = vmatprep.subr.bf16.mxu0 %v1502
  %2083 = vmatpush1.bf16.msra.mxu0 %v1501
  %2084 = vmatprep.subr.bf16.mxu0 %v1508
  %2085 = vmatpush1.bf16.msra.mxu0 %v1507
  %2086 = vmatprep.subr.bf16.mxu0 %v1514
  %2087 = vmatpush1.bf16.msra.mxu0 %v1513
  %2088 = vmatprep.subr.bf16.mxu0 %v1520
  %2089 = vmatpush1.bf16.msra.mxu0 %v1519
  %2090 = vmatprep.subr.bf16.mxu0 %v1526
  %2091 = vmatpush1.bf16.msra.mxu0 %v1525
  %2092 = vmatprep.subr.bf16.mxu0 %v1532
  %2093 = vmatpush1.bf16.msra.mxu0 %v1531
  %2094 = vmatprep.subr.bf16.mxu0 %v1538
  %2095 = vmatpush1.bf16.msra.mxu0 %v1537
  %2096 = vmatprep.subr.bf16.mxu0 %v1544
  %2097 = vmatpush1.bf16.msra.mxu0 %v1543
  %2098 = vmatprep.subr.bf16.mxu0 %v1550
  %2099 = vmatpush1.bf16.msra.mxu0 %v1549
  %2100 = vmatprep.subr.bf16.mxu0 %v1556
  %2101 = vmatpush1.bf16.msra.mxu0 %v1555
  %2102 = vmatprep.subr.bf16.mxu0 %v1562
  %2103 = vmatpush1.bf16.msra.mxu0 %v1561
  %2104 = vmatprep.subr.bf16.mxu0 %v1568
  %2105 = vmatpush1.bf16.msra.mxu0 %v1567
  %2106 = vmatprep.subr.bf16.mxu0 %v1574
  %2107 = vmatpush1.bf16.msra.mxu0 %v1573
  %2108 = vmatprep.subr.bf16.mxu0 %v1580
  %2109 = vmatpush1.bf16.msra.mxu0 %v1579
  %2110 = vmatprep.mubr.bf16.mxu0 %v2077
  %2111 = vmatmul.mubr.bf16.gmra.mrb[0].mxu0 %v2076
  %v2112 = vpop.f32.mrb[0].mxu0
  %v2113 = vadd.f32 0.0, %v2112
  %v2114 = vpop.f32.mrb[0].mxu0
  %v2115 = vadd.f32 0.0, %v2114
  %v2116 = vpop.f32.mrb[0].mxu0
  %v2117 = vpop.f32.mrb[0].mxu0
  %2118 = vdwg.mxu0
  %2119 = vmatprep.subr.bf16.mxu0 %v1492
  %2120 = vmatpush1.bf16.msra.mxu0 %v1491
  %2121 = vmatprep.subr.bf16.mxu0 %v1498
  %2122 = vmatpush1.bf16.msra.mxu0 %v1497
  %2123 = vmatprep.subr.bf16.mxu0 %v1504
  %2124 = vmatpush1.bf16.msra.mxu0 %v1503
  %2125 = vmatprep.subr.bf16.mxu0 %v1510
  %2126 = vmatpush1.bf16.msra.mxu0 %v1509
  %2127 = vmatprep.subr.bf16.mxu0 %v1516
  %2128 = vmatpush1.bf16.msra.mxu0 %v1515
  %2129 = vmatprep.subr.bf16.mxu0 %v1522
  %2130 = vmatpush1.bf16.msra.mxu0 %v1521
  %2131 = vmatprep.subr.bf16.mxu0 %v1528
  %2132 = vmatpush1.bf16.msra.mxu0 %v1527
  %2133 = vmatprep.subr.bf16.mxu0 %v1534
  %2134 = vmatpush1.bf16.msra.mxu0 %v1533
  %2135 = vmatprep.subr.bf16.mxu0 %v1540
  %2136 = vmatpush1.bf16.msra.mxu0 %v1539
  %2137 = vmatprep.subr.bf16.mxu0 %v1546
  %2138 = vmatpush1.bf16.msra.mxu0 %v1545
  %2139 = vmatprep.subr.bf16.mxu0 %v1552
  %2140 = vmatpush1.bf16.msra.mxu0 %v1551
  %2141 = vmatprep.subr.bf16.mxu0 %v1558
  %2142 = vmatpush1.bf16.msra.mxu0 %v1557
  %2143 = vmatprep.subr.bf16.mxu0 %v1564
  %2144 = vmatpush1.bf16.msra.mxu0 %v1563
  %2145 = vmatprep.subr.bf16.mxu0 %v1570
  %2146 = vmatpush1.bf16.msra.mxu0 %v1569
  %2147 = vmatprep.subr.bf16.mxu0 %v1576
  %2148 = vmatpush1.bf16.msra.mxu0 %v1575
  %2149 = vmatprep.subr.bf16.mxu0 %v1582
  %2150 = vmatpush1.bf16.msra.mxu0 %v1581
  %2151 = vmatprep.mubr.bf16.mxu0 %v2077
  %2152 = vmatmul.mubr.bf16.gmra.mrb[0].mxu0 %v2076
  %v2153 = vpop.f32.mrb[0].mxu0
  %v2154 = vadd.f32 0.0, %v2153
  %v2155 = vpop.f32.mrb[0].mxu0
  %v2156 = vadd.f32 0.0, %v2155
  %v2157 = vpop.f32.mrb[0].mxu0
  %v2158 = vpop.f32.mrb[0].mxu0
  %2159 = vdwg.mxu0
  %2160 = vmatprep.subr.bf16.mxu0 %v1494
  %2161 = vmatpush1.bf16.msra.mxu0 %v1493
  %2162 = vmatprep.subr.bf16.mxu0 %v1500
  %2163 = vmatpush1.bf16.msra.mxu0 %v1499
  %2164 = vmatprep.subr.bf16.mxu0 %v1506
  %2165 = vmatpush1.bf16.msra.mxu0 %v1505
  %2166 = vmatprep.subr.bf16.mxu0 %v1512
  %2167 = vmatpush1.bf16.msra.mxu0 %v1511
  %2168 = vmatprep.subr.bf16.mxu0 %v1518
  %2169 = vmatpush1.bf16.msra.mxu0 %v1517
  %2170 = vmatprep.subr.bf16.mxu0 %v1524
  %2171 = vmatpush1.bf16.msra.mxu0 %v1523
  %2172 = vmatprep.subr.bf16.mxu0 %v1530
  %2173 = vmatpush1.bf16.msra.mxu0 %v1529
  %2174 = vmatprep.subr.bf16.mxu0 %v1536
  %2175 = vmatpush1.bf16.msra.mxu0 %v1535
  %2176 = vmatprep.subr.bf16.mxu0 %v1542
  %2177 = vmatpush1.bf16.msra.mxu0 %v1541
  %2178 = vmatprep.subr.bf16.mxu0 %v1548
  %2179 = vmatpush1.bf16.msra.mxu0 %v1547
  %2180 = vmatprep.subr.bf16.mxu0 %v1554
  %2181 = vmatpush1.bf16.msra.mxu0 %v1553
  %2182 = vmatprep.subr.bf16.mxu0 %v1560
  %2183 = vmatpush1.bf16.msra.mxu0 %v1559
  %2184 = vmatprep.subr.bf16.mxu0 %v1566
  %2185 = vmatpush1.bf16.msra.mxu0 %v1565
  %2186 = vmatprep.subr.bf16.mxu0 %v1572
  %2187 = vmatpush1.bf16.msra.mxu0 %v1571
  %2188 = vmatprep.subr.bf16.mxu0 %v1578
  %2189 = vmatpush1.bf16.msra.mxu0 %v1577
  %2190 = vmatprep.subr.bf16.mxu0 %v1584
  %2191 = vmatpush1.bf16.msra.mxu0 %v1583
  %2192 = vmatprep.mubr.bf16.mxu0 %v2077
  %2193 = vmatmul.mubr.bf16.gmra.mrb[0].mxu0 %v2076
  %v2194 = vpop.f32.mrb[0].mxu0
  %v2195 = vadd.f32 0.0, %v2194
  %v2196 = vpop.f32.mrb[0].mxu0
  %v2197 = vadd.f32 0.0, %v2196
  %v2198 = vpop.f32.mrb[0].mxu0
  %v2199 = vpop.f32.mrb[0].mxu0
  %2200 = vdwg.mxu0
  %v2201 = vadd.f32 %v1087, %v2113
  %v2202 = vadd.f32 %v1089, %v2115
  %v2203 = vadd.f32 %v1140, %v2154
  %v2204 = vadd.f32 %v1142, %v2156
  %v2205 = vadd.f32 %v2201, %v1812
  %v2206 = vadd.f32 %v2202, %v1816
  %v2207 = vadd.f32 %v2203, %v1820
  %v2208 = vadd.f32 %v2204, %v1824
  %v2209 = vxor.u32 %v2205, 2147483648
  %v2210 = vxor.u32 %v2206, 2147483648
  %v2211 = vxor.u32 %v2207, 2147483648
  %v2212 = vxor.u32 %v2208, 2147483648
  %v2213 = vmul.f32 %v2209, 1.442695
  %v2214 = vpow.pop %v2213
  %v2215 = vmul.f32 %v2210, 1.442695
  %v2216 = vpow.pop %v2215
  %v2217 = vmul.f32 %v2211, 1.442695
  %v2218 = vpow.pop %v2217
  %v2219 = vmul.f32 %v2212, 1.442695
  %v2220 = vpow.pop %v2219
  %v2221 = vadd.f32 %v2214, 1.0
  %v2222 = vadd.f32 %v2216, 1.0
  %v2223 = vadd.f32 %v2218, 1.0
  %v2224 = vadd.f32 %v2220, 1.0
  %v2225 = vrcp.pop %v2221
  %v2226 = vmul.f32 1.0, %v2225
  %v2227 = vrcp.pop %v2222
  %v2228 = vmul.f32 1.0, %v2227
  %v2229 = vrcp.pop %v2223
  %v2230 = vmul.f32 1.0, %v2229
  %v2231 = vrcp.pop %v2224
  %v2232 = vmul.f32 1.0, %v2231
  %v2233 = vadd.f32 %v1193, %v1861
  %v2234 = vadd.f32 %v1195, %v1865
  %v2235 = vadd.f32 %v2195, %v1874
  %v2236 = vadd.f32 %v2197, %v1878
  %v2237 = vmul.f32 %v2226, %v2235
  %v2238 = vmul.f32 %v2228, %v2236
  %v2239 = vadd.f32 %v2233, %v2237
  %v2240 = vadd.f32 %v2234, %v2238
  %v2241 = vtanh.pop %v2239
  %v2242 = vtanh.pop %v2240
  %v2243 = vsub.f32 1.0, %v2230
  %v2244 = vsub.f32 1.0, %v2232
  %v2245 = vmul.f32 %v2243, %v2241
  %v2246 = vmul.f32 %v2244, %v2242
  %v2247 = vmul.f32 %v2230, %v2072
  %v2248 = vmul.f32 %v2232, %v2073
  %v2249 = vadd.f32 %v2245, %v2247
  %v2250 = vadd.f32 %v2246, %v2248
  %2251 = vst [vmem:[#allocation2 + $0x20] sm:$0xff] %v2249
  %2252 = vst [vmem:[#allocation2 + $0x28] sm:$0xff] %v2250
  %v2253 = vpack.c.bf16 %v2249, %v2249
  %v2254 = vpack.c.bf16 %v2250, %v2250
  %2255 = vmatprep.subr.bf16.mxu0 %v1490
  %2256 = vmatpush1.bf16.msra.mxu0 %v1489
  %2257 = vmatprep.subr.bf16.mxu0 %v1496
  %2258 = vmatpush1.bf16.msra.mxu0 %v1495
  %2259 = vmatprep.subr.bf16.mxu0 %v1502
  %2260 = vmatpush1.bf16.msra.mxu0 %v1501
  %2261 = vmatprep.subr.bf16.mxu0 %v1508
  %2262 = vmatpush1.bf16.msra.mxu0 %v1507
  %2263 = vmatprep.subr.bf16.mxu0 %v1514
  %2264 = vmatpush1.bf16.msra.mxu0 %v1513
  %2265 = vmatprep.subr.bf16.mxu0 %v1520
  %2266 = vmatpush1.bf16.msra.mxu0 %v1519
  %2267 = vmatprep.subr.bf16.mxu0 %v1526
  %2268 = vmatpush1.bf16.msra.mxu0 %v1525
  %2269 = vmatprep.subr.bf16.mxu0 %v1532
  %2270 = vmatpush1.bf16.msra.mxu0 %v1531
  %2271 = vmatprep.subr.bf16.mxu0 %v1538
  %2272 = vmatpush1.bf16.msra.mxu0 %v1537
  %2273 = vmatprep.subr.bf16.mxu0 %v1544
  %2274 = vmatpush1.bf16.msra.mxu0 %v1543
  %2275 = vmatprep.subr.bf16.mxu0 %v1550
  %2276 = vmatpush1.bf16.msra.mxu0 %v1549
  %2277 = vmatprep.subr.bf16.mxu0 %v1556
  %2278 = vmatpush1.bf16.msra.mxu0 %v1555
  %2279 = vmatprep.subr.bf16.mxu0 %v1562
  %2280 = vmatpush1.bf16.msra.mxu0 %v1561
  %2281 = vmatprep.subr.bf16.mxu0 %v1568
  %2282 = vmatpush1.bf16.msra.mxu0 %v1567
  %2283 = vmatprep.subr.bf16.mxu0 %v1574
  %2284 = vmatpush1.bf16.msra.mxu0 %v1573
  %2285 = vmatprep.subr.bf16.mxu0 %v1580
  %2286 = vmatpush1.bf16.msra.mxu0 %v1579
  %2287 = vmatprep.mubr.bf16.mxu0 %v2254
  %2288 = vmatmul.mubr.bf16.gmra.mrb[0].mxu0 %v2253
  %v2289 = vpop.f32.mrb[0].mxu0
  %v2290 = vadd.f32 0.0, %v2289
  %v2291 = vpop.f32.mrb[0].mxu0
  %v2292 = vadd.f32 0.0, %v2291
  %v2293 = vpop.f32.mrb[0].mxu0
  %v2294 = vpop.f32.mrb[0].mxu0
  %2295 = vdwg.mxu0
  %2296 = vmatprep.subr.bf16.mxu0 %v1492
  %2297 = vmatpush1.bf16.msra.mxu0 %v1491
  %2298 = vmatprep.subr.bf16.mxu0 %v1498
  %2299 = vmatpush1.bf16.msra.mxu0 %v1497
  %2300 = vmatprep.subr.bf16.mxu0 %v1504
  %2301 = vmatpush1.bf16.msra.mxu0 %v1503
  %2302 = vmatprep.subr.bf16.mxu0 %v1510
  %2303 = vmatpush1.bf16.msra.mxu0 %v1509
  %2304 = vmatprep.subr.bf16.mxu0 %v1516
  %2305 = vmatpush1.bf16.msra.mxu0 %v1515
  %2306 = vmatprep.subr.bf16.mxu0 %v1522
  %2307 = vmatpush1.bf16.msra.mxu0 %v1521
  %2308 = vmatprep.subr.bf16.mxu0 %v1528
  %2309 = vmatpush1.bf16.msra.mxu0 %v1527
  %2310 = vmatprep.subr.bf16.mxu0 %v1534
  %2311 = vmatpush1.bf16.msra.mxu0 %v1533
  %2312 = vmatprep.subr.bf16.mxu0 %v1540
  %2313 = vmatpush1.bf16.msra.mxu0 %v1539
  %2314 = vmatprep.subr.bf16.mxu0 %v1546
  %2315 = vmatpush1.bf16.msra.mxu0 %v1545
  %2316 = vmatprep.subr.bf16.mxu0 %v1552
  %2317 = vmatpush1.bf16.msra.mxu0 %v1551
  %2318 = vmatprep.subr.bf16.mxu0 %v1558
  %2319 = vmatpush1.bf16.msra.mxu0 %v1557
  %2320 = vmatprep.subr.bf16.mxu0 %v1564
  %2321 = vmatpush1.bf16.msra.mxu0 %v1563
  %2322 = vmatprep.subr.bf16.mxu0 %v1570
  %2323 = vmatpush1.bf16.msra.mxu0 %v1569
  %2324 = vmatprep.subr.bf16.mxu0 %v1576
  %2325 = vmatpush1.bf16.msra.mxu0 %v1575
  %2326 = vmatprep.subr.bf16.mxu0 %v1582
  %2327 = vmatpush1.bf16.msra.mxu0 %v1581
  %2328 = vmatprep.mubr.bf16.mxu0 %v2254
  %2329 = vmatmul.mubr.bf16.gmra.mrb[0].mxu0 %v2253
  %v2330 = vpop.f32.mrb[0].mxu0
  %v2331 = vadd.f32 0.0, %v2330
  %v2332 = vpop.f32.mrb[0].mxu0
  %v2333 = vadd.f32 0.0, %v2332
  %v2334 = vpop.f32.mrb[0].mxu0
  %v2335 = vpop.f32.mrb[0].mxu0
  %2336 = vdwg.mxu0
  %2337 = vmatprep.subr.bf16.mxu0 %v1494
  %2338 = vmatpush1.bf16.msra.mxu0 %v1493
  %2339 = vmatprep.subr.bf16.mxu0 %v1500
  %2340 = vmatpush1.bf16.msra.mxu0 %v1499
  %2341 = vmatprep.subr.bf16.mxu0 %v1506
  %2342 = vmatpush1.bf16.msra.mxu0 %v1505
  %2343 = vmatprep.subr.bf16.mxu0 %v1512
  %2344 = vmatpush1.bf16.msra.mxu0 %v1511
  %2345 = vmatprep.subr.bf16.mxu0 %v1518
  %2346 = vmatpush1.bf16.msra.mxu0 %v1517
  %2347 = vmatprep.subr.bf16.mxu0 %v1524
  %2348 = vmatpush1.bf16.msra.mxu0 %v1523
  %2349 = vmatprep.subr.bf16.mxu0 %v1530
  %2350 = vmatpush1.bf16.msra.mxu0 %v1529
  %2351 = vmatprep.subr.bf16.mxu0 %v1536
  %2352 = vmatpush1.bf16.msra.mxu0 %v1535
  %2353 = vmatprep.subr.bf16.mxu0 %v1542
  %2354 = vmatpush1.bf16.msra.mxu0 %v1541
  %2355 = vmatprep.subr.bf16.mxu0 %v1548
  %2356 = vmatpush1.bf16.msra.mxu0 %v1547
  %2357 = vmatprep.subr.bf16.mxu0 %v1554
  %2358 = vmatpush1.bf16.msra.mxu0 %v1553
  %2359 = vmatprep.subr.bf16.mxu0 %v1560
  %2360 = vmatpush1.bf16.msra.mxu0 %v1559
  %2361 = vmatprep.subr.bf16.mxu0 %v1566
  %2362 = vmatpush1.bf16.msra.mxu0 %v1565
  %2363 = vmatprep.subr.bf16.mxu0 %v1572
  %2364 = vmatpush1.bf16.msra.mxu0 %v1571
  %2365 = vmatprep.subr.bf16.mxu0 %v1578
  %2366 = vmatpush1.bf16.msra.mxu0 %v1577
  %2367 = vmatprep.subr.bf16.mxu0 %v1584
  %2368 = vmatpush1.bf16.msra.mxu0 %v1583
  %2369 = vmatprep.mubr.bf16.mxu0 %v2254
  %2370 = vmatmul.mubr.bf16.gmra.mrb[0].mxu0 %v2253
  %v2371 = vpop.f32.mrb[0].mxu0
  %v2372 = vadd.f32 0.0, %v2371
  %v2373 = vpop.f32.mrb[0].mxu0
  %v2374 = vadd.f32 0.0, %v2373
  %v2375 = vpop.f32.mrb[0].mxu0
  %v2376 = vpop.f32.mrb[0].mxu0
  %2377 = vdwg.mxu0
  %v2378 = vadd.f32 %v1091, %v2290
  %v2379 = vadd.f32 %v1093, %v2292
  %v2380 = vadd.f32 %v1144, %v2331
  %v2381 = vadd.f32 %v1146, %v2333
  %v2382 = vadd.f32 %v2378, %v1812
  %v2383 = vadd.f32 %v2379, %v1816
  %v2384 = vadd.f32 %v2380, %v1820
  %v2385 = vadd.f32 %v2381, %v1824
  %v2386 = vxor.u32 %v2382, 2147483648
  %v2387 = vxor.u32 %v2383, 2147483648
  %v2388 = vxor.u32 %v2384, 2147483648
  %v2389 = vxor.u32 %v2385, 2147483648
  %v2390 = vmul.f32 %v2386, 1.442695
  %v2391 = vpow.pop %v2390
  %v2392 = vmul.f32 %v2387, 1.442695
  %v2393 = vpow.pop %v2392
  %v2394 = vmul.f32 %v2388, 1.442695
  %v2395 = vpow.pop %v2394
  %v2396 = vmul.f32 %v2389, 1.442695
  %v2397 = vpow.pop %v2396
  %v2398 = vadd.f32 %v2391, 1.0
  %v2399 = vadd.f32 %v2393, 1.0
  %v2400 = vadd.f32 %v2395, 1.0
  %v2401 = vadd.f32 %v2397, 1.0
  %v2402 = vrcp.pop %v2398
  %v2403 = vmul.f32 1.0, %v2402
  %v2404 = vrcp.pop %v2399
  %v2405 = vmul.f32 1.0, %v2404
  %v2406 = vrcp.pop %v2400
  %v2407 = vmul.f32 1.0, %v2406
  %v2408 = vrcp.pop %v2401
  %v2409 = vmul.f32 1.0, %v2408
  %v2410 = vadd.f32 %v1197, %v1861
  %v2411 = vadd.f32 %v1199, %v1865
  %v2412 = vadd.f32 %v2372, %v1874
  %v2413 = vadd.f32 %v2374, %v1878
  %v2414 = vmul.f32 %v2403, %v2412
  %v2415 = vmul.f32 %v2405, %v2413
  %v2416 = vadd.f32 %v2410, %v2414
  %v2417 = vadd.f32 %v2411, %v2415
  %v2418 = vtanh.pop %v2416
  %v2419 = vtanh.pop %v2417
  %v2420 = vsub.f32 1.0, %v2407
  %v2421 = vsub.f32 1.0, %v2409
  %v2422 = vmul.f32 %v2420, %v2418
  %v2423 = vmul.f32 %v2421, %v2419
  %v2424 = vmul.f32 %v2407, %v2249
  %v2425 = vmul.f32 %v2409, %v2250
  %v2426 = vadd.f32 %v2422, %v2424
  %v2427 = vadd.f32 %v2423, %v2425
  %2428 = vst [vmem:[#allocation2 + $0x30] sm:$0xff] %v2426
  %2429 = vst [vmem:[#allocation2 + $0x38] sm:$0xff] %v2427
  %v2430 = vpack.c.bf16 %v2426, %v2426
  %v2431 = vpack.c.bf16 %v2427, %v2427
  %v2432 = vld [vmem:[%s8] sm:$0xff]
  %v2433 = vld [vmem:[%s8 + $0x8] sm:$0xff]
  %v2434 = vld [vmem:[%s8 + $0x10] sm:$0xff]
  %v2435 = vld [vmem:[%s8 + $0x18] sm:$0xff]
  %v2436 = vld [vmem:[%s8 + $0x20] sm:$0xff]
  %v2437 = vld [vmem:[%s8 + $0x28] sm:$0xff]
  %v2438 = vld [vmem:[%s8 + $0x30] sm:$0xff]
  %v2439 = vld [vmem:[%s8 + $0x38] sm:$0xff]
  %v2440 = vld [vmem:[%s8 + $0x40] sm:$0xff]
  %v2441 = vld [vmem:[%s8 + $0x48] sm:$0xff]
  %v2442 = vld [vmem:[%s8 + $0x50] sm:$0xff]
  %v2443 = vld [vmem:[%s8 + $0x58] sm:$0xff]
  %v2444 = vld [vmem:[%s8 + $0x60] sm:$0xff]
  %v2445 = vld [vmem:[%s8 + $0x68] sm:$0xff]
  %v2446 = vld [vmem:[%s8 + $0x70] sm:$0xff]
  %v2447 = vld [vmem:[%s8 + $0x78] sm:$0xff]
  %v2448 = vld [vmem:[%s8 + $0x80] sm:$0xff]
  %v2449 = vld [vmem:[%s8 + $0x88] sm:$0xff]
  %v2450 = vld [vmem:[%s8 + $0x90] sm:$0xff]
  %v2451 = vld [vmem:[%s8 + $0x98] sm:$0xff]
  %v2452 = vld [vmem:[%s8 + $0xa0] sm:$0xff]
  %v2453 = vld [vmem:[%s8 + $0xa8] sm:$0xff]
  %v2454 = vld [vmem:[%s8 + $0xb0] sm:$0xff]
  %v2455 = vld [vmem:[%s8 + $0xb8] sm:$0xff]
  %v2456 = vld [vmem:[%s8 + $0xc0] sm:$0xff]
  %v2457 = vld [vmem:[%s8 + $0xc8] sm:$0xff]
  %v2458 = vld [vmem:[%s8 + $0xd0] sm:$0xff]
  %v2459 = vld [vmem:[%s8 + $0xd8] sm:$0xff]
  %v2460 = vld [vmem:[%s8 + $0xe0] sm:$0xff]
  %v2461 = vld [vmem:[%s8 + $0xe8] sm:$0xff]
  %v2462 = vld [vmem:[%s8 + $0xf0] sm:$0xff]
  %v2463 = vld [vmem:[%s8 + $0xf8] sm:$0xff]
  %s2464 = scalar_lea.vmem %s3, 768
  %v2465 = vld [vmem:[%s2464] sm:$0xff]
  %v2466 = vld [vmem:[%s2464 + $0x8] sm:$0xff]
  %v2467 = vld [vmem:[%s2464 + $0x10] sm:$0xff]
  %v2468 = vld [vmem:[%s2464 + $0x18] sm:$0xff]
  %v2469 = vld [vmem:[%s2464 + $0x20] sm:$0xff]
  %v2470 = vld [vmem:[%s2464 + $0x28] sm:$0xff]
  %v2471 = vld [vmem:[%s2464 + $0x30] sm:$0xff]
  %v2472 = vld [vmem:[%s2464 + $0x38] sm:$0xff]
  %v2473 = vld [vmem:[%s2464 + $0x40] sm:$0xff]
  %v2474 = vld [vmem:[%s2464 + $0x48] sm:$0xff]
  %v2475 = vld [vmem:[%s2464 + $0x50] sm:$0xff]
  %v2476 = vld [vmem:[%s2464 + $0x58] sm:$0xff]
  %v2477 = vld [vmem:[%s2464 + $0x60] sm:$0xff]
  %v2478 = vld [vmem:[%s2464 + $0x68] sm:$0xff]
  %v2479 = vld [vmem:[%s2464 + $0x70] sm:$0xff]
  %v2480 = vld [vmem:[%s2464 + $0x78] sm:$0xff]
  %v2481 = vld [vmem:[%s2464 + $0x80] sm:$0xff]
  %v2482 = vld [vmem:[%s2464 + $0x88] sm:$0xff]
  %v2483 = vld [vmem:[%s2464 + $0x90] sm:$0xff]
  %v2484 = vld [vmem:[%s2464 + $0x98] sm:$0xff]
  %v2485 = vld [vmem:[%s2464 + $0xa0] sm:$0xff]
  %v2486 = vld [vmem:[%s2464 + $0xa8] sm:$0xff]
  %v2487 = vld [vmem:[%s2464 + $0xb0] sm:$0xff]
  %v2488 = vld [vmem:[%s2464 + $0xb8] sm:$0xff]
  %v2489 = vld [vmem:[%s2464 + $0xc0] sm:$0xff]
  %v2490 = vld [vmem:[%s2464 + $0xc8] sm:$0xff]
  %v2491 = vld [vmem:[%s2464 + $0xd0] sm:$0xff]
  %v2492 = vld [vmem:[%s2464 + $0xd8] sm:$0xff]
  %v2493 = vld [vmem:[%s2464 + $0xe0] sm:$0xff]
  %v2494 = vld [vmem:[%s2464 + $0xe8] sm:$0xff]
  %v2495 = vld [vmem:[%s2464 + $0xf0] sm:$0xff]
  %v2496 = vld [vmem:[%s2464 + $0xf8] sm:$0xff]
  %v2497 = vld [vmem:[%s2464 + $0x100] sm:$0xff]
  %v2498 = vld [vmem:[%s2464 + $0x108] sm:$0xff]
  %v2499 = vld [vmem:[%s2464 + $0x110] sm:$0xff]
  %v2500 = vld [vmem:[%s2464 + $0x118] sm:$0xff]
  %v2501 = vld [vmem:[%s2464 + $0x120] sm:$0xff]
  %v2502 = vld [vmem:[%s2464 + $0x128] sm:$0xff]
  %v2503 = vld [vmem:[%s2464 + $0x130] sm:$0xff]
  %v2504 = vld [vmem:[%s2464 + $0x138] sm:$0xff]
  %v2505 = vld [vmem:[%s2464 + $0x140] sm:$0xff]
  %v2506 = vld [vmem:[%s2464 + $0x148] sm:$0xff]
  %v2507 = vld [vmem:[%s2464 + $0x150] sm:$0xff]
  %v2508 = vld [vmem:[%s2464 + $0x158] sm:$0xff]
  %v2509 = vld [vmem:[%s2464 + $0x160] sm:$0xff]
  %v2510 = vld [vmem:[%s2464 + $0x168] sm:$0xff]
  %v2511 = vld [vmem:[%s2464 + $0x170] sm:$0xff]
  %v2512 = vld [vmem:[%s2464 + $0x178] sm:$0xff]
  %v2513 = vld [vmem:[%s2464 + $0x180] sm:$0xff]
  %v2514 = vld [vmem:[%s2464 + $0x188] sm:$0xff]
  %v2515 = vld [vmem:[%s2464 + $0x190] sm:$0xff]
  %v2516 = vld [vmem:[%s2464 + $0x198] sm:$0xff]
  %v2517 = vld [vmem:[%s2464 + $0x1a0] sm:$0xff]
  %v2518 = vld [vmem:[%s2464 + $0x1a8] sm:$0xff]
  %v2519 = vld [vmem:[%s2464 + $0x1b0] sm:$0xff]
  %v2520 = vld [vmem:[%s2464 + $0x1b8] sm:$0xff]
  %v2521 = vld [vmem:[%s2464 + $0x1c0] sm:$0xff]
  %v2522 = vld [vmem:[%s2464 + $0x1c8] sm:$0xff]
  %v2523 = vld [vmem:[%s2464 + $0x1d0] sm:$0xff]
  %v2524 = vld [vmem:[%s2464 + $0x1d8] sm:$0xff]
  %v2525 = vld [vmem:[%s2464 + $0x1e0] sm:$0xff]
  %v2526 = vld [vmem:[%s2464 + $0x1e8] sm:$0xff]
  %v2527 = vld [vmem:[%s2464 + $0x1f0] sm:$0xff]
  %v2528 = vld [vmem:[%s2464 + $0x1f8] sm:$0xff]
  %v2529 = vld [vmem:[%s2464 + $0x200] sm:$0xff]
  %v2530 = vld [vmem:[%s2464 + $0x208] sm:$0xff]
  %v2531 = vld [vmem:[%s2464 + $0x210] sm:$0xff]
  %v2532 = vld [vmem:[%s2464 + $0x218] sm:$0xff]
  %v2533 = vld [vmem:[%s2464 + $0x220] sm:$0xff]
  %v2534 = vld [vmem:[%s2464 + $0x228] sm:$0xff]
  %v2535 = vld [vmem:[%s2464 + $0x230] sm:$0xff]
  %v2536 = vld [vmem:[%s2464 + $0x238] sm:$0xff]
  %v2537 = vld [vmem:[%s2464 + $0x240] sm:$0xff]
  %v2538 = vld [vmem:[%s2464 + $0x248] sm:$0xff]
  %v2539 = vld [vmem:[%s2464 + $0x250] sm:$0xff]
  %v2540 = vld [vmem:[%s2464 + $0x258] sm:$0xff]
  %v2541 = vld [vmem:[%s2464 + $0x260] sm:$0xff]
  %v2542 = vld [vmem:[%s2464 + $0x268] sm:$0xff]
  %v2543 = vld [vmem:[%s2464 + $0x270] sm:$0xff]
  %v2544 = vld [vmem:[%s2464 + $0x278] sm:$0xff]
  %v2545 = vld [vmem:[%s2464 + $0x280] sm:$0xff]
  %v2546 = vld [vmem:[%s2464 + $0x288] sm:$0xff]
  %v2547 = vld [vmem:[%s2464 + $0x290] sm:$0xff]
  %v2548 = vld [vmem:[%s2464 + $0x298] sm:$0xff]
  %v2549 = vld [vmem:[%s2464 + $0x2a0] sm:$0xff]
  %v2550 = vld [vmem:[%s2464 + $0x2a8] sm:$0xff]
  %v2551 = vld [vmem:[%s2464 + $0x2b0] sm:$0xff]
  %v2552 = vld [vmem:[%s2464 + $0x2b8] sm:$0xff]
  %v2553 = vld [vmem:[%s2464 + $0x2c0] sm:$0xff]
  %v2554 = vld [vmem:[%s2464 + $0x2c8] sm:$0xff]
  %v2555 = vld [vmem:[%s2464 + $0x2d0] sm:$0xff]
  %v2556 = vld [vmem:[%s2464 + $0x2d8] sm:$0xff]
  %v2557 = vld [vmem:[%s2464 + $0x2e0] sm:$0xff]
  %v2558 = vld [vmem:[%s2464 + $0x2e8] sm:$0xff]
  %v2559 = vld [vmem:[%s2464 + $0x2f0] sm:$0xff]
  %v2560 = vld [vmem:[%s2464 + $0x2f8] sm:$0xff]
  %s2561 = scalar_lea.vmem %s4, 768
  %v2562 = vld [vmem:[%s2561] sm:$0xff]
  %v2563 = vld [vmem:[%s2561 + $0x8] sm:$0xff]
  %v2564 = vld [vmem:[%s2561 + $0x10] sm:$0xff]
  %v2565 = vld [vmem:[%s2561 + $0x18] sm:$0xff]
  %v2566 = vld [vmem:[%s2561 + $0x20] sm:$0xff]
  %v2567 = vld [vmem:[%s2561 + $0x28] sm:$0xff]
  %v2568 = vld [vmem:[%s2561 + $0x30] sm:$0xff]
  %v2569 = vld [vmem:[%s2561 + $0x38] sm:$0xff]
  %v2570 = vld [vmem:[%s2561 + $0x40] sm:$0xff]
  %v2571 = vld [vmem:[%s2561 + $0x48] sm:$0xff]
  %v2572 = vld [vmem:[%s2561 + $0x50] sm:$0xff]
  %v2573 = vld [vmem:[%s2561 + $0x58] sm:$0xff]
  %v2574 = vld [vmem:[%s2561 + $0x60] sm:$0xff]
  %v2575 = vld [vmem:[%s2561 + $0x68] sm:$0xff]
  %v2576 = vld [vmem:[%s2561 + $0x70] sm:$0xff]
  %v2577 = vld [vmem:[%s2561 + $0x78] sm:$0xff]
  %v2578 = vld [vmem:[%s2561 + $0x80] sm:$0xff]
  %v2579 = vld [vmem:[%s2561 + $0x88] sm:$0xff]
  %v2580 = vld [vmem:[%s2561 + $0x90] sm:$0xff]
  %v2581 = vld [vmem:[%s2561 + $0x98] sm:$0xff]
  %v2582 = vld [vmem:[%s2561 + $0xa0] sm:$0xff]
  %v2583 = vld [vmem:[%s2561 + $0xa8] sm:$0xff]
  %v2584 = vld [vmem:[%s2561 + $0xb0] sm:$0xff]
  %v2585 = vld [vmem:[%s2561 + $0xb8] sm:$0xff]
  %v2586 = vld [vmem:[%s2561 + $0xc0] sm:$0xff]
  %v2587 = vld [vmem:[%s2561 + $0xc8] sm:$0xff]
  %v2588 = vld [vmem:[%s2561 + $0xd0] sm:$0xff]
  %v2589 = vld [vmem:[%s2561 + $0xd8] sm:$0xff]
  %v2590 = vld [vmem:[%s2561 + $0xe0] sm:$0xff]
  %v2591 = vld [vmem:[%s2561 + $0xe8] sm:$0xff]
  %v2592 = vld [vmem:[%s2561 + $0xf0] sm:$0xff]
  %v2593 = vld [vmem:[%s2561 + $0xf8] sm:$0xff]
  %v2594 = vld [vmem:[%s2561 + $0x100] sm:$0xff]
  %v2595 = vld [vmem:[%s2561 + $0x108] sm:$0xff]
  %v2596 = vld [vmem:[%s2561 + $0x110] sm:$0xff]
  %v2597 = vld [vmem:[%s2561 + $0x118] sm:$0xff]
  %v2598 = vld [vmem:[%s2561 + $0x120] sm:$0xff]
  %v2599 = vld [vmem:[%s2561 + $0x128] sm:$0xff]
  %v2600 = vld [vmem:[%s2561 + $0x130] sm:$0xff]
  %v2601 = vld [vmem:[%s2561 + $0x138] sm:$0xff]
  %v2602 = vld [vmem:[%s2561 + $0x140] sm:$0xff]
  %v2603 = vld [vmem:[%s2561 + $0x148] sm:$0xff]
  %v2604 = vld [vmem:[%s2561 + $0x150] sm:$0xff]
  %v2605 = vld [vmem:[%s2561 + $0x158] sm:$0xff]
  %v2606 = vld [vmem:[%s2561 + $0x160] sm:$0xff]
  %v2607 = vld [vmem:[%s2561 + $0x168] sm:$0xff]
  %v2608 = vld [vmem:[%s2561 + $0x170] sm:$0xff]
  %v2609 = vld [vmem:[%s2561 + $0x178] sm:$0xff]
  %v2610 = vld [vmem:[%s2561 + $0x180] sm:$0xff]
  %v2611 = vld [vmem:[%s2561 + $0x188] sm:$0xff]
  %v2612 = vld [vmem:[%s2561 + $0x190] sm:$0xff]
  %v2613 = vld [vmem:[%s2561 + $0x198] sm:$0xff]
  %v2614 = vld [vmem:[%s2561 + $0x1a0] sm:$0xff]
  %v2615 = vld [vmem:[%s2561 + $0x1a8] sm:$0xff]
  %v2616 = vld [vmem:[%s2561 + $0x1b0] sm:$0xff]
  %v2617 = vld [vmem:[%s2561 + $0x1b8] sm:$0xff]
  %v2618 = vld [vmem:[%s2561 + $0x1c0] sm:$0xff]
  %v2619 = vld [vmem:[%s2561 + $0x1c8] sm:$0xff]
  %v2620 = vld [vmem:[%s2561 + $0x1d0] sm:$0xff]
  %v2621 = vld [vmem:[%s2561 + $0x1d8] sm:$0xff]
  %v2622 = vld [vmem:[%s2561 + $0x1e0] sm:$0xff]
  %v2623 = vld [vmem:[%s2561 + $0x1e8] sm:$0xff]
  %v2624 = vld [vmem:[%s2561 + $0x1f0] sm:$0xff]
  %v2625 = vld [vmem:[%s2561 + $0x1f8] sm:$0xff]
  %v2626 = vld [vmem:[%s2561 + $0x200] sm:$0xff]
  %v2627 = vld [vmem:[%s2561 + $0x208] sm:$0xff]
  %v2628 = vld [vmem:[%s2561 + $0x210] sm:$0xff]
  %v2629 = vld [vmem:[%s2561 + $0x218] sm:$0xff]
  %v2630 = vld [vmem:[%s2561 + $0x220] sm:$0xff]
  %v2631 = vld [vmem:[%s2561 + $0x228] sm:$0xff]
  %v2632 = vld [vmem:[%s2561 + $0x230] sm:$0xff]
  %v2633 = vld [vmem:[%s2561 + $0x238] sm:$0xff]
  %v2634 = vld [vmem:[%s2561 + $0x240] sm:$0xff]
  %v2635 = vld [vmem:[%s2561 + $0x248] sm:$0xff]
  %v2636 = vld [vmem:[%s2561 + $0x250] sm:$0xff]
  %v2637 = vld [vmem:[%s2561 + $0x258] sm:$0xff]
  %v2638 = vld [vmem:[%s2561 + $0x260] sm:$0xff]
  %v2639 = vld [vmem:[%s2561 + $0x268] sm:$0xff]
  %v2640 = vld [vmem:[%s2561 + $0x270] sm:$0xff]
  %v2641 = vld [vmem:[%s2561 + $0x278] sm:$0xff]
  %v2642 = vld [vmem:[%s2561 + $0x280] sm:$0xff]
  %v2643 = vld [vmem:[%s2561 + $0x288] sm:$0xff]
  %v2644 = vld [vmem:[%s2561 + $0x290] sm:$0xff]
  %v2645 = vld [vmem:[%s2561 + $0x298] sm:$0xff]
  %v2646 = vld [vmem:[%s2561 + $0x2a0] sm:$0xff]
  %v2647 = vld [vmem:[%s2561 + $0x2a8] sm:$0xff]
  %v2648 = vld [vmem:[%s2561 + $0x2b0] sm:$0xff]
  %v2649 = vld [vmem:[%s2561 + $0x2b8] sm:$0xff]
  %v2650 = vld [vmem:[%s2561 + $0x2c0] sm:$0xff]
  %v2651 = vld [vmem:[%s2561 + $0x2c8] sm:$0xff]
  %v2652 = vld [vmem:[%s2561 + $0x2d0] sm:$0xff]
  %v2653 = vld [vmem:[%s2561 + $0x2d8] sm:$0xff]
  %v2654 = vld [vmem:[%s2561 + $0x2e0] sm:$0xff]
  %v2655 = vld [vmem:[%s2561 + $0x2e8] sm:$0xff]
  %v2656 = vld [vmem:[%s2561 + $0x2f0] sm:$0xff]
  %v2657 = vld [vmem:[%s2561 + $0x2f8] sm:$0xff]
  %s2658 = scalar_lea.vmem %s5, 4
  %v2659 = vld [vmem:[%s2658] sm:$0xf]
  %s2660 = scalar_lea.vmem %s6, 2
  %v2661 = vld [vmem:[%s2660] sm:$0x3]
  %s2662 = scalar_lea.vmem %s7, 2
  %v2663 = vld [vmem:[%s2662] sm:$0x3]
  %v2664 = vld [vmem:[#allocation2] sm:$0xff]
  %v2665 = vld [vmem:[#allocation2 + $0x8] sm:$0xff]
  %v2666 = vld [vmem:[#allocation2 + $0x10] sm:$0xff]
  %v2667 = vld [vmem:[#allocation2 + $0x18] sm:$0xff]
  %v2668 = vld [vmem:[#allocation2 + $0x20] sm:$0xff]
  %v2669 = vld [vmem:[#allocation2 + $0x28] sm:$0xff]
  %v2670 = vld [vmem:[#allocation2 + $0x30] sm:$0xff]
  %v2671 = vld [vmem:[#allocation2 + $0x38] sm:$0xff]
  %v2672 = vpack.c.bf16 %v2666, %v2664
  %v2673 = vpack.c.bf16 %v2667, %v2665
  %v2674 = vpack.c.bf16 %v2670, %v2668
  %v2675 = vpack.c.bf16 %v2671, %v2669
  %v2772 = vunpack.c.l.b16 %v2465
  %v2773 = vunpack.c.h.b16 %v2465
  %v2774 = vunpack.c.l.b16 %v2466
  %v2775 = vunpack.c.h.b16 %v2466
  %v2776 = vunpack.c.l.b16 %v2467
  %v2777 = vunpack.c.h.b16 %v2467
  %v2778 = vunpack.c.l.b16 %v2468
  %v2779 = vunpack.c.h.b16 %v2468
  %v2780 = vunpack.c.l.b16 %v2469
  %v2781 = vunpack.c.h.b16 %v2469
  %v2782 = vunpack.c.l.b16 %v2470
  %v2783 = vunpack.c.h.b16 %v2470
  %v2784 = vunpack.c.l.b16 %v2471
  %v2785 = vunpack.c.h.b16 %v2471
  %v2786 = vunpack.c.l.b16 %v2472
  %v2787 = vunpack.c.h.b16 %v2472
  %v2788 = vunpack.c.l.b16 %v2473
  %v2789 = vunpack.c.h.b16 %v2473
  %v2790 = vunpack.c.l.b16 %v2474
  %v2791 = vunpack.c.h.b16 %v2474
  %v2792 = vunpack.c.l.b16 %v2475
  %v2793 = vunpack.c.h.b16 %v2475
  %v2794 = vunpack.c.l.b16 %v2476
  %v2795 = vunpack.c.h.b16 %v2476
  %v2796 = vunpack.c.l.b16 %v2477
  %v2797 = vunpack.c.h.b16 %v2477
  %v2798 = vunpack.c.l.b16 %v2478
  %v2799 = vunpack.c.h.b16 %v2478
  %v2800 = vunpack.c.l.b16 %v2479
  %v2801 = vunpack.c.h.b16 %v2479
  %v2802 = vunpack.c.l.b16 %v2480
  %v2803 = vunpack.c.h.b16 %v2480
  %v2804 = vunpack.c.l.b16 %v2481
  %v2805 = vunpack.c.h.b16 %v2481
  %v2806 = vunpack.c.l.b16 %v2482
  %v2807 = vunpack.c.h.b16 %v2482
  %v2808 = vunpack.c.l.b16 %v2483
  %v2809 = vunpack.c.h.b16 %v2483
  %v2810 = vunpack.c.l.b16 %v2484
  %v2811 = vunpack.c.h.b16 %v2484
  %v2812 = vunpack.c.l.b16 %v2485
  %v2813 = vunpack.c.h.b16 %v2485
  %v2814 = vunpack.c.l.b16 %v2486
  %v2815 = vunpack.c.h.b16 %v2486
  %v2816 = vunpack.c.l.b16 %v2487
  %v2817 = vunpack.c.h.b16 %v2487
  %v2818 = vunpack.c.l.b16 %v2488
  %v2819 = vunpack.c.h.b16 %v2488
  %v2820 = vunpack.c.l.b16 %v2489
  %v2821 = vunpack.c.h.b16 %v2489
  %v2822 = vunpack.c.l.b16 %v2490
  %v2823 = vunpack.c.h.b16 %v2490
  %v2824 = vunpack.c.l.b16 %v2491
  %v2825 = vunpack.c.h.b16 %v2491
  %v2826 = vunpack.c.l.b16 %v2492
  %v2827 = vunpack.c.h.b16 %v2492
  %v2828 = vunpack.c.l.b16 %v2493
  %v2829 = vunpack.c.h.b16 %v2493
  %v2830 = vunpack.c.l.b16 %v2494
  %v2831 = vunpack.c.h.b16 %v2494
  %v2832 = vunpack.c.l.b16 %v2495
  %v2833 = vunpack.c.h.b16 %v2495
  %v2834 = vunpack.c.l.b16 %v2496
  %v2835 = vunpack.c.h.b16 %v2496
  %v2836 = vunpack.c.l.b16 %v2497
  %v2837 = vunpack.c.h.b16 %v2497
  %v2838 = vunpack.c.l.b16 %v2498
  %v2839 = vunpack.c.h.b16 %v2498
  %v2840 = vunpack.c.l.b16 %v2499
  %v2841 = vunpack.c.h.b16 %v2499
  %v2842 = vunpack.c.l.b16 %v2500
  %v2843 = vunpack.c.h.b16 %v2500
  %v2844 = vunpack.c.l.b16 %v2501
  %v2845 = vunpack.c.h.b16 %v2501
  %v2846 = vunpack.c.l.b16 %v2502
  %v2847 = vunpack.c.h.b16 %v2502
  %v2848 = vunpack.c.l.b16 %v2503
  %v2849 = vunpack.c.h.b16 %v2503
  %v2850 = vunpack.c.l.b16 %v2504
  %v2851 = vunpack.c.h.b16 %v2504
  %v2852 = vunpack.c.l.b16 %v2505
  %v2853 = vunpack.c.h.b16 %v2505
  %v2854 = vunpack.c.l.b16 %v2506
  %v2855 = vunpack.c.h.b16 %v2506
  %v2856 = vunpack.c.l.b16 %v2507
  %v2857 = vunpack.c.h.b16 %v2507
  %v2858 = vunpack.c.l.b16 %v2508
  %v2859 = vunpack.c.h.b16 %v2508
  %v2860 = vunpack.c.l.b16 %v2509
  %v2861 = vunpack.c.h.b16 %v2509
  %v2862 = vunpack.c.l.b16 %v2510
  %v2863 = vunpack.c.h.b16 %v2510
  %v2864 = vunpack.c.l.b16 %v2511
  %v2865 = vunpack.c.h.b16 %v2511
  %v2866 = vunpack.c.l.b16 %v2512
  %v2867 = vunpack.c.h.b16 %v2512
  %v2868 = vunpack.c.l.b16 %v2513
  %v2869 = vunpack.c.h.b16 %v2513
  %v2870 = vunpack.c.l.b16 %v2514
  %v2871 = vunpack.c.h.b16 %v2514
  %v2872 = vunpack.c.l.b16 %v2515
  %v2873 = vunpack.c.h.b16 %v2515
  %v2874 = vunpack.c.l.b16 %v2516
  %v2875 = vunpack.c.h.b16 %v2516
  %v2876 = vunpack.c.l.b16 %v2517
  %v2877 = vunpack.c.h.b16 %v2517
  %v2878 = vunpack.c.l.b16 %v2518
  %v2879 = vunpack.c.h.b16 %v2518
  %v2880 = vunpack.c.l.b16 %v2519
  %v2881 = vunpack.c.h.b16 %v2519
  %v2882 = vunpack.c.l.b16 %v2520
  %v2883 = vunpack.c.h.b16 %v2520
  %v2884 = vunpack.c.l.b16 %v2521
  %v2885 = vunpack.c.h.b16 %v2521
  %v2886 = vunpack.c.l.b16 %v2522
  %v2887 = vunpack.c.h.b16 %v2522
  %v2888 = vunpack.c.l.b16 %v2523
  %v2889 = vunpack.c.h.b16 %v2523
  %v2890 = vunpack.c.l.b16 %v2524
  %v2891 = vunpack.c.h.b16 %v2524
  %v2892 = vunpack.c.l.b16 %v2525
  %v2893 = vunpack.c.h.b16 %v2525
  %v2894 = vunpack.c.l.b16 %v2526
  %v2895 = vunpack.c.h.b16 %v2526
  %v2896 = vunpack.c.l.b16 %v2527
  %v2897 = vunpack.c.h.b16 %v2527
  %v2898 = vunpack.c.l.b16 %v2528
  %v2899 = vunpack.c.h.b16 %v2528
  %v2900 = vunpack.c.l.b16 %v2529
  %v2901 = vunpack.c.h.b16 %v2529
  %v2902 = vunpack.c.l.b16 %v2530
  %v2903 = vunpack.c.h.b16 %v2530
  %v2904 = vunpack.c.l.b16 %v2531
  %v2905 = vunpack.c.h.b16 %v2531
  %v2906 = vunpack.c.l.b16 %v2532
  %v2907 = vunpack.c.h.b16 %v2532
  %v2908 = vunpack.c.l.b16 %v2533
  %v2909 = vunpack.c.h.b16 %v2533
  %v2910 = vunpack.c.l.b16 %v2534
  %v2911 = vunpack.c.h.b16 %v2534
  %v2912 = vunpack.c.l.b16 %v2535
  %v2913 = vunpack.c.h.b16 %v2535
  %v2914 = vunpack.c.l.b16 %v2536
  %v2915 = vunpack.c.h.b16 %v2536
  %v2916 = vunpack.c.l.b16 %v2537
  %v2917 = vunpack.c.h.b16 %v2537
  %v2918 = vunpack.c.l.b16 %v2538
  %v2919 = vunpack.c.h.b16 %v2538
  %v2920 = vunpack.c.l.b16 %v2539
  %v2921 = vunpack.c.h.b16 %v2539
  %v2922 = vunpack.c.l.b16 %v2540
  %v2923 = vunpack.c.h.b16 %v2540
  %v2924 = vunpack.c.l.b16 %v2541
  %v2925 = vunpack.c.h.b16 %v2541
  %v2926 = vunpack.c.l.b16 %v2542
  %v2927 = vunpack.c.h.b16 %v2542
  %v2928 = vunpack.c.l.b16 %v2543
  %v2929 = vunpack.c.h.b16 %v2543
  %v2930 = vunpack.c.l.b16 %v2544
  %v2931 = vunpack.c.h.b16 %v2544
  %v2932 = vunpack.c.l.b16 %v2545
  %v2933 = vunpack.c.h.b16 %v2545
  %v2934 = vunpack.c.l.b16 %v2546
  %v2935 = vunpack.c.h.b16 %v2546
  %v2936 = vunpack.c.l.b16 %v2547
  %v2937 = vunpack.c.h.b16 %v2547
  %v2938 = vunpack.c.l.b16 %v2548
  %v2939 = vunpack.c.h.b16 %v2548
  %v2940 = vunpack.c.l.b16 %v2549
  %v2941 = vunpack.c.h.b16 %v2549
  %v2942 = vunpack.c.l.b16 %v2550
  %v2943 = vunpack.c.h.b16 %v2550
  %v2944 = vunpack.c.l.b16 %v2551
  %v2945 = vunpack.c.h.b16 %v2551
  %v2946 = vunpack.c.l.b16 %v2552
  %v2947 = vunpack.c.h.b16 %v2552
  %v2948 = vunpack.c.l.b16 %v2553
  %v2949 = vunpack.c.h.b16 %v2553
  %v2950 = vunpack.c.l.b16 %v2554
  %v2951 = vunpack.c.h.b16 %v2554
  %v2952 = vunpack.c.l.b16 %v2555
  %v2953 = vunpack.c.h.b16 %v2555
  %v2954 = vunpack.c.l.b16 %v2556
  %v2955 = vunpack.c.h.b16 %v2556
  %v2956 = vunpack.c.l.b16 %v2557
  %v2957 = vunpack.c.h.b16 %v2557
  %v2958 = vunpack.c.l.b16 %v2558
  %v2959 = vunpack.c.h.b16 %v2558
  %v2960 = vunpack.c.l.b16 %v2559
  %v2961 = vunpack.c.h.b16 %v2559
  %v2962 = vunpack.c.l.b16 %v2560
  %v2963 = vunpack.c.h.b16 %v2560
  %v2964 = vpack.c.b16 %v2778, %v2772
  %v2965 = vpack.c.b16 %v2779, %v2773
  %v2966 = vpack.c.b16 %v2780, %v2774
  %v2967 = vpack.c.b16 %v2781, %v2775
  %v2968 = vpack.c.b16 %v2782, %v2776
  %v2969 = vpack.c.b16 %v2783, %v2777
  %v2970 = vpack.c.b16 %v2790, %v2784
  %v2971 = vpack.c.b16 %v2791, %v2785
  %v2972 = vpack.c.b16 %v2792, %v2786
  %v2973 = vpack.c.b16 %v2793, %v2787
  %v2974 = vpack.c.b16 %v2794, %v2788
  %v2975 = vpack.c.b16 %v2795, %v2789
  %v2976 = vpack.c.b16 %v2802, %v2796
  %v2977 = vpack.c.b16 %v2803, %v2797
  %v2978 = vpack.c.b16 %v2804, %v2798
  %v2979 = vpack.c.b16 %v2805, %v2799
  %v2980 = vpack.c.b16 %v2806, %v2800
  %v2981 = vpack.c.b16 %v2807, %v2801
  %v2982 = vpack.c.b16 %v2814, %v2808
  %v2983 = vpack.c.b16 %v2815, %v2809
  %v2984 = vpack.c.b16 %v2816, %v2810
  %v2985 = vpack.c.b16 %v2817, %v2811
  %v2986 = vpack.c.b16 %v2818, %v2812
  %v2987 = vpack.c.b16 %v2819, %v2813
  %v2988 = vpack.c.b16 %v2826, %v2820
  %v2989 = vpack.c.b16 %v2827, %v2821
  %v2990 = vpack.c.b16 %v2828, %v2822
  %v2991 = vpack.c.b16 %v2829, %v2823
  %v2992 = vpack.c.b16 %v2830, %v2824
  %v2993 = vpack.c.b16 %v2831, %v2825
  %v2994 = vpack.c.b16 %v2838, %v2832
  %v2995 = vpack.c.b16 %v2839, %v2833
  %v2996 = vpack.c.b16 %v2840, %v2834
  %v2997 = vpack.c.b16 %v2841, %v2835
  %v2998 = vpack.c.b16 %v2842, %v2836
  %v2999 = vpack.c.b16 %v2843, %v2837
  %v3000 = vpack.c.b16 %v2850, %v2844
  %v3001 = vpack.c.b16 %v2851, %v2845
  %v3002 = vpack.c.b16 %v2852, %v2846
  %v3003 = vpack.c.b16 %v2853, %v2847
  %v3004 = vpack.c.b16 %v2854, %v2848
  %v3005 = vpack.c.b16 %v2855, %v2849
  %v3006 = vpack.c.b16 %v2862, %v2856
  %v3007 = vpack.c.b16 %v2863, %v2857
  %v3008 = vpack.c.b16 %v2864, %v2858
  %v3009 = vpack.c.b16 %v2865, %v2859
  %v3010 = vpack.c.b16 %v2866, %v2860
  %v3011 = vpack.c.b16 %v2867, %v2861
  %v3012 = vpack.c.b16 %v2874, %v2868
  %v3013 = vpack.c.b16 %v2875, %v2869
  %v3014 = vpack.c.b16 %v2876, %v2870
  %v3015 = vpack.c.b16 %v2877, %v2871
  %v3016 = vpack.c.b16 %v2878, %v2872
  %v3017 = vpack.c.b16 %v2879, %v2873
  %v3018 = vpack.c.b16 %v2886, %v2880
  %v3019 = vpack.c.b16 %v2887, %v2881
  %v3020 = vpack.c.b16 %v2888, %v2882
  %v3021 = vpack.c.b16 %v2889, %v2883
  %v3022 = vpack.c.b16 %v2890, %v2884
  %v3023 = vpack.c.b16 %v2891, %v2885
  %v3024 = vpack.c.b16 %v2898, %v2892
  %v3025 = vpack.c.b16 %v2899, %v2893
  %v3026 = vpack.c.b16 %v2900, %v2894
  %v3027 = vpack.c.b16 %v2901, %v2895
  %v3028 = vpack.c.b16 %v2902, %v2896
  %v3029 = vpack.c.b16 %v2903, %v2897
  %v3030 = vpack.c.b16 %v2910, %v2904
  %v3031 = vpack.c.b16 %v2911, %v2905
  %v3032 = vpack.c.b16 %v2912, %v2906
  %v3033 = vpack.c.b16 %v2913, %v2907
  %v3034 = vpack.c.b16 %v2914, %v2908
  %v3035 = vpack.c.b16 %v2915, %v2909
  %v3036 = vpack.c.b16 %v2922, %v2916
  %v3037 = vpack.c.b16 %v2923, %v2917
  %v3038 = vpack.c.b16 %v2924, %v2918
  %v3039 = vpack.c.b16 %v2925, %v2919
  %v3040 = vpack.c.b16 %v2926, %v2920
  %v3041 = vpack.c.b16 %v2927, %v2921
  %v3042 = vpack.c.b16 %v2934, %v2928
  %v3043 = vpack.c.b16 %v2935, %v2929
  %v3044 = vpack.c.b16 %v2936, %v2930
  %v3045 = vpack.c.b16 %v2937, %v2931
  %v3046 = vpack.c.b16 %v2938, %v2932
  %v3047 = vpack.c.b16 %v2939, %v2933
  %v3048 = vpack.c.b16 %v2946, %v2940
  %v3049 = vpack.c.b16 %v2947, %v2941
  %v3050 = vpack.c.b16 %v2948, %v2942
  %v3051 = vpack.c.b16 %v2949, %v2943
  %v3052 = vpack.c.b16 %v2950, %v2944
  %v3053 = vpack.c.b16 %v2951, %v2945
  %v3054 = vpack.c.b16 %v2958, %v2952
  %v3055 = vpack.c.b16 %v2959, %v2953
  %v3056 = vpack.c.b16 %v2960, %v2954
  %v3057 = vpack.c.b16 %v2961, %v2955
  %v3058 = vpack.c.b16 %v2962, %v2956
  %v3059 = vpack.c.b16 %v2963, %v2957
  %3156 = vmatprep.subr.bf16.mxu0 %v2965
  %3157 = vmatpush1.bf16.msra.mxu0 %v2964
  %3158 = vmatprep.subr.bf16.mxu0 %v2971
  %3159 = vmatpush1.bf16.msra.mxu0 %v2970
  %3160 = vmatprep.subr.bf16.mxu0 %v2977
  %3161 = vmatpush1.bf16.msra.mxu0 %v2976
  %3162 = vmatprep.subr.bf16.mxu0 %v2983
  %3163 = vmatpush1.bf16.msra.mxu0 %v2982
  %3164 = vmatprep.subr.bf16.mxu0 %v2989
  %3165 = vmatpush1.bf16.msra.mxu0 %v2988
  %3166 = vmatprep.subr.bf16.mxu0 %v2995
  %3167 = vmatpush1.bf16.msra.mxu0 %v2994
  %3168 = vmatprep.subr.bf16.mxu0 %v3001
  %3169 = vmatpush1.bf16.msra.mxu0 %v3000
  %3170 = vmatprep.subr.bf16.mxu0 %v3007
  %3171 = vmatpush1.bf16.msra.mxu0 %v3006
  %3172 = vmatprep.subr.bf16.mxu0 %v3013
  %3173 = vmatpush1.bf16.msra.mxu0 %v3012
  %3174 = vmatprep.subr.bf16.mxu0 %v3019
  %3175 = vmatpush1.bf16.msra.mxu0 %v3018
  %3176 = vmatprep.subr.bf16.mxu0 %v3025
  %3177 = vmatpush1.bf16.msra.mxu0 %v3024
  %3178 = vmatprep.subr.bf16.mxu0 %v3031
  %3179 = vmatpush1.bf16.msra.mxu0 %v3030
  %3180 = vmatprep.subr.bf16.mxu0 %v3037
  %3181 = vmatpush1.bf16.msra.mxu0 %v3036
  %3182 = vmatprep.subr.bf16.mxu0 %v3043
  %3183 = vmatpush1.bf16.msra.mxu0 %v3042
  %3184 = vmatprep.subr.bf16.mxu0 %v3049
  %3185 = vmatpush1.bf16.msra.mxu0 %v3048
  %3186 = vmatprep.subr.bf16.mxu0 %v3055
  %3187 = vmatpush1.bf16.msra.mxu0 %v3054
  %3188 = vmatprep.mubr.bf16.mxu0 %v2673
  %3189 = vmatmul.mubr.bf16.gmra.mrb[0].mxu0 %v2672
  %v3190 = vpop.f32.mrb[0].mxu0
  %v3191 = vadd.f32 0.0, %v3190
  %v3192 = vpop.f32.mrb[0].mxu0
  %v3193 = vadd.f32 0.0, %v3192
  %v3194 = vpop.f32.mrb[0].mxu0
  %v3195 = vadd.f32 0.0, %v3194
  %v3196 = vpop.f32.mrb[0].mxu0
  %v3197 = vadd.f32 0.0, %v3196
  %3198 = vmatprep.mubr.bf16.mxu0 %v2675
  %3199 = vmatmul.mubr.bf16.gmra.mrb[0].mxu0 %v2674
  %v3200 = vpop.f32.mrb[0].mxu0
  %v3201 = vadd.f32 0.0, %v3200
  %v3202 = vpop.f32.mrb[0].mxu0
  %v3203 = vadd.f32 0.0, %v3202
  %v3204 = vpop.f32.mrb[0].mxu0
  %v3205 = vadd.f32 0.0, %v3204
  %v3206 = vpop.f32.mrb[0].mxu0
  %v3207 = vadd.f32 0.0, %v3206
  %3208 = vdwg.mxu0
  %3209 = vmatprep.subr.bf16.mxu0 %v2967
  %3210 = vmatpush1.bf16.msra.mxu0 %v2966
  %3211 = vmatprep.subr.bf16.mxu0 %v2973
  %3212 = vmatpush1.bf16.msra.mxu0 %v2972
  %3213 = vmatprep.subr.bf16.mxu0 %v2979
  %3214 = vmatpush1.bf16.msra.mxu0 %v2978
  %3215 = vmatprep.subr.bf16.mxu0 %v2985
  %3216 = vmatpush1.bf16.msra.mxu0 %v2984
  %3217 = vmatprep.subr.bf16.mxu0 %v2991
  %3218 = vmatpush1.bf16.msra.mxu0 %v2990
  %3219 = vmatprep.subr.bf16.mxu0 %v2997
  %3220 = vmatpush1.bf16.msra.mxu0 %v2996
  %3221 = vmatprep.subr.bf16.mxu0 %v3003
  %3222 = vmatpush1.bf16.msra.mxu0 %v3002
  %3223 = vmatprep.subr.bf16.mxu0 %v3009
  %3224 = vmatpush1.bf16.msra.mxu0 %v3008
  %3225 = vmatprep.subr.bf16.mxu0 %v3015
  %3226 = vmatpush1.bf16.msra.mxu0 %v3014
  %3227 = vmatprep.subr.bf16.mxu0 %v3021
  %3228 = vmatpush1.bf16.msra.mxu0 %v3020
  %3229 = vmatprep.subr.bf16.mxu0 %v3027
  %3230 = vmatpush1.bf16.msra.mxu0 %v3026
  %3231 = vmatprep.subr.bf16.mxu0 %v3033
  %3232 = vmatpush1.bf16.msra.mxu0 %v3032
  %3233 = vmatprep.subr.bf16.mxu0 %v3039
  %3234 = vmatpush1.bf16.msra.mxu0 %v3038
  %3235 = vmatprep.subr.bf16.mxu0 %v3045
  %3236 = vmatpush1.bf16.msra.mxu0 %v3044
  %3237 = vmatprep.subr.bf16.mxu0 %v3051
  %3238 = vmatpush1.bf16.msra.mxu0 %v3050
  %3239 = vmatprep.subr.bf16.mxu0 %v3057
  %3240 = vmatpush1.bf16.msra.mxu0 %v3056
  %3241 = vmatprep.mubr.bf16.mxu0 %v2673
  %3242 = vmatmul.mubr.bf16.gmra.mrb[0].mxu0 %v2672
  %v3243 = vpop.f32.mrb[0].mxu0
  %v3244 = vadd.f32 0.0, %v3243
  %v3245 = vpop.f32.mrb[0].mxu0
  %v3246 = vadd.f32 0.0, %v3245
  %v3247 = vpop.f32.mrb[0].mxu0
  %v3248 = vadd.f32 0.0, %v3247
  %v3249 = vpop.f32.mrb[0].mxu0
  %v3250 = vadd.f32 0.0, %v3249
  %3251 = vmatprep.mubr.bf16.mxu0 %v2675
  %3252 = vmatmul.mubr.bf16.gmra.mrb[0].mxu0 %v2674
  %v3253 = vpop.f32.mrb[0].mxu0
  %v3254 = vadd.f32 0.0, %v3253
  %v3255 = vpop.f32.mrb[0].mxu0
  %v3256 = vadd.f32 0.0, %v3255
  %v3257 = vpop.f32.mrb[0].mxu0
  %v3258 = vadd.f32 0.0, %v3257
  %v3259 = vpop.f32.mrb[0].mxu0
  %v3260 = vadd.f32 0.0, %v3259
  %3261 = vdwg.mxu0
  %3262 = vmatprep.subr.bf16.mxu0 %v2969
  %3263 = vmatpush1.bf16.msra.mxu0 %v2968
  %3264 = vmatprep.subr.bf16.mxu0 %v2975
  %3265 = vmatpush1.bf16.msra.mxu0 %v2974
  %3266 = vmatprep.subr.bf16.mxu0 %v2981
  %3267 = vmatpush1.bf16.msra.mxu0 %v2980
  %3268 = vmatprep.subr.bf16.mxu0 %v2987
  %3269 = vmatpush1.bf16.msra.mxu0 %v2986
  %3270 = vmatprep.subr.bf16.mxu0 %v2993
  %3271 = vmatpush1.bf16.msra.mxu0 %v2992
  %3272 = vmatprep.subr.bf16.mxu0 %v2999
  %3273 = vmatpush1.bf16.msra.mxu0 %v2998
  %3274 = vmatprep.subr.bf16.mxu0 %v3005
  %3275 = vmatpush1.bf16.msra.mxu0 %v3004
  %3276 = vmatprep.subr.bf16.mxu0 %v3011
  %3277 = vmatpush1.bf16.msra.mxu0 %v3010
  %3278 = vmatprep.subr.bf16.mxu0 %v3017
  %3279 = vmatpush1.bf16.msra.mxu0 %v3016
  %3280 = vmatprep.subr.bf16.mxu0 %v3023
  %3281 = vmatpush1.bf16.msra.mxu0 %v3022
  %3282 = vmatprep.subr.bf16.mxu0 %v3029
  %3283 = vmatpush1.bf16.msra.mxu0 %v3028
  %3284 = vmatprep.subr.bf16.mxu0 %v3035
  %3285 = vmatpush1.bf16.msra.mxu0 %v3034
  %3286 = vmatprep.subr.bf16.mxu0 %v3041
  %3287 = vmatpush1.bf16.msra.mxu0 %v3040
  %3288 = vmatprep.subr.bf16.mxu0 %v3047
  %3289 = vmatpush1.bf16.msra.mxu0 %v3046
  %3290 = vmatprep.subr.bf16.mxu0 %v3053
  %3291 = vmatpush1.bf16.msra.mxu0 %v3052
  %3292 = vmatprep.subr.bf16.mxu0 %v3059
  %3293 = vmatpush1.bf16.msra.mxu0 %v3058
  %3294 = vmatprep.mubr.bf16.mxu0 %v2673
  %3295 = vmatmul.mubr.bf16.gmra.mrb[0].mxu0 %v2672
  %v3296 = vpop.f32.mrb[0].mxu0
  %v3297 = vadd.f32 0.0, %v3296
  %v3298 = vpop.f32.mrb[0].mxu0
  %v3299 = vadd.f32 0.0, %v3298
  %v3300 = vpop.f32.mrb[0].mxu0
  %v3301 = vadd.f32 0.0, %v3300
  %v3302 = vpop.f32.mrb[0].mxu0
  %v3303 = vadd.f32 0.0, %v3302
  %3304 = vmatprep.mubr.bf16.mxu0 %v2675
  %3305 = vmatmul.mubr.bf16.gmra.mrb[0].mxu0 %v2674
  %v3306 = vpop.f32.mrb[0].mxu0
  %v3307 = vadd.f32 0.0, %v3306
  %v3308 = vpop.f32.mrb[0].mxu0
  %v3309 = vadd.f32 0.0, %v3308
  %v3310 = vpop.f32.mrb[0].mxu0
  %v3311 = vadd.f32 0.0, %v3310
  %v3312 = vpop.f32.mrb[0].mxu0
  %v3313 = vadd.f32 0.0, %v3312
  %3314 = vdwg.mxu0
  %v3411 = vunpack.c.l.b16 %v2562
  %v3412 = vunpack.c.h.b16 %v2562
  %v3413 = vunpack.c.l.b16 %v2563
  %v3414 = vunpack.c.h.b16 %v2563
  %v3415 = vunpack.c.l.b16 %v2564
  %v3416 = vunpack.c.h.b16 %v2564
  %v3417 = vunpack.c.l.b16 %v2565
  %v3418 = vunpack.c.h.b16 %v2565
  %v3419 = vunpack.c.l.b16 %v2566
  %v3420 = vunpack.c.h.b16 %v2566
  %v3421 = vunpack.c.l.b16 %v2567
  %v3422 = vunpack.c.h.b16 %v2567
  %v3423 = vunpack.c.l.b16 %v2568
  %v3424 = vunpack.c.h.b16 %v2568
  %v3425 = vunpack.c.l.b16 %v2569
  %v3426 = vunpack.c.h.b16 %v2569
  %v3427 = vunpack.c.l.b16 %v2570
  %v3428 = vunpack.c.h.b16 %v2570
  %v3429 = vunpack.c.l.b16 %v2571
  %v3430 = vunpack.c.h.b16 %v2571
  %v3431 = vunpack.c.l.b16 %v2572
  %v3432 = vunpack.c.h.b16 %v2572
  %v3433 = vunpack.c.l.b16 %v2573
  %v3434 = vunpack.c.h.b16 %v2573
  %v3435 = vunpack.c.l.b16 %v2574
  %v3436 = vunpack.c.h.b16 %v2574
  %v3437 = vunpack.c.l.b16 %v2575
  %v3438 = vunpack.c.h.b16 %v2575
  %v3439 = vunpack.c.l.b16 %v2576
  %v3440 = vunpack.c.h.b16 %v2576
  %v3441 = vunpack.c.l.b16 %v2577
  %v3442 = vunpack.c.h.b16 %v2577
  %v3443 = vunpack.c.l.b16 %v2578
  %v3444 = vunpack.c.h.b16 %v2578
  %v3445 = vunpack.c.l.b16 %v2579
  %v3446 = vunpack.c.h.b16 %v2579
  %v3447 = vunpack.c.l.b16 %v2580
  %v3448 = vunpack.c.h.b16 %v2580
  %v3449 = vunpack.c.l.b16 %v2581
  %v3450 = vunpack.c.h.b16 %v2581
  %v3451 = vunpack.c.l.b16 %v2582
  %v3452 = vunpack.c.h.b16 %v2582
  %v3453 = vunpack.c.l.b16 %v2583
  %v3454 = vunpack.c.h.b16 %v2583
  %v3455 = vunpack.c.l.b16 %v2584
  %v3456 = vunpack.c.h.b16 %v2584
  %v3457 = vunpack.c.l.b16 %v2585
  %v3458 = vunpack.c.h.b16 %v2585
  %v3459 = vunpack.c.l.b16 %v2586
  %v3460 = vunpack.c.h.b16 %v2586
  %v3461 = vunpack.c.l.b16 %v2587
  %v3462 = vunpack.c.h.b16 %v2587
  %v3463 = vunpack.c.l.b16 %v2588
  %v3464 = vunpack.c.h.b16 %v2588
  %v3465 = vunpack.c.l.b16 %v2589
  %v3466 = vunpack.c.h.b16 %v2589
  %v3467 = vunpack.c.l.b16 %v2590
  %v3468 = vunpack.c.h.b16 %v2590
  %v3469 = vunpack.c.l.b16 %v2591
  %v3470 = vunpack.c.h.b16 %v2591
  %v3471 = vunpack.c.l.b16 %v2592
  %v3472 = vunpack.c.h.b16 %v2592
  %v3473 = vunpack.c.l.b16 %v2593
  %v3474 = vunpack.c.h.b16 %v2593
  %v3475 = vunpack.c.l.b16 %v2594
  %v3476 = vunpack.c.h.b16 %v2594
  %v3477 = vunpack.c.l.b16 %v2595
  %v3478 = vunpack.c.h.b16 %v2595
  %v3479 = vunpack.c.l.b16 %v2596
  %v3480 = vunpack.c.h.b16 %v2596
  %v3481 = vunpack.c.l.b16 %v2597
  %v3482 = vunpack.c.h.b16 %v2597
  %v3483 = vunpack.c.l.b16 %v2598
  %v3484 = vunpack.c.h.b16 %v2598
  %v3485 = vunpack.c.l.b16 %v2599
  %v3486 = vunpack.c.h.b16 %v2599
  %v3487 = vunpack.c.l.b16 %v2600
  %v3488 = vunpack.c.h.b16 %v2600
  %v3489 = vunpack.c.l.b16 %v2601
  %v3490 = vunpack.c.h.b16 %v2601
  %v3491 = vunpack.c.l.b16 %v2602
  %v3492 = vunpack.c.h.b16 %v2602
  %v3493 = vunpack.c.l.b16 %v2603
  %v3494 = vunpack.c.h.b16 %v2603
  %v3495 = vunpack.c.l.b16 %v2604
  %v3496 = vunpack.c.h.b16 %v2604
  %v3497 = vunpack.c.l.b16 %v2605
  %v3498 = vunpack.c.h.b16 %v2605
  %v3499 = vunpack.c.l.b16 %v2606
  %v3500 = vunpack.c.h.b16 %v2606
  %v3501 = vunpack.c.l.b16 %v2607
  %v3502 = vunpack.c.h.b16 %v2607
  %v3503 = vunpack.c.l.b16 %v2608
  %v3504 = vunpack.c.h.b16 %v2608
  %v3505 = vunpack.c.l.b16 %v2609
  %v3506 = vunpack.c.h.b16 %v2609
  %v3507 = vunpack.c.l.b16 %v2610
  %v3508 = vunpack.c.h.b16 %v2610
  %v3509 = vunpack.c.l.b16 %v2611
  %v3510 = vunpack.c.h.b16 %v2611
  %v3511 = vunpack.c.l.b16 %v2612
  %v3512 = vunpack.c.h.b16 %v2612
  %v3513 = vunpack.c.l.b16 %v2613
  %v3514 = vunpack.c.h.b16 %v2613
  %v3515 = vunpack.c.l.b16 %v2614
  %v3516 = vunpack.c.h.b16 %v2614
  %v3517 = vunpack.c.l.b16 %v2615
  %v3518 = vunpack.c.h.b16 %v2615
  %v3519 = vunpack.c.l.b16 %v2616
  %v3520 = vunpack.c.h.b16 %v2616
  %v3521 = vunpack.c.l.b16 %v2617
  %v3522 = vunpack.c.h.b16 %v2617
  %v3523 = vunpack.c.l.b16 %v2618
  %v3524 = vunpack.c.h.b16 %v2618
  %v3525 = vunpack.c.l.b16 %v2619
  %v3526 = vunpack.c.h.b16 %v2619
  %v3527 = vunpack.c.l.b16 %v2620
  %v3528 = vunpack.c.h.b16 %v2620
  %v3529 = vunpack.c.l.b16 %v2621
  %v3530 = vunpack.c.h.b16 %v2621
  %v3531 = vunpack.c.l.b16 %v2622
  %v3532 = vunpack.c.h.b16 %v2622
  %v3533 = vunpack.c.l.b16 %v2623
  %v3534 = vunpack.c.h.b16 %v2623
  %v3535 = vunpack.c.l.b16 %v2624
  %v3536 = vunpack.c.h.b16 %v2624
  %v3537 = vunpack.c.l.b16 %v2625
  %v3538 = vunpack.c.h.b16 %v2625
  %v3539 = vunpack.c.l.b16 %v2626
  %v3540 = vunpack.c.h.b16 %v2626
  %v3541 = vunpack.c.l.b16 %v2627
  %v3542 = vunpack.c.h.b16 %v2627
  %v3543 = vunpack.c.l.b16 %v2628
  %v3544 = vunpack.c.h.b16 %v2628
  %v3545 = vunpack.c.l.b16 %v2629
  %v3546 = vunpack.c.h.b16 %v2629
  %v3547 = vunpack.c.l.b16 %v2630
  %v3548 = vunpack.c.h.b16 %v2630
  %v3549 = vunpack.c.l.b16 %v2631
  %v3550 = vunpack.c.h.b16 %v2631
  %v3551 = vunpack.c.l.b16 %v2632
  %v3552 = vunpack.c.h.b16 %v2632
  %v3553 = vunpack.c.l.b16 %v2633
  %v3554 = vunpack.c.h.b16 %v2633
  %v3555 = vunpack.c.l.b16 %v2634
  %v3556 = vunpack.c.h.b16 %v2634
  %v3557 = vunpack.c.l.b16 %v2635
  %v3558 = vunpack.c.h.b16 %v2635
  %v3559 = vunpack.c.l.b16 %v2636
  %v3560 = vunpack.c.h.b16 %v2636
  %v3561 = vunpack.c.l.b16 %v2637
  %v3562 = vunpack.c.h.b16 %v2637
  %v3563 = vunpack.c.l.b16 %v2638
  %v3564 = vunpack.c.h.b16 %v2638
  %v3565 = vunpack.c.l.b16 %v2639
  %v3566 = vunpack.c.h.b16 %v2639
  %v3567 = vunpack.c.l.b16 %v2640
  %v3568 = vunpack.c.h.b16 %v2640
  %v3569 = vunpack.c.l.b16 %v2641
  %v3570 = vunpack.c.h.b16 %v2641
  %v3571 = vunpack.c.l.b16 %v2642
  %v3572 = vunpack.c.h.b16 %v2642
  %v3573 = vunpack.c.l.b16 %v2643
  %v3574 = vunpack.c.h.b16 %v2643
  %v3575 = vunpack.c.l.b16 %v2644
  %v3576 = vunpack.c.h.b16 %v2644
  %v3577 = vunpack.c.l.b16 %v2645
  %v3578 = vunpack.c.h.b16 %v2645
  %v3579 = vunpack.c.l.b16 %v2646
  %v3580 = vunpack.c.h.b16 %v2646
  %v3581 = vunpack.c.l.b16 %v2647
  %v3582 = vunpack.c.h.b16 %v2647
  %v3583 = vunpack.c.l.b16 %v2648
  %v3584 = vunpack.c.h.b16 %v2648
  %v3585 = vunpack.c.l.b16 %v2649
  %v3586 = vunpack.c.h.b16 %v2649
  %v3587 = vunpack.c.l.b16 %v2650
  %v3588 = vunpack.c.h.b16 %v2650
  %v3589 = vunpack.c.l.b16 %v2651
  %v3590 = vunpack.c.h.b16 %v2651
  %v3591 = vunpack.c.l.b16 %v2652
  %v3592 = vunpack.c.h.b16 %v2652
  %v3593 = vunpack.c.l.b16 %v2653
  %v3594 = vunpack.c.h.b16 %v2653
  %v3595 = vunpack.c.l.b16 %v2654
  %v3596 = vunpack.c.h.b16 %v2654
  %v3597 = vunpack.c.l.b16 %v2655
  %v3598 = vunpack.c.h.b16 %v2655
  %v3599 = vunpack.c.l.b16 %v2656
  %v3600 = vunpack.c.h.b16 %v2656
  %v3601 = vunpack.c.l.b16 %v2657
  %v3602 = vunpack.c.h.b16 %v2657
  %v3603 = vpack.c.b16 %v3417, %v3411
  %v3604 = vpack.c.b16 %v3418, %v3412
  %v3605 = vpack.c.b16 %v3419, %v3413
  %v3606 = vpack.c.b16 %v3420, %v3414
  %v3607 = vpack.c.b16 %v3421, %v3415
  %v3608 = vpack.c.b16 %v3422, %v3416
  %v3609 = vpack.c.b16 %v3429, %v3423
  %v3610 = vpack.c.b16 %v3430, %v3424
  %v3611 = vpack.c.b16 %v3431, %v3425
  %v3612 = vpack.c.b16 %v3432, %v3426
  %v3613 = vpack.c.b16 %v3433, %v3427
  %v3614 = vpack.c.b16 %v3434, %v3428
  %v3615 = vpack.c.b16 %v3441, %v3435
  %v3616 = vpack.c.b16 %v3442, %v3436
  %v3617 = vpack.c.b16 %v3443, %v3437
  %v3618 = vpack.c.b16 %v3444, %v3438
  %v3619 = vpack.c.b16 %v3445, %v3439
  %v3620 = vpack.c.b16 %v3446, %v3440
  %v3621 = vpack.c.b16 %v3453, %v3447
  %v3622 = vpack.c.b16 %v3454, %v3448
  %v3623 = vpack.c.b16 %v3455, %v3449
  %v3624 = vpack.c.b16 %v3456, %v3450
  %v3625 = vpack.c.b16 %v3457, %v3451
  %v3626 = vpack.c.b16 %v3458, %v3452
  %v3627 = vpack.c.b16 %v3465, %v3459
  %v3628 = vpack.c.b16 %v3466, %v3460
  %v3629 = vpack.c.b16 %v3467, %v3461
  %v3630 = vpack.c.b16 %v3468, %v3462
  %v3631 = vpack.c.b16 %v3469, %v3463
  %v3632 = vpack.c.b16 %v3470, %v3464
  %v3633 = vpack.c.b16 %v3477, %v3471
  %v3634 = vpack.c.b16 %v3478, %v3472
  %v3635 = vpack.c.b16 %v3479, %v3473
  %v3636 = vpack.c.b16 %v3480, %v3474
  %v3637 = vpack.c.b16 %v3481, %v3475
  %v3638 = vpack.c.b16 %v3482, %v3476
  %v3639 = vpack.c.b16 %v3489, %v3483
  %v3640 = vpack.c.b16 %v3490, %v3484
  %v3641 = vpack.c.b16 %v3491, %v3485
  %v3642 = vpack.c.b16 %v3492, %v3486
  %v3643 = vpack.c.b16 %v3493, %v3487
  %v3644 = vpack.c.b16 %v3494, %v3488
  %v3645 = vpack.c.b16 %v3501, %v3495
  %v3646 = vpack.c.b16 %v3502, %v3496
  %v3647 = vpack.c.b16 %v3503, %v3497
  %v3648 = vpack.c.b16 %v3504, %v3498
  %v3649 = vpack.c.b16 %v3505, %v3499
  %v3650 = vpack.c.b16 %v3506, %v3500
  %v3651 = vpack.c.b16 %v3513, %v3507
  %v3652 = vpack.c.b16 %v3514, %v3508
  %v3653 = vpack.c.b16 %v3515, %v3509
  %v3654 = vpack.c.b16 %v3516, %v3510
  %v3655 = vpack.c.b16 %v3517, %v3511
  %v3656 = vpack.c.b16 %v3518, %v3512
  %v3657 = vpack.c.b16 %v3525, %v3519
  %v3658 = vpack.c.b16 %v3526, %v3520
  %v3659 = vpack.c.b16 %v3527, %v3521
  %v3660 = vpack.c.b16 %v3528, %v3522
  %v3661 = vpack.c.b16 %v3529, %v3523
  %v3662 = vpack.c.b16 %v3530, %v3524
  %v3663 = vpack.c.b16 %v3537, %v3531
  %v3664 = vpack.c.b16 %v3538, %v3532
  %v3665 = vpack.c.b16 %v3539, %v3533
  %v3666 = vpack.c.b16 %v3540, %v3534
  %v3667 = vpack.c.b16 %v3541, %v3535
  %v3668 = vpack.c.b16 %v3542, %v3536
  %v3669 = vpack.c.b16 %v3549, %v3543
  %v3670 = vpack.c.b16 %v3550, %v3544
  %v3671 = vpack.c.b16 %v3551, %v3545
  %v3672 = vpack.c.b16 %v3552, %v3546
  %v3673 = vpack.c.b16 %v3553, %v3547
  %v3674 = vpack.c.b16 %v3554, %v3548
  %v3675 = vpack.c.b16 %v3561, %v3555
  %v3676 = vpack.c.b16 %v3562, %v3556
  %v3677 = vpack.c.b16 %v3563, %v3557
  %v3678 = vpack.c.b16 %v3564, %v3558
  %v3679 = vpack.c.b16 %v3565, %v3559
  %v3680 = vpack.c.b16 %v3566, %v3560
  %v3681 = vpack.c.b16 %v3573, %v3567
  %v3682 = vpack.c.b16 %v3574, %v3568
  %v3683 = vpack.c.b16 %v3575, %v3569
  %v3684 = vpack.c.b16 %v3576, %v3570
  %v3685 = vpack.c.b16 %v3577, %v3571
  %v3686 = vpack.c.b16 %v3578, %v3572
  %v3687 = vpack.c.b16 %v3585, %v3579
  %v3688 = vpack.c.b16 %v3586, %v3580
  %v3689 = vpack.c.b16 %v3587, %v3581
  %v3690 = vpack.c.b16 %v3588, %v3582
  %v3691 = vpack.c.b16 %v3589, %v3583
  %v3692 = vpack.c.b16 %v3590, %v3584
  %v3693 = vpack.c.b16 %v3597, %v3591
  %v3694 = vpack.c.b16 %v3598, %v3592
  %v3695 = vpack.c.b16 %v3599, %v3593
  %v3696 = vpack.c.b16 %v3600, %v3594
  %v3697 = vpack.c.b16 %v3601, %v3595
  %v3698 = vpack.c.b16 %v3602, %v3596
  %3795 = vmatprep.subr.bf16.mxu0 %v3604
  %3796 = vmatpush1.bf16.msra.mxu0 %v3603
  %3797 = vmatprep.subr.bf16.mxu0 %v3610
  %3798 = vmatpush1.bf16.msra.mxu0 %v3609
  %3799 = vmatprep.subr.bf16.mxu0 %v3616
  %3800 = vmatpush1.bf16.msra.mxu0 %v3615
  %3801 = vmatprep.subr.bf16.mxu0 %v3622
  %3802 = vmatpush1.bf16.msra.mxu0 %v3621
  %3803 = vmatprep.subr.bf16.mxu0 %v3628
  %3804 = vmatpush1.bf16.msra.mxu0 %v3627
  %3805 = vmatprep.subr.bf16.mxu0 %v3634
  %3806 = vmatpush1.bf16.msra.mxu0 %v3633
  %3807 = vmatprep.subr.bf16.mxu0 %v3640
  %3808 = vmatpush1.bf16.msra.mxu0 %v3639
  %3809 = vmatprep.subr.bf16.mxu0 %v3646
  %3810 = vmatpush1.bf16.msra.mxu0 %v3645
  %3811 = vmatprep.subr.bf16.mxu0 %v3652
  %3812 = vmatpush1.bf16.msra.mxu0 %v3651
  %3813 = vmatprep.subr.bf16.mxu0 %v3658
  %3814 = vmatpush1.bf16.msra.mxu0 %v3657
  %3815 = vmatprep.subr.bf16.mxu0 %v3664
  %3816 = vmatpush1.bf16.msra.mxu0 %v3663
  %3817 = vmatprep.subr.bf16.mxu0 %v3670
  %3818 = vmatpush1.bf16.msra.mxu0 %v3669
  %3819 = vmatprep.subr.bf16.mxu0 %v3676
  %3820 = vmatpush1.bf16.msra.mxu0 %v3675
  %3821 = vmatprep.subr.bf16.mxu0 %v3682
  %3822 = vmatpush1.bf16.msra.mxu0 %v3681
  %3823 = vmatprep.subr.bf16.mxu0 %v3688
  %3824 = vmatpush1.bf16.msra.mxu0 %v3687
  %3825 = vmatprep.subr.bf16.mxu0 %v3694
  %3826 = vmatpush1.bf16.msra.mxu0 %v3693
  %3827 = vmatprep.mubr.bf16.mxu0 0
  %3828 = vmatmul.mubr.bf16.gmra.mrb[0].mxu0 0
  %v3829 = vpop.f32.mrb[0].mxu0
  %v3830 = vadd.f32 0.0, %v3829
  %v3831 = vpop.f32.mrb[0].mxu0
  %v3832 = vadd.f32 0.0, %v3831
  %v3833 = vpop.f32.mrb[0].mxu0
  %v3834 = vpop.f32.mrb[0].mxu0
  %3835 = vdwg.mxu0
  %3836 = vmatprep.subr.bf16.mxu0 %v3606
  %3837 = vmatpush1.bf16.msra.mxu0 %v3605
  %3838 = vmatprep.subr.bf16.mxu0 %v3612
  %3839 = vmatpush1.bf16.msra.mxu0 %v3611
  %3840 = vmatprep.subr.bf16.mxu0 %v3618
  %3841 = vmatpush1.bf16.msra.mxu0 %v3617
  %3842 = vmatprep.subr.bf16.mxu0 %v3624
  %3843 = vmatpush1.bf16.msra.mxu0 %v3623
  %3844 = vmatprep.subr.bf16.mxu0 %v3630
  %3845 = vmatpush1.bf16.msra.mxu0 %v3629
  %3846 = vmatprep.subr.bf16.mxu0 %v3636
  %3847 = vmatpush1.bf16.msra.mxu0 %v3635
  %3848 = vmatprep.subr.bf16.mxu0 %v3642
  %3849 = vmatpush1.bf16.msra.mxu0 %v3641
  %3850 = vmatprep.subr.bf16.mxu0 %v3648
  %3851 = vmatpush1.bf16.msra.mxu0 %v3647
  %3852 = vmatprep.subr.bf16.mxu0 %v3654
  %3853 = vmatpush1.bf16.msra.mxu0 %v3653
  %3854 = vmatprep.subr.bf16.mxu0 %v3660
  %3855 = vmatpush1.bf16.msra.mxu0 %v3659
  %3856 = vmatprep.subr.bf16.mxu0 %v3666
  %3857 = vmatpush1.bf16.msra.mxu0 %v3665
  %3858 = vmatprep.subr.bf16.mxu0 %v3672
  %3859 = vmatpush1.bf16.msra.mxu0 %v3671
  %3860 = vmatprep.subr.bf16.mxu0 %v3678
  %3861 = vmatpush1.bf16.msra.mxu0 %v3677
  %3862 = vmatprep.subr.bf16.mxu0 %v3684
  %3863 = vmatpush1.bf16.msra.mxu0 %v3683
  %3864 = vmatprep.subr.bf16.mxu0 %v3690
  %3865 = vmatpush1.bf16.msra.mxu0 %v3689
  %3866 = vmatprep.subr.bf16.mxu0 %v3696
  %3867 = vmatpush1.bf16.msra.mxu0 %v3695
  %3868 = vmatprep.mubr.bf16.mxu0 0
  %3869 = vmatmul.mubr.bf16.gmra.mrb[0].mxu0 0
  %v3870 = vpop.f32.mrb[0].mxu0
  %v3871 = vadd.f32 0.0, %v3870
  %v3872 = vpop.f32.mrb[0].mxu0
  %v3873 = vadd.f32 0.0, %v3872
  %v3874 = vpop.f32.mrb[0].mxu0
  %v3875 = vpop.f32.mrb[0].mxu0
  %3876 = vdwg.mxu0
  %3877 = vmatprep.subr.bf16.mxu0 %v3608
  %3878 = vmatpush1.bf16.msra.mxu0 %v3607
  %3879 = vmatprep.subr.bf16.mxu0 %v3614
  %3880 = vmatpush1.bf16.msra.mxu0 %v3613
  %3881 = vmatprep.subr.bf16.mxu0 %v3620
  %3882 = vmatpush1.bf16.msra.mxu0 %v3619
  %3883 = vmatprep.subr.bf16.mxu0 %v3626
  %3884 = vmatpush1.bf16.msra.mxu0 %v3625
  %3885 = vmatprep.subr.bf16.mxu0 %v3632
  %3886 = vmatpush1.bf16.msra.mxu0 %v3631
  %3887 = vmatprep.subr.bf16.mxu0 %v3638
  %3888 = vmatpush1.bf16.msra.mxu0 %v3637
  %3889 = vmatprep.subr.bf16.mxu0 %v3644
  %3890 = vmatpush1.bf16.msra.mxu0 %v3643
  %3891 = vmatprep.subr.bf16.mxu0 %v3650
  %3892 = vmatpush1.bf16.msra.mxu0 %v3649
  %3893 = vmatprep.subr.bf16.mxu0 %v3656
  %3894 = vmatpush1.bf16.msra.mxu0 %v3655
  %3895 = vmatprep.subr.bf16.mxu0 %v3662
  %3896 = vmatpush1.bf16.msra.mxu0 %v3661
  %3897 = vmatprep.subr.bf16.mxu0 %v3668
  %3898 = vmatpush1.bf16.msra.mxu0 %v3667
  %3899 = vmatprep.subr.bf16.mxu0 %v3674
  %3900 = vmatpush1.bf16.msra.mxu0 %v3673
  %3901 = vmatprep.subr.bf16.mxu0 %v3680
  %3902 = vmatpush1.bf16.msra.mxu0 %v3679
  %3903 = vmatprep.subr.bf16.mxu0 %v3686
  %3904 = vmatpush1.bf16.msra.mxu0 %v3685
  %3905 = vmatprep.subr.bf16.mxu0 %v3692
  %3906 = vmatpush1.bf16.msra.mxu0 %v3691
  %3907 = vmatprep.subr.bf16.mxu0 %v3698
  %3908 = vmatpush1.bf16.msra.mxu0 %v3697
  %3909 = vmatprep.mubr.bf16.mxu0 0
  %3910 = vmatmul.mubr.bf16.gmra.mrb[0].mxu0 0
  %v3911 = vpop.f32.mrb[0].mxu0
  %v3912 = vadd.f32 0.0, %v3911
  %v3913 = vpop.f32.mrb[0].mxu0
  %v3914 = vadd.f32 0.0, %v3913
  %v3915 = vpop.f32.mrb[0].mxu0
  %v3916 = vpop.f32.mrb[0].mxu0
  %3917 = vdwg.mxu0
  %v3918 = vadd.f32 %v3191, %v3830
  %v3919 = vadd.f32 %v3193, %v3832
  %v3920 = vadd.f32 %v3244, %v3871
  %v3921 = vadd.f32 %v3246, %v3873
  %v3923 = vlaneseq
  %v3924 = vshrl.u32 %v3923, 7
  %v3925 = vsub.s32 0, %v3924
  %v3926 = vrot.slane %v2659, %v3925
  %v3927 = vlaneseq
  %v3928 = vshrl.u32 %v3927, 7
  %v3929 = vsub.s32 1, %v3928
  %v3930 = vrot.slane %v2659, %v3929
  %v3931 = vlaneseq
  %v3932 = vshrl.u32 %v3931, 7
  %v3933 = vsub.s32 2, %v3932
  %v3934 = vrot.slane %v2659, %v3933
  %v3935 = vlaneseq
  %v3936 = vshrl.u32 %v3935, 7
  %v3937 = vsub.s32 3, %v3936
  %v3938 = vrot.slane %v2659, %v3937
  %v3943 = vadd.f32 %v3918, %v3926
  %v3944 = vadd.f32 %v3919, %v3930
  %v3945 = vadd.f32 %v3920, %v3934
  %v3946 = vadd.f32 %v3921, %v3938
  %v3947 = vxor.u32 %v3943, 2147483648
  %v3948 = vxor.u32 %v3944, 2147483648
  %v3949 = vxor.u32 %v3945, 2147483648
  %v3950 = vxor.u32 %v3946, 2147483648
  %v3951 = vmul.f32 %v3947, 1.442695
  %v3952 = vpow.pop %v3951
  %v3953 = vmul.f32 %v3948, 1.442695
  %v3954 = vpow.pop %v3953
  %v3955 = vmul.f32 %v3949, 1.442695
  %v3956 = vpow.pop %v3955
  %v3957 = vmul.f32 %v3950, 1.442695
  %v3958 = vpow.pop %v3957
  %v3959 = vadd.f32 %v3952, 1.0
  %v3960 = vadd.f32 %v3954, 1.0
  %v3961 = vadd.f32 %v3956, 1.0
  %v3962 = vadd.f32 %v3958, 1.0
  %v3963 = vrcp.pop %v3959
  %v3964 = vmul.f32 1.0, %v3963
  %v3965 = vrcp.pop %v3960
  %v3966 = vmul.f32 1.0, %v3965
  %v3967 = vrcp.pop %v3961
  %v3968 = vmul.f32 1.0, %v3967
  %v3969 = vrcp.pop %v3962
  %v3970 = vmul.f32 1.0, %v3969
  %v3972 = vlaneseq
  %v3973 = vshrl.u32 %v3972, 7
  %v3974 = vsub.s32 0, %v3973
  %v3975 = vrot.slane %v2661, %v3974
  %v3976 = vlaneseq
  %v3977 = vshrl.u32 %v3976, 7
  %v3978 = vsub.s32 1, %v3977
  %v3979 = vrot.slane %v2661, %v3978
  %v3982 = vadd.f32 %v3297, %v3975
  %v3983 = vadd.f32 %v3299, %v3979
  %v3985 = vlaneseq
  %v3986 = vshrl.u32 %v3985, 7
  %v3987 = vsub.s32 0, %v3986
  %v3988 = vrot.slane %v2663, %v3987
  %v3989 = vlaneseq
  %v3990 = vshrl.u32 %v3989, 7
  %v3991 = vsub.s32 1, %v3990
  %v3992 = vrot.slane %v2663, %v3991
  %v3995 = vadd.f32 %v3912, %v3988
  %v3996 = vadd.f32 %v3914, %v3992
  %v3997 = vmul.f32 %v3964, %v3995
  %v3998 = vmul.f32 %v3966, %v3996
  %v3999 = vadd.f32 %v3982, %v3997
  %v4000 = vadd.f32 %v3983, %v3998
  %v4001 = vtanh.pop %v3999
  %v4002 = vtanh.pop %v4000
  %v4003 = vsub.f32 1.0, %v3968
  %v4004 = vsub.f32 1.0, %v3970
  %v4005 = vmul.f32 %v4003, %v4001
  %v4006 = vmul.f32 %v4004, %v4002
  %v4007 = vmul.f32 %v3968, 0.0
  %v4008 = vmul.f32 %v3970, 0.0
  %v4009 = vadd.f32 %v4005, %v4007
  %v4010 = vadd.f32 %v4006, %v4008
  %4011 = vst [vmem:[#allocation2] sm:$0xff] %v4009
  %4012 = vst [vmem:[#allocation2 + $0x8] sm:$0xff] %v4010
  %v4013 = vpack.c.bf16 %v4009, %v4009
  %v4014 = vpack.c.bf16 %v4010, %v4010
  %4015 = vmatprep.subr.bf16.mxu0 %v3604
  %4016 = vmatpush1.bf16.msra.mxu0 %v3603
  %4017 = vmatprep.subr.bf16.mxu0 %v3610
  %4018 = vmatpush1.bf16.msra.mxu0 %v3609
  %4019 = vmatprep.subr.bf16.mxu0 %v3616
  %4020 = vmatpush1.bf16.msra.mxu0 %v3615
  %4021 = vmatprep.subr.bf16.mxu0 %v3622
  %4022 = vmatpush1.bf16.msra.mxu0 %v3621
  %4023 = vmatprep.subr.bf16.mxu0 %v3628
  %4024 = vmatpush1.bf16.msra.mxu0 %v3627
  %4025 = vmatprep.subr.bf16.mxu0 %v3634
  %4026 = vmatpush1.bf16.msra.mxu0 %v3633
  %4027 = vmatprep.subr.bf16.mxu0 %v3640
  %4028 = vmatpush1.bf16.msra.mxu0 %v3639
  %4029 = vmatprep.subr.bf16.mxu0 %v3646
  %4030 = vmatpush1.bf16.msra.mxu0 %v3645
  %4031 = vmatprep.subr.bf16.mxu0 %v3652
  %4032 = vmatpush1.bf16.msra.mxu0 %v3651
  %4033 = vmatprep.subr.bf16.mxu0 %v3658
  %4034 = vmatpush1.bf16.msra.mxu0 %v3657
  %4035 = vmatprep.subr.bf16.mxu0 %v3664
  %4036 = vmatpush1.bf16.msra.mxu0 %v3663
  %4037 = vmatprep.subr.bf16.mxu0 %v3670
  %4038 = vmatpush1.bf16.msra.mxu0 %v3669
  %4039 = vmatprep.subr.bf16.mxu0 %v3676
  %4040 = vmatpush1.bf16.msra.mxu0 %v3675
  %4041 = vmatprep.subr.bf16.mxu0 %v3682
  %4042 = vmatpush1.bf16.msra.mxu0 %v3681
  %4043 = vmatprep.subr.bf16.mxu0 %v3688
  %4044 = vmatpush1.bf16.msra.mxu0 %v3687
  %4045 = vmatprep.subr.bf16.mxu0 %v3694
  %4046 = vmatpush1.bf16.msra.mxu0 %v3693
  %4047 = vmatprep.mubr.bf16.mxu0 %v4014
  %4048 = vmatmul.mubr.bf16.gmra.mrb[0].mxu0 %v4013
  %v4049 = vpop.f32.mrb[0].mxu0
  %v4050 = vadd.f32 0.0, %v4049
  %v4051 = vpop.f32.mrb[0].mxu0
  %v4052 = vadd.f32 0.0, %v4051
  %v4053 = vpop.f32.mrb[0].mxu0
  %v4054 = vpop.f32.mrb[0].mxu0
  %4055 = vdwg.mxu0
  %4056 = vmatprep.subr.bf16.mxu0 %v3606
  %4057 = vmatpush1.bf16.msra.mxu0 %v3605
  %4058 = vmatprep.subr.bf16.mxu0 %v3612
  %4059 = vmatpush1.bf16.msra.mxu0 %v3611
  %4060 = vmatprep.subr.bf16.mxu0 %v3618
  %4061 = vmatpush1.bf16.msra.mxu0 %v3617
  %4062 = vmatprep.subr.bf16.mxu0 %v3624
  %4063 = vmatpush1.bf16.msra.mxu0 %v3623
  %4064 = vmatprep.subr.bf16.mxu0 %v3630
  %4065 = vmatpush1.bf16.msra.mxu0 %v3629
  %4066 = vmatprep.subr.bf16.mxu0 %v3636
  %4067 = vmatpush1.bf16.msra.mxu0 %v3635
  %4068 = vmatprep.subr.bf16.mxu0 %v3642
  %4069 = vmatpush1.bf16.msra.mxu0 %v3641
  %4070 = vmatprep.subr.bf16.mxu0 %v3648
  %4071 = vmatpush1.bf16.msra.mxu0 %v3647
  %4072 = vmatprep.subr.bf16.mxu0 %v3654
  %4073 = vmatpush1.bf16.msra.mxu0 %v3653
  %4074 = vmatprep.subr.bf16.mxu0 %v3660
  %4075 = vmatpush1.bf16.msra.mxu0 %v3659
  %4076 = vmatprep.subr.bf16.mxu0 %v3666
  %4077 = vmatpush1.bf16.msra.mxu0 %v3665
  %4078 = vmatprep.subr.bf16.mxu0 %v3672
  %4079 = vmatpush1.bf16.msra.mxu0 %v3671
  %4080 = vmatprep.subr.bf16.mxu0 %v3678
  %4081 = vmatpush1.bf16.msra.mxu0 %v3677
  %4082 = vmatprep.subr.bf16.mxu0 %v3684
  %4083 = vmatpush1.bf16.msra.mxu0 %v3683
  %4084 = vmatprep.subr.bf16.mxu0 %v3690
  %4085 = vmatpush1.bf16.msra.mxu0 %v3689
  %4086 = vmatprep.subr.bf16.mxu0 %v3696
  %4087 = vmatpush1.bf16.msra.mxu0 %v3695
  %4088 = vmatprep.mubr.bf16.mxu0 %v4014
  %4089 = vmatmul.mubr.bf16.gmra.mrb[0].mxu0 %v4013
  %v4090 = vpop.f32.mrb[0].mxu0
  %v4091 = vadd.f32 0.0, %v4090
  %v4092 = vpop.f32.mrb[0].mxu0
  %v4093 = vadd.f32 0.0, %v4092
  %v4094 = vpop.f32.mrb[0].mxu0
  %v4095 = vpop.f32.mrb[0].mxu0
  %4096 = vdwg.mxu0
  %4097 = vmatprep.subr.bf16.mxu0 %v3608
  %4098 = vmatpush1.bf16.msra.mxu0 %v3607
  %4099 = vmatprep.subr.bf16.mxu0 %v3614
  %4100 = vmatpush1.bf16.msra.mxu0 %v3613
  %4101 = vmatprep.subr.bf16.mxu0 %v3620
  %4102 = vmatpush1.bf16.msra.mxu0 %v3619
  %4103 = vmatprep.subr.bf16.mxu0 %v3626
  %4104 = vmatpush1.bf16.msra.mxu0 %v3625
  %4105 = vmatprep.subr.bf16.mxu0 %v3632
  %4106 = vmatpush1.bf16.msra.mxu0 %v3631
  %4107 = vmatprep.subr.bf16.mxu0 %v3638
  %4108 = vmatpush1.bf16.msra.mxu0 %v3637
  %4109 = vmatprep.subr.bf16.mxu0 %v3644
  %4110 = vmatpush1.bf16.msra.mxu0 %v3643
  %4111 = vmatprep.subr.bf16.mxu0 %v3650
  %4112 = vmatpush1.bf16.msra.mxu0 %v3649
  %4113 = vmatprep.subr.bf16.mxu0 %v3656
  %4114 = vmatpush1.bf16.msra.mxu0 %v3655
  %4115 = vmatprep.subr.bf16.mxu0 %v3662
  %4116 = vmatpush1.bf16.msra.mxu0 %v3661
  %4117 = vmatprep.subr.bf16.mxu0 %v3668
  %4118 = vmatpush1.bf16.msra.mxu0 %v3667
  %4119 = vmatprep.subr.bf16.mxu0 %v3674
  %4120 = vmatpush1.bf16.msra.mxu0 %v3673
  %4121 = vmatprep.subr.bf16.mxu0 %v3680
  %4122 = vmatpush1.bf16.msra.mxu0 %v3679
  %4123 = vmatprep.subr.bf16.mxu0 %v3686
  %4124 = vmatpush1.bf16.msra.mxu0 %v3685
  %4125 = vmatprep.subr.bf16.mxu0 %v3692
  %4126 = vmatpush1.bf16.msra.mxu0 %v3691
  %4127 = vmatprep.subr.bf16.mxu0 %v3698
  %4128 = vmatpush1.bf16.msra.mxu0 %v3697
  %4129 = vmatprep.mubr.bf16.mxu0 %v4014
  %4130 = vmatmul.mubr.bf16.gmra.mrb[0].mxu0 %v4013
  %v4131 = vpop.f32.mrb[0].mxu0
  %v4132 = vadd.f32 0.0, %v4131
  %v4133 = vpop.f32.mrb[0].mxu0
  %v4134 = vadd.f32 0.0, %v4133
  %v4135 = vpop.f32.mrb[0].mxu0
  %v4136 = vpop.f32.mrb[0].mxu0
  %4137 = vdwg.mxu0
  %v4138 = vadd.f32 %v3195, %v4050
  %v4139 = vadd.f32 %v3197, %v4052
  %v4140 = vadd.f32 %v3248, %v4091
  %v4141 = vadd.f32 %v3250, %v4093
  %v4142 = vadd.f32 %v4138, %v3926
  %v4143 = vadd.f32 %v4139, %v3930
  %v4144 = vadd.f32 %v4140, %v3934
  %v4145 = vadd.f32 %v4141, %v3938
  %v4146 = vxor.u32 %v4142, 2147483648
  %v4147 = vxor.u32 %v4143, 2147483648
  %v4148 = vxor.u32 %v4144, 2147483648
  %v4149 = vxor.u32 %v4145, 2147483648
  %v4150 = vmul.f32 %v4146, 1.442695
  %v4151 = vpow.pop %v4150
  %v4152 = vmul.f32 %v4147, 1.442695
  %v4153 = vpow.pop %v4152
  %v4154 = vmul.f32 %v4148, 1.442695
  %v4155 = vpow.pop %v4154
  %v4156 = vmul.f32 %v4149, 1.442695
  %v4157 = vpow.pop %v4156
  %v4158 = vadd.f32 %v4151, 1.0
  %v4159 = vadd.f32 %v4153, 1.0
  %v4160 = vadd.f32 %v4155, 1.0
  %v4161 = vadd.f32 %v4157, 1.0
  %v4162 = vrcp.pop %v4158
  %v4163 = vmul.f32 1.0, %v4162
  %v4164 = vrcp.pop %v4159
  %v4165 = vmul.f32 1.0, %v4164
  %v4166 = vrcp.pop %v4160
  %v4167 = vmul.f32 1.0, %v4166
  %v4168 = vrcp.pop %v4161
  %v4169 = vmul.f32 1.0, %v4168
  %v4170 = vadd.f32 %v3301, %v3975
  %v4171 = vadd.f32 %v3303, %v3979
  %v4172 = vadd.f32 %v4132, %v3988
  %v4173 = vadd.f32 %v4134, %v3992
  %v4174 = vmul.f32 %v4163, %v4172
  %v4175 = vmul.f32 %v4165, %v4173
  %v4176 = vadd.f32 %v4170, %v4174
  %v4177 = vadd.f32 %v4171, %v4175
  %v4178 = vtanh.pop %v4176
  %v4179 = vtanh.pop %v4177
  %v4180 = vsub.f32 1.0, %v4167
  %v4181 = vsub.f32 1.0, %v4169
  %v4182 = vmul.f32 %v4180, %v4178
  %v4183 = vmul.f32 %v4181, %v4179
  %v4184 = vmul.f32 %v4167, %v4009
  %v4185 = vmul.f32 %v4169, %v4010
  %v4186 = vadd.f32 %v4182, %v4184
  %v4187 = vadd.f32 %v4183, %v4185
  %4188 = vst [vmem:[#allocation2 + $0x10] sm:$0xff] %v4186
  %4189 = vst [vmem:[#allocation2 + $0x18] sm:$0xff] %v4187
  %v4190 = vpack.c.bf16 %v4186, %v4186
  %v4191 = vpack.c.bf16 %v4187, %v4187
  %4192 = vmatprep.subr.bf16.mxu0 %v3604
  %4193 = vmatpush1.bf16.msra.mxu0 %v3603
  %4194 = vmatprep.subr.bf16.mxu0 %v3610
  %4195 = vmatpush1.bf16.msra.mxu0 %v3609
  %4196 = vmatprep.subr.bf16.mxu0 %v3616
  %4197 = vmatpush1.bf16.msra.mxu0 %v3615
  %4198 = vmatprep.subr.bf16.mxu0 %v3622
  %4199 = vmatpush1.bf16.msra.mxu0 %v3621
  %4200 = vmatprep.subr.bf16.mxu0 %v3628
  %4201 = vmatpush1.bf16.msra.mxu0 %v3627
  %4202 = vmatprep.subr.bf16.mxu0 %v3634
  %4203 = vmatpush1.bf16.msra.mxu0 %v3633
  %4204 = vmatprep.subr.bf16.mxu0 %v3640
  %4205 = vmatpush1.bf16.msra.mxu0 %v3639
  %4206 = vmatprep.subr.bf16.mxu0 %v3646
  %4207 = vmatpush1.bf16.msra.mxu0 %v3645
  %4208 = vmatprep.subr.bf16.mxu0 %v3652
  %4209 = vmatpush1.bf16.msra.mxu0 %v3651
  %4210 = vmatprep.subr.bf16.mxu0 %v3658
  %4211 = vmatpush1.bf16.msra.mxu0 %v3657
  %4212 = vmatprep.subr.bf16.mxu0 %v3664
  %4213 = vmatpush1.bf16.msra.mxu0 %v3663
  %4214 = vmatprep.subr.bf16.mxu0 %v3670
  %4215 = vmatpush1.bf16.msra.mxu0 %v3669
  %4216 = vmatprep.subr.bf16.mxu0 %v3676
  %4217 = vmatpush1.bf16.msra.mxu0 %v3675
  %4218 = vmatprep.subr.bf16.mxu0 %v3682
  %4219 = vmatpush1.bf16.msra.mxu0 %v3681
  %4220 = vmatprep.subr.bf16.mxu0 %v3688
  %4221 = vmatpush1.bf16.msra.mxu0 %v3687
  %4222 = vmatprep.subr.bf16.mxu0 %v3694
  %4223 = vmatpush1.bf16.msra.mxu0 %v3693
  %4224 = vmatprep.mubr.bf16.mxu0 %v4191
  %4225 = vmatmul.mubr.bf16.gmra.mrb[0].mxu0 %v4190
  %v4226 = vpop.f32.mrb[0].mxu0
  %v4227 = vadd.f32 0.0, %v4226
  %v4228 = vpop.f32.mrb[0].mxu0
  %v4229 = vadd.f32 0.0, %v4228
  %v4230 = vpop.f32.mrb[0].mxu0
  %v4231 = vpop.f32.mrb[0].mxu0
  %4232 = vdwg.mxu0
  %4233 = vmatprep.subr.bf16.mxu0 %v3606
  %4234 = vmatpush1.bf16.msra.mxu0 %v3605
  %4235 = vmatprep.subr.bf16.mxu0 %v3612
  %4236 = vmatpush1.bf16.msra.mxu0 %v3611
  %4237 = vmatprep.subr.bf16.mxu0 %v3618
  %4238 = vmatpush1.bf16.msra.mxu0 %v3617
  %4239 = vmatprep.subr.bf16.mxu0 %v3624
  %4240 = vmatpush1.bf16.msra.mxu0 %v3623
  %4241 = vmatprep.subr.bf16.mxu0 %v3630
  %4242 = vmatpush1.bf16.msra.mxu0 %v3629
  %4243 = vmatprep.subr.bf16.mxu0 %v3636
  %4244 = vmatpush1.bf16.msra.mxu0 %v3635
  %4245 = vmatprep.subr.bf16.mxu0 %v3642
  %4246 = vmatpush1.bf16.msra.mxu0 %v3641
  %4247 = vmatprep.subr.bf16.mxu0 %v3648
  %4248 = vmatpush1.bf16.msra.mxu0 %v3647
  %4249 = vmatprep.subr.bf16.mxu0 %v3654
  %4250 = vmatpush1.bf16.msra.mxu0 %v3653
  %4251 = vmatprep.subr.bf16.mxu0 %v3660
  %4252 = vmatpush1.bf16.msra.mxu0 %v3659
  %4253 = vmatprep.subr.bf16.mxu0 %v3666
  %4254 = vmatpush1.bf16.msra.mxu0 %v3665
  %4255 = vmatprep.subr.bf16.mxu0 %v3672
  %4256 = vmatpush1.bf16.msra.mxu0 %v3671
  %4257 = vmatprep.subr.bf16.mxu0 %v3678
  %4258 = vmatpush1.bf16.msra.mxu0 %v3677
  %4259 = vmatprep.subr.bf16.mxu0 %v3684
  %4260 = vmatpush1.bf16.msra.mxu0 %v3683
  %4261 = vmatprep.subr.bf16.mxu0 %v3690
  %4262 = vmatpush1.bf16.msra.mxu0 %v3689
  %4263 = vmatprep.subr.bf16.mxu0 %v3696
  %4264 = vmatpush1.bf16.msra.mxu0 %v3695
  %4265 = vmatprep.mubr.bf16.mxu0 %v4191
  %4266 = vmatmul.mubr.bf16.gmra.mrb[0].mxu0 %v4190
  %v4267 = vpop.f32.mrb[0].mxu0
  %v4268 = vadd.f32 0.0, %v4267
  %v4269 = vpop.f32.mrb[0].mxu0
  %v4270 = vadd.f32 0.0, %v4269
  %v4271 = vpop.f32.mrb[0].mxu0
  %v4272 = vpop.f32.mrb[0].mxu0
  %4273 = vdwg.mxu0
  %4274 = vmatprep.subr.bf16.mxu0 %v3608
  %4275 = vmatpush1.bf16.msra.mxu0 %v3607
  %4276 = vmatprep.subr.bf16.mxu0 %v3614
  %4277 = vmatpush1.bf16.msra.mxu0 %v3613
  %4278 = vmatprep.subr.bf16.mxu0 %v3620
  %4279 = vmatpush1.bf16.msra.mxu0 %v3619
  %4280 = vmatprep.subr.bf16.mxu0 %v3626
  %4281 = vmatpush1.bf16.msra.mxu0 %v3625
  %4282 = vmatprep.subr.bf16.mxu0 %v3632
  %4283 = vmatpush1.bf16.msra.mxu0 %v3631
  %4284 = vmatprep.subr.bf16.mxu0 %v3638
  %4285 = vmatpush1.bf16.msra.mxu0 %v3637
  %4286 = vmatprep.subr.bf16.mxu0 %v3644
  %4287 = vmatpush1.bf16.msra.mxu0 %v3643
  %4288 = vmatprep.subr.bf16.mxu0 %v3650
  %4289 = vmatpush1.bf16.msra.mxu0 %v3649
  %4290 = vmatprep.subr.bf16.mxu0 %v3656
  %4291 = vmatpush1.bf16.msra.mxu0 %v3655
  %4292 = vmatprep.subr.bf16.mxu0 %v3662
  %4293 = vmatpush1.bf16.msra.mxu0 %v3661
  %4294 = vmatprep.subr.bf16.mxu0 %v3668
  %4295 = vmatpush1.bf16.msra.mxu0 %v3667
  %4296 = vmatprep.subr.bf16.mxu0 %v3674
  %4297 = vmatpush1.bf16.msra.mxu0 %v3673
  %4298 = vmatprep.subr.bf16.mxu0 %v3680
  %4299 = vmatpush1.bf16.msra.mxu0 %v3679
  %4300 = vmatprep.subr.bf16.mxu0 %v3686
  %4301 = vmatpush1.bf16.msra.mxu0 %v3685
  %4302 = vmatprep.subr.bf16.mxu0 %v3692
  %4303 = vmatpush1.bf16.msra.mxu0 %v3691
  %4304 = vmatprep.subr.bf16.mxu0 %v3698
  %4305 = vmatpush1.bf16.msra.mxu0 %v3697
  %4306 = vmatprep.mubr.bf16.mxu0 %v4191
  %4307 = vmatmul.mubr.bf16.gmra.mrb[0].mxu0 %v4190
  %v4308 = vpop.f32.mrb[0].mxu0
  %v4309 = vadd.f32 0.0, %v4308
  %v4310 = vpop.f32.mrb[0].mxu0
  %v4311 = vadd.f32 0.0, %v4310
  %v4312 = vpop.f32.mrb[0].mxu0
  %v4313 = vpop.f32.mrb[0].mxu0
  %4314 = vdwg.mxu0
  %v4315 = vadd.f32 %v3201, %v4227
  %v4316 = vadd.f32 %v3203, %v4229
  %v4317 = vadd.f32 %v3254, %v4268
  %v4318 = vadd.f32 %v3256, %v4270
  %v4319 = vadd.f32 %v4315, %v3926
  %v4320 = vadd.f32 %v4316, %v3930
  %v4321 = vadd.f32 %v4317, %v3934
  %v4322 = vadd.f32 %v4318, %v3938
  %v4323 = vxor.u32 %v4319, 2147483648
  %v4324 = vxor.u32 %v4320, 2147483648
  %v4325 = vxor.u32 %v4321, 2147483648
  %v4326 = vxor.u32 %v4322, 2147483648
  %v4327 = vmul.f32 %v4323, 1.442695
  %v4328 = vpow.pop %v4327
  %v4329 = vmul.f32 %v4324, 1.442695
  %v4330 = vpow.pop %v4329
  %v4331 = vmul.f32 %v4325, 1.442695
  %v4332 = vpow.pop %v4331
  %v4333 = vmul.f32 %v4326, 1.442695
  %v4334 = vpow.pop %v4333
  %v4335 = vadd.f32 %v4328, 1.0
  %v4336 = vadd.f32 %v4330, 1.0
  %v4337 = vadd.f32 %v4332, 1.0
  %v4338 = vadd.f32 %v4334, 1.0
  %v4339 = vrcp.pop %v4335
  %v4340 = vmul.f32 1.0, %v4339
  %v4341 = vrcp.pop %v4336
  %v4342 = vmul.f32 1.0, %v4341
  %v4343 = vrcp.pop %v4337
  %v4344 = vmul.f32 1.0, %v4343
  %v4345 = vrcp.pop %v4338
  %v4346 = vmul.f32 1.0, %v4345
  %v4347 = vadd.f32 %v3307, %v3975
  %v4348 = vadd.f32 %v3309, %v3979
  %v4349 = vadd.f32 %v4309, %v3988
  %v4350 = vadd.f32 %v4311, %v3992
  %v4351 = vmul.f32 %v4340, %v4349
  %v4352 = vmul.f32 %v4342, %v4350
  %v4353 = vadd.f32 %v4347, %v4351
  %v4354 = vadd.f32 %v4348, %v4352
  %v4355 = vtanh.pop %v4353
  %v4356 = vtanh.pop %v4354
  %v4357 = vsub.f32 1.0, %v4344
  %v4358 = vsub.f32 1.0, %v4346
  %v4359 = vmul.f32 %v4357, %v4355
  %v4360 = vmul.f32 %v4358, %v4356
  %v4361 = vmul.f32 %v4344, %v4186
  %v4362 = vmul.f32 %v4346, %v4187
  %v4363 = vadd.f32 %v4359, %v4361
  %v4364 = vadd.f32 %v4360, %v4362
  %4365 = vst [vmem:[#allocation2 + $0x20] sm:$0xff] %v4363
  %4366 = vst [vmem:[#allocation2 + $0x28] sm:$0xff] %v4364
  %v4367 = vpack.c.bf16 %v4363, %v4363
  %v4368 = vpack.c.bf16 %v4364, %v4364
  %4369 = vmatprep.subr.bf16.mxu0 %v3604
  %4370 = vmatpush1.bf16.msra.mxu0 %v3603
  %4371 = vmatprep.subr.bf16.mxu0 %v3610
  %4372 = vmatpush1.bf16.msra.mxu0 %v3609
  %4373 = vmatprep.subr.bf16.mxu0 %v3616
  %4374 = vmatpush1.bf16.msra.mxu0 %v3615
  %4375 = vmatprep.subr.bf16.mxu0 %v3622
  %4376 = vmatpush1.bf16.msra.mxu0 %v3621
  %4377 = vmatprep.subr.bf16.mxu0 %v3628
  %4378 = vmatpush1.bf16.msra.mxu0 %v3627
  %4379 = vmatprep.subr.bf16.mxu0 %v3634
  %4380 = vmatpush1.bf16.msra.mxu0 %v3633
  %4381 = vmatprep.subr.bf16.mxu0 %v3640
  %4382 = vmatpush1.bf16.msra.mxu0 %v3639
  %4383 = vmatprep.subr.bf16.mxu0 %v3646
  %4384 = vmatpush1.bf16.msra.mxu0 %v3645
  %4385 = vmatprep.subr.bf16.mxu0 %v3652
  %4386 = vmatpush1.bf16.msra.mxu0 %v3651
  %4387 = vmatprep.subr.bf16.mxu0 %v3658
  %4388 = vmatpush1.bf16.msra.mxu0 %v3657
  %4389 = vmatprep.subr.bf16.mxu0 %v3664
  %4390 = vmatpush1.bf16.msra.mxu0 %v3663
  %4391 = vmatprep.subr.bf16.mxu0 %v3670
  %4392 = vmatpush1.bf16.msra.mxu0 %v3669
  %4393 = vmatprep.subr.bf16.mxu0 %v3676
  %4394 = vmatpush1.bf16.msra.mxu0 %v3675
  %4395 = vmatprep.subr.bf16.mxu0 %v3682
  %4396 = vmatpush1.bf16.msra.mxu0 %v3681
  %4397 = vmatprep.subr.bf16.mxu0 %v3688
  %4398 = vmatpush1.bf16.msra.mxu0 %v3687
  %4399 = vmatprep.subr.bf16.mxu0 %v3694
  %4400 = vmatpush1.bf16.msra.mxu0 %v3693
  %4401 = vmatprep.mubr.bf16.mxu0 %v4368
  %4402 = vmatmul.mubr.bf16.gmra.mrb[0].mxu0 %v4367
  %v4403 = vpop.f32.mrb[0].mxu0
  %v4404 = vadd.f32 0.0, %v4403
  %v4405 = vpop.f32.mrb[0].mxu0
  %v4406 = vadd.f32 0.0, %v4405
  %v4407 = vpop.f32.mrb[0].mxu0
  %v4408 = vpop.f32.mrb[0].mxu0
  %4409 = vdwg.mxu0
  %4410 = vmatprep.subr.bf16.mxu0 %v3606
  %4411 = vmatpush1.bf16.msra.mxu0 %v3605
  %4412 = vmatprep.subr.bf16.mxu0 %v3612
  %4413 = vmatpush1.bf16.msra.mxu0 %v3611
  %4414 = vmatprep.subr.bf16.mxu0 %v3618
  %4415 = vmatpush1.bf16.msra.mxu0 %v3617
  %4416 = vmatprep.subr.bf16.mxu0 %v3624
  %4417 = vmatpush1.bf16.msra.mxu0 %v3623
  %4418 = vmatprep.subr.bf16.mxu0 %v3630
  %4419 = vmatpush1.bf16.msra.mxu0 %v3629
  %4420 = vmatprep.subr.bf16.mxu0 %v3636
  %4421 = vmatpush1.bf16.msra.mxu0 %v3635
  %4422 = vmatprep.subr.bf16.mxu0 %v3642
  %4423 = vmatpush1.bf16.msra.mxu0 %v3641
  %4424 = vmatprep.subr.bf16.mxu0 %v3648
  %4425 = vmatpush1.bf16.msra.mxu0 %v3647
  %4426 = vmatprep.subr.bf16.mxu0 %v3654
  %4427 = vmatpush1.bf16.msra.mxu0 %v3653
  %4428 = vmatprep.subr.bf16.mxu0 %v3660
  %4429 = vmatpush1.bf16.msra.mxu0 %v3659
  %4430 = vmatprep.subr.bf16.mxu0 %v3666
  %4431 = vmatpush1.bf16.msra.mxu0 %v3665
  %4432 = vmatprep.subr.bf16.mxu0 %v3672
  %4433 = vmatpush1.bf16.msra.mxu0 %v3671
  %4434 = vmatprep.subr.bf16.mxu0 %v3678
  %4435 = vmatpush1.bf16.msra.mxu0 %v3677
  %4436 = vmatprep.subr.bf16.mxu0 %v3684
  %4437 = vmatpush1.bf16.msra.mxu0 %v3683
  %4438 = vmatprep.subr.bf16.mxu0 %v3690
  %4439 = vmatpush1.bf16.msra.mxu0 %v3689
  %4440 = vmatprep.subr.bf16.mxu0 %v3696
  %4441 = vmatpush1.bf16.msra.mxu0 %v3695
  %4442 = vmatprep.mubr.bf16.mxu0 %v4368
  %4443 = vmatmul.mubr.bf16.gmra.mrb[0].mxu0 %v4367
  %v4444 = vpop.f32.mrb[0].mxu0
  %v4445 = vadd.f32 0.0, %v4444
  %v4446 = vpop.f32.mrb[0].mxu0
  %v4447 = vadd.f32 0.0, %v4446
  %v4448 = vpop.f32.mrb[0].mxu0
  %v4449 = vpop.f32.mrb[0].mxu0
  %4450 = vdwg.mxu0
  %4451 = vmatprep.subr.bf16.mxu0 %v3608
  %4452 = vmatpush1.bf16.msra.mxu0 %v3607
  %4453 = vmatprep.subr.bf16.mxu0 %v3614
  %4454 = vmatpush1.bf16.msra.mxu0 %v3613
  %4455 = vmatprep.subr.bf16.mxu0 %v3620
  %4456 = vmatpush1.bf16.msra.mxu0 %v3619
  %4457 = vmatprep.subr.bf16.mxu0 %v3626
  %4458 = vmatpush1.bf16.msra.mxu0 %v3625
  %4459 = vmatprep.subr.bf16.mxu0 %v3632
  %4460 = vmatpush1.bf16.msra.mxu0 %v3631
  %4461 = vmatprep.subr.bf16.mxu0 %v3638
  %4462 = vmatpush1.bf16.msra.mxu0 %v3637
  %4463 = vmatprep.subr.bf16.mxu0 %v3644
  %4464 = vmatpush1.bf16.msra.mxu0 %v3643
  %4465 = vmatprep.subr.bf16.mxu0 %v3650
  %4466 = vmatpush1.bf16.msra.mxu0 %v3649
  %4467 = vmatprep.subr.bf16.mxu0 %v3656
  %4468 = vmatpush1.bf16.msra.mxu0 %v3655
  %4469 = vmatprep.subr.bf16.mxu0 %v3662
  %4470 = vmatpush1.bf16.msra.mxu0 %v3661
  %4471 = vmatprep.subr.bf16.mxu0 %v3668
  %4472 = vmatpush1.bf16.msra.mxu0 %v3667
  %4473 = vmatprep.subr.bf16.mxu0 %v3674
  %4474 = vmatpush1.bf16.msra.mxu0 %v3673
  %4475 = vmatprep.subr.bf16.mxu0 %v3680
  %4476 = vmatpush1.bf16.msra.mxu0 %v3679
  %4477 = vmatprep.subr.bf16.mxu0 %v3686
  %4478 = vmatpush1.bf16.msra.mxu0 %v3685
  %4479 = vmatprep.subr.bf16.mxu0 %v3692
  %4480 = vmatpush1.bf16.msra.mxu0 %v3691
  %4481 = vmatprep.subr.bf16.mxu0 %v3698
  %4482 = vmatpush1.bf16.msra.mxu0 %v3697
  %4483 = vmatprep.mubr.bf16.mxu0 %v4368
  %4484 = vmatmul.mubr.bf16.gmra.mrb[0].mxu0 %v4367
  %v4485 = vpop.f32.mrb[0].mxu0
  %v4486 = vadd.f32 0.0, %v4485
  %v4487 = vpop.f32.mrb[0].mxu0
  %v4488 = vadd.f32 0.0, %v4487
  %v4489 = vpop.f32.mrb[0].mxu0
  %v4490 = vpop.f32.mrb[0].mxu0
  %4491 = vdwg.mxu0
  %v4492 = vadd.f32 %v3205, %v4404
  %v4493 = vadd.f32 %v3207, %v4406
  %v4494 = vadd.f32 %v3258, %v4445
  %v4495 = vadd.f32 %v3260, %v4447
  %v4496 = vadd.f32 %v4492, %v3926
  %v4497 = vadd.f32 %v4493, %v3930
  %v4498 = vadd.f32 %v4494, %v3934
  %v4499 = vadd.f32 %v4495, %v3938
  %v4500 = vxor.u32 %v4496, 2147483648
  %v4501 = vxor.u32 %v4497, 2147483648
  %v4502 = vxor.u32 %v4498, 2147483648
  %v4503 = vxor.u32 %v4499, 2147483648
  %v4504 = vmul.f32 %v4500, 1.442695
  %v4505 = vpow.pop %v4504
  %v4506 = vmul.f32 %v4501, 1.442695
  %v4507 = vpow.pop %v4506
  %v4508 = vmul.f32 %v4502, 1.442695
  %v4509 = vpow.pop %v4508
  %v4510 = vmul.f32 %v4503, 1.442695
  %v4511 = vpow.pop %v4510
  %v4512 = vadd.f32 %v4505, 1.0
  %v4513 = vadd.f32 %v4507, 1.0
  %v4514 = vadd.f32 %v4509, 1.0
  %v4515 = vadd.f32 %v4511, 1.0
  %v4516 = vrcp.pop %v4512
  %v4517 = vmul.f32 1.0, %v4516
  %v4518 = vrcp.pop %v4513
  %v4519 = vmul.f32 1.0, %v4518
  %v4520 = vrcp.pop %v4514
  %v4521 = vmul.f32 1.0, %v4520
  %v4522 = vrcp.pop %v4515
  %v4523 = vmul.f32 1.0, %v4522
  %v4524 = vadd.f32 %v3311, %v3975
  %v4525 = vadd.f32 %v3313, %v3979
  %v4526 = vadd.f32 %v4486, %v3988
  %v4527 = vadd.f32 %v4488, %v3992
  %v4528 = vmul.f32 %v4517, %v4526
  %v4529 = vmul.f32 %v4519, %v4527
  %v4530 = vadd.f32 %v4524, %v4528
  %v4531 = vadd.f32 %v4525, %v4529
  %v4532 = vtanh.pop %v4530
  %v4533 = vtanh.pop %v4531
  %v4534 = vsub.f32 1.0, %v4521
  %v4535 = vsub.f32 1.0, %v4523
  %v4536 = vmul.f32 %v4534, %v4532
  %v4537 = vmul.f32 %v4535, %v4533
  %v4538 = vmul.f32 %v4521, %v4363
  %v4539 = vmul.f32 %v4523, %v4364
  %v4540 = vadd.f32 %v4536, %v4538
  %v4541 = vadd.f32 %v4537, %v4539
  %4542 = vst [vmem:[#allocation2 + $0x30] sm:$0xff] %v4540
  %4543 = vst [vmem:[#allocation2 + $0x38] sm:$0xff] %v4541
  %v4544 = vpack.c.bf16 %v4540, %v4540
  %v4545 = vpack.c.bf16 %v4541, %v4541
  %s4546 = scalar_lea.vmem %s8, 256
  %v4547 = vld [vmem:[%s4546] sm:$0xff]
  %v4548 = vld [vmem:[%s4546 + $0x8] sm:$0xff]
  %v4549 = vld [vmem:[%s4546 + $0x10] sm:$0xff]
  %v4550 = vld [vmem:[%s4546 + $0x18] sm:$0xff]
  %v4551 = vld [vmem:[%s4546 + $0x20] sm:$0xff]
  %v4552 = vld [vmem:[%s4546 + $0x28] sm:$0xff]
  %v4553 = vld [vmem:[%s4546 + $0x30] sm:$0xff]
  %v4554 = vld [vmem:[%s4546 + $0x38] sm:$0xff]
  %v4555 = vld [vmem:[%s4546 + $0x40] sm:$0xff]
  %v4556 = vld [vmem:[%s4546 + $0x48] sm:$0xff]
  %v4557 = vld [vmem:[%s4546 + $0x50] sm:$0xff]
  %v4558 = vld [vmem:[%s4546 + $0x58] sm:$0xff]
  %v4559 = vld [vmem:[%s4546 + $0x60] sm:$0xff]
  %v4560 = vld [vmem:[%s4546 + $0x68] sm:$0xff]
  %v4561 = vld [vmem:[%s4546 + $0x70] sm:$0xff]
  %v4562 = vld [vmem:[%s4546 + $0x78] sm:$0xff]
  %v4563 = vld [vmem:[%s4546 + $0x80] sm:$0xff]
  %v4564 = vld [vmem:[%s4546 + $0x88] sm:$0xff]
  %v4565 = vld [vmem:[%s4546 + $0x90] sm:$0xff]
  %v4566 = vld [vmem:[%s4546 + $0x98] sm:$0xff]
  %v4567 = vld [vmem:[%s4546 + $0xa0] sm:$0xff]
  %v4568 = vld [vmem:[%s4546 + $0xa8] sm:$0xff]
  %v4569 = vld [vmem:[%s4546 + $0xb0] sm:$0xff]
  %v4570 = vld [vmem:[%s4546 + $0xb8] sm:$0xff]
  %v4571 = vld [vmem:[%s4546 + $0xc0] sm:$0xff]
  %v4572 = vld [vmem:[%s4546 + $0xc8] sm:$0xff]
  %v4573 = vld [vmem:[%s4546 + $0xd0] sm:$0xff]
  %v4574 = vld [vmem:[%s4546 + $0xd8] sm:$0xff]
  %v4575 = vld [vmem:[%s4546 + $0xe0] sm:$0xff]
  %v4576 = vld [vmem:[%s4546 + $0xe8] sm:$0xff]
  %v4577 = vld [vmem:[%s4546 + $0xf0] sm:$0xff]
  %v4578 = vld [vmem:[%s4546 + $0xf8] sm:$0xff]
  %v4611 = vunpack.c.l.b16 %v4547
  %v4612 = vunpack.c.h.b16 %v4547
  %v4613 = vunpack.c.l.b16 %v4548
  %v4614 = vunpack.c.h.b16 %v4548
  %v4615 = vunpack.c.l.b16 %v4549
  %v4616 = vunpack.c.h.b16 %v4549
  %v4617 = vunpack.c.l.b16 %v4550
  %v4618 = vunpack.c.h.b16 %v4550
  %v4619 = vunpack.c.l.b16 %v4551
  %v4620 = vunpack.c.h.b16 %v4551
  %v4621 = vunpack.c.l.b16 %v4552
  %v4622 = vunpack.c.h.b16 %v4552
  %v4623 = vunpack.c.l.b16 %v4553
  %v4624 = vunpack.c.h.b16 %v4553
  %v4625 = vunpack.c.l.b16 %v4554
  %v4626 = vunpack.c.h.b16 %v4554
  %v4627 = vunpack.c.l.b16 %v4555
  %v4628 = vunpack.c.h.b16 %v4555
  %v4629 = vunpack.c.l.b16 %v4556
  %v4630 = vunpack.c.h.b16 %v4556
  %v4631 = vunpack.c.l.b16 %v4557
  %v4632 = vunpack.c.h.b16 %v4557
  %v4633 = vunpack.c.l.b16 %v4558
  %v4634 = vunpack.c.h.b16 %v4558
  %v4635 = vunpack.c.l.b16 %v4559
  %v4636 = vunpack.c.h.b16 %v4559
  %v4637 = vunpack.c.l.b16 %v4560
  %v4638 = vunpack.c.h.b16 %v4560
  %v4639 = vunpack.c.l.b16 %v4561
  %v4640 = vunpack.c.h.b16 %v4561
  %v4641 = vunpack.c.l.b16 %v4562
  %v4642 = vunpack.c.h.b16 %v4562
  %v4643 = vunpack.c.l.b16 %v4563
  %v4644 = vunpack.c.h.b16 %v4563
  %v4645 = vunpack.c.l.b16 %v4564
  %v4646 = vunpack.c.h.b16 %v4564
  %v4647 = vunpack.c.l.b16 %v4565
  %v4648 = vunpack.c.h.b16 %v4565
  %v4649 = vunpack.c.l.b16 %v4566
  %v4650 = vunpack.c.h.b16 %v4566
  %v4651 = vunpack.c.l.b16 %v4567
  %v4652 = vunpack.c.h.b16 %v4567
  %v4653 = vunpack.c.l.b16 %v4568
  %v4654 = vunpack.c.h.b16 %v4568
  %v4655 = vunpack.c.l.b16 %v4569
  %v4656 = vunpack.c.h.b16 %v4569
  %v4657 = vunpack.c.l.b16 %v4570
  %v4658 = vunpack.c.h.b16 %v4570
  %v4659 = vunpack.c.l.b16 %v4571
  %v4660 = vunpack.c.h.b16 %v4571
  %v4661 = vunpack.c.l.b16 %v4572
  %v4662 = vunpack.c.h.b16 %v4572
  %v4663 = vunpack.c.l.b16 %v4573
  %v4664 = vunpack.c.h.b16 %v4573
  %v4665 = vunpack.c.l.b16 %v4574
  %v4666 = vunpack.c.h.b16 %v4574
  %v4667 = vunpack.c.l.b16 %v4575
  %v4668 = vunpack.c.h.b16 %v4575
  %v4669 = vunpack.c.l.b16 %v4576
  %v4670 = vunpack.c.h.b16 %v4576
  %v4671 = vunpack.c.l.b16 %v4577
  %v4672 = vunpack.c.h.b16 %v4577
  %v4673 = vunpack.c.l.b16 %v4578
  %v4674 = vunpack.c.h.b16 %v4578
  %v4675 = vpack.c.b16 %v4613, %v4611
  %v4676 = vpack.c.b16 %v4614, %v4612
  %v4677 = vpack.c.b16 %v4617, %v4615
  %v4678 = vpack.c.b16 %v4618, %v4616
  %v4679 = vpack.c.b16 %v4621, %v4619
  %v4680 = vpack.c.b16 %v4622, %v4620
  %v4681 = vpack.c.b16 %v4625, %v4623
  %v4682 = vpack.c.b16 %v4626, %v4624
  %v4683 = vpack.c.b16 %v4629, %v4627
  %v4684 = vpack.c.b16 %v4630, %v4628
  %v4685 = vpack.c.b16 %v4633, %v4631
  %v4686 = vpack.c.b16 %v4634, %v4632
  %v4687 = vpack.c.b16 %v4637, %v4635
  %v4688 = vpack.c.b16 %v4638, %v4636
  %v4689 = vpack.c.b16 %v4641, %v4639
  %v4690 = vpack.c.b16 %v4642, %v4640
  %v4691 = vpack.c.b16 %v4645, %v4643
  %v4692 = vpack.c.b16 %v4646, %v4644
  %v4693 = vpack.c.b16 %v4649, %v4647
  %v4694 = vpack.c.b16 %v4650, %v4648
  %v4695 = vpack.c.b16 %v4653, %v4651
  %v4696 = vpack.c.b16 %v4654, %v4652
  %v4697 = vpack.c.b16 %v4657, %v4655
  %v4698 = vpack.c.b16 %v4658, %v4656
  %v4699 = vpack.c.b16 %v4661, %v4659
  %v4700 = vpack.c.b16 %v4662, %v4660
  %v4701 = vpack.c.b16 %v4665, %v4663
  %v4702 = vpack.c.b16 %v4666, %v4664
  %v4703 = vpack.c.b16 %v4669, %v4667
  %v4704 = vpack.c.b16 %v4670, %v4668
  %v4705 = vpack.c.b16 %v4673, %v4671
  %v4706 = vpack.c.b16 %v4674, %v4672
  %4739 = vmatprep.subr.bf16.mxu0 %v4676
  %4740 = vmatpush1.bf16.msra.mxu0 %v4675
  %4741 = vmatprep.subr.bf16.mxu0 %v4678
  %4742 = vmatpush1.bf16.msra.mxu0 %v4677
  %4743 = vmatprep.subr.bf16.mxu0 %v4680
  %4744 = vmatpush1.bf16.msra.mxu0 %v4679
  %4745 = vmatprep.subr.bf16.mxu0 %v4682
  %4746 = vmatpush1.bf16.msra.mxu0 %v4681
  %4747 = vmatprep.subr.bf16.mxu0 %v4684
  %4748 = vmatpush1.bf16.msra.mxu0 %v4683
  %4749 = vmatprep.subr.bf16.mxu0 %v4686
  %4750 = vmatpush1.bf16.msra.mxu0 %v4685
  %4751 = vmatprep.subr.bf16.mxu0 %v4688
  %4752 = vmatpush1.bf16.msra.mxu0 %v4687
  %4753 = vmatprep.subr.bf16.mxu0 %v4690
  %4754 = vmatpush1.bf16.msra.mxu0 %v4689
  %4755 = vmatprep.subr.bf16.mxu0 %v4692
  %4756 = vmatpush1.bf16.msra.mxu0 %v4691
  %4757 = vmatprep.subr.bf16.mxu0 %v4694
  %4758 = vmatpush1.bf16.msra.mxu0 %v4693
  %4759 = vmatprep.subr.bf16.mxu0 %v4696
  %4760 = vmatpush1.bf16.msra.mxu0 %v4695
  %4761 = vmatprep.subr.bf16.mxu0 %v4698
  %4762 = vmatpush1.bf16.msra.mxu0 %v4697
  %4763 = vmatprep.subr.bf16.mxu0 %v4700
  %4764 = vmatpush1.bf16.msra.mxu0 %v4699
  %4765 = vmatprep.subr.bf16.mxu0 %v4702
  %4766 = vmatpush1.bf16.msra.mxu0 %v4701
  %4767 = vmatprep.subr.bf16.mxu0 %v4704
  %4768 = vmatpush1.bf16.msra.mxu0 %v4703
  %4769 = vmatprep.subr.bf16.mxu0 %v4706
  %4770 = vmatpush1.bf16.msra.mxu0 %v4705
  %4771 = vmatprep.mubr.bf16.mxu0 %v4545
  %4772 = vmatmul.mubr.bf16.gmra.mrb[0].mxu0 %v4544
  %v4773 = vpop.f32.mrb[0].mxu0
  %v4774 = vadd.f32 0.0, %v4773
  %v4775 = vpop.f32.mrb[0].mxu0
  %v4776 = vadd.f32 0.0, %v4775
  %v4777 = vpop.f32.mrb[0].mxu0
  %v4778 = vpop.f32.mrb[0].mxu0
  %4779 = vdwg.mxu0
  %v4812 = vunpack.c.l.b16 %v2432
  %v4813 = vunpack.c.h.b16 %v2432
  %v4814 = vunpack.c.l.b16 %v2433
  %v4815 = vunpack.c.h.b16 %v2433
  %v4816 = vunpack.c.l.b16 %v2434
  %v4817 = vunpack.c.h.b16 %v2434
  %v4818 = vunpack.c.l.b16 %v2435
  %v4819 = vunpack.c.h.b16 %v2435
  %v4820 = vunpack.c.l.b16 %v2436
  %v4821 = vunpack.c.h.b16 %v2436
  %v4822 = vunpack.c.l.b16 %v2437
  %v4823 = vunpack.c.h.b16 %v2437
  %v4824 = vunpack.c.l.b16 %v2438
  %v4825 = vunpack.c.h.b16 %v2438
  %v4826 = vunpack.c.l.b16 %v2439
  %v4827 = vunpack.c.h.b16 %v2439
  %v4828 = vunpack.c.l.b16 %v2440
  %v4829 = vunpack.c.h.b16 %v2440
  %v4830 = vunpack.c.l.b16 %v2441
  %v4831 = vunpack.c.h.b16 %v2441
  %v4832 = vunpack.c.l.b16 %v2442
  %v4833 = vunpack.c.h.b16 %v2442
  %v4834 = vunpack.c.l.b16 %v2443
  %v4835 = vunpack.c.h.b16 %v2443
  %v4836 = vunpack.c.l.b16 %v2444
  %v4837 = vunpack.c.h.b16 %v2444
  %v4838 = vunpack.c.l.b16 %v2445
  %v4839 = vunpack.c.h.b16 %v2445
  %v4840 = vunpack.c.l.b16 %v2446
  %v4841 = vunpack.c.h.b16 %v2446
  %v4842 = vunpack.c.l.b16 %v2447
  %v4843 = vunpack.c.h.b16 %v2447
  %v4844 = vunpack.c.l.b16 %v2448
  %v4845 = vunpack.c.h.b16 %v2448
  %v4846 = vunpack.c.l.b16 %v2449
  %v4847 = vunpack.c.h.b16 %v2449
  %v4848 = vunpack.c.l.b16 %v2450
  %v4849 = vunpack.c.h.b16 %v2450
  %v4850 = vunpack.c.l.b16 %v2451
  %v4851 = vunpack.c.h.b16 %v2451
  %v4852 = vunpack.c.l.b16 %v2452
  %v4853 = vunpack.c.h.b16 %v2452
  %v4854 = vunpack.c.l.b16 %v2453
  %v4855 = vunpack.c.h.b16 %v2453
  %v4856 = vunpack.c.l.b16 %v2454
  %v4857 = vunpack.c.h.b16 %v2454
  %v4858 = vunpack.c.l.b16 %v2455
  %v4859 = vunpack.c.h.b16 %v2455
  %v4860 = vunpack.c.l.b16 %v2456
  %v4861 = vunpack.c.h.b16 %v2456
  %v4862 = vunpack.c.l.b16 %v2457
  %v4863 = vunpack.c.h.b16 %v2457
  %v4864 = vunpack.c.l.b16 %v2458
  %v4865 = vunpack.c.h.b16 %v2458
  %v4866 = vunpack.c.l.b16 %v2459
  %v4867 = vunpack.c.h.b16 %v2459
  %v4868 = vunpack.c.l.b16 %v2460
  %v4869 = vunpack.c.h.b16 %v2460
  %v4870 = vunpack.c.l.b16 %v2461
  %v4871 = vunpack.c.h.b16 %v2461
  %v4872 = vunpack.c.l.b16 %v2462
  %v4873 = vunpack.c.h.b16 %v2462
  %v4874 = vunpack.c.l.b16 %v2463
  %v4875 = vunpack.c.h.b16 %v2463
  %v4876 = vpack.c.b16 %v4814, %v4812
  %v4877 = vpack.c.b16 %v4815, %v4813
  %v4878 = vpack.c.b16 %v4818, %v4816
  %v4879 = vpack.c.b16 %v4819, %v4817
  %v4880 = vpack.c.b16 %v4822, %v4820
  %v4881 = vpack.c.b16 %v4823, %v4821
  %v4882 = vpack.c.b16 %v4826, %v4824
  %v4883 = vpack.c.b16 %v4827, %v4825
  %v4884 = vpack.c.b16 %v4830, %v4828
  %v4885 = vpack.c.b16 %v4831, %v4829
  %v4886 = vpack.c.b16 %v4834, %v4832
  %v4887 = vpack.c.b16 %v4835, %v4833
  %v4888 = vpack.c.b16 %v4838, %v4836
  %v4889 = vpack.c.b16 %v4839, %v4837
  %v4890 = vpack.c.b16 %v4842, %v4840
  %v4891 = vpack.c.b16 %v4843, %v4841
  %v4892 = vpack.c.b16 %v4846, %v4844
  %v4893 = vpack.c.b16 %v4847, %v4845
  %v4894 = vpack.c.b16 %v4850, %v4848
  %v4895 = vpack.c.b16 %v4851, %v4849
  %v4896 = vpack.c.b16 %v4854, %v4852
  %v4897 = vpack.c.b16 %v4855, %v4853
  %v4898 = vpack.c.b16 %v4858, %v4856
  %v4899 = vpack.c.b16 %v4859, %v4857
  %v4900 = vpack.c.b16 %v4862, %v4860
  %v4901 = vpack.c.b16 %v4863, %v4861
  %v4902 = vpack.c.b16 %v4866, %v4864
  %v4903 = vpack.c.b16 %v4867, %v4865
  %v4904 = vpack.c.b16 %v4870, %v4868
  %v4905 = vpack.c.b16 %v4871, %v4869
  %v4906 = vpack.c.b16 %v4874, %v4872
  %v4907 = vpack.c.b16 %v4875, %v4873
  %4940 = vmatprep.subr.bf16.mxu0 %v4877
  %4941 = vmatpush1.bf16.msra.mxu0 %v4876
  %4942 = vmatprep.subr.bf16.mxu0 %v4879
  %4943 = vmatpush1.bf16.msra.mxu0 %v4878
  %4944 = vmatprep.subr.bf16.mxu0 %v4881
  %4945 = vmatpush1.bf16.msra.mxu0 %v4880
  %4946 = vmatprep.subr.bf16.mxu0 %v4883
  %4947 = vmatpush1.bf16.msra.mxu0 %v4882
  %4948 = vmatprep.subr.bf16.mxu0 %v4885
  %4949 = vmatpush1.bf16.msra.mxu0 %v4884
  %4950 = vmatprep.subr.bf16.mxu0 %v4887
  %4951 = vmatpush1.bf16.msra.mxu0 %v4886
  %4952 = vmatprep.subr.bf16.mxu0 %v4889
  %4953 = vmatpush1.bf16.msra.mxu0 %v4888
  %4954 = vmatprep.subr.bf16.mxu0 %v4891
  %4955 = vmatpush1.bf16.msra.mxu0 %v4890
  %4956 = vmatprep.subr.bf16.mxu0 %v4893
  %4957 = vmatpush1.bf16.msra.mxu0 %v4892
  %4958 = vmatprep.subr.bf16.mxu0 %v4895
  %4959 = vmatpush1.bf16.msra.mxu0 %v4894
  %4960 = vmatprep.subr.bf16.mxu0 %v4897
  %4961 = vmatpush1.bf16.msra.mxu0 %v4896
  %4962 = vmatprep.subr.bf16.mxu0 %v4899
  %4963 = vmatpush1.bf16.msra.mxu0 %v4898
  %4964 = vmatprep.subr.bf16.mxu0 %v4901
  %4965 = vmatpush1.bf16.msra.mxu0 %v4900
  %4966 = vmatprep.subr.bf16.mxu0 %v4903
  %4967 = vmatpush1.bf16.msra.mxu0 %v4902
  %4968 = vmatprep.subr.bf16.mxu0 %v4905
  %4969 = vmatpush1.bf16.msra.mxu0 %v4904
  %4970 = vmatprep.subr.bf16.mxu0 %v4907
  %4971 = vmatpush1.bf16.msra.mxu0 %v4906
  %4972 = vmatprep.mubr.bf16.mxu0 %v2431
  %4973 = vmatmul.mubr.bf16.gmra.mrb[0].mxu0 %v2430
  %v4974 = vpop.f32.mrb[0].mxu0
  %v4975 = vadd.f32 %v4774, %v4974
  %v4976 = vpop.f32.mrb[0].mxu0
  %v4977 = vadd.f32 %v4776, %v4976
  %v4978 = vpop.f32.mrb[0].mxu0
  %v4979 = vpop.f32.mrb[0].mxu0
  %4980 = vdwg.mxu0
  %s4981 = scalar_lea.vmem %s3, 1536
  %v4982 = vld [vmem:[%s4981] sm:$0xff]
  %v4983 = vld [vmem:[%s4981 + $0x8] sm:$0xff]
  %v4984 = vld [vmem:[%s4981 + $0x10] sm:$0xff]
  %v4985 = vld [vmem:[%s4981 + $0x18] sm:$0xff]
  %v4986 = vld [vmem:[%s4981 + $0x20] sm:$0xff]
  %v4987 = vld [vmem:[%s4981 + $0x28] sm:$0xff]
  %v4988 = vld [vmem:[%s4981 + $0x30] sm:$0xff]
  %v4989 = vld [vmem:[%s4981 + $0x38] sm:$0xff]
  %v4990 = vld [vmem:[%s4981 + $0x40] sm:$0xff]
  %v4991 = vld [vmem:[%s4981 + $0x48] sm:$0xff]
  %v4992 = vld [vmem:[%s4981 + $0x50] sm:$0xff]
  %v4993 = vld [vmem:[%s4981 + $0x58] sm:$0xff]
  %v4994 = vld [vmem:[%s4981 + $0x60] sm:$0xff]
  %v4995 = vld [vmem:[%s4981 + $0x68] sm:$0xff]
  %v4996 = vld [vmem:[%s4981 + $0x70] sm:$0xff]
  %v4997 = vld [vmem:[%s4981 + $0x78] sm:$0xff]
  %v4998 = vld [vmem:[%s4981 + $0x80] sm:$0xff]
  %v4999 = vld [vmem:[%s4981 + $0x88] sm:$0xff]
  %v5000 = vld [vmem:[%s4981 + $0x90] sm:$0xff]
  %v5001 = vld [vmem:[%s4981 + $0x98] sm:$0xff]
  %v5002 = vld [vmem:[%s4981 + $0xa0] sm:$0xff]
  %v5003 = vld [vmem:[%s4981 + $0xa8] sm:$0xff]
  %v5004 = vld [vmem:[%s4981 + $0xb0] sm:$0xff]
  %v5005 = vld [vmem:[%s4981 + $0xb8] sm:$0xff]
  %v5006 = vld [vmem:[%s4981 + $0xc0] sm:$0xff]
  %v5007 = vld [vmem:[%s4981 + $0xc8] sm:$0xff]
  %v5008 = vld [vmem:[%s4981 + $0xd0] sm:$0xff]
  %v5009 = vld [vmem:[%s4981 + $0xd8] sm:$0xff]
  %v5010 = vld [vmem:[%s4981 + $0xe0] sm:$0xff]
  %v5011 = vld [vmem:[%s4981 + $0xe8] sm:$0xff]
  %v5012 = vld [vmem:[%s4981 + $0xf0] sm:$0xff]
  %v5013 = vld [vmem:[%s4981 + $0xf8] sm:$0xff]
  %v5014 = vld [vmem:[%s4981 + $0x100] sm:$0xff]
  %v5015 = vld [vmem:[%s4981 + $0x108] sm:$0xff]
  %v5016 = vld [vmem:[%s4981 + $0x110] sm:$0xff]
  %v5017 = vld [vmem:[%s4981 + $0x118] sm:$0xff]
  %v5018 = vld [vmem:[%s4981 + $0x120] sm:$0xff]
  %v5019 = vld [vmem:[%s4981 + $0x128] sm:$0xff]
  %v5020 = vld [vmem:[%s4981 + $0x130] sm:$0xff]
  %v5021 = vld [vmem:[%s4981 + $0x138] sm:$0xff]
  %v5022 = vld [vmem:[%s4981 + $0x140] sm:$0xff]
  %v5023 = vld [vmem:[%s4981 + $0x148] sm:$0xff]
  %v5024 = vld [vmem:[%s4981 + $0x150] sm:$0xff]
  %v5025 = vld [vmem:[%s4981 + $0x158] sm:$0xff]
  %v5026 = vld [vmem:[%s4981 + $0x160] sm:$0xff]
  %v5027 = vld [vmem:[%s4981 + $0x168] sm:$0xff]
  %v5028 = vld [vmem:[%s4981 + $0x170] sm:$0xff]
  %v5029 = vld [vmem:[%s4981 + $0x178] sm:$0xff]
  %v5030 = vld [vmem:[%s4981 + $0x180] sm:$0xff]
  %v5031 = vld [vmem:[%s4981 + $0x188] sm:$0xff]
  %v5032 = vld [vmem:[%s4981 + $0x190] sm:$0xff]
  %v5033 = vld [vmem:[%s4981 + $0x198] sm:$0xff]
  %v5034 = vld [vmem:[%s4981 + $0x1a0] sm:$0xff]
  %v5035 = vld [vmem:[%s4981 + $0x1a8] sm:$0xff]
  %v5036 = vld [vmem:[%s4981 + $0x1b0] sm:$0xff]
  %v5037 = vld [vmem:[%s4981 + $0x1b8] sm:$0xff]
  %v5038 = vld [vmem:[%s4981 + $0x1c0] sm:$0xff]
  %v5039 = vld [vmem:[%s4981 + $0x1c8] sm:$0xff]
  %v5040 = vld [vmem:[%s4981 + $0x1d0] sm:$0xff]
  %v5041 = vld [vmem:[%s4981 + $0x1d8] sm:$0xff]
  %v5042 = vld [vmem:[%s4981 + $0x1e0] sm:$0xff]
  %v5043 = vld [vmem:[%s4981 + $0x1e8] sm:$0xff]
  %v5044 = vld [vmem:[%s4981 + $0x1f0] sm:$0xff]
  %v5045 = vld [vmem:[%s4981 + $0x1f8] sm:$0xff]
  %v5046 = vld [vmem:[%s4981 + $0x200] sm:$0xff]
  %v5047 = vld [vmem:[%s4981 + $0x208] sm:$0xff]
  %v5048 = vld [vmem:[%s4981 + $0x210] sm:$0xff]
  %v5049 = vld [vmem:[%s4981 + $0x218] sm:$0xff]
  %v5050 = vld [vmem:[%s4981 + $0x220] sm:$0xff]
  %v5051 = vld [vmem:[%s4981 + $0x228] sm:$0xff]
  %v5052 = vld [vmem:[%s4981 + $0x230] sm:$0xff]
  %v5053 = vld [vmem:[%s4981 + $0x238] sm:$0xff]
  %v5054 = vld [vmem:[%s4981 + $0x240] sm:$0xff]
  %v5055 = vld [vmem:[%s4981 + $0x248] sm:$0xff]
  %v5056 = vld [vmem:[%s4981 + $0x250] sm:$0xff]
  %v5057 = vld [vmem:[%s4981 + $0x258] sm:$0xff]
  %v5058 = vld [vmem:[%s4981 + $0x260] sm:$0xff]
  %v5059 = vld [vmem:[%s4981 + $0x268] sm:$0xff]
  %v5060 = vld [vmem:[%s4981 + $0x270] sm:$0xff]
  %v5061 = vld [vmem:[%s4981 + $0x278] sm:$0xff]
  %v5062 = vld [vmem:[%s4981 + $0x280] sm:$0xff]
  %v5063 = vld [vmem:[%s4981 + $0x288] sm:$0xff]
  %v5064 = vld [vmem:[%s4981 + $0x290] sm:$0xff]
  %v5065 = vld [vmem:[%s4981 + $0x298] sm:$0xff]
  %v5066 = vld [vmem:[%s4981 + $0x2a0] sm:$0xff]
  %v5067 = vld [vmem:[%s4981 + $0x2a8] sm:$0xff]
  %v5068 = vld [vmem:[%s4981 + $0x2b0] sm:$0xff]
  %v5069 = vld [vmem:[%s4981 + $0x2b8] sm:$0xff]
  %v5070 = vld [vmem:[%s4981 + $0x2c0] sm:$0xff]
  %v5071 = vld [vmem:[%s4981 + $0x2c8] sm:$0xff]
  %v5072 = vld [vmem:[%s4981 + $0x2d0] sm:$0xff]
  %v5073 = vld [vmem:[%s4981 + $0x2d8] sm:$0xff]
  %v5074 = vld [vmem:[%s4981 + $0x2e0] sm:$0xff]
  %v5075 = vld [vmem:[%s4981 + $0x2e8] sm:$0xff]
  %v5076 = vld [vmem:[%s4981 + $0x2f0] sm:$0xff]
  %v5077 = vld [vmem:[%s4981 + $0x2f8] sm:$0xff]
  %s5078 = scalar_lea.vmem %s4, 1536
  %v5079 = vld [vmem:[%s5078] sm:$0xff]
  %v5080 = vld [vmem:[%s5078 + $0x8] sm:$0xff]
  %v5081 = vld [vmem:[%s5078 + $0x10] sm:$0xff]
  %v5082 = vld [vmem:[%s5078 + $0x18] sm:$0xff]
  %v5083 = vld [vmem:[%s5078 + $0x20] sm:$0xff]
  %v5084 = vld [vmem:[%s5078 + $0x28] sm:$0xff]
  %v5085 = vld [vmem:[%s5078 + $0x30] sm:$0xff]
  %v5086 = vld [vmem:[%s5078 + $0x38] sm:$0xff]
  %v5087 = vld [vmem:[%s5078 + $0x40] sm:$0xff]
  %v5088 = vld [vmem:[%s5078 + $0x48] sm:$0xff]
  %v5089 = vld [vmem:[%s5078 + $0x50] sm:$0xff]
  %v5090 = vld [vmem:[%s5078 + $0x58] sm:$0xff]
  %v5091 = vld [vmem:[%s5078 + $0x60] sm:$0xff]
  %v5092 = vld [vmem:[%s5078 + $0x68] sm:$0xff]
  %v5093 = vld [vmem:[%s5078 + $0x70] sm:$0xff]
  %v5094 = vld [vmem:[%s5078 + $0x78] sm:$0xff]
  %v5095 = vld [vmem:[%s5078 + $0x80] sm:$0xff]
  %v5096 = vld [vmem:[%s5078 + $0x88] sm:$0xff]
  %v5097 = vld [vmem:[%s5078 + $0x90] sm:$0xff]
  %v5098 = vld [vmem:[%s5078 + $0x98] sm:$0xff]
  %v5099 = vld [vmem:[%s5078 + $0xa0] sm:$0xff]
  %v5100 = vld [vmem:[%s5078 + $0xa8] sm:$0xff]
  %v5101 = vld [vmem:[%s5078 + $0xb0] sm:$0xff]
  %v5102 = vld [vmem:[%s5078 + $0xb8] sm:$0xff]
  %v5103 = vld [vmem:[%s5078 + $0xc0] sm:$0xff]
  %v5104 = vld [vmem:[%s5078 + $0xc8] sm:$0xff]
  %v5105 = vld [vmem:[%s5078 + $0xd0] sm:$0xff]
  %v5106 = vld [vmem:[%s5078 + $0xd8] sm:$0xff]
  %v5107 = vld [vmem:[%s5078 + $0xe0] sm:$0xff]
  %v5108 = vld [vmem:[%s5078 + $0xe8] sm:$0xff]
  %v5109 = vld [vmem:[%s5078 + $0xf0] sm:$0xff]
  %v5110 = vld [vmem:[%s5078 + $0xf8] sm:$0xff]
  %v5111 = vld [vmem:[%s5078 + $0x100] sm:$0xff]
  %v5112 = vld [vmem:[%s5078 + $0x108] sm:$0xff]
  %v5113 = vld [vmem:[%s5078 + $0x110] sm:$0xff]
  %v5114 = vld [vmem:[%s5078 + $0x118] sm:$0xff]
  %v5115 = vld [vmem:[%s5078 + $0x120] sm:$0xff]
  %v5116 = vld [vmem:[%s5078 + $0x128] sm:$0xff]
  %v5117 = vld [vmem:[%s5078 + $0x130] sm:$0xff]
  %v5118 = vld [vmem:[%s5078 + $0x138] sm:$0xff]
  %v5119 = vld [vmem:[%s5078 + $0x140] sm:$0xff]
  %v5120 = vld [vmem:[%s5078 + $0x148] sm:$0xff]
  %v5121 = vld [vmem:[%s5078 + $0x150] sm:$0xff]
  %v5122 = vld [vmem:[%s5078 + $0x158] sm:$0xff]
  %v5123 = vld [vmem:[%s5078 + $0x160] sm:$0xff]
  %v5124 = vld [vmem:[%s5078 + $0x168] sm:$0xff]
  %v5125 = vld [vmem:[%s5078 + $0x170] sm:$0xff]
  %v5126 = vld [vmem:[%s5078 + $0x178] sm:$0xff]
  %v5127 = vld [vmem:[%s5078 + $0x180] sm:$0xff]
  %v5128 = vld [vmem:[%s5078 + $0x188] sm:$0xff]
  %v5129 = vld [vmem:[%s5078 + $0x190] sm:$0xff]
  %v5130 = vld [vmem:[%s5078 + $0x198] sm:$0xff]
  %v5131 = vld [vmem:[%s5078 + $0x1a0] sm:$0xff]
  %v5132 = vld [vmem:[%s5078 + $0x1a8] sm:$0xff]
  %v5133 = vld [vmem:[%s5078 + $0x1b0] sm:$0xff]
  %v5134 = vld [vmem:[%s5078 + $0x1b8] sm:$0xff]
  %v5135 = vld [vmem:[%s5078 + $0x1c0] sm:$0xff]
  %v5136 = vld [vmem:[%s5078 + $0x1c8] sm:$0xff]
  %v5137 = vld [vmem:[%s5078 + $0x1d0] sm:$0xff]
  %v5138 = vld [vmem:[%s5078 + $0x1d8] sm:$0xff]
  %v5139 = vld [vmem:[%s5078 + $0x1e0] sm:$0xff]
  %v5140 = vld [vmem:[%s5078 + $0x1e8] sm:$0xff]
  %v5141 = vld [vmem:[%s5078 + $0x1f0] sm:$0xff]
  %v5142 = vld [vmem:[%s5078 + $0x1f8] sm:$0xff]
  %v5143 = vld [vmem:[%s5078 + $0x200] sm:$0xff]
  %v5144 = vld [vmem:[%s5078 + $0x208] sm:$0xff]
  %v5145 = vld [vmem:[%s5078 + $0x210] sm:$0xff]
  %v5146 = vld [vmem:[%s5078 + $0x218] sm:$0xff]
  %v5147 = vld [vmem:[%s5078 + $0x220] sm:$0xff]
  %v5148 = vld [vmem:[%s5078 + $0x228] sm:$0xff]
  %v5149 = vld [vmem:[%s5078 + $0x230] sm:$0xff]
  %v5150 = vld [vmem:[%s5078 + $0x238] sm:$0xff]
  %v5151 = vld [vmem:[%s5078 + $0x240] sm:$0xff]
  %v5152 = vld [vmem:[%s5078 + $0x248] sm:$0xff]
  %v5153 = vld [vmem:[%s5078 + $0x250] sm:$0xff]
  %v5154 = vld [vmem:[%s5078 + $0x258] sm:$0xff]
  %v5155 = vld [vmem:[%s5078 + $0x260] sm:$0xff]
  %v5156 = vld [vmem:[%s5078 + $0x268] sm:$0xff]
  %v5157 = vld [vmem:[%s5078 + $0x270] sm:$0xff]
  %v5158 = vld [vmem:[%s5078 + $0x278] sm:$0xff]
  %v5159 = vld [vmem:[%s5078 + $0x280] sm:$0xff]
  %v5160 = vld [vmem:[%s5078 + $0x288] sm:$0xff]
  %v5161 = vld [vmem:[%s5078 + $0x290] sm:$0xff]
  %v5162 = vld [vmem:[%s5078 + $0x298] sm:$0xff]
  %v5163 = vld [vmem:[%s5078 + $0x2a0] sm:$0xff]
  %v5164 = vld [vmem:[%s5078 + $0x2a8] sm:$0xff]
  %v5165 = vld [vmem:[%s5078 + $0x2b0] sm:$0xff]
  %v5166 = vld [vmem:[%s5078 + $0x2b8] sm:$0xff]
  %v5167 = vld [vmem:[%s5078 + $0x2c0] sm:$0xff]
  %v5168 = vld [vmem:[%s5078 + $0x2c8] sm:$0xff]
  %v5169 = vld [vmem:[%s5078 + $0x2d0] sm:$0xff]
  %v5170 = vld [vmem:[%s5078 + $0x2d8] sm:$0xff]
  %v5171 = vld [vmem:[%s5078 + $0x2e0] sm:$0xff]
  %v5172 = vld [vmem:[%s5078 + $0x2e8] sm:$0xff]
  %v5173 = vld [vmem:[%s5078 + $0x2f0] sm:$0xff]
  %v5174 = vld [vmem:[%s5078 + $0x2f8] sm:$0xff]
  %s5175 = scalar_lea.vmem %s5, 8
  %v5176 = vld [vmem:[%s5175] sm:$0xf]
  %s5177 = scalar_lea.vmem %s6, 4
  %v5178 = vld [vmem:[%s5177] sm:$0x3]
  %s5179 = scalar_lea.vmem %s7, 4
  %v5180 = vld [vmem:[%s5179] sm:$0x3]
  %v5181 = vld [vmem:[#allocation2] sm:$0xff]
  %v5182 = vld [vmem:[#allocation2 + $0x8] sm:$0xff]
  %v5183 = vld [vmem:[#allocation2 + $0x10] sm:$0xff]
  %v5184 = vld [vmem:[#allocation2 + $0x18] sm:$0xff]
  %v5185 = vld [vmem:[#allocation2 + $0x20] sm:$0xff]
  %v5186 = vld [vmem:[#allocation2 + $0x28] sm:$0xff]
  %v5187 = vld [vmem:[#allocation2 + $0x30] sm:$0xff]
  %v5188 = vld [vmem:[#allocation2 + $0x38] sm:$0xff]
  %v5189 = vpack.c.bf16 %v5183, %v5181
  %v5190 = vpack.c.bf16 %v5184, %v5182
  %v5191 = vpack.c.bf16 %v5187, %v5185
  %v5192 = vpack.c.bf16 %v5188, %v5186
  %v5289 = vunpack.c.l.b16 %v4982
  %v5290 = vunpack.c.h.b16 %v4982
  %v5291 = vunpack.c.l.b16 %v4983
  %v5292 = vunpack.c.h.b16 %v4983
  %v5293 = vunpack.c.l.b16 %v4984
  %v5294 = vunpack.c.h.b16 %v4984
  %v5295 = vunpack.c.l.b16 %v4985
  %v5296 = vunpack.c.h.b16 %v4985
  %v5297 = vunpack.c.l.b16 %v4986
  %v5298 = vunpack.c.h.b16 %v4986
  %v5299 = vunpack.c.l.b16 %v4987
  %v5300 = vunpack.c.h.b16 %v4987
  %v5301 = vunpack.c.l.b16 %v4988
  %v5302 = vunpack.c.h.b16 %v4988
  %v5303 = vunpack.c.l.b16 %v4989
  %v5304 = vunpack.c.h.b16 %v4989
  %v5305 = vunpack.c.l.b16 %v4990
  %v5306 = vunpack.c.h.b16 %v4990
  %v5307 = vunpack.c.l.b16 %v4991
  %v5308 = vunpack.c.h.b16 %v4991
  %v5309 = vunpack.c.l.b16 %v4992
  %v5310 = vunpack.c.h.b16 %v4992
  %v5311 = vunpack.c.l.b16 %v4993
  %v5312 = vunpack.c.h.b16 %v4993
  %v5313 = vunpack.c.l.b16 %v4994
  %v5314 = vunpack.c.h.b16 %v4994
  %v5315 = vunpack.c.l.b16 %v4995
  %v5316 = vunpack.c.h.b16 %v4995
  %v5317 = vunpack.c.l.b16 %v4996
  %v5318 = vunpack.c.h.b16 %v4996
  %v5319 = vunpack.c.l.b16 %v4997
  %v5320 = vunpack.c.h.b16 %v4997
  %v5321 = vunpack.c.l.b16 %v4998
  %v5322 = vunpack.c.h.b16 %v4998
  %v5323 = vunpack.c.l.b16 %v4999
  %v5324 = vunpack.c.h.b16 %v4999
  %v5325 = vunpack.c.l.b16 %v5000
  %v5326 = vunpack.c.h.b16 %v5000
  %v5327 = vunpack.c.l.b16 %v5001
  %v5328 = vunpack.c.h.b16 %v5001
  %v5329 = vunpack.c.l.b16 %v5002
  %v5330 = vunpack.c.h.b16 %v5002
  %v5331 = vunpack.c.l.b16 %v5003
  %v5332 = vunpack.c.h.b16 %v5003
  %v5333 = vunpack.c.l.b16 %v5004
  %v5334 = vunpack.c.h.b16 %v5004
  %v5335 = vunpack.c.l.b16 %v5005
  %v5336 = vunpack.c.h.b16 %v5005
  %v5337 = vunpack.c.l.b16 %v5006
  %v5338 = vunpack.c.h.b16 %v5006
  %v5339 = vunpack.c.l.b16 %v5007
  %v5340 = vunpack.c.h.b16 %v5007
  %v5341 = vunpack.c.l.b16 %v5008
  %v5342 = vunpack.c.h.b16 %v5008
  %v5343 = vunpack.c.l.b16 %v5009
  %v5344 = vunpack.c.h.b16 %v5009
  %v5345 = vunpack.c.l.b16 %v5010
  %v5346 = vunpack.c.h.b16 %v5010
  %v5347 = vunpack.c.l.b16 %v5011
  %v5348 = vunpack.c.h.b16 %v5011
  %v5349 = vunpack.c.l.b16 %v5012
  %v5350 = vunpack.c.h.b16 %v5012
  %v5351 = vunpack.c.l.b16 %v5013
  %v5352 = vunpack.c.h.b16 %v5013
  %v5353 = vunpack.c.l.b16 %v5014
  %v5354 = vunpack.c.h.b16 %v5014
  %v5355 = vunpack.c.l.b16 %v5015
  %v5356 = vunpack.c.h.b16 %v5015
  %v5357 = vunpack.c.l.b16 %v5016
  %v5358 = vunpack.c.h.b16 %v5016
  %v5359 = vunpack.c.l.b16 %v5017
  %v5360 = vunpack.c.h.b16 %v5017
  %v5361 = vunpack.c.l.b16 %v5018
  %v5362 = vunpack.c.h.b16 %v5018
  %v5363 = vunpack.c.l.b16 %v5019
  %v5364 = vunpack.c.h.b16 %v5019
  %v5365 = vunpack.c.l.b16 %v5020
  %v5366 = vunpack.c.h.b16 %v5020
  %v5367 = vunpack.c.l.b16 %v5021
  %v5368 = vunpack.c.h.b16 %v5021
  %v5369 = vunpack.c.l.b16 %v5022
  %v5370 = vunpack.c.h.b16 %v5022
  %v5371 = vunpack.c.l.b16 %v5023
  %v5372 = vunpack.c.h.b16 %v5023
  %v5373 = vunpack.c.l.b16 %v5024
  %v5374 = vunpack.c.h.b16 %v5024
  %v5375 = vunpack.c.l.b16 %v5025
  %v5376 = vunpack.c.h.b16 %v5025
  %v5377 = vunpack.c.l.b16 %v5026
  %v5378 = vunpack.c.h.b16 %v5026
  %v5379 = vunpack.c.l.b16 %v5027
  %v5380 = vunpack.c.h.b16 %v5027
  %v5381 = vunpack.c.l.b16 %v5028
  %v5382 = vunpack.c.h.b16 %v5028
  %v5383 = vunpack.c.l.b16 %v5029
  %v5384 = vunpack.c.h.b16 %v5029
  %v5385 = vunpack.c.l.b16 %v5030
  %v5386 = vunpack.c.h.b16 %v5030
  %v5387 = vunpack.c.l.b16 %v5031
  %v5388 = vunpack.c.h.b16 %v5031
  %v5389 = vunpack.c.l.b16 %v5032
  %v5390 = vunpack.c.h.b16 %v5032
  %v5391 = vunpack.c.l.b16 %v5033
  %v5392 = vunpack.c.h.b16 %v5033
  %v5393 = vunpack.c.l.b16 %v5034
  %v5394 = vunpack.c.h.b16 %v5034
  %v5395 = vunpack.c.l.b16 %v5035
  %v5396 = vunpack.c.h.b16 %v5035
  %v5397 = vunpack.c.l.b16 %v5036
  %v5398 = vunpack.c.h.b16 %v5036
  %v5399 = vunpack.c.l.b16 %v5037
  %v5400 = vunpack.c.h.b16 %v5037
  %v5401 = vunpack.c.l.b16 %v5038
  %v5402 = vunpack.c.h.b16 %v5038
  %v5403 = vunpack.c.l.b16 %v5039
  %v5404 = vunpack.c.h.b16 %v5039
  %v5405 = vunpack.c.l.b16 %v5040
  %v5406 = vunpack.c.h.b16 %v5040
  %v5407 = vunpack.c.l.b16 %v5041
  %v5408 = vunpack.c.h.b16 %v5041
  %v5409 = vunpack.c.l.b16 %v5042
  %v5410 = vunpack.c.h.b16 %v5042
  %v5411 = vunpack.c.l.b16 %v5043
  %v5412 = vunpack.c.h.b16 %v5043
  %v5413 = vunpack.c.l.b16 %v5044
  %v5414 = vunpack.c.h.b16 %v5044
  %v5415 = vunpack.c.l.b16 %v5045
  %v5416 = vunpack.c.h.b16 %v5045
  %v5417 = vunpack.c.l.b16 %v5046
  %v5418 = vunpack.c.h.b16 %v5046
  %v5419 = vunpack.c.l.b16 %v5047
  %v5420 = vunpack.c.h.b16 %v5047
  %v5421 = vunpack.c.l.b16 %v5048
  %v5422 = vunpack.c.h.b16 %v5048
  %v5423 = vunpack.c.l.b16 %v5049
  %v5424 = vunpack.c.h.b16 %v5049
  %v5425 = vunpack.c.l.b16 %v5050
  %v5426 = vunpack.c.h.b16 %v5050
  %v5427 = vunpack.c.l.b16 %v5051
  %v5428 = vunpack.c.h.b16 %v5051
  %v5429 = vunpack.c.l.b16 %v5052
  %v5430 = vunpack.c.h.b16 %v5052
  %v5431 = vunpack.c.l.b16 %v5053
  %v5432 = vunpack.c.h.b16 %v5053
  %v5433 = vunpack.c.l.b16 %v5054
  %v5434 = vunpack.c.h.b16 %v5054
  %v5435 = vunpack.c.l.b16 %v5055
  %v5436 = vunpack.c.h.b16 %v5055
  %v5437 = vunpack.c.l.b16 %v5056
  %v5438 = vunpack.c.h.b16 %v5056
  %v5439 = vunpack.c.l.b16 %v5057
  %v5440 = vunpack.c.h.b16 %v5057
  %v5441 = vunpack.c.l.b16 %v5058
  %v5442 = vunpack.c.h.b16 %v5058
  %v5443 = vunpack.c.l.b16 %v5059
  %v5444 = vunpack.c.h.b16 %v5059
  %v5445 = vunpack.c.l.b16 %v5060
  %v5446 = vunpack.c.h.b16 %v5060
  %v5447 = vunpack.c.l.b16 %v5061
  %v5448 = vunpack.c.h.b16 %v5061
  %v5449 = vunpack.c.l.b16 %v5062
  %v5450 = vunpack.c.h.b16 %v5062
  %v5451 = vunpack.c.l.b16 %v5063
  %v5452 = vunpack.c.h.b16 %v5063
  %v5453 = vunpack.c.l.b16 %v5064
  %v5454 = vunpack.c.h.b16 %v5064
  %v5455 = vunpack.c.l.b16 %v5065
  %v5456 = vunpack.c.h.b16 %v5065
  %v5457 = vunpack.c.l.b16 %v5066
  %v5458 = vunpack.c.h.b16 %v5066
  %v5459 = vunpack.c.l.b16 %v5067
  %v5460 = vunpack.c.h.b16 %v5067
  %v5461 = vunpack.c.l.b16 %v5068
  %v5462 = vunpack.c.h.b16 %v5068
  %v5463 = vunpack.c.l.b16 %v5069
  %v5464 = vunpack.c.h.b16 %v5069
  %v5465 = vunpack.c.l.b16 %v5070
  %v5466 = vunpack.c.h.b16 %v5070
  %v5467 = vunpack.c.l.b16 %v5071
  %v5468 = vunpack.c.h.b16 %v5071
  %v5469 = vunpack.c.l.b16 %v5072
  %v5470 = vunpack.c.h.b16 %v5072
  %v5471 = vunpack.c.l.b16 %v5073
  %v5472 = vunpack.c.h.b16 %v5073
  %v5473 = vunpack.c.l.b16 %v5074
  %v5474 = vunpack.c.h.b16 %v5074
  %v5475 = vunpack.c.l.b16 %v5075
  %v5476 = vunpack.c.h.b16 %v5075
  %v5477 = vunpack.c.l.b16 %v5076
  %v5478 = vunpack.c.h.b16 %v5076
  %v5479 = vunpack.c.l.b16 %v5077
  %v5480 = vunpack.c.h.b16 %v5077
  %v5481 = vpack.c.b16 %v5295, %v5289
  %v5482 = vpack.c.b16 %v5296, %v5290
  %v5483 = vpack.c.b16 %v5297, %v5291
  %v5484 = vpack.c.b16 %v5298, %v5292
  %v5485 = vpack.c.b16 %v5299, %v5293
  %v5486 = vpack.c.b16 %v5300, %v5294
  %v5487 = vpack.c.b16 %v5307, %v5301
  %v5488 = vpack.c.b16 %v5308, %v5302
  %v5489 = vpack.c.b16 %v5309, %v5303
  %v5490 = vpack.c.b16 %v5310, %v5304
  %v5491 = vpack.c.b16 %v5311, %v5305
  %v5492 = vpack.c.b16 %v5312, %v5306
  %v5493 = vpack.c.b16 %v5319, %v5313
  %v5494 = vpack.c.b16 %v5320, %v5314
  %v5495 = vpack.c.b16 %v5321, %v5315
  %v5496 = vpack.c.b16 %v5322, %v5316
  %v5497 = vpack.c.b16 %v5323, %v5317
  %v5498 = vpack.c.b16 %v5324, %v5318
  %v5499 = vpack.c.b16 %v5331, %v5325
  %v5500 = vpack.c.b16 %v5332, %v5326
  %v5501 = vpack.c.b16 %v5333, %v5327
  %v5502 = vpack.c.b16 %v5334, %v5328
  %v5503 = vpack.c.b16 %v5335, %v5329
  %v5504 = vpack.c.b16 %v5336, %v5330
  %v5505 = vpack.c.b16 %v5343, %v5337
  %v5506 = vpack.c.b16 %v5344, %v5338
  %v5507 = vpack.c.b16 %v5345, %v5339
  %v5508 = vpack.c.b16 %v5346, %v5340
  %v5509 = vpack.c.b16 %v5347, %v5341
  %v5510 = vpack.c.b16 %v5348, %v5342
  %v5511 = vpack.c.b16 %v5355, %v5349
  %v5512 = vpack.c.b16 %v5356, %v5350
  %v5513 = vpack.c.b16 %v5357, %v5351
  %v5514 = vpack.c.b16 %v5358, %v5352
  %v5515 = vpack.c.b16 %v5359, %v5353
  %v5516 = vpack.c.b16 %v5360, %v5354
  %v5517 = vpack.c.b16 %v5367, %v5361
  %v5518 = vpack.c.b16 %v5368, %v5362
  %v5519 = vpack.c.b16 %v5369, %v5363
  %v5520 = vpack.c.b16 %v5370, %v5364
  %v5521 = vpack.c.b16 %v5371, %v5365
  %v5522 = vpack.c.b16 %v5372, %v5366
  %v5523 = vpack.c.b16 %v5379, %v5373
  %v5524 = vpack.c.b16 %v5380, %v5374
  %v5525 = vpack.c.b16 %v5381, %v5375
  %v5526 = vpack.c.b16 %v5382, %v5376
  %v5527 = vpack.c.b16 %v5383, %v5377
  %v5528 = vpack.c.b16 %v5384, %v5378
  %v5529 = vpack.c.b16 %v5391, %v5385
  %v5530 = vpack.c.b16 %v5392, %v5386
  %v5531 = vpack.c.b16 %v5393, %v5387
  %v5532 = vpack.c.b16 %v5394, %v5388
  %v5533 = vpack.c.b16 %v5395, %v5389
  %v5534 = vpack.c.b16 %v5396, %v5390
  %v5535 = vpack.c.b16 %v5403, %v5397
  %v5536 = vpack.c.b16 %v5404, %v5398
  %v5537 = vpack.c.b16 %v5405, %v5399
  %v5538 = vpack.c.b16 %v5406, %v5400
  %v5539 = vpack.c.b16 %v5407, %v5401
  %v5540 = vpack.c.b16 %v5408, %v5402
  %v5541 = vpack.c.b16 %v5415, %v5409
  %v5542 = vpack.c.b16 %v5416, %v5410
  %v5543 = vpack.c.b16 %v5417, %v5411
  %v5544 = vpack.c.b16 %v5418, %v5412
  %v5545 = vpack.c.b16 %v5419, %v5413
  %v5546 = vpack.c.b16 %v5420, %v5414
  %v5547 = vpack.c.b16 %v5427, %v5421
  %v5548 = vpack.c.b16 %v5428, %v5422
  %v5549 = vpack.c.b16 %v5429, %v5423
  %v5550 = vpack.c.b16 %v5430, %v5424
  %v5551 = vpack.c.b16 %v5431, %v5425
  %v5552 = vpack.c.b16 %v5432, %v5426
  %v5553 = vpack.c.b16 %v5439, %v5433
  %v5554 = vpack.c.b16 %v5440, %v5434
  %v5555 = vpack.c.b16 %v5441, %v5435
  %v5556 = vpack.c.b16 %v5442, %v5436
  %v5557 = vpack.c.b16 %v5443, %v5437
  %v5558 = vpack.c.b16 %v5444, %v5438
  %v5559 = vpack.c.b16 %v5451, %v5445
  %v5560 = vpack.c.b16 %v5452, %v5446
  %v5561 = vpack.c.b16 %v5453, %v5447
  %v5562 = vpack.c.b16 %v5454, %v5448
  %v5563 = vpack.c.b16 %v5455, %v5449
  %v5564 = vpack.c.b16 %v5456, %v5450
  %v5565 = vpack.c.b16 %v5463, %v5457
  %v5566 = vpack.c.b16 %v5464, %v5458
  %v5567 = vpack.c.b16 %v5465, %v5459
  %v5568 = vpack.c.b16 %v5466, %v5460
  %v5569 = vpack.c.b16 %v5467, %v5461
  %v5570 = vpack.c.b16 %v5468, %v5462
  %v5571 = vpack.c.b16 %v5475, %v5469
  %v5572 = vpack.c.b16 %v5476, %v5470
  %v5573 = vpack.c.b16 %v5477, %v5471
  %v5574 = vpack.c.b16 %v5478, %v5472
  %v5575 = vpack.c.b16 %v5479, %v5473
  %v5576 = vpack.c.b16 %v5480, %v5474
  %5673 = vmatprep.subr.bf16.mxu0 %v5482
  %5674 = vmatpush1.bf16.msra.mxu0 %v5481
  %5675 = vmatprep.subr.bf16.mxu0 %v5488
  %5676 = vmatpush1.bf16.msra.mxu0 %v5487
  %5677 = vmatprep.subr.bf16.mxu0 %v5494
  %5678 = vmatpush1.bf16.msra.mxu0 %v5493
  %5679 = vmatprep.subr.bf16.mxu0 %v5500
  %5680 = vmatpush1.bf16.msra.mxu0 %v5499
  %5681 = vmatprep.subr.bf16.mxu0 %v5506
  %5682 = vmatpush1.bf16.msra.mxu0 %v5505
  %5683 = vmatprep.subr.bf16.mxu0 %v5512
  %5684 = vmatpush1.bf16.msra.mxu0 %v5511
  %5685 = vmatprep.subr.bf16.mxu0 %v5518
  %5686 = vmatpush1.bf16.msra.mxu0 %v5517
  %5687 = vmatprep.subr.bf16.mxu0 %v5524
  %5688 = vmatpush1.bf16.msra.mxu0 %v5523
  %5689 = vmatprep.subr.bf16.mxu0 %v5530
  %5690 = vmatpush1.bf16.msra.mxu0 %v5529
  %5691 = vmatprep.subr.bf16.mxu0 %v5536
  %5692 = vmatpush1.bf16.msra.mxu0 %v5535
  %5693 = vmatprep.subr.bf16.mxu0 %v5542
  %5694 = vmatpush1.bf16.msra.mxu0 %v5541
  %5695 = vmatprep.subr.bf16.mxu0 %v5548
  %5696 = vmatpush1.bf16.msra.mxu0 %v5547
  %5697 = vmatprep.subr.bf16.mxu0 %v5554
  %5698 = vmatpush1.bf16.msra.mxu0 %v5553
  %5699 = vmatprep.subr.bf16.mxu0 %v5560
  %5700 = vmatpush1.bf16.msra.mxu0 %v5559
  %5701 = vmatprep.subr.bf16.mxu0 %v5566
  %5702 = vmatpush1.bf16.msra.mxu0 %v5565
  %5703 = vmatprep.subr.bf16.mxu0 %v5572
  %5704 = vmatpush1.bf16.msra.mxu0 %v5571
  %5705 = vmatprep.mubr.bf16.mxu0 %v5190
  %5706 = vmatmul.mubr.bf16.gmra.mrb[0].mxu0 %v5189
  %v5707 = vpop.f32.mrb[0].mxu0
  %v5708 = vadd.f32 0.0, %v5707
  %v5709 = vpop.f32.mrb[0].mxu0
  %v5710 = vadd.f32 0.0, %v5709
  %v5711 = vpop.f32.mrb[0].mxu0
  %v5712 = vadd.f32 0.0, %v5711
  %v5713 = vpop.f32.mrb[0].mxu0
  %v5714 = vadd.f32 0.0, %v5713
  %5715 = vmatprep.mubr.bf16.mxu0 %v5192
  %5716 = vmatmul.mubr.bf16.gmra.mrb[0].mxu0 %v5191
  %v5717 = vpop.f32.mrb[0].mxu0
  %v5718 = vadd.f32 0.0, %v5717
  %v5719 = vpop.f32.mrb[0].mxu0
  %v5720 = vadd.f32 0.0, %v5719
  %v5721 = vpop.f32.mrb[0].mxu0
  %v5722 = vadd.f32 0.0, %v5721
  %v5723 = vpop.f32.mrb[0].mxu0
  %v5724 = vadd.f32 0.0, %v5723
  %5725 = vdwg.mxu0
  %5726 = vmatprep.subr.bf16.mxu0 %v5484
  %5727 = vmatpush1.bf16.msra.mxu0 %v5483
  %5728 = vmatprep.subr.bf16.mxu0 %v5490
  %5729 = vmatpush1.bf16.msra.mxu0 %v5489
  %5730 = vmatprep.subr.bf16.mxu0 %v5496
  %5731 = vmatpush1.bf16.msra.mxu0 %v5495
  %5732 = vmatprep.subr.bf16.mxu0 %v5502
  %5733 = vmatpush1.bf16.msra.mxu0 %v5501
  %5734 = vmatprep.subr.bf16.mxu0 %v5508
  %5735 = vmatpush1.bf16.msra.mxu0 %v5507
  %5736 = vmatprep.subr.bf16.mxu0 %v5514
  %5737 = vmatpush1.bf16.msra.mxu0 %v5513
  %5738 = vmatprep.subr.bf16.mxu0 %v5520
  %5739 = vmatpush1.bf16.msra.mxu0 %v5519
  %5740 = vmatprep.subr.bf16.mxu0 %v5526
  %5741 = vmatpush1.bf16.msra.mxu0 %v5525
  %5742 = vmatprep.subr.bf16.mxu0 %v5532
  %5743 = vmatpush1.bf16.msra.mxu0 %v5531
  %5744 = vmatprep.subr.bf16.mxu0 %v5538
  %5745 = vmatpush1.bf16.msra.mxu0 %v5537
  %5746 = vmatprep.subr.bf16.mxu0 %v5544
  %5747 = vmatpush1.bf16.msra.mxu0 %v5543
  %5748 = vmatprep.subr.bf16.mxu0 %v5550
  %5749 = vmatpush1.bf16.msra.mxu0 %v5549
  %5750 = vmatprep.subr.bf16.mxu0 %v5556
  %5751 = vmatpush1.bf16.msra.mxu0 %v5555
  %5752 = vmatprep.subr.bf16.mxu0 %v5562
  %5753 = vmatpush1.bf16.msra.mxu0 %v5561
  %5754 = vmatprep.subr.bf16.mxu0 %v5568
  %5755 = vmatpush1.bf16.msra.mxu0 %v5567
  %5756 = vmatprep.subr.bf16.mxu0 %v5574
  %5757 = vmatpush1.bf16.msra.mxu0 %v5573
  %5758 = vmatprep.mubr.bf16.mxu0 %v5190
  %5759 = vmatmul.mubr.bf16.gmra.mrb[0].mxu0 %v5189
  %v5760 = vpop.f32.mrb[0].mxu0
  %v5761 = vadd.f32 0.0, %v5760
  %v5762 = vpop.f32.mrb[0].mxu0
  %v5763 = vadd.f32 0.0, %v5762
  %v5764 = vpop.f32.mrb[0].mxu0
  %v5765 = vadd.f32 0.0, %v5764
  %v5766 = vpop.f32.mrb[0].mxu0
  %v5767 = vadd.f32 0.0, %v5766
  %5768 = vmatprep.mubr.bf16.mxu0 %v5192
  %5769 = vmatmul.mubr.bf16.gmra.mrb[0].mxu0 %v5191
  %v5770 = vpop.f32.mrb[0].mxu0
  %v5771 = vadd.f32 0.0, %v5770
  %v5772 = vpop.f32.mrb[0].mxu0
  %v5773 = vadd.f32 0.0, %v5772
  %v5774 = vpop.f32.mrb[0].mxu0
  %v5775 = vadd.f32 0.0, %v5774
  %v5776 = vpop.f32.mrb[0].mxu0
  %v5777 = vadd.f32 0.0, %v5776
  %5778 = vdwg.mxu0
  %5779 = vmatprep.subr.bf16.mxu0 %v5486
  %5780 = vmatpush1.bf16.msra.mxu0 %v5485
  %5781 = vmatprep.subr.bf16.mxu0 %v5492
  %5782 = vmatpush1.bf16.msra.mxu0 %v5491
  %5783 = vmatprep.subr.bf16.mxu0 %v5498
  %5784 = vmatpush1.bf16.msra.mxu0 %v5497
  %5785 = vmatprep.subr.bf16.mxu0 %v5504
  %5786 = vmatpush1.bf16.msra.mxu0 %v5503
  %5787 = vmatprep.subr.bf16.mxu0 %v5510
  %5788 = vmatpush1.bf16.msra.mxu0 %v5509
  %5789 = vmatprep.subr.bf16.mxu0 %v5516
  %5790 = vmatpush1.bf16.msra.mxu0 %v5515
  %5791 = vmatprep.subr.bf16.mxu0 %v5522
  %5792 = vmatpush1.bf16.msra.mxu0 %v5521
  %5793 = vmatprep.subr.bf16.mxu0 %v5528
  %5794 = vmatpush1.bf16.msra.mxu0 %v5527
  %5795 = vmatprep.subr.bf16.mxu0 %v5534
  %5796 = vmatpush1.bf16.msra.mxu0 %v5533
  %5797 = vmatprep.subr.bf16.mxu0 %v5540
  %5798 = vmatpush1.bf16.msra.mxu0 %v5539
  %5799 = vmatprep.subr.bf16.mxu0 %v5546
  %5800 = vmatpush1.bf16.msra.mxu0 %v5545
  %5801 = vmatprep.subr.bf16.mxu0 %v5552
  %5802 = vmatpush1.bf16.msra.mxu0 %v5551
  %5803 = vmatprep.subr.bf16.mxu0 %v5558
  %5804 = vmatpush1.bf16.msra.mxu0 %v5557
  %5805 = vmatprep.subr.bf16.mxu0 %v5564
  %5806 = vmatpush1.bf16.msra.mxu0 %v5563
  %5807 = vmatprep.subr.bf16.mxu0 %v5570
  %5808 = vmatpush1.bf16.msra.mxu0 %v5569
  %5809 = vmatprep.subr.bf16.mxu0 %v5576
  %5810 = vmatpush1.bf16.msra.mxu0 %v5575
  %5811 = vmatprep.mubr.bf16.mxu0 %v5190
  %5812 = vmatmul.mubr.bf16.gmra.mrb[0].mxu0 %v5189
  %v5813 = vpop.f32.mrb[0].mxu0
  %v5814 = vadd.f32 0.0, %v5813
  %v5815 = vpop.f32.mrb[0].mxu0
  %v5816 = vadd.f32 0.0, %v5815
  %v5817 = vpop.f32.mrb[0].mxu0
  %v5818 = vadd.f32 0.0, %v5817
  %v5819 = vpop.f32.mrb[0].mxu0
  %v5820 = vadd.f32 0.0, %v5819
  %5821 = vmatprep.mubr.bf16.mxu0 %v5192
  %5822 = vmatmul.mubr.bf16.gmra.mrb[0].mxu0 %v5191
  %v5823 = vpop.f32.mrb[0].mxu0
  %v5824 = vadd.f32 0.0, %v5823
  %v5825 = vpop.f32.mrb[0].mxu0
  %v5826 = vadd.f32 0.0, %v5825
  %v5827 = vpop.f32.mrb[0].mxu0
  %v5828 = vadd.f32 0.0, %v5827
  %v5829 = vpop.f32.mrb[0].mxu0
  %v5830 = vadd.f32 0.0, %v5829
  %5831 = vdwg.mxu0
  %v5928 = vunpack.c.l.b16 %v5079
  %v5929 = vunpack.c.h.b16 %v5079
  %v5930 = vunpack.c.l.b16 %v5080
  %v5931 = vunpack.c.h.b16 %v5080
  %v5932 = vunpack.c.l.b16 %v5081
  %v5933 = vunpack.c.h.b16 %v5081
  %v5934 = vunpack.c.l.b16 %v5082
  %v5935 = vunpack.c.h.b16 %v5082
  %v5936 = vunpack.c.l.b16 %v5083
  %v5937 = vunpack.c.h.b16 %v5083
  %v5938 = vunpack.c.l.b16 %v5084
  %v5939 = vunpack.c.h.b16 %v5084
  %v5940 = vunpack.c.l.b16 %v5085
  %v5941 = vunpack.c.h.b16 %v5085
  %v5942 = vunpack.c.l.b16 %v5086
  %v5943 = vunpack.c.h.b16 %v5086
  %v5944 = vunpack.c.l.b16 %v5087
  %v5945 = vunpack.c.h.b16 %v5087
  %v5946 = vunpack.c.l.b16 %v5088
  %v5947 = vunpack.c.h.b16 %v5088
  %v5948 = vunpack.c.l.b16 %v5089
  %v5949 = vunpack.c.h.b16 %v5089
  %v5950 = vunpack.c.l.b16 %v5090
  %v5951 = vunpack.c.h.b16 %v5090
  %v5952 = vunpack.c.l.b16 %v5091
  %v5953 = vunpack.c.h.b16 %v5091
  %v5954 = vunpack.c.l.b16 %v5092
  %v5955 = vunpack.c.h.b16 %v5092
  %v5956 = vunpack.c.l.b16 %v5093
  %v5957 = vunpack.c.h.b16 %v5093
  %v5958 = vunpack.c.l.b16 %v5094
  %v5959 = vunpack.c.h.b16 %v5094
  %v5960 = vunpack.c.l.b16 %v5095
  %v5961 = vunpack.c.h.b16 %v5095
  %v5962 = vunpack.c.l.b16 %v5096
  %v5963 = vunpack.c.h.b16 %v5096
  %v5964 = vunpack.c.l.b16 %v5097
  %v5965 = vunpack.c.h.b16 %v5097
  %v5966 = vunpack.c.l.b16 %v5098
  %v5967 = vunpack.c.h.b16 %v5098
  %v5968 = vunpack.c.l.b16 %v5099
  %v5969 = vunpack.c.h.b16 %v5099
  %v5970 = vunpack.c.l.b16 %v5100
  %v5971 = vunpack.c.h.b16 %v5100
  %v5972 = vunpack.c.l.b16 %v5101
  %v5973 = vunpack.c.h.b16 %v5101
  %v5974 = vunpack.c.l.b16 %v5102
  %v5975 = vunpack.c.h.b16 %v5102
  %v5976 = vunpack.c.l.b16 %v5103
  %v5977 = vunpack.c.h.b16 %v5103
  %v5978 = vunpack.c.l.b16 %v5104
  %v5979 = vunpack.c.h.b16 %v5104
  %v5980 = vunpack.c.l.b16 %v5105
  %v5981 = vunpack.c.h.b16 %v5105
  %v5982 = vunpack.c.l.b16 %v5106
  %v5983 = vunpack.c.h.b16 %v5106
  %v5984 = vunpack.c.l.b16 %v5107
  %v5985 = vunpack.c.h.b16 %v5107
  %v5986 = vunpack.c.l.b16 %v5108
  %v5987 = vunpack.c.h.b16 %v5108
  %v5988 = vunpack.c.l.b16 %v5109
  %v5989 = vunpack.c.h.b16 %v5109
  %v5990 = vunpack.c.l.b16 %v5110
  %v5991 = vunpack.c.h.b16 %v5110
  %v5992 = vunpack.c.l.b16 %v5111
  %v5993 = vunpack.c.h.b16 %v5111
  %v5994 = vunpack.c.l.b16 %v5112
  %v5995 = vunpack.c.h.b16 %v5112
  %v5996 = vunpack.c.l.b16 %v5113
  %v5997 = vunpack.c.h.b16 %v5113
  %v5998 = vunpack.c.l.b16 %v5114
  %v5999 = vunpack.c.h.b16 %v5114
  %v6000 = vunpack.c.l.b16 %v5115
  %v6001 = vunpack.c.h.b16 %v5115
  %v6002 = vunpack.c.l.b16 %v5116
  %v6003 = vunpack.c.h.b16 %v5116
  %v6004 = vunpack.c.l.b16 %v5117
  %v6005 = vunpack.c.h.b16 %v5117
  %v6006 = vunpack.c.l.b16 %v5118
  %v6007 = vunpack.c.h.b16 %v5118
  %v6008 = vunpack.c.l.b16 %v5119
  %v6009 = vunpack.c.h.b16 %v5119
  %v6010 = vunpack.c.l.b16 %v5120
  %v6011 = vunpack.c.h.b16 %v5120
  %v6012 = vunpack.c.l.b16 %v5121
  %v6013 = vunpack.c.h.b16 %v5121
  %v6014 = vunpack.c.l.b16 %v5122
  %v6015 = vunpack.c.h.b16 %v5122
  %v6016 = vunpack.c.l.b16 %v5123
  %v6017 = vunpack.c.h.b16 %v5123
  %v6018 = vunpack.c.l.b16 %v5124
  %v6019 = vunpack.c.h.b16 %v5124
  %v6020 = vunpack.c.l.b16 %v5125
  %v6021 = vunpack.c.h.b16 %v5125
  %v6022 = vunpack.c.l.b16 %v5126
  %v6023 = vunpack.c.h.b16 %v5126
  %v6024 = vunpack.c.l.b16 %v5127
  %v6025 = vunpack.c.h.b16 %v5127
  %v6026 = vunpack.c.l.b16 %v5128
  %v6027 = vunpack.c.h.b16 %v5128
  %v6028 = vunpack.c.l.b16 %v5129
  %v6029 = vunpack.c.h.b16 %v5129
  %v6030 = vunpack.c.l.b16 %v5130
  %v6031 = vunpack.c.h.b16 %v5130
  %v6032 = vunpack.c.l.b16 %v5131
  %v6033 = vunpack.c.h.b16 %v5131
  %v6034 = vunpack.c.l.b16 %v5132
  %v6035 = vunpack.c.h.b16 %v5132
  %v6036 = vunpack.c.l.b16 %v5133
  %v6037 = vunpack.c.h.b16 %v5133
  %v6038 = vunpack.c.l.b16 %v5134
  %v6039 = vunpack.c.h.b16 %v5134
  %v6040 = vunpack.c.l.b16 %v5135
  %v6041 = vunpack.c.h.b16 %v5135
  %v6042 = vunpack.c.l.b16 %v5136
  %v6043 = vunpack.c.h.b16 %v5136
  %v6044 = vunpack.c.l.b16 %v5137
  %v6045 = vunpack.c.h.b16 %v5137
  %v6046 = vunpack.c.l.b16 %v5138
  %v6047 = vunpack.c.h.b16 %v5138
  %v6048 = vunpack.c.l.b16 %v5139
  %v6049 = vunpack.c.h.b16 %v5139
  %v6050 = vunpack.c.l.b16 %v5140
  %v6051 = vunpack.c.h.b16 %v5140
  %v6052 = vunpack.c.l.b16 %v5141
  %v6053 = vunpack.c.h.b16 %v5141
  %v6054 = vunpack.c.l.b16 %v5142
  %v6055 = vunpack.c.h.b16 %v5142
  %v6056 = vunpack.c.l.b16 %v5143
  %v6057 = vunpack.c.h.b16 %v5143
  %v6058 = vunpack.c.l.b16 %v5144
  %v6059 = vunpack.c.h.b16 %v5144
  %v6060 = vunpack.c.l.b16 %v5145
  %v6061 = vunpack.c.h.b16 %v5145
  %v6062 = vunpack.c.l.b16 %v5146
  %v6063 = vunpack.c.h.b16 %v5146
  %v6064 = vunpack.c.l.b16 %v5147
  %v6065 = vunpack.c.h.b16 %v5147
  %v6066 = vunpack.c.l.b16 %v5148
  %v6067 = vunpack.c.h.b16 %v5148
  %v6068 = vunpack.c.l.b16 %v5149
  %v6069 = vunpack.c.h.b16 %v5149
  %v6070 = vunpack.c.l.b16 %v5150
  %v6071 = vunpack.c.h.b16 %v5150
  %v6072 = vunpack.c.l.b16 %v5151
  %v6073 = vunpack.c.h.b16 %v5151
  %v6074 = vunpack.c.l.b16 %v5152
  %v6075 = vunpack.c.h.b16 %v5152
  %v6076 = vunpack.c.l.b16 %v5153
  %v6077 = vunpack.c.h.b16 %v5153
  %v6078 = vunpack.c.l.b16 %v5154
  %v6079 = vunpack.c.h.b16 %v5154
  %v6080 = vunpack.c.l.b16 %v5155
  %v6081 = vunpack.c.h.b16 %v5155
  %v6082 = vunpack.c.l.b16 %v5156
  %v6083 = vunpack.c.h.b16 %v5156
  %v6084 = vunpack.c.l.b16 %v5157
  %v6085 = vunpack.c.h.b16 %v5157
  %v6086 = vunpack.c.l.b16 %v5158
  %v6087 = vunpack.c.h.b16 %v5158
  %v6088 = vunpack.c.l.b16 %v5159
  %v6089 = vunpack.c.h.b16 %v5159
  %v6090 = vunpack.c.l.b16 %v5160
  %v6091 = vunpack.c.h.b16 %v5160
  %v6092 = vunpack.c.l.b16 %v5161
  %v6093 = vunpack.c.h.b16 %v5161
  %v6094 = vunpack.c.l.b16 %v5162
  %v6095 = vunpack.c.h.b16 %v5162
  %v6096 = vunpack.c.l.b16 %v5163
  %v6097 = vunpack.c.h.b16 %v5163
  %v6098 = vunpack.c.l.b16 %v5164
  %v6099 = vunpack.c.h.b16 %v5164
  %v6100 = vunpack.c.l.b16 %v5165
  %v6101 = vunpack.c.h.b16 %v5165
  %v6102 = vunpack.c.l.b16 %v5166
  %v6103 = vunpack.c.h.b16 %v5166
  %v6104 = vunpack.c.l.b16 %v5167
  %v6105 = vunpack.c.h.b16 %v5167
  %v6106 = vunpack.c.l.b16 %v5168
  %v6107 = vunpack.c.h.b16 %v5168
  %v6108 = vunpack.c.l.b16 %v5169
  %v6109 = vunpack.c.h.b16 %v5169
  %v6110 = vunpack.c.l.b16 %v5170
  %v6111 = vunpack.c.h.b16 %v5170
  %v6112 = vunpack.c.l.b16 %v5171
  %v6113 = vunpack.c.h.b16 %v5171
  %v6114 = vunpack.c.l.b16 %v5172
  %v6115 = vunpack.c.h.b16 %v5172
  %v6116 = vunpack.c.l.b16 %v5173
  %v6117 = vunpack.c.h.b16 %v5173
  %v6118 = vunpack.c.l.b16 %v5174
  %v6119 = vunpack.c.h.b16 %v5174
  %v6120 = vpack.c.b16 %v5934, %v5928
  %v6121 = vpack.c.b16 %v5935, %v5929
  %v6122 = vpack.c.b16 %v5936, %v5930
  %v6123 = vpack.c.b16 %v5937, %v5931
  %v6124 = vpack.c.b16 %v5938, %v5932
  %v6125 = vpack.c.b16 %v5939, %v5933
  %v6126 = vpack.c.b16 %v5946, %v5940
  %v6127 = vpack.c.b16 %v5947, %v5941
  %v6128 = vpack.c.b16 %v5948, %v5942
  %v6129 = vpack.c.b16 %v5949, %v5943
  %v6130 = vpack.c.b16 %v5950, %v5944
  %v6131 = vpack.c.b16 %v5951, %v5945
  %v6132 = vpack.c.b16 %v5958, %v5952
  %v6133 = vpack.c.b16 %v5959, %v5953
  %v6134 = vpack.c.b16 %v5960, %v5954
  %v6135 = vpack.c.b16 %v5961, %v5955
  %v6136 = vpack.c.b16 %v5962, %v5956
  %v6137 = vpack.c.b16 %v5963, %v5957
  %v6138 = vpack.c.b16 %v5970, %v5964
  %v6139 = vpack.c.b16 %v5971, %v5965
  %v6140 = vpack.c.b16 %v5972, %v5966
  %v6141 = vpack.c.b16 %v5973, %v5967
  %v6142 = vpack.c.b16 %v5974, %v5968
  %v6143 = vpack.c.b16 %v5975, %v5969
  %v6144 = vpack.c.b16 %v5982, %v5976
  %v6145 = vpack.c.b16 %v5983, %v5977
  %v6146 = vpack.c.b16 %v5984, %v5978
  %v6147 = vpack.c.b16 %v5985, %v5979
  %v6148 = vpack.c.b16 %v5986, %v5980
  %v6149 = vpack.c.b16 %v5987, %v5981
  %v6150 = vpack.c.b16 %v5994, %v5988
  %v6151 = vpack.c.b16 %v5995, %v5989
  %v6152 = vpack.c.b16 %v5996, %v5990
  %v6153 = vpack.c.b16 %v5997, %v5991
  %v6154 = vpack.c.b16 %v5998, %v5992
  %v6155 = vpack.c.b16 %v5999, %v5993
  %v6156 = vpack.c.b16 %v6006, %v6000
  %v6157 = vpack.c.b16 %v6007, %v6001
  %v6158 = vpack.c.b16 %v6008, %v6002
  %v6159 = vpack.c.b16 %v6009, %v6003
  %v6160 = vpack.c.b16 %v6010, %v6004
  %v6161 = vpack.c.b16 %v6011, %v6005
  %v6162 = vpack.c.b16 %v6018, %v6012
  %v6163 = vpack.c.b16 %v6019, %v6013
  %v6164 = vpack.c.b16 %v6020, %v6014
  %v6165 = vpack.c.b16 %v6021, %v6015
  %v6166 = vpack.c.b16 %v6022, %v6016
  %v6167 = vpack.c.b16 %v6023, %v6017
  %v6168 = vpack.c.b16 %v6030, %v6024
  %v6169 = vpack.c.b16 %v6031, %v6025
  %v6170 = vpack.c.b16 %v6032, %v6026
  %v6171 = vpack.c.b16 %v6033, %v6027
  %v6172 = vpack.c.b16 %v6034, %v6028
  %v6173 = vpack.c.b16 %v6035, %v6029
  %v6174 = vpack.c.b16 %v6042, %v6036
  %v6175 = vpack.c.b16 %v6043, %v6037
  %v6176 = vpack.c.b16 %v6044, %v6038
  %v6177 = vpack.c.b16 %v6045, %v6039
  %v6178 = vpack.c.b16 %v6046, %v6040
  %v6179 = vpack.c.b16 %v6047, %v6041
  %v6180 = vpack.c.b16 %v6054, %v6048
  %v6181 = vpack.c.b16 %v6055, %v6049
  %v6182 = vpack.c.b16 %v6056, %v6050
  %v6183 = vpack.c.b16 %v6057, %v6051
  %v6184 = vpack.c.b16 %v6058, %v6052
  %v6185 = vpack.c.b16 %v6059, %v6053
  %v6186 = vpack.c.b16 %v6066, %v6060
  %v6187 = vpack.c.b16 %v6067, %v6061
  %v6188 = vpack.c.b16 %v6068, %v6062
  %v6189 = vpack.c.b16 %v6069, %v6063
  %v6190 = vpack.c.b16 %v6070, %v6064
  %v6191 = vpack.c.b16 %v6071, %v6065
  %v6192 = vpack.c.b16 %v6078, %v6072
  %v6193 = vpack.c.b16 %v6079, %v6073
  %v6194 = vpack.c.b16 %v6080, %v6074
  %v6195 = vpack.c.b16 %v6081, %v6075
  %v6196 = vpack.c.b16 %v6082, %v6076
  %v6197 = vpack.c.b16 %v6083, %v6077
  %v6198 = vpack.c.b16 %v6090, %v6084
  %v6199 = vpack.c.b16 %v6091, %v6085
  %v6200 = vpack.c.b16 %v6092, %v6086
  %v6201 = vpack.c.b16 %v6093, %v6087
  %v6202 = vpack.c.b16 %v6094, %v6088
  %v6203 = vpack.c.b16 %v6095, %v6089
  %v6204 = vpack.c.b16 %v6102, %v6096
  %v6205 = vpack.c.b16 %v6103, %v6097
  %v6206 = vpack.c.b16 %v6104, %v6098
  %v6207 = vpack.c.b16 %v6105, %v6099
  %v6208 = vpack.c.b16 %v6106, %v6100
  %v6209 = vpack.c.b16 %v6107, %v6101
  %v6210 = vpack.c.b16 %v6114, %v6108
  %v6211 = vpack.c.b16 %v6115, %v6109
  %v6212 = vpack.c.b16 %v6116, %v6110
  %v6213 = vpack.c.b16 %v6117, %v6111
  %v6214 = vpack.c.b16 %v6118, %v6112
  %v6215 = vpack.c.b16 %v6119, %v6113
  %6312 = vmatprep.subr.bf16.mxu0 %v6121
  %6313 = vmatpush1.bf16.msra.mxu0 %v6120
  %6314 = vmatprep.subr.bf16.mxu0 %v6127
  %6315 = vmatpush1.bf16.msra.mxu0 %v6126
  %6316 = vmatprep.subr.bf16.mxu0 %v6133
  %6317 = vmatpush1.bf16.msra.mxu0 %v6132
  %6318 = vmatprep.subr.bf16.mxu0 %v6139
  %6319 = vmatpush1.bf16.msra.mxu0 %v6138
  %6320 = vmatprep.subr.bf16.mxu0 %v6145
  %6321 = vmatpush1.bf16.msra.mxu0 %v6144
  %6322 = vmatprep.subr.bf16.mxu0 %v6151
  %6323 = vmatpush1.bf16.msra.mxu0 %v6150
  %6324 = vmatprep.subr.bf16.mxu0 %v6157
  %6325 = vmatpush1.bf16.msra.mxu0 %v6156
  %6326 = vmatprep.subr.bf16.mxu0 %v6163
  %6327 = vmatpush1.bf16.msra.mxu0 %v6162
  %6328 = vmatprep.subr.bf16.mxu0 %v6169
  %6329 = vmatpush1.bf16.msra.mxu0 %v6168
  %6330 = vmatprep.subr.bf16.mxu0 %v6175
  %6331 = vmatpush1.bf16.msra.mxu0 %v6174
  %6332 = vmatprep.subr.bf16.mxu0 %v6181
  %6333 = vmatpush1.bf16.msra.mxu0 %v6180
  %6334 = vmatprep.subr.bf16.mxu0 %v6187
  %6335 = vmatpush1.bf16.msra.mxu0 %v6186
  %6336 = vmatprep.subr.bf16.mxu0 %v6193
  %6337 = vmatpush1.bf16.msra.mxu0 %v6192
  %6338 = vmatprep.subr.bf16.mxu0 %v6199
  %6339 = vmatpush1.bf16.msra.mxu0 %v6198
  %6340 = vmatprep.subr.bf16.mxu0 %v6205
  %6341 = vmatpush1.bf16.msra.mxu0 %v6204
  %6342 = vmatprep.subr.bf16.mxu0 %v6211
  %6343 = vmatpush1.bf16.msra.mxu0 %v6210
  %6344 = vmatprep.mubr.bf16.mxu0 0
  %6345 = vmatmul.mubr.bf16.gmra.mrb[0].mxu0 0
  %v6346 = vpop.f32.mrb[0].mxu0
  %v6347 = vadd.f32 0.0, %v6346
  %v6348 = vpop.f32.mrb[0].mxu0
  %v6349 = vadd.f32 0.0, %v6348
  %v6350 = vpop.f32.mrb[0].mxu0
  %v6351 = vpop.f32.mrb[0].mxu0
  %6352 = vdwg.mxu0
  %6353 = vmatprep.subr.bf16.mxu0 %v6123
  %6354 = vmatpush1.bf16.msra.mxu0 %v6122
  %6355 = vmatprep.subr.bf16.mxu0 %v6129
  %6356 = vmatpush1.bf16.msra.mxu0 %v6128
  %6357 = vmatprep.subr.bf16.mxu0 %v6135
  %6358 = vmatpush1.bf16.msra.mxu0 %v6134
  %6359 = vmatprep.subr.bf16.mxu0 %v6141
  %6360 = vmatpush1.bf16.msra.mxu0 %v6140
  %6361 = vmatprep.subr.bf16.mxu0 %v6147
  %6362 = vmatpush1.bf16.msra.mxu0 %v6146
  %6363 = vmatprep.subr.bf16.mxu0 %v6153
  %6364 = vmatpush1.bf16.msra.mxu0 %v6152
  %6365 = vmatprep.subr.bf16.mxu0 %v6159
  %6366 = vmatpush1.bf16.msra.mxu0 %v6158
  %6367 = vmatprep.subr.bf16.mxu0 %v6165
  %6368 = vmatpush1.bf16.msra.mxu0 %v6164
  %6369 = vmatprep.subr.bf16.mxu0 %v6171
  %6370 = vmatpush1.bf16.msra.mxu0 %v6170
  %6371 = vmatprep.subr.bf16.mxu0 %v6177
  %6372 = vmatpush1.bf16.msra.mxu0 %v6176
  %6373 = vmatprep.subr.bf16.mxu0 %v6183
  %6374 = vmatpush1.bf16.msra.mxu0 %v6182
  %6375 = vmatprep.subr.bf16.mxu0 %v6189
  %6376 = vmatpush1.bf16.msra.mxu0 %v6188
  %6377 = vmatprep.subr.bf16.mxu0 %v6195
  %6378 = vmatpush1.bf16.msra.mxu0 %v6194
  %6379 = vmatprep.subr.bf16.mxu0 %v6201
  %6380 = vmatpush1.bf16.msra.mxu0 %v6200
  %6381 = vmatprep.subr.bf16.mxu0 %v6207
  %6382 = vmatpush1.bf16.msra.mxu0 %v6206
  %6383 = vmatprep.subr.bf16.mxu0 %v6213
  %6384 = vmatpush1.bf16.msra.mxu0 %v6212
  %6385 = vmatprep.mubr.bf16.mxu0 0
  %6386 = vmatmul.mubr.bf16.gmra.mrb[0].mxu0 0
  %v6387 = vpop.f32.mrb[0].mxu0
  %v6388 = vadd.f32 0.0, %v6387
  %v6389 = vpop.f32.mrb[0].mxu0
  %v6390 = vadd.f32 0.0, %v6389
  %v6391 = vpop.f32.mrb[0].mxu0
  %v6392 = vpop.f32.mrb[0].mxu0
  %6393 = vdwg.mxu0
  %6394 = vmatprep.subr.bf16.mxu0 %v6125
  %6395 = vmatpush1.bf16.msra.mxu0 %v6124
  %6396 = vmatprep.subr.bf16.mxu0 %v6131
  %6397 = vmatpush1.bf16.msra.mxu0 %v6130
  %6398 = vmatprep.subr.bf16.mxu0 %v6137
  %6399 = vmatpush1.bf16.msra.mxu0 %v6136
  %6400 = vmatprep.subr.bf16.mxu0 %v6143
  %6401 = vmatpush1.bf16.msra.mxu0 %v6142
  %6402 = vmatprep.subr.bf16.mxu0 %v6149
  %6403 = vmatpush1.bf16.msra.mxu0 %v6148
  %6404 = vmatprep.subr.bf16.mxu0 %v6155
  %6405 = vmatpush1.bf16.msra.mxu0 %v6154
  %6406 = vmatprep.subr.bf16.mxu0 %v6161
  %6407 = vmatpush1.bf16.msra.mxu0 %v6160
  %6408 = vmatprep.subr.bf16.mxu0 %v6167
  %6409 = vmatpush1.bf16.msra.mxu0 %v6166
  %6410 = vmatprep.subr.bf16.mxu0 %v6173
  %6411 = vmatpush1.bf16.msra.mxu0 %v6172
  %6412 = vmatprep.subr.bf16.mxu0 %v6179
  %6413 = vmatpush1.bf16.msra.mxu0 %v6178
  %6414 = vmatprep.subr.bf16.mxu0 %v6185
  %6415 = vmatpush1.bf16.msra.mxu0 %v6184
  %6416 = vmatprep.subr.bf16.mxu0 %v6191
  %6417 = vmatpush1.bf16.msra.mxu0 %v6190
  %6418 = vmatprep.subr.bf16.mxu0 %v6197
  %6419 = vmatpush1.bf16.msra.mxu0 %v6196
  %6420 = vmatprep.subr.bf16.mxu0 %v6203
  %6421 = vmatpush1.bf16.msra.mxu0 %v6202
  %6422 = vmatprep.subr.bf16.mxu0 %v6209
  %6423 = vmatpush1.bf16.msra.mxu0 %v6208
  %6424 = vmatprep.subr.bf16.mxu0 %v6215
  %6425 = vmatpush1.bf16.msra.mxu0 %v6214
  %6426 = vmatprep.mubr.bf16.mxu0 0
  %6427 = vmatmul.mubr.bf16.gmra.mrb[0].mxu0 0
  %v6428 = vpop.f32.mrb[0].mxu0
  %v6429 = vadd.f32 0.0, %v6428
  %v6430 = vpop.f32.mrb[0].mxu0
  %v6431 = vadd.f32 0.0, %v6430
  %v6432 = vpop.f32.mrb[0].mxu0
  %v6433 = vpop.f32.mrb[0].mxu0
  %6434 = vdwg.mxu0
  %v6435 = vadd.f32 %v5708, %v6347
  %v6436 = vadd.f32 %v5710, %v6349
  %v6437 = vadd.f32 %v5761, %v6388
  %v6438 = vadd.f32 %v5763, %v6390
  %v6440 = vlaneseq
  %v6441 = vshrl.u32 %v6440, 7
  %v6442 = vsub.s32 0, %v6441
  %v6443 = vrot.slane %v5176, %v6442
  %v6444 = vlaneseq
  %v6445 = vshrl.u32 %v6444, 7
  %v6446 = vsub.s32 1, %v6445
  %v6447 = vrot.slane %v5176, %v6446
  %v6448 = vlaneseq
  %v6449 = vshrl.u32 %v6448, 7
  %v6450 = vsub.s32 2, %v6449
  %v6451 = vrot.slane %v5176, %v6450
  %v6452 = vlaneseq
  %v6453 = vshrl.u32 %v6452, 7
  %v6454 = vsub.s32 3, %v6453
  %v6455 = vrot.slane %v5176, %v6454
  %v6460 = vadd.f32 %v6435, %v6443
  %v6461 = vadd.f32 %v6436, %v6447
  %v6462 = vadd.f32 %v6437, %v6451
  %v6463 = vadd.f32 %v6438, %v6455
  %v6464 = vxor.u32 %v6460, 2147483648
  %v6465 = vxor.u32 %v6461, 2147483648
  %v6466 = vxor.u32 %v6462, 2147483648
  %v6467 = vxor.u32 %v6463, 2147483648
  %v6468 = vmul.f32 %v6464, 1.442695
  %v6469 = vpow.pop %v6468
  %v6470 = vmul.f32 %v6465, 1.442695
  %v6471 = vpow.pop %v6470
  %v6472 = vmul.f32 %v6466, 1.442695
  %v6473 = vpow.pop %v6472
  %v6474 = vmul.f32 %v6467, 1.442695
  %v6475 = vpow.pop %v6474
  %v6476 = vadd.f32 %v6469, 1.0
  %v6477 = vadd.f32 %v6471, 1.0
  %v6478 = vadd.f32 %v6473, 1.0
  %v6479 = vadd.f32 %v6475, 1.0
  %v6480 = vrcp.pop %v6476
  %v6481 = vmul.f32 1.0, %v6480
  %v6482 = vrcp.pop %v6477
  %v6483 = vmul.f32 1.0, %v6482
  %v6484 = vrcp.pop %v6478
  %v6485 = vmul.f32 1.0, %v6484
  %v6486 = vrcp.pop %v6479
  %v6487 = vmul.f32 1.0, %v6486
  %v6489 = vlaneseq
  %v6490 = vshrl.u32 %v6489, 7
  %v6491 = vsub.s32 0, %v6490
  %v6492 = vrot.slane %v5178, %v6491
  %v6493 = vlaneseq
  %v6494 = vshrl.u32 %v6493, 7
  %v6495 = vsub.s32 1, %v6494
  %v6496 = vrot.slane %v5178, %v6495
  %v6499 = vadd.f32 %v5814, %v6492
  %v6500 = vadd.f32 %v5816, %v6496
  %v6502 = vlaneseq
  %v6503 = vshrl.u32 %v6502, 7
  %v6504 = vsub.s32 0, %v6503
  %v6505 = vrot.slane %v5180, %v6504
  %v6506 = vlaneseq
  %v6507 = vshrl.u32 %v6506, 7
  %v6508 = vsub.s32 1, %v6507
  %v6509 = vrot.slane %v5180, %v6508
  %v6512 = vadd.f32 %v6429, %v6505
  %v6513 = vadd.f32 %v6431, %v6509
  %v6514 = vmul.f32 %v6481, %v6512
  %v6515 = vmul.f32 %v6483, %v6513
  %v6516 = vadd.f32 %v6499, %v6514
  %v6517 = vadd.f32 %v6500, %v6515
  %v6518 = vtanh.pop %v6516
  %v6519 = vtanh.pop %v6517
  %v6520 = vsub.f32 1.0, %v6485
  %v6521 = vsub.f32 1.0, %v6487
  %v6522 = vmul.f32 %v6520, %v6518
  %v6523 = vmul.f32 %v6521, %v6519
  %v6524 = vmul.f32 %v6485, 0.0
  %v6525 = vmul.f32 %v6487, 0.0
  %v6526 = vadd.f32 %v6522, %v6524
  %v6527 = vadd.f32 %v6523, %v6525
  %6528 = vst [vmem:[#allocation2] sm:$0xff] %v6526
  %6529 = vst [vmem:[#allocation2 + $0x8] sm:$0xff] %v6527
  %v6530 = vpack.c.bf16 %v6526, %v6526
  %v6531 = vpack.c.bf16 %v6527, %v6527
  %6532 = vmatprep.subr.bf16.mxu0 %v6121
  %6533 = vmatpush1.bf16.msra.mxu0 %v6120
  %6534 = vmatprep.subr.bf16.mxu0 %v6127
  %6535 = vmatpush1.bf16.msra.mxu0 %v6126
  %6536 = vmatprep.subr.bf16.mxu0 %v6133
  %6537 = vmatpush1.bf16.msra.mxu0 %v6132
  %6538 = vmatprep.subr.bf16.mxu0 %v6139
  %6539 = vmatpush1.bf16.msra.mxu0 %v6138
  %6540 = vmatprep.subr.bf16.mxu0 %v6145
  %6541 = vmatpush1.bf16.msra.mxu0 %v6144
  %6542 = vmatprep.subr.bf16.mxu0 %v6151
  %6543 = vmatpush1.bf16.msra.mxu0 %v6150
  %6544 = vmatprep.subr.bf16.mxu0 %v6157
  %6545 = vmatpush1.bf16.msra.mxu0 %v6156
  %6546 = vmatprep.subr.bf16.mxu0 %v6163
  %6547 = vmatpush1.bf16.msra.mxu0 %v6162
  %6548 = vmatprep.subr.bf16.mxu0 %v6169
  %6549 = vmatpush1.bf16.msra.mxu0 %v6168
  %6550 = vmatprep.subr.bf16.mxu0 %v6175
  %6551 = vmatpush1.bf16.msra.mxu0 %v6174
  %6552 = vmatprep.subr.bf16.mxu0 %v6181
  %6553 = vmatpush1.bf16.msra.mxu0 %v6180
  %6554 = vmatprep.subr.bf16.mxu0 %v6187
  %6555 = vmatpush1.bf16.msra.mxu0 %v6186
  %6556 = vmatprep.subr.bf16.mxu0 %v6193
  %6557 = vmatpush1.bf16.msra.mxu0 %v6192
  %6558 = vmatprep.subr.bf16.mxu0 %v6199
  %6559 = vmatpush1.bf16.msra.mxu0 %v6198
  %6560 = vmatprep.subr.bf16.mxu0 %v6205
  %6561 = vmatpush1.bf16.msra.mxu0 %v6204
  %6562 = vmatprep.subr.bf16.mxu0 %v6211
  %6563 = vmatpush1.bf16.msra.mxu0 %v6210
  %6564 = vmatprep.mubr.bf16.mxu0 %v6531
  %6565 = vmatmul.mubr.bf16.gmra.mrb[0].mxu0 %v6530
  %v6566 = vpop.f32.mrb[0].mxu0
  %v6567 = vadd.f32 0.0, %v6566
  %v6568 = vpop.f32.mrb[0].mxu0
  %v6569 = vadd.f32 0.0, %v6568
  %v6570 = vpop.f32.mrb[0].mxu0
  %v6571 = vpop.f32.mrb[0].mxu0
  %6572 = vdwg.mxu0
  %6573 = vmatprep.subr.bf16.mxu0 %v6123
  %6574 = vmatpush1.bf16.msra.mxu0 %v6122
  %6575 = vmatprep.subr.bf16.mxu0 %v6129
  %6576 = vmatpush1.bf16.msra.mxu0 %v6128
  %6577 = vmatprep.subr.bf16.mxu0 %v6135
  %6578 = vmatpush1.bf16.msra.mxu0 %v6134
  %6579 = vmatprep.subr.bf16.mxu0 %v6141
  %6580 = vmatpush1.bf16.msra.mxu0 %v6140
  %6581 = vmatprep.subr.bf16.mxu0 %v6147
  %6582 = vmatpush1.bf16.msra.mxu0 %v6146
  %6583 = vmatprep.subr.bf16.mxu0 %v6153
  %6584 = vmatpush1.bf16.msra.mxu0 %v6152
  %6585 = vmatprep.subr.bf16.mxu0 %v6159
  %6586 = vmatpush1.bf16.msra.mxu0 %v6158
  %6587 = vmatprep.subr.bf16.mxu0 %v6165
  %6588 = vmatpush1.bf16.msra.mxu0 %v6164
  %6589 = vmatprep.subr.bf16.mxu0 %v6171
  %6590 = vmatpush1.bf16.msra.mxu0 %v6170
  %6591 = vmatprep.subr.bf16.mxu0 %v6177
  %6592 = vmatpush1.bf16.msra.mxu0 %v6176
  %6593 = vmatprep.subr.bf16.mxu0 %v6183
  %6594 = vmatpush1.bf16.msra.mxu0 %v6182
  %6595 = vmatprep.subr.bf16.mxu0 %v6189
  %6596 = vmatpush1.bf16.msra.mxu0 %v6188
  %6597 = vmatprep.subr.bf16.mxu0 %v6195
  %6598 = vmatpush1.bf16.msra.mxu0 %v6194
  %6599 = vmatprep.subr.bf16.mxu0 %v6201
  %6600 = vmatpush1.bf16.msra.mxu0 %v6200
  %6601 = vmatprep.subr.bf16.mxu0 %v6207
  %6602 = vmatpush1.bf16.msra.mxu0 %v6206
  %6603 = vmatprep.subr.bf16.mxu0 %v6213
  %6604 = vmatpush1.bf16.msra.mxu0 %v6212
  %6605 = vmatprep.mubr.bf16.mxu0 %v6531
  %6606 = vmatmul.mubr.bf16.gmra.mrb[0].mxu0 %v6530
  %v6607 = vpop.f32.mrb[0].mxu0
  %v6608 = vadd.f32 0.0, %v6607
  %v6609 = vpop.f32.mrb[0].mxu0
  %v6610 = vadd.f32 0.0, %v6609
  %v6611 = vpop.f32.mrb[0].mxu0
  %v6612 = vpop.f32.mrb[0].mxu0
  %6613 = vdwg.mxu0
  %6614 = vmatprep.subr.bf16.mxu0 %v6125
  %6615 = vmatpush1.bf16.msra.mxu0 %v6124
  %6616 = vmatprep.subr.bf16.mxu0 %v6131
  %6617 = vmatpush1.bf16.msra.mxu0 %v6130
  %6618 = vmatprep.subr.bf16.mxu0 %v6137
  %6619 = vmatpush1.bf16.msra.mxu0 %v6136
  %6620 = vmatprep.subr.bf16.mxu0 %v6143
  %6621 = vmatpush1.bf16.msra.mxu0 %v6142
  %6622 = vmatprep.subr.bf16.mxu0 %v6149
  %6623 = vmatpush1.bf16.msra.mxu0 %v6148
  %6624 = vmatprep.subr.bf16.mxu0 %v6155
  %6625 = vmatpush1.bf16.msra.mxu0 %v6154
  %6626 = vmatprep.subr.bf16.mxu0 %v6161
  %6627 = vmatpush1.bf16.msra.mxu0 %v6160
  %6628 = vmatprep.subr.bf16.mxu0 %v6167
  %6629 = vmatpush1.bf16.msra.mxu0 %v6166
  %6630 = vmatprep.subr.bf16.mxu0 %v6173
  %6631 = vmatpush1.bf16.msra.mxu0 %v6172
  %6632 = vmatprep.subr.bf16.mxu0 %v6179
  %6633 = vmatpush1.bf16.msra.mxu0 %v6178
  %6634 = vmatprep.subr.bf16.mxu0 %v6185
  %6635 = vmatpush1.bf16.msra.mxu0 %v6184
  %6636 = vmatprep.subr.bf16.mxu0 %v6191
  %6637 = vmatpush1.bf16.msra.mxu0 %v6190
  %6638 = vmatprep.subr.bf16.mxu0 %v6197
  %6639 = vmatpush1.bf16.msra.mxu0 %v6196
  %6640 = vmatprep.subr.bf16.mxu0 %v6203
  %6641 = vmatpush1.bf16.msra.mxu0 %v6202
  %6642 = vmatprep.subr.bf16.mxu0 %v6209
  %6643 = vmatpush1.bf16.msra.mxu0 %v6208
  %6644 = vmatprep.subr.bf16.mxu0 %v6215
  %6645 = vmatpush1.bf16.msra.mxu0 %v6214
  %6646 = vmatprep.mubr.bf16.mxu0 %v6531
  %6647 = vmatmul.mubr.bf16.gmra.mrb[0].mxu0 %v6530
  %v6648 = vpop.f32.mrb[0].mxu0
  %v6649 = vadd.f32 0.0, %v6648
  %v6650 = vpop.f32.mrb[0].mxu0
  %v6651 = vadd.f32 0.0, %v6650
  %v6652 = vpop.f32.mrb[0].mxu0
  %v6653 = vpop.f32.mrb[0].mxu0
  %6654 = vdwg.mxu0
  %v6655 = vadd.f32 %v5712, %v6567
  %v6656 = vadd.f32 %v5714, %v6569
  %v6657 = vadd.f32 %v5765, %v6608
  %v6658 = vadd.f32 %v5767, %v6610
  %v6659 = vadd.f32 %v6655, %v6443
  %v6660 = vadd.f32 %v6656, %v6447
  %v6661 = vadd.f32 %v6657, %v6451
  %v6662 = vadd.f32 %v6658, %v6455
  %v6663 = vxor.u32 %v6659, 2147483648
  %v6664 = vxor.u32 %v6660, 2147483648
  %v6665 = vxor.u32 %v6661, 2147483648
  %v6666 = vxor.u32 %v6662, 2147483648
  %v6667 = vmul.f32 %v6663, 1.442695
  %v6668 = vpow.pop %v6667
  %v6669 = vmul.f32 %v6664, 1.442695
  %v6670 = vpow.pop %v6669
  %v6671 = vmul.f32 %v6665, 1.442695
  %v6672 = vpow.pop %v6671
  %v6673 = vmul.f32 %v6666, 1.442695
  %v6674 = vpow.pop %v6673
  %v6675 = vadd.f32 %v6668, 1.0
  %v6676 = vadd.f32 %v6670, 1.0
  %v6677 = vadd.f32 %v6672, 1.0
  %v6678 = vadd.f32 %v6674, 1.0
  %v6679 = vrcp.pop %v6675
  %v6680 = vmul.f32 1.0, %v6679
  %v6681 = vrcp.pop %v6676
  %v6682 = vmul.f32 1.0, %v6681
  %v6683 = vrcp.pop %v6677
  %v6684 = vmul.f32 1.0, %v6683
  %v6685 = vrcp.pop %v6678
  %v6686 = vmul.f32 1.0, %v6685
  %v6687 = vadd.f32 %v5818, %v6492
  %v6688 = vadd.f32 %v5820, %v6496
  %v6689 = vadd.f32 %v6649, %v6505
  %v6690 = vadd.f32 %v6651, %v6509
  %v6691 = vmul.f32 %v6680, %v6689
  %v6692 = vmul.f32 %v6682, %v6690
  %v6693 = vadd.f32 %v6687, %v6691
  %v6694 = vadd.f32 %v6688, %v6692
  %v6695 = vtanh.pop %v6693
  %v6696 = vtanh.pop %v6694
  %v6697 = vsub.f32 1.0, %v6684
  %v6698 = vsub.f32 1.0, %v6686
  %v6699 = vmul.f32 %v6697, %v6695
  %v6700 = vmul.f32 %v6698, %v6696
  %v6701 = vmul.f32 %v6684, %v6526
  %v6702 = vmul.f32 %v6686, %v6527
  %v6703 = vadd.f32 %v6699, %v6701
  %v6704 = vadd.f32 %v6700, %v6702
  %6705 = vst [vmem:[#allocation2 + $0x10] sm:$0xff] %v6703
  %6706 = vst [vmem:[#allocation2 + $0x18] sm:$0xff] %v6704
  %v6707 = vpack.c.bf16 %v6703, %v6703
  %v6708 = vpack.c.bf16 %v6704, %v6704
  %6709 = vmatprep.subr.bf16.mxu0 %v6121
  %6710 = vmatpush1.bf16.msra.mxu0 %v6120
  %6711 = vmatprep.subr.bf16.mxu0 %v6127
  %6712 = vmatpush1.bf16.msra.mxu0 %v6126
  %6713 = vmatprep.subr.bf16.mxu0 %v6133
  %6714 = vmatpush1.bf16.msra.mxu0 %v6132
  %6715 = vmatprep.subr.bf16.mxu0 %v6139
  %6716 = vmatpush1.bf16.msra.mxu0 %v6138
  %6717 = vmatprep.subr.bf16.mxu0 %v6145
  %6718 = vmatpush1.bf16.msra.mxu0 %v6144
  %6719 = vmatprep.subr.bf16.mxu0 %v6151
  %6720 = vmatpush1.bf16.msra.mxu0 %v6150
  %6721 = vmatprep.subr.bf16.mxu0 %v6157
  %6722 = vmatpush1.bf16.msra.mxu0 %v6156
  %6723 = vmatprep.subr.bf16.mxu0 %v6163
  %6724 = vmatpush1.bf16.msra.mxu0 %v6162
  %6725 = vmatprep.subr.bf16.mxu0 %v6169
  %6726 = vmatpush1.bf16.msra.mxu0 %v6168
  %6727 = vmatprep.subr.bf16.mxu0 %v6175
  %6728 = vmatpush1.bf16.msra.mxu0 %v6174
  %6729 = vmatprep.subr.bf16.mxu0 %v6181
  %6730 = vmatpush1.bf16.msra.mxu0 %v6180
  %6731 = vmatprep.subr.bf16.mxu0 %v6187
  %6732 = vmatpush1.bf16.msra.mxu0 %v6186
  %6733 = vmatprep.subr.bf16.mxu0 %v6193
  %6734 = vmatpush1.bf16.msra.mxu0 %v6192
  %6735 = vmatprep.subr.bf16.mxu0 %v6199
  %6736 = vmatpush1.bf16.msra.mxu0 %v6198
  %6737 = vmatprep.subr.bf16.mxu0 %v6205
  %6738 = vmatpush1.bf16.msra.mxu0 %v6204
  %6739 = vmatprep.subr.bf16.mxu0 %v6211
  %6740 = vmatpush1.bf16.msra.mxu0 %v6210
  %6741 = vmatprep.mubr.bf16.mxu0 %v6708
  %6742 = vmatmul.mubr.bf16.gmra.mrb[0].mxu0 %v6707
  %v6743 = vpop.f32.mrb[0].mxu0
  %v6744 = vadd.f32 0.0, %v6743
  %v6745 = vpop.f32.mrb[0].mxu0
  %v6746 = vadd.f32 0.0, %v6745
  %v6747 = vpop.f32.mrb[0].mxu0
  %v6748 = vpop.f32.mrb[0].mxu0
  %6749 = vdwg.mxu0
  %6750 = vmatprep.subr.bf16.mxu0 %v6123
  %6751 = vmatpush1.bf16.msra.mxu0 %v6122
  %6752 = vmatprep.subr.bf16.mxu0 %v6129
  %6753 = vmatpush1.bf16.msra.mxu0 %v6128
  %6754 = vmatprep.subr.bf16.mxu0 %v6135
  %6755 = vmatpush1.bf16.msra.mxu0 %v6134
  %6756 = vmatprep.subr.bf16.mxu0 %v6141
  %6757 = vmatpush1.bf16.msra.mxu0 %v6140
  %6758 = vmatprep.subr.bf16.mxu0 %v6147
  %6759 = vmatpush1.bf16.msra.mxu0 %v6146
  %6760 = vmatprep.subr.bf16.mxu0 %v6153
  %6761 = vmatpush1.bf16.msra.mxu0 %v6152
  %6762 = vmatprep.subr.bf16.mxu0 %v6159
  %6763 = vmatpush1.bf16.msra.mxu0 %v6158
  %6764 = vmatprep.subr.bf16.mxu0 %v6165
  %6765 = vmatpush1.bf16.msra.mxu0 %v6164
  %6766 = vmatprep.subr.bf16.mxu0 %v6171
  %6767 = vmatpush1.bf16.msra.mxu0 %v6170
  %6768 = vmatprep.subr.bf16.mxu0 %v6177
  %6769 = vmatpush1.bf16.msra.mxu0 %v6176
  %6770 = vmatprep.subr.bf16.mxu0 %v6183
  %6771 = vmatpush1.bf16.msra.mxu0 %v6182
  %6772 = vmatprep.subr.bf16.mxu0 %v6189
  %6773 = vmatpush1.bf16.msra.mxu0 %v6188
  %6774 = vmatprep.subr.bf16.mxu0 %v6195
  %6775 = vmatpush1.bf16.msra.mxu0 %v6194
  %6776 = vmatprep.subr.bf16.mxu0 %v6201
  %6777 = vmatpush1.bf16.msra.mxu0 %v6200
  %6778 = vmatprep.subr.bf16.mxu0 %v6207
  %6779 = vmatpush1.bf16.msra.mxu0 %v6206
  %6780 = vmatprep.subr.bf16.mxu0 %v6213
  %6781 = vmatpush1.bf16.msra.mxu0 %v6212
  %6782 = vmatprep.mubr.bf16.mxu0 %v6708
  %6783 = vmatmul.mubr.bf16.gmra.mrb[0].mxu0 %v6707
  %v6784 = vpop.f32.mrb[0].mxu0
  %v6785 = vadd.f32 0.0, %v6784
  %v6786 = vpop.f32.mrb[0].mxu0
  %v6787 = vadd.f32 0.0, %v6786
  %v6788 = vpop.f32.mrb[0].mxu0
  %v6789 = vpop.f32.mrb[0].mxu0
  %6790 = vdwg.mxu0
  %6791 = vmatprep.subr.bf16.mxu0 %v6125
  %6792 = vmatpush1.bf16.msra.mxu0 %v6124
  %6793 = vmatprep.subr.bf16.mxu0 %v6131
  %6794 = vmatpush1.bf16.msra.mxu0 %v6130
  %6795 = vmatprep.subr.bf16.mxu0 %v6137
  %6796 = vmatpush1.bf16.msra.mxu0 %v6136
  %6797 = vmatprep.subr.bf16.mxu0 %v6143
  %6798 = vmatpush1.bf16.msra.mxu0 %v6142
  %6799 = vmatprep.subr.bf16.mxu0 %v6149
  %6800 = vmatpush1.bf16.msra.mxu0 %v6148
  %6801 = vmatprep.subr.bf16.mxu0 %v6155
  %6802 = vmatpush1.bf16.msra.mxu0 %v6154
  %6803 = vmatprep.subr.bf16.mxu0 %v6161
  %6804 = vmatpush1.bf16.msra.mxu0 %v6160
  %6805 = vmatprep.subr.bf16.mxu0 %v6167
  %6806 = vmatpush1.bf16.msra.mxu0 %v6166
  %6807 = vmatprep.subr.bf16.mxu0 %v6173
  %6808 = vmatpush1.bf16.msra.mxu0 %v6172
  %6809 = vmatprep.subr.bf16.mxu0 %v6179
  %6810 = vmatpush1.bf16.msra.mxu0 %v6178
  %6811 = vmatprep.subr.bf16.mxu0 %v6185
  %6812 = vmatpush1.bf16.msra.mxu0 %v6184
  %6813 = vmatprep.subr.bf16.mxu0 %v6191
  %6814 = vmatpush1.bf16.msra.mxu0 %v6190
  %6815 = vmatprep.subr.bf16.mxu0 %v6197
  %6816 = vmatpush1.bf16.msra.mxu0 %v6196
  %6817 = vmatprep.subr.bf16.mxu0 %v6203
  %6818 = vmatpush1.bf16.msra.mxu0 %v6202
  %6819 = vmatprep.subr.bf16.mxu0 %v6209
  %6820 = vmatpush1.bf16.msra.mxu0 %v6208
  %6821 = vmatprep.subr.bf16.mxu0 %v6215
  %6822 = vmatpush1.bf16.msra.mxu0 %v6214
  %6823 = vmatprep.mubr.bf16.mxu0 %v6708
  %6824 = vmatmul.mubr.bf16.gmra.mrb[0].mxu0 %v6707
  %v6825 = vpop.f32.mrb[0].mxu0
  %v6826 = vadd.f32 0.0, %v6825
  %v6827 = vpop.f32.mrb[0].mxu0
  %v6828 = vadd.f32 0.0, %v6827
  %v6829 = vpop.f32.mrb[0].mxu0
  %v6830 = vpop.f32.mrb[0].mxu0
  %6831 = vdwg.mxu0
  %v6832 = vadd.f32 %v5718, %v6744
  %v6833 = vadd.f32 %v5720, %v6746
  %v6834 = vadd.f32 %v5771, %v6785
  %v6835 = vadd.f32 %v5773, %v6787
  %v6836 = vadd.f32 %v6832, %v6443
  %v6837 = vadd.f32 %v6833, %v6447
  %v6838 = vadd.f32 %v6834, %v6451
  %v6839 = vadd.f32 %v6835, %v6455
  %v6840 = vxor.u32 %v6836, 2147483648
  %v6841 = vxor.u32 %v6837, 2147483648
  %v6842 = vxor.u32 %v6838, 2147483648
  %v6843 = vxor.u32 %v6839, 2147483648
  %v6844 = vmul.f32 %v6840, 1.442695
  %v6845 = vpow.pop %v6844
  %v6846 = vmul.f32 %v6841, 1.442695
  %v6847 = vpow.pop %v6846
  %v6848 = vmul.f32 %v6842, 1.442695
  %v6849 = vpow.pop %v6848
  %v6850 = vmul.f32 %v6843, 1.442695
  %v6851 = vpow.pop %v6850
  %v6852 = vadd.f32 %v6845, 1.0
  %v6853 = vadd.f32 %v6847, 1.0
  %v6854 = vadd.f32 %v6849, 1.0
  %v6855 = vadd.f32 %v6851, 1.0
  %v6856 = vrcp.pop %v6852
  %v6857 = vmul.f32 1.0, %v6856
  %v6858 = vrcp.pop %v6853
  %v6859 = vmul.f32 1.0, %v6858
  %v6860 = vrcp.pop %v6854
  %v6861 = vmul.f32 1.0, %v6860
  %v6862 = vrcp.pop %v6855
  %v6863 = vmul.f32 1.0, %v6862
  %v6864 = vadd.f32 %v5824, %v6492
  %v6865 = vadd.f32 %v5826, %v6496
  %v6866 = vadd.f32 %v6826, %v6505
  %v6867 = vadd.f32 %v6828, %v6509
  %v6868 = vmul.f32 %v6857, %v6866
  %v6869 = vmul.f32 %v6859, %v6867
  %v6870 = vadd.f32 %v6864, %v6868
  %v6871 = vadd.f32 %v6865, %v6869
  %v6872 = vtanh.pop %v6870
  %v6873 = vtanh.pop %v6871
  %v6874 = vsub.f32 1.0, %v6861
  %v6875 = vsub.f32 1.0, %v6863
  %v6876 = vmul.f32 %v6874, %v6872
  %v6877 = vmul.f32 %v6875, %v6873
  %v6878 = vmul.f32 %v6861, %v6703
  %v6879 = vmul.f32 %v6863, %v6704
  %v6880 = vadd.f32 %v6876, %v6878
  %v6881 = vadd.f32 %v6877, %v6879
  %6882 = vst [vmem:[#allocation2 + $0x20] sm:$0xff] %v6880
  %6883 = vst [vmem:[#allocation2 + $0x28] sm:$0xff] %v6881
  %v6884 = vpack.c.bf16 %v6880, %v6880
  %v6885 = vpack.c.bf16 %v6881, %v6881
  %6886 = vmatprep.subr.bf16.mxu0 %v6121
  %6887 = vmatpush1.bf16.msra.mxu0 %v6120
  %6888 = vmatprep.subr.bf16.mxu0 %v6127
  %6889 = vmatpush1.bf16.msra.mxu0 %v6126
  %6890 = vmatprep.subr.bf16.mxu0 %v6133
  %6891 = vmatpush1.bf16.msra.mxu0 %v6132
  %6892 = vmatprep.subr.bf16.mxu0 %v6139
  %6893 = vmatpush1.bf16.msra.mxu0 %v6138
  %6894 = vmatprep.subr.bf16.mxu0 %v6145
  %6895 = vmatpush1.bf16.msra.mxu0 %v6144
  %6896 = vmatprep.subr.bf16.mxu0 %v6151
  %6897 = vmatpush1.bf16.msra.mxu0 %v6150
  %6898 = vmatprep.subr.bf16.mxu0 %v6157
  %6899 = vmatpush1.bf16.msra.mxu0 %v6156
  %6900 = vmatprep.subr.bf16.mxu0 %v6163
  %6901 = vmatpush1.bf16.msra.mxu0 %v6162
  %6902 = vmatprep.subr.bf16.mxu0 %v6169
  %6903 = vmatpush1.bf16.msra.mxu0 %v6168
  %6904 = vmatprep.subr.bf16.mxu0 %v6175
  %6905 = vmatpush1.bf16.msra.mxu0 %v6174
  %6906 = vmatprep.subr.bf16.mxu0 %v6181
  %6907 = vmatpush1.bf16.msra.mxu0 %v6180
  %6908 = vmatprep.subr.bf16.mxu0 %v6187
  %6909 = vmatpush1.bf16.msra.mxu0 %v6186
  %6910 = vmatprep.subr.bf16.mxu0 %v6193
  %6911 = vmatpush1.bf16.msra.mxu0 %v6192
  %6912 = vmatprep.subr.bf16.mxu0 %v6199
  %6913 = vmatpush1.bf16.msra.mxu0 %v6198
  %6914 = vmatprep.subr.bf16.mxu0 %v6205
  %6915 = vmatpush1.bf16.msra.mxu0 %v6204
  %6916 = vmatprep.subr.bf16.mxu0 %v6211
  %6917 = vmatpush1.bf16.msra.mxu0 %v6210
  %6918 = vmatprep.mubr.bf16.mxu0 %v6885
  %6919 = vmatmul.mubr.bf16.gmra.mrb[0].mxu0 %v6884
  %v6920 = vpop.f32.mrb[0].mxu0
  %v6921 = vadd.f32 0.0, %v6920
  %v6922 = vpop.f32.mrb[0].mxu0
  %v6923 = vadd.f32 0.0, %v6922
  %v6924 = vpop.f32.mrb[0].mxu0
  %v6925 = vpop.f32.mrb[0].mxu0
  %6926 = vdwg.mxu0
  %6927 = vmatprep.subr.bf16.mxu0 %v6123
  %6928 = vmatpush1.bf16.msra.mxu0 %v6122
  %6929 = vmatprep.subr.bf16.mxu0 %v6129
  %6930 = vmatpush1.bf16.msra.mxu0 %v6128
  %6931 = vmatprep.subr.bf16.mxu0 %v6135
  %6932 = vmatpush1.bf16.msra.mxu0 %v6134
  %6933 = vmatprep.subr.bf16.mxu0 %v6141
  %6934 = vmatpush1.bf16.msra.mxu0 %v6140
  %6935 = vmatprep.subr.bf16.mxu0 %v6147
  %6936 = vmatpush1.bf16.msra.mxu0 %v6146
  %6937 = vmatprep.subr.bf16.mxu0 %v6153
  %6938 = vmatpush1.bf16.msra.mxu0 %v6152
  %6939 = vmatprep.subr.bf16.mxu0 %v6159
  %6940 = vmatpush1.bf16.msra.mxu0 %v6158
  %6941 = vmatprep.subr.bf16.mxu0 %v6165
  %6942 = vmatpush1.bf16.msra.mxu0 %v6164
  %6943 = vmatprep.subr.bf16.mxu0 %v6171
  %6944 = vmatpush1.bf16.msra.mxu0 %v6170
  %6945 = vmatprep.subr.bf16.mxu0 %v6177
  %6946 = vmatpush1.bf16.msra.mxu0 %v6176
  %6947 = vmatprep.subr.bf16.mxu0 %v6183
  %6948 = vmatpush1.bf16.msra.mxu0 %v6182
  %6949 = vmatprep.subr.bf16.mxu0 %v6189
  %6950 = vmatpush1.bf16.msra.mxu0 %v6188
  %6951 = vmatprep.subr.bf16.mxu0 %v6195
  %6952 = vmatpush1.bf16.msra.mxu0 %v6194
  %6953 = vmatprep.subr.bf16.mxu0 %v6201
  %6954 = vmatpush1.bf16.msra.mxu0 %v6200
  %6955 = vmatprep.subr.bf16.mxu0 %v6207
  %6956 = vmatpush1.bf16.msra.mxu0 %v6206
  %6957 = vmatprep.subr.bf16.mxu0 %v6213
  %6958 = vmatpush1.bf16.msra.mxu0 %v6212
  %6959 = vmatprep.mubr.bf16.mxu0 %v6885
  %6960 = vmatmul.mubr.bf16.gmra.mrb[0].mxu0 %v6884
  %v6961 = vpop.f32.mrb[0].mxu0
  %v6962 = vadd.f32 0.0, %v6961
  %v6963 = vpop.f32.mrb[0].mxu0
  %v6964 = vadd.f32 0.0, %v6963
  %v6965 = vpop.f32.mrb[0].mxu0
  %v6966 = vpop.f32.mrb[0].mxu0
  %6967 = vdwg.mxu0
  %6968 = vmatprep.subr.bf16.mxu0 %v6125
  %6969 = vmatpush1.bf16.msra.mxu0 %v6124
  %6970 = vmatprep.subr.bf16.mxu0 %v6131
  %6971 = vmatpush1.bf16.msra.mxu0 %v6130
  %6972 = vmatprep.subr.bf16.mxu0 %v6137
  %6973 = vmatpush1.bf16.msra.mxu0 %v6136
  %6974 = vmatprep.subr.bf16.mxu0 %v6143
  %6975 = vmatpush1.bf16.msra.mxu0 %v6142
  %6976 = vmatprep.subr.bf16.mxu0 %v6149
  %6977 = vmatpush1.bf16.msra.mxu0 %v6148
  %6978 = vmatprep.subr.bf16.mxu0 %v6155
  %6979 = vmatpush1.bf16.msra.mxu0 %v6154
  %6980 = vmatprep.subr.bf16.mxu0 %v6161
  %6981 = vmatpush1.bf16.msra.mxu0 %v6160
  %6982 = vmatprep.subr.bf16.mxu0 %v6167
  %6983 = vmatpush1.bf16.msra.mxu0 %v6166
  %6984 = vmatprep.subr.bf16.mxu0 %v6173
  %6985 = vmatpush1.bf16.msra.mxu0 %v6172
  %6986 = vmatprep.subr.bf16.mxu0 %v6179
  %6987 = vmatpush1.bf16.msra.mxu0 %v6178
  %6988 = vmatprep.subr.bf16.mxu0 %v6185
  %6989 = vmatpush1.bf16.msra.mxu0 %v6184
  %6990 = vmatprep.subr.bf16.mxu0 %v6191
  %6991 = vmatpush1.bf16.msra.mxu0 %v6190
  %6992 = vmatprep.subr.bf16.mxu0 %v6197
  %6993 = vmatpush1.bf16.msra.mxu0 %v6196
  %6994 = vmatprep.subr.bf16.mxu0 %v6203
  %6995 = vmatpush1.bf16.msra.mxu0 %v6202
  %6996 = vmatprep.subr.bf16.mxu0 %v6209
  %6997 = vmatpush1.bf16.msra.mxu0 %v6208
  %6998 = vmatprep.subr.bf16.mxu0 %v6215
  %6999 = vmatpush1.bf16.msra.mxu0 %v6214
  %7000 = vmatprep.mubr.bf16.mxu0 %v6885
  %7001 = vmatmul.mubr.bf16.gmra.mrb[0].mxu0 %v6884
  %v7002 = vpop.f32.mrb[0].mxu0
  %v7003 = vadd.f32 0.0, %v7002
  %v7004 = vpop.f32.mrb[0].mxu0
  %v7005 = vadd.f32 0.0, %v7004
  %v7006 = vpop.f32.mrb[0].mxu0
  %v7007 = vpop.f32.mrb[0].mxu0
  %7008 = vdwg.mxu0
  %v7009 = vadd.f32 %v5722, %v6921
  %v7010 = vadd.f32 %v5724, %v6923
  %v7011 = vadd.f32 %v5775, %v6962
  %v7012 = vadd.f32 %v5777, %v6964
  %v7013 = vadd.f32 %v7009, %v6443
  %v7014 = vadd.f32 %v7010, %v6447
  %v7015 = vadd.f32 %v7011, %v6451
  %v7016 = vadd.f32 %v7012, %v6455
  %v7017 = vxor.u32 %v7013, 2147483648
  %v7018 = vxor.u32 %v7014, 2147483648
  %v7019 = vxor.u32 %v7015, 2147483648
  %v7020 = vxor.u32 %v7016, 2147483648
  %v7021 = vmul.f32 %v7017, 1.442695
  %v7022 = vpow.pop %v7021
  %v7023 = vmul.f32 %v7018, 1.442695
  %v7024 = vpow.pop %v7023
  %v7025 = vmul.f32 %v7019, 1.442695
  %v7026 = vpow.pop %v7025
  %v7027 = vmul.f32 %v7020, 1.442695
  %v7028 = vpow.pop %v7027
  %v7029 = vadd.f32 %v7022, 1.0
  %v7030 = vadd.f32 %v7024, 1.0
  %v7031 = vadd.f32 %v7026, 1.0
  %v7032 = vadd.f32 %v7028, 1.0
  %v7033 = vrcp.pop %v7029
  %v7034 = vmul.f32 1.0, %v7033
  %v7035 = vrcp.pop %v7030
  %v7036 = vmul.f32 1.0, %v7035
  %v7037 = vrcp.pop %v7031
  %v7038 = vmul.f32 1.0, %v7037
  %v7039 = vrcp.pop %v7032
  %v7040 = vmul.f32 1.0, %v7039
  %v7041 = vadd.f32 %v5828, %v6492
  %v7042 = vadd.f32 %v5830, %v6496
  %v7043 = vadd.f32 %v7003, %v6505
  %v7044 = vadd.f32 %v7005, %v6509
  %v7045 = vmul.f32 %v7034, %v7043
  %v7046 = vmul.f32 %v7036, %v7044
  %v7047 = vadd.f32 %v7041, %v7045
  %v7048 = vadd.f32 %v7042, %v7046
  %v7049 = vtanh.pop %v7047
  %v7050 = vtanh.pop %v7048
  %v7051 = vsub.f32 1.0, %v7038
  %v7052 = vsub.f32 1.0, %v7040
  %v7053 = vmul.f32 %v7051, %v7049
  %v7054 = vmul.f32 %v7052, %v7050
  %v7055 = vmul.f32 %v7038, %v6880
  %v7056 = vmul.f32 %v7040, %v6881
  %v7057 = vadd.f32 %v7053, %v7055
  %v7058 = vadd.f32 %v7054, %v7056
  %7059 = vst [vmem:[#allocation2 + $0x30] sm:$0xff] %v7057
  %7060 = vst [vmem:[#allocation2 + $0x38] sm:$0xff] %v7058
  %v7061 = vpack.c.bf16 %v7057, %v7057
  %v7062 = vpack.c.bf16 %v7058, %v7058
  %s7063 = scalar_lea.vmem %s8, 512
  %v7064 = vld [vmem:[%s7063] sm:$0xff]
  %v7065 = vld [vmem:[%s7063 + $0x8] sm:$0xff]
  %v7066 = vld [vmem:[%s7063 + $0x10] sm:$0xff]
  %v7067 = vld [vmem:[%s7063 + $0x18] sm:$0xff]
  %v7068 = vld [vmem:[%s7063 + $0x20] sm:$0xff]
  %v7069 = vld [vmem:[%s7063 + $0x28] sm:$0xff]
  %v7070 = vld [vmem:[%s7063 + $0x30] sm:$0xff]
  %v7071 = vld [vmem:[%s7063 + $0x38] sm:$0xff]
  %v7072 = vld [vmem:[%s7063 + $0x40] sm:$0xff]
  %v7073 = vld [vmem:[%s7063 + $0x48] sm:$0xff]
  %v7074 = vld [vmem:[%s7063 + $0x50] sm:$0xff]
  %v7075 = vld [vmem:[%s7063 + $0x58] sm:$0xff]
  %v7076 = vld [vmem:[%s7063 + $0x60] sm:$0xff]
  %v7077 = vld [vmem:[%s7063 + $0x68] sm:$0xff]
  %v7078 = vld [vmem:[%s7063 + $0x70] sm:$0xff]
  %v7079 = vld [vmem:[%s7063 + $0x78] sm:$0xff]
  %v7080 = vld [vmem:[%s7063 + $0x80] sm:$0xff]
  %v7081 = vld [vmem:[%s7063 + $0x88] sm:$0xff]
  %v7082 = vld [vmem:[%s7063 + $0x90] sm:$0xff]
  %v7083 = vld [vmem:[%s7063 + $0x98] sm:$0xff]
  %v7084 = vld [vmem:[%s7063 + $0xa0] sm:$0xff]
  %v7085 = vld [vmem:[%s7063 + $0xa8] sm:$0xff]
  %v7086 = vld [vmem:[%s7063 + $0xb0] sm:$0xff]
  %v7087 = vld [vmem:[%s7063 + $0xb8] sm:$0xff]
  %v7088 = vld [vmem:[%s7063 + $0xc0] sm:$0xff]
  %v7089 = vld [vmem:[%s7063 + $0xc8] sm:$0xff]
  %v7090 = vld [vmem:[%s7063 + $0xd0] sm:$0xff]
  %v7091 = vld [vmem:[%s7063 + $0xd8] sm:$0xff]
  %v7092 = vld [vmem:[%s7063 + $0xe0] sm:$0xff]
  %v7093 = vld [vmem:[%s7063 + $0xe8] sm:$0xff]
  %v7094 = vld [vmem:[%s7063 + $0xf0] sm:$0xff]
  %v7095 = vld [vmem:[%s7063 + $0xf8] sm:$0xff]
  %v7128 = vunpack.c.l.b16 %v7064
  %v7129 = vunpack.c.h.b16 %v7064
  %v7130 = vunpack.c.l.b16 %v7065
  %v7131 = vunpack.c.h.b16 %v7065
  %v7132 = vunpack.c.l.b16 %v7066
  %v7133 = vunpack.c.h.b16 %v7066
  %v7134 = vunpack.c.l.b16 %v7067
  %v7135 = vunpack.c.h.b16 %v7067
  %v7136 = vunpack.c.l.b16 %v7068
  %v7137 = vunpack.c.h.b16 %v7068
  %v7138 = vunpack.c.l.b16 %v7069
  %v7139 = vunpack.c.h.b16 %v7069
  %v7140 = vunpack.c.l.b16 %v7070
  %v7141 = vunpack.c.h.b16 %v7070
  %v7142 = vunpack.c.l.b16 %v7071
  %v7143 = vunpack.c.h.b16 %v7071
  %v7144 = vunpack.c.l.b16 %v7072
  %v7145 = vunpack.c.h.b16 %v7072
  %v7146 = vunpack.c.l.b16 %v7073
  %v7147 = vunpack.c.h.b16 %v7073
  %v7148 = vunpack.c.l.b16 %v7074
  %v7149 = vunpack.c.h.b16 %v7074
  %v7150 = vunpack.c.l.b16 %v7075
  %v7151 = vunpack.c.h.b16 %v7075
  %v7152 = vunpack.c.l.b16 %v7076
  %v7153 = vunpack.c.h.b16 %v7076
  %v7154 = vunpack.c.l.b16 %v7077
  %v7155 = vunpack.c.h.b16 %v7077
  %v7156 = vunpack.c.l.b16 %v7078
  %v7157 = vunpack.c.h.b16 %v7078
  %v7158 = vunpack.c.l.b16 %v7079
  %v7159 = vunpack.c.h.b16 %v7079
  %v7160 = vunpack.c.l.b16 %v7080
  %v7161 = vunpack.c.h.b16 %v7080
  %v7162 = vunpack.c.l.b16 %v7081
  %v7163 = vunpack.c.h.b16 %v7081
  %v7164 = vunpack.c.l.b16 %v7082
  %v7165 = vunpack.c.h.b16 %v7082
  %v7166 = vunpack.c.l.b16 %v7083
  %v7167 = vunpack.c.h.b16 %v7083
  %v7168 = vunpack.c.l.b16 %v7084
  %v7169 = vunpack.c.h.b16 %v7084
  %v7170 = vunpack.c.l.b16 %v7085
  %v7171 = vunpack.c.h.b16 %v7085
  %v7172 = vunpack.c.l.b16 %v7086
  %v7173 = vunpack.c.h.b16 %v7086
  %v7174 = vunpack.c.l.b16 %v7087
  %v7175 = vunpack.c.h.b16 %v7087
  %v7176 = vunpack.c.l.b16 %v7088
  %v7177 = vunpack.c.h.b16 %v7088
  %v7178 = vunpack.c.l.b16 %v7089
  %v7179 = vunpack.c.h.b16 %v7089
  %v7180 = vunpack.c.l.b16 %v7090
  %v7181 = vunpack.c.h.b16 %v7090
  %v7182 = vunpack.c.l.b16 %v7091
  %v7183 = vunpack.c.h.b16 %v7091
  %v7184 = vunpack.c.l.b16 %v7092
  %v7185 = vunpack.c.h.b16 %v7092
  %v7186 = vunpack.c.l.b16 %v7093
  %v7187 = vunpack.c.h.b16 %v7093
  %v7188 = vunpack.c.l.b16 %v7094
  %v7189 = vunpack.c.h.b16 %v7094
  %v7190 = vunpack.c.l.b16 %v7095
  %v7191 = vunpack.c.h.b16 %v7095
  %v7192 = vpack.c.b16 %v7130, %v7128
  %v7193 = vpack.c.b16 %v7131, %v7129
  %v7194 = vpack.c.b16 %v7134, %v7132
  %v7195 = vpack.c.b16 %v7135, %v7133
  %v7196 = vpack.c.b16 %v7138, %v7136
  %v7197 = vpack.c.b16 %v7139, %v7137
  %v7198 = vpack.c.b16 %v7142, %v7140
  %v7199 = vpack.c.b16 %v7143, %v7141
  %v7200 = vpack.c.b16 %v7146, %v7144
  %v7201 = vpack.c.b16 %v7147, %v7145
  %v7202 = vpack.c.b16 %v7150, %v7148
  %v7203 = vpack.c.b16 %v7151, %v7149
  %v7204 = vpack.c.b16 %v7154, %v7152
  %v7205 = vpack.c.b16 %v7155, %v7153
  %v7206 = vpack.c.b16 %v7158, %v7156
  %v7207 = vpack.c.b16 %v7159, %v7157
  %v7208 = vpack.c.b16 %v7162, %v7160
  %v7209 = vpack.c.b16 %v7163, %v7161
  %v7210 = vpack.c.b16 %v7166, %v7164
  %v7211 = vpack.c.b16 %v7167, %v7165
  %v7212 = vpack.c.b16 %v7170, %v7168
  %v7213 = vpack.c.b16 %v7171, %v7169
  %v7214 = vpack.c.b16 %v7174, %v7172
  %v7215 = vpack.c.b16 %v7175, %v7173
  %v7216 = vpack.c.b16 %v7178, %v7176
  %v7217 = vpack.c.b16 %v7179, %v7177
  %v7218 = vpack.c.b16 %v7182, %v7180
  %v7219 = vpack.c.b16 %v7183, %v7181
  %v7220 = vpack.c.b16 %v7186, %v7184
  %v7221 = vpack.c.b16 %v7187, %v7185
  %v7222 = vpack.c.b16 %v7190, %v7188
  %v7223 = vpack.c.b16 %v7191, %v7189
  %7256 = vmatprep.subr.bf16.mxu0 %v7193
  %7257 = vmatpush1.bf16.msra.mxu0 %v7192
  %7258 = vmatprep.subr.bf16.mxu0 %v7195
  %7259 = vmatpush1.bf16.msra.mxu0 %v7194
  %7260 = vmatprep.subr.bf16.mxu0 %v7197
  %7261 = vmatpush1.bf16.msra.mxu0 %v7196
  %7262 = vmatprep.subr.bf16.mxu0 %v7199
  %7263 = vmatpush1.bf16.msra.mxu0 %v7198
  %7264 = vmatprep.subr.bf16.mxu0 %v7201
  %7265 = vmatpush1.bf16.msra.mxu0 %v7200
  %7266 = vmatprep.subr.bf16.mxu0 %v7203
  %7267 = vmatpush1.bf16.msra.mxu0 %v7202
  %7268 = vmatprep.subr.bf16.mxu0 %v7205
  %7269 = vmatpush1.bf16.msra.mxu0 %v7204
  %7270 = vmatprep.subr.bf16.mxu0 %v7207
  %7271 = vmatpush1.bf16.msra.mxu0 %v7206
  %7272 = vmatprep.subr.bf16.mxu0 %v7209
  %7273 = vmatpush1.bf16.msra.mxu0 %v7208
  %7274 = vmatprep.subr.bf16.mxu0 %v7211
  %7275 = vmatpush1.bf16.msra.mxu0 %v7210
  %7276 = vmatprep.subr.bf16.mxu0 %v7213
  %7277 = vmatpush1.bf16.msra.mxu0 %v7212
  %7278 = vmatprep.subr.bf16.mxu0 %v7215
  %7279 = vmatpush1.bf16.msra.mxu0 %v7214
  %7280 = vmatprep.subr.bf16.mxu0 %v7217
  %7281 = vmatpush1.bf16.msra.mxu0 %v7216
  %7282 = vmatprep.subr.bf16.mxu0 %v7219
  %7283 = vmatpush1.bf16.msra.mxu0 %v7218
  %7284 = vmatprep.subr.bf16.mxu0 %v7221
  %7285 = vmatpush1.bf16.msra.mxu0 %v7220
  %7286 = vmatprep.subr.bf16.mxu0 %v7223
  %7287 = vmatpush1.bf16.msra.mxu0 %v7222
  %7288 = vmatprep.mubr.bf16.mxu0 %v7062
  %7289 = vmatmul.mubr.bf16.gmra.mrb[0].mxu0 %v7061
  %v7290 = vpop.f32.mrb[0].mxu0
  %v7291 = vadd.f32 0.0, %v7290
  %v7292 = vpop.f32.mrb[0].mxu0
  %v7293 = vadd.f32 0.0, %v7292
  %v7294 = vpop.f32.mrb[0].mxu0
  %v7295 = vpop.f32.mrb[0].mxu0
  %7296 = vdwg.mxu0
  %v7297 = vadd.f32 %v4975, %v7291
  %v7298 = vadd.f32 %v4977, %v7293
  %v7299 = vld [vmem:[%s9] sm:$0x3]
  %v7301 = vlaneseq
  %v7302 = vshrl.u32 %v7301, 7
  %v7303 = vsub.s32 0, %v7302
  %v7304 = vrot.slane %v7299, %v7303
  %v7305 = vlaneseq
  %v7306 = vshrl.u32 %v7305, 7
  %v7307 = vsub.s32 1, %v7306
  %v7308 = vrot.slane %v7299, %v7307
  %v7311 = vadd.f32 %v7297, %v7304
  %v7312 = vadd.f32 %v7298, %v7308
  %vm7313 = vcmp.gt.f32.partialorder %v7311, 0.0
  %vm7314 = vcmp.gt.f32.partialorder %v7312, 0.0
  %v7315 = vmul.f32 %v7311, 0.01
  %v7316 = vmul.f32 %v7312, 0.01
  %v7317 = vsel %vm7313, %v7311, %v7315
  %v7318 = vsel %vm7314, %v7312, %v7316
  %v7319 = vpack.c.bf16 %v7317, %v7317
  %v7320 = vpack.c.bf16 %v7318, %v7318
  %v7321 = vld [vmem:[%s10] sm:$0xf]
  %v7322 = vld [vmem:[%s10 + $0x4] sm:$0xf]
  %v7323 = vld [vmem:[%s10 + $0x8] sm:$0xf]
  %v7324 = vld [vmem:[%s10 + $0xc] sm:$0xf]
  %v7325 = vld [vmem:[%s10 + $0x10] sm:$0xf]
  %v7326 = vld [vmem:[%s10 + $0x14] sm:$0xf]
  %v7327 = vld [vmem:[%s10 + $0x18] sm:$0xf]
  %v7328 = vld [vmem:[%s10 + $0x1c] sm:$0xf]
  %v7329 = vld [vmem:[%s10 + $0x20] sm:$0xf]
  %v7330 = vld [vmem:[%s10 + $0x24] sm:$0xf]
  %v7331 = vld [vmem:[%s10 + $0x28] sm:$0xf]
  %v7332 = vld [vmem:[%s10 + $0x2c] sm:$0xf]
  %v7333 = vld [vmem:[%s10 + $0x30] sm:$0xf]
  %v7334 = vld [vmem:[%s10 + $0x34] sm:$0xf]
  %v7335 = vld [vmem:[%s10 + $0x38] sm:$0xf]
  %v7336 = vld [vmem:[%s10 + $0x3c] sm:$0xf]
  %v7337 = vld [vmem:[%s10 + $0x40] sm:$0xf]
  %v7338 = vld [vmem:[%s10 + $0x44] sm:$0xf]
  %v7339 = vld [vmem:[%s10 + $0x48] sm:$0xf]
  %v7340 = vld [vmem:[%s10 + $0x4c] sm:$0xf]
  %v7341 = vld [vmem:[%s10 + $0x50] sm:$0xf]
  %v7342 = vld [vmem:[%s10 + $0x54] sm:$0xf]
  %v7343 = vld [vmem:[%s10 + $0x58] sm:$0xf]
  %v7344 = vld [vmem:[%s10 + $0x5c] sm:$0xf]
  %v7345 = vld [vmem:[%s10 + $0x60] sm:$0xf]
  %v7346 = vld [vmem:[%s10 + $0x64] sm:$0xf]
  %v7347 = vld [vmem:[%s10 + $0x68] sm:$0xf]
  %v7348 = vld [vmem:[%s10 + $0x6c] sm:$0xf]
  %v7349 = vld [vmem:[%s10 + $0x70] sm:$0xf]
  %v7350 = vld [vmem:[%s10 + $0x74] sm:$0xf]
  %v7351 = vld [vmem:[%s10 + $0x78] sm:$0xf]
  %v7352 = vld [vmem:[%s10 + $0x7c] sm:$0xf]
  %v7353 = vld [vmem:[%s11] sm:$0x1]
  %v7355 = vlaneseq
  %v7356 = vshrl.u32 %v7355, 7
  %v7357 = vsub.s32 0, %v7356
  %v7358 = vrot.slane %v7353, %v7357
  %v7392 = vunpack.c.l.b16 %v7321
  %v7393 = vunpack.c.l.b16 %v7322
  %v7394 = vunpack.c.l.b16 %v7323
  %v7395 = vunpack.c.l.b16 %v7324
  %v7396 = vunpack.c.l.b16 %v7325
  %v7397 = vunpack.c.l.b16 %v7326
  %v7398 = vunpack.c.l.b16 %v7327
  %v7399 = vunpack.c.l.b16 %v7328
  %v7400 = vunpack.c.l.b16 %v7329
  %v7401 = vunpack.c.l.b16 %v7330
  %v7402 = vunpack.c.l.b16 %v7331
  %v7403 = vunpack.c.l.b16 %v7332
  %v7404 = vunpack.c.l.b16 %v7333
  %v7405 = vunpack.c.l.b16 %v7334
  %v7406 = vunpack.c.l.b16 %v7335
  %v7407 = vunpack.c.l.b16 %v7336
  %v7408 = vunpack.c.l.b16 %v7337
  %v7409 = vunpack.c.l.b16 %v7338
  %v7410 = vunpack.c.l.b16 %v7339
  %v7411 = vunpack.c.l.b16 %v7340
  %v7412 = vunpack.c.l.b16 %v7341
  %v7413 = vunpack.c.l.b16 %v7342
  %v7414 = vunpack.c.l.b16 %v7343
  %v7415 = vunpack.c.l.b16 %v7344
  %v7416 = vunpack.c.l.b16 %v7345
  %v7417 = vunpack.c.l.b16 %v7346
  %v7418 = vunpack.c.l.b16 %v7347
  %v7419 = vunpack.c.l.b16 %v7348
  %v7420 = vunpack.c.l.b16 %v7349
  %v7421 = vunpack.c.l.b16 %v7350
  %v7422 = vunpack.c.l.b16 %v7351
  %v7423 = vunpack.c.l.b16 %v7352
  %v7424 = vpack.c.b16 %v7393, %v7392
  %v7425 = vpack.c.b16 %v7395, %v7394
  %v7426 = vpack.c.b16 %v7397, %v7396
  %v7427 = vpack.c.b16 %v7399, %v7398
  %v7428 = vpack.c.b16 %v7401, %v7400
  %v7429 = vpack.c.b16 %v7403, %v7402
  %v7430 = vpack.c.b16 %v7405, %v7404
  %v7431 = vpack.c.b16 %v7407, %v7406
  %v7432 = vpack.c.b16 %v7409, %v7408
  %v7433 = vpack.c.b16 %v7411, %v7410
  %v7434 = vpack.c.b16 %v7413, %v7412
  %v7435 = vpack.c.b16 %v7415, %v7414
  %v7436 = vpack.c.b16 %v7417, %v7416
  %v7437 = vpack.c.b16 %v7419, %v7418
  %v7438 = vpack.c.b16 %v7421, %v7420
  %v7439 = vpack.c.b16 %v7423, %v7422
  %7456 = vmatprep.subr.bf16.mxu0 0
  %7457 = vmatpush1.bf16.msra.mxu0 %v7424
  %7458 = vmatprep.subr.bf16.mxu0 0
  %7459 = vmatpush1.bf16.msra.mxu0 %v7425
  %7460 = vmatprep.subr.bf16.mxu0 0
  %7461 = vmatpush1.bf16.msra.mxu0 %v7426
  %7462 = vmatprep.subr.bf16.mxu0 0
  %7463 = vmatpush1.bf16.msra.mxu0 %v7427
  %7464 = vmatprep.subr.bf16.mxu0 0
  %7465 = vmatpush1.bf16.msra.mxu0 %v7428
  %7466 = vmatprep.subr.bf16.mxu0 0
  %7467 = vmatpush1.bf16.msra.mxu0 %v7429
  %7468 = vmatprep.subr.bf16.mxu0 0
  %7469 = vmatpush1.bf16.msra.mxu0 %v7430
  %7470 = vmatprep.subr.bf16.mxu0 0
  %7471 = vmatpush1.bf16.msra.mxu0 %v7431
  %7472 = vmatprep.subr.bf16.mxu0 0
  %7473 = vmatpush1.bf16.msra.mxu0 %v7432
  %7474 = vmatprep.subr.bf16.mxu0 0
  %7475 = vmatpush1.bf16.msra.mxu0 %v7433
  %7476 = vmatprep.subr.bf16.mxu0 0
  %7477 = vmatpush1.bf16.msra.mxu0 %v7434
  %7478 = vmatprep.subr.bf16.mxu0 0
  %7479 = vmatpush1.bf16.msra.mxu0 %v7435
  %7480 = vmatprep.subr.bf16.mxu0 0
  %7481 = vmatpush1.bf16.msra.mxu0 %v7436
  %7482 = vmatprep.subr.bf16.mxu0 0
  %7483 = vmatpush1.bf16.msra.mxu0 %v7437
  %7484 = vmatprep.subr.bf16.mxu0 0
  %7485 = vmatpush1.bf16.msra.mxu0 %v7438
  %7486 = vmatprep.subr.bf16.mxu0 0
  %7487 = vmatpush1.bf16.msra.mxu0 %v7439
  %7488 = vmatprep.mubr.bf16.mxu0 %v7320
  %7489 = vmatmul.mubr.bf16.gmra.mrb[0].mxu0 %v7319
  %v7490 = vpop.f32.mrb[0].mxu0
  %v7491 = vadd.f32 %v7358, %v7490
  %v7492 = vpop.f32.mrb[0].mxu0
  %v7493 = vpop.f32.mrb[0].mxu0
  %v7494 = vpop.f32.mrb[0].mxu0
  %7495 = vdwg.mxu0
  %7496 = vmax.xlane.f32.xlu0 %v7491
  %v7497 = vpop.xlane.xlu0 %7496
  %v7498 = vsub.f32 %v7491, %v7497
  %v7499 = vmul.f32 %v7498, 1.442695
  %v7500 = vpow.pop %v7499
  %7501 = vadd.xlane.f32.xlu0 %v7500
  %v7502 = vpop.xlane.xlu0 %7501
  %v7503 = vrcp.pop %v7502
  %v7504 = vmul.f32 %v7500, %v7503
  %7505 = vst [vmem:[%s12] sm:$0xff] %v7504
  // Predicated region
  $region50: #{lstm_forward.1} parent=0 // pred_check
    _
  $region51: #{lstm_forward.1} parent=0 // pred_check_branch
    %7507 = sbr.rel (0) target = $region53
  $region52: #{lstm_forward.1} parent=0 // pred_region
    _
  $region53: #{lstm_forward.1} parent=0 // pred_fallthru
    _
  // Predicated region
  $region54: #{lstm_forward.1} parent=0 // pred_check
    _
  $region55: #{lstm_forward.1} parent=0 // pred_check_branch
    %7509 = sbr.rel (0) target = $region57
  $region56: #{lstm_forward.1} parent=0 // pred_region
    _
  $region57: #{lstm_forward.1} parent=0 // pred_fallthru
    _

</llo_original>
